<compile_context>
chip_gen: v5e
topology: v5e:2x2
jax: 0.10.0
libtpu: 0.0.40
codegen_flags: <defaults>
</compile_context>

<pallas_src>
import functools

import numpy as np
import jax
import jax.numpy as jnp
from jax import lax
from jax.experimental import pallas as pl
from jax.experimental.pallas import tpu as pltpu


def _round_up(x, m):
    return (x + m - 1) // m * m


def _largest_divisor(n, cap, mult=1):
    """Largest d <= cap with n % d == 0 and d % mult == 0 (fallback 1)."""
    cap = max(min(cap, n), mult)
    for d in range(cap, 0, -1):
        if n % d == 0 and d % mult == 0:
            return d
    return 1


@functools.lru_cache(maxsize=None)
def _vmem_limit_bytes():
    phys = 64 * 1024 * 1024                     # v7x floor; v5e/v6e have 128 MiB
    try:
        phys = int(pltpu.get_tpu_info().vmem_capacity_bytes)
    except Exception:
        pass
    return int(min(phys * 3 // 4, 96 * 1024 * 1024))


def _compiler_params(dims):
    return pltpu.CompilerParams(dimension_semantics=dims,
                                vmem_limit_bytes=_vmem_limit_bytes())


# ----------------------------- Pallas kernels --------------------------------

def _conv3x3_stats_kernel(xm_ref, xt_ref, xb_ref, w_ref, scale_ref, shift_ref,
                          y_ref, s_ref, xpad_ref, *, apply_act):
    # xm_ref   : (1, TR, W, Cp)  bf16 main rows of the tile
    # xt_ref   : (1, 1, W, Cp)   bf16 row above the tile (clamped at border)
    # xb_ref   : (1, 1, W, Cp)   bf16 row below the tile (clamped at border)
    # w_ref    : (3, 3, Cp, Cout_p) bf16 conv weights
    # scale/shift : (1, Cp) f32 folded BN affine of the *previous* layer
    # y_ref    : (TR*W, Cout_p) bf16 conv output (lane-dense)
    # s_ref    : (1, 2, Cout_p) f32 per-tile BN partials (sum, centered sumsq)
    # xpad_ref : (TR+2, W+2, Cp) bf16 VMEM scratch: zero-padded input window
    _, TR, W, Cp = xm_ref.shape
    cout_p = w_ref.shape[3]
    r = pl.program_id(1)
    nr = pl.num_programs(1)

    def prologue(v):
        # Fused BN-apply + ReLU of the previous layer (review item: no separate
        # HBM round trip for the inner activation).
        if apply_act:
            a = v.astype(jnp.float32) * scale_ref[...] + shift_ref[...]
            return jnp.maximum(a, 0.0).astype(jnp.bfloat16)
        return v

    mid = prologue(xm_ref[0])                      # (TR, W, Cp)
    top = prologue(xt_ref[0])                      # (1, W, Cp)
    bot = prologue(xb_ref[0])
    zero_row = jnp.zeros_like(top)
    top = jnp.where(r > 0, top, zero_row)          # image-border halo rows are
    bot = jnp.where(r < nr - 1, bot, zero_row)     # zero *post*-activation

    # Assemble the zero-padded (TR+2, W+2, Cp) window in VMEM (in-kernel im2col
    # source; nothing extra ever hits HBM).
    zcol = jnp.zeros((TR + 2, 1, Cp), jnp.bfloat16)
    xpad_ref[:, 0:1, :] = zcol
    xpad_ref[:, W + 1:W + 2, :] = zcol
    xpad_ref[0:1, 1:W + 1, :] = top
    xpad_ref[1:TR + 1, 1:W + 1, :] = mid
    xpad_ref[TR + 1:TR + 2, 1:W + 1, :] = bot

    # 3x3 conv = nine (TR*W, Cin) x (Cin, Cout) MXU contractions, f32 accum.
    acc = jnp.zeros((TR * W, cout_p), jnp.float32)
    for dy in range(3):
        for dx in range(3):
            patch = xpad_ref[dy:dy + TR, dx:dx + W, :].reshape(TR * W, Cp)
            acc = acc + jnp.dot(patch, w_ref[dy, dx],
                                preferred_element_type=jnp.float32)

    y_ref[...] = acc.astype(jnp.bfloat16)          # bf16 intermediate stream

    # Per-tile BN partials: sum and CENTERED sum of squares; combined with the
    # parallel-variance (Chan) formula in the wrapper (no E[x^2]-E[x]^2
    # cancellation).  Taken from the f32 accumulator, not the bf16 store.
    ssum = jnp.sum(acc, axis=0, keepdims=True)
    mu = ssum * (1.0 / (TR * W))
    d = acc - mu
    ssq = jnp.sum(d * d, axis=0, keepdims=True)
    s_ref[...] = jnp.concatenate([ssum, ssq], axis=0).reshape(1, 2, cout_p)


def _bn_act_kernel(y_ref, scale_ref, shift_ref, o_ref):
    o_ref[...] = jnp.maximum(
        y_ref[...].astype(jnp.float32) * scale_ref[...] + shift_ref[...], 0.0)


# ------------------------ conv3x3 (+fused BN/ReLU in) -------------------------

def _conv3x3_bn_stats(xin, w, gamma, beta, *, in_scale=None, in_shift=None,
                      eps=1e-5, tr_target=8):
    """Conv3x3(pad=1, no bias) with optional fused input BN+ReLU prologue and
    batch-stat collection.  Returns (y bf16 (M, Cout_p), scale, shift) where
    scale/shift fold gamma/beta/mean/var for the *next* stage to apply.

    The conv bias is dropped on purpose: training-mode BatchNorm subtracts the
    batch mean, which cancels any per-channel bias exactly.
    """
    N, H, W, Cp = xin.shape
    Cin, Cout = w.shape[2], w.shape[3]
    if W % 8 != 0:
        raise ValueError("W must be a multiple of 8 (sublane-aligned rows)")
    cout_p = _round_up(Cout, 128)
    TR = _largest_divisor(H, tr_target)            # row-tile; keeps >=2 tiles
    R = H // TR                                    # per image when H >= 16
    M = N * H * W

    wp = jnp.pad(w.astype(jnp.float32),
                 ((0, 0), (0, 0), (0, Cp - Cin), (0, cout_p - Cout))
                 ).astype(jnp.bfloat16)
    apply_act = in_scale is not None
    if not apply_act:
        in_scale = jnp.zeros((Cp,), jnp.float32)
        in_shift = jnp.zeros((Cp,), jnp.float32)
    scale_arr = in_scale.reshape(1, Cp).astype(jnp.float32)
    shift_arr = in_shift.reshape(1, Cp).astype(jnp.float32)

    kern = functools.partial(_conv3x3_stats_kernel, apply_act=apply_act)
    y, stats = pl.pallas_call(
        kern,
        out_shape=(jax.ShapeDtypeStruct((M, cout_p), jnp.bfloat16),
                   jax.ShapeDtypeStruct((N * R, 2, cout_p), jnp.float32)),
        grid=(N, R),
        in_specs=[
            # main rows + 1-row top/bottom halos (clamped at the border and
            # zeroed in-kernel): the NHWC input is read essentially once.
            pl.BlockSpec((1, TR, W, Cp), lambda n, r: (n, r, 0, 0)),
            pl.BlockSpec((1, 1, W, Cp),
                         lambda n, r: (n, jnp.maximum(r * TR - 1, 0), 0, 0)),
            pl.BlockSpec((1, 1, W, Cp),
                         lambda n, r: (n, jnp.minimum(r * TR + TR, H - 1), 0, 0)),
            pl.BlockSpec((3, 3, Cp, cout_p), lambda n, r: (0, 0, 0, 0)),
            pl.BlockSpec((1, Cp), lambda n, r: (0, 0)),
            pl.BlockSpec((1, Cp), lambda n, r: (0, 0)),
        ],
        out_specs=(
            pl.BlockSpec((TR * W, cout_p), lambda n, r: (n * R + r, 0)),
            pl.BlockSpec((1, 2, cout_p), lambda n, r: (n * R + r, 0, 0)),
        ),
        scratch_shapes=[pltpu.VMEM((TR + 2, W + 2, Cp), jnp.bfloat16)],
        compiler_params=_compiler_params(("parallel", "parallel")),
    )(xin, xin, xin, wp, scale_arr, shift_arr)

    # Global BN batch stats (tiny XLA reduction over tiles; parallel-variance
    # combine of the centered per-tile partials).
    n_per = TR * W
    ssum_t = stats[:, 0, :]
    ssqc_t = stats[:, 1, :]
    mean = ssum_t.sum(axis=0) / M
    mu_t = ssum_t / n_per
    var = (ssqc_t.sum(axis=0) + n_per * ((mu_t - mean) ** 2).sum(axis=0)) / M
    var = jnp.maximum(var, 0.0)

    g = jnp.pad(gamma.astype(jnp.float32), (0, cout_p - Cout))
    b = jnp.pad(beta.astype(jnp.float32), (0, cout_p - Cout))
    scale = g * lax.rsqrt(var + eps)
    shift = b - mean * scale
    return y, scale, shift


def _bn_act(y2d, scale, shift, row_target=1024):
    """Standalone lane-dense BN-apply + ReLU (only used for the final layer)."""
    M, C = y2d.shape
    TB = _largest_divisor(M, row_target, mult=8)
    return pl.pallas_call(
        _bn_act_kernel,
        out_shape=jax.ShapeDtypeStruct((M, C), jnp.float32),
        grid=(M // TB,),
        in_specs=[pl.BlockSpec((TB, C), lambda i: (i, 0)),
                  pl.BlockSpec((1, C), lambda i: (0, 0)),
                  pl.BlockSpec((1, C), lambda i: (0, 0))],
        out_specs=pl.BlockSpec((TB, C), lambda i: (i, 0)),
        compiler_params=_compiler_params(("parallel",)),
    )(y2d, scale.reshape(1, C), shift.reshape(1, C))


# ------------------------------ JAX glue -------------------------------------

def _interp_matrix(n_in, n_out):
    """Row-interpolation matrix for bilinear upsample with align_corners=True."""
    if n_in == 1:
        return jnp.ones((n_out, 1), jnp.float32)
    src = np.arange(n_out) * (n_in - 1) / (n_out - 1)
    lo = np.clip(np.floor(src).astype(np.int64), 0, n_in - 2)
    frac = (src - lo).astype(np.float32)
    m = np.zeros((n_out, n_in), np.float32)
    m[np.arange(n_out), lo] = 1.0 - frac
    m[np.arange(n_out), lo + 1] += frac
    return jnp.asarray(m)


def _upsample_pad_concat(x1_nchw, x2_nchw):
    """Bilinear 2x upsample (align_corners=True) of x1, F.pad to x2's spatial
    size, concat [x2, x1] on channels.  bf16 storage / f32 einsum accumulation;
    shared by the Pallas path and the reference so both see identical inputs."""
    x1 = jnp.transpose(x1_nchw, (0, 2, 3, 1)).astype(jnp.bfloat16)
    x2 = jnp.transpose(x2_nchw, (0, 2, 3, 1)).astype(jnp.bfloat16)
    _, H, W, _ = x1.shape
    mh = _interp_matrix(H, 2 * H).astype(jnp.bfloat16)
    mw = _interp_matrix(W, 2 * W).astype(jnp.bfloat16)
    xu = jnp.einsum('oh,nhwc->nowc', mh, x1,
                    preferred_element_type=jnp.float32).astype(jnp.bfloat16)
    xu = jnp.einsum('pw,nowc->nopc', mw, xu,
                    preferred_element_type=jnp.float32).astype(jnp.bfloat16)
    diff_y = x2.shape[1] - xu.shape[1]
    diff_x = x2.shape[2] - xu.shape[2]
    xu = jnp.pad(xu, ((0, 0), (diff_y // 2, diff_y - diff_y // 2),
                      (diff_x // 2, diff_x - diff_x // 2), (0, 0)))
    return jnp.concatenate([x2, xu], axis=-1)


def up_forward(params, x1_nchw, x2_nchw):
    """Equivalent of Up.forward(x1, x2) with bilinear=True.  NCHW in / NCHW out."""
    x = _upsample_pad_concat(x1_nchw, x2_nchw)          # (N, H, W, Cin) bf16
    N, H, W, _ = x.shape
    cout = params['w2'].shape[-1]

    # conv1 -> folded BN1 affine (applied lazily as conv2's prologue).
    y1, s1, t1 = _conv3x3_bn_stats(x, params['w1'], params['g1'], params['beta1'])
    c1p = y1.shape[-1]
    # conv2 with BN1+ReLU fused as its input prologue.
    y2, s2, t2 = _conv3x3_bn_stats(y1.reshape(N, H, W, c1p),
                                   params['w2'], params['g2'], params['beta2'],
                                   in_scale=s1, in_shift=t1)
    # final BN+ReLU (lane-dense elementwise pass, large row tiles).
    out = _bn_act(y2, s2, t2)
    out = out[:, :cout].reshape(N, H, W, cout)
    return jnp.transpose(out, (0, 3, 1, 2))


def init_params(key, in_channels, out_channels):
    """Deterministic init matching the PyTorch module shapes (weights in HWIO)."""
    mid = in_channels // 2
    k1, k2, k3, k4 = jax.random.split(key, 4)

    def conv_init(kw, kb, cin, cout):
        bound = 1.0 / np.sqrt(cin * 9)
        w = jax.random.uniform(kw, (3, 3, cin, cout), jnp.float32, -bound, bound)
        b = jax.random.uniform(kb, (cout,), jnp.float32, -bound, bound)
        return w, b

    w1, b1 = conv_init(k1, k2, in_channels, mid)
    w2, b2 = conv_init(k3, k4, mid, out_channels)
    return dict(
        w1=w1, b1=b1, g1=jnp.ones((mid,), jnp.float32),
        beta1=jnp.zeros((mid,), jnp.float32),
        w2=w2, b2=b2, g2=jnp.ones((out_channels,), jnp.float32),
        beta2=jnp.zeros((out_channels,), jnp.float32),
    )


# -------------------------- pure-JAX reference -------------------------------

def _ref_conv_bn_relu(x_bf16, w, b, gamma, beta, eps=1e-5):
    # Mirrors the kernel's bf16 MXU inputs / f32 accumulation.  Includes the
    # conv bias (the kernel omits it; training-mode BN cancels it exactly).
    y = lax.conv_general_dilated(
        x_bf16, w.astype(jnp.bfloat16), (1, 1), 'SAME',
        dimension_numbers=('NHWC', 'HWIO', 'NHWC'),
        preferred_element_type=jnp.float32) + b
    mean = y.mean(axis=(0, 1, 2), keepdims=True)
    var = ((y - mean) ** 2).mean(axis=(0, 1, 2), keepdims=True)
    y = (y - mean) * lax.rsqrt(var + eps) * gamma + beta
    return jnp.maximum(y, 0.0)


def up_forward_ref(params, x1_nchw, x2_nchw):
    x = _upsample_pad_concat(x1_nchw, x2_nchw)
    h = _ref_conv_bn_relu(x, params['w1'], params['b1'],
                          params['g1'], params['beta1'])
    h = _ref_conv_bn_relu(h.astype(jnp.bfloat16), params['w2'], params['b2'],
                          params['g2'], params['beta2'])
    return jnp.transpose(h, (0, 3, 1, 2))


# --------------------------------- main --------------------------------------

if __name__ == "__main__":
    key = jax.random.PRNGKey(0)
    kp, kx1, kx2 = jax.random.split(key, 3)

    in_channels, out_channels = 8, 4
    params = init_params(kp, in_channels, out_channels)

    # As in U-Net: x1 (deep, small spatial) and x2 (skip, 2x spatial) each carry
    # in_channels // 2 channels so the concat has `in_channels` channels.
    x1 = jax.random.normal(kx1, (2, in_channels // 2, 8, 8), jnp.float32)    # NCHW
    x2 = jax.random.normal(kx2, (2, in_channels // 2, 16, 16), jnp.float32)  # NCHW

    out = jax.jit(up_forward)(params, x1, x2)
    out = jax.block_until_ready(out)

    ref = up_forward_ref(params, x1, x2)
    # Tolerance accounts for bf16 MXU inputs and the bf16 storage of the
    # intermediate conv outputs (the reference normalizes its f32 conv output,
    # the kernel normalizes the bf16-rounded copy with exact f32 statistics).
    np.testing.assert_allclose(np.asarray(out), np.asarray(ref),
                               rtol=2e-2, atol=2e-2)

    print("KERNEL_OK")
</pallas_src>

<mosaic_0001>
module attributes {stable_mosaic.version = 11 : i64} {
  func.func @_conv3x3_stats_kernel(%arg0: i32, %arg1: i32, %arg2: memref<1x8x16x8xbf16, #tpu.memory_space<vmem>>, %arg3: memref<1x1x16x8xbf16, #tpu.memory_space<vmem>>, %arg4: memref<1x1x16x8xbf16, #tpu.memory_space<vmem>>, %arg5: memref<3x3x8x128xbf16, #tpu.memory_space<vmem>>, %arg6: memref<1x8xf32, #tpu.memory_space<vmem>>, %arg7: memref<1x8xf32, #tpu.memory_space<vmem>>, %arg8: memref<128x128xbf16, #tpu.memory_space<vmem>>, %arg9: memref<1x2x128xf32, #tpu.memory_space<vmem>>, %arg10: memref<10x18x8xbf16, #tpu.memory_space<vmem>>) attributes {dimension_semantics = [#tpu.dimension_semantics<parallel>, #tpu.dimension_semantics<parallel>], iteration_bounds = array<i64: 2, 2>, scalar_prefetch = 0 : i64, scratch_operands = 1 : i64, tpu.core_type = #tpu.core_type<tc>, window_params = [{transform_indices = @transform_0, window_bounds = array<i64: 1, 8, 16, 8>}, {transform_indices = @transform_1, window_bounds = array<i64: 1, 1, 16, 8>}, {transform_indices = @transform_2, window_bounds = array<i64: 1, 1, 16, 8>}, {pipeline_mode = #tpu.pipeline_mode<synchronous>, transform_indices = @transform_3, window_bounds = array<i64: 3, 3, 8, 128>}, {pipeline_mode = #tpu.pipeline_mode<synchronous>, transform_indices = @transform_4, window_bounds = array<i64: 1, 8>}, {pipeline_mode = #tpu.pipeline_mode<synchronous>, transform_indices = @transform_5, window_bounds = array<i64: 1, 8>}, {transform_indices = @transform_6, window_bounds = array<i64: 128, 128>}, {transform_indices = @transform_7, window_bounds = array<i64: 1, 2, 128>}]} {
    %c0 = arith.constant 0 : index
    %c0_0 = arith.constant 0 : index
    %c0_1 = arith.constant 0 : index
    %c0_2 = arith.constant 0 : index
    %0 = vector.load %arg2[%c0, %c0_0, %c0_1, %c0_2] : memref<1x8x16x8xbf16, #tpu.memory_space<vmem>>, vector<1x8x16x8xbf16>
    %1 = vector.shape_cast %0 : vector<1x8x16x8xbf16> to vector<8x16x8xbf16>
    %c0_3 = arith.constant 0 : index
    %c0_4 = arith.constant 0 : index
    %c0_5 = arith.constant 0 : index
    %c0_6 = arith.constant 0 : index
    %2 = vector.load %arg3[%c0_3, %c0_4, %c0_5, %c0_6] : memref<1x1x16x8xbf16, #tpu.memory_space<vmem>>, vector<1x1x16x8xbf16>
    %3 = vector.shape_cast %2 : vector<1x1x16x8xbf16> to vector<1x16x8xbf16>
    %c0_7 = arith.constant 0 : index
    %c0_8 = arith.constant 0 : index
    %c0_9 = arith.constant 0 : index
    %c0_10 = arith.constant 0 : index
    %4 = vector.load %arg4[%c0_7, %c0_8, %c0_9, %c0_10] : memref<1x1x16x8xbf16, #tpu.memory_space<vmem>>, vector<1x1x16x8xbf16>
    %5 = vector.shape_cast %4 : vector<1x1x16x8xbf16> to vector<1x16x8xbf16>
    %cst = arith.constant 0.000000e+00 : bf16
    %6 = vector.broadcast %cst : bf16 to vector<1x16x8xbf16>
    %c0_i32 = arith.constant 0 : i32
    %7 = arith.cmpi sgt, %arg1, %c0_i32 : i32
    %8 = arith.select %7, %3, %6 : vector<1x16x8xbf16>
    %c1_i32 = arith.constant 1 : i32
    %9 = arith.cmpi slt, %arg1, %c1_i32 : i32
    %10 = arith.select %9, %5, %6 : vector<1x16x8xbf16>
    %cst_11 = arith.constant 0.000000e+00 : bf16
    %11 = vector.broadcast %cst_11 : bf16 to vector<10x1x8xbf16>
    %c0_12 = arith.constant 0 : index
    %c0_13 = arith.constant 0 : index
    %c0_14 = arith.constant 0 : index
    %12 = vector.load %arg10[%c0_12, %c0_13, %c0_14] : memref<10x18x8xbf16, #tpu.memory_space<vmem>>, vector<10x1x8xbf16>
    tpu.vector_store %arg10[%c0_12, %c0_13, %c0_14], %11 {strides = array<i32>} : memref<10x18x8xbf16, #tpu.memory_space<vmem>>, vector<10x1x8xbf16>,
    %c0_15 = arith.constant 0 : index
    %c17 = arith.constant 17 : index
    %c0_16 = arith.constant 0 : index
    %13 = vector.load %arg10[%c0_15, %c17, %c0_16] : memref<10x18x8xbf16, #tpu.memory_space<vmem>>, vector<10x1x8xbf16>
    tpu.vector_store %arg10[%c0_15, %c17, %c0_16], %11 {strides = array<i32>} : memref<10x18x8xbf16, #tpu.memory_space<vmem>>, vector<10x1x8xbf16>,
    %c0_17 = arith.constant 0 : index
    %c1 = arith.constant 1 : index
    %c0_18 = arith.constant 0 : index
    %14 = vector.load %arg10[%c0_17, %c1, %c0_18] : memref<10x18x8xbf16, #tpu.memory_space<vmem>>, vector<1x16x8xbf16>
    tpu.vector_store %arg10[%c0_17, %c1, %c0_18], %8 {strides = array<i32>} : memref<10x18x8xbf16, #tpu.memory_space<vmem>>, vector<1x16x8xbf16>,
    %c1_19 = arith.constant 1 : index
    %c1_20 = arith.constant 1 : index
    %c0_21 = arith.constant 0 : index
    %15 = vector.load %arg10[%c1_19, %c1_20, %c0_21] : memref<10x18x8xbf16, #tpu.memory_space<vmem>>, vector<8x16x8xbf16>
    tpu.vector_store %arg10[%c1_19, %c1_20, %c0_21], %1 {strides = array<i32>} : memref<10x18x8xbf16, #tpu.memory_space<vmem>>, vector<8x16x8xbf16>,
    %c9 = arith.constant 9 : index
    %c1_22 = arith.constant 1 : index
    %c0_23 = arith.constant 0 : index
    %16 = vector.load %arg10[%c9, %c1_22, %c0_23] : memref<10x18x8xbf16, #tpu.memory_space<vmem>>, vector<1x16x8xbf16>
    tpu.vector_store %arg10[%c9, %c1_22, %c0_23], %10 {strides = array<i32>} : memref<10x18x8xbf16, #tpu.memory_space<vmem>>, vector<1x16x8xbf16>,
    %cst_24 = arith.constant 0.000000e+00 : f32
    %17 = vector.broadcast %cst_24 : f32 to vector<128x128xf32>
    %c0_25 = arith.constant 0 : index
    %c0_26 = arith.constant 0 : index
    %c0_27 = arith.constant 0 : index
    %18 = vector.load %arg10[%c0_25, %c0_26, %c0_27] : memref<10x18x8xbf16, #tpu.memory_space<vmem>>, vector<8x16x8xbf16>
    %19 = vector.shape_cast %18 : vector<8x16x8xbf16> to vector<128x8xbf16>
    %c0_28 = arith.constant 0 : index
    %c0_29 = arith.constant 0 : index
    %c0_30 = arith.constant 0 : index
    %c0_31 = arith.constant 0 : index
    %20 = vector.load %arg5[%c0_28, %c0_29, %c0_30, %c0_31] : memref<3x3x8x128xbf16, #tpu.memory_space<vmem>>, vector<1x1x8x128xbf16>
    %21 = vector.shape_cast %20 : vector<1x1x8x128xbf16> to vector<8x128xbf16>
    %cst_32 = arith.constant dense<0.000000e+00> : vector<128x128xf32>
    %22 = tpu.matmul %19, %21, %cst_32 {dimension_numbers = #tpu.dot_dimension_numbers<[1], [0], [0], [1], [0, 0, 1, 1], [], []>} : vector<128x8xbf16>, vector<8x128xbf16>, vector<128x128xf32> -> vector<128x128xf32>
    %23 = arith.addf %17, %22 : vector<128x128xf32>
    %c0_33 = arith.constant 0 : index
    %c1_34 = arith.constant 1 : index
    %c0_35 = arith.constant 0 : index
    %24 = vector.load %arg10[%c0_33, %c1_34, %c0_35] : memref<10x18x8xbf16, #tpu.memory_space<vmem>>, vector<8x16x8xbf16>
    %25 = vector.shape_cast %24 : vector<8x16x8xbf16> to vector<128x8xbf16>
    %c0_36 = arith.constant 0 : index
    %c1_37 = arith.constant 1 : index
    %c0_38 = arith.constant 0 : index
    %c0_39 = arith.constant 0 : index
    %26 = vector.load %arg5[%c0_36, %c1_37, %c0_38, %c0_39] : memref<3x3x8x128xbf16, #tpu.memory_space<vmem>>, vector<1x1x8x128xbf16>
    %27 = vector.shape_cast %26 : vector<1x1x8x128xbf16> to vector<8x128xbf16>
    %cst_40 = arith.constant dense<0.000000e+00> : vector<128x128xf32>
    %28 = tpu.matmul %25, %27, %cst_40 {dimension_numbers = #tpu.dot_dimension_numbers<[1], [0], [0], [1], [0, 0, 1, 1], [], []>} : vector<128x8xbf16>, vector<8x128xbf16>, vector<128x128xf32> -> vector<128x128xf32>
    %29 = arith.addf %23, %28 : vector<128x128xf32>
    %c0_41 = arith.constant 0 : index
    %c2 = arith.constant 2 : index
    %c0_42 = arith.constant 0 : index
    %30 = vector.load %arg10[%c0_41, %c2, %c0_42] : memref<10x18x8xbf16, #tpu.memory_space<vmem>>, vector<8x16x8xbf16>
    %31 = vector.shape_cast %30 : vector<8x16x8xbf16> to vector<128x8xbf16>
    %c0_43 = arith.constant 0 : index
    %c2_44 = arith.constant 2 : index
    %c0_45 = arith.constant 0 : index
    %c0_46 = arith.constant 0 : index
    %32 = vector.load %arg5[%c0_43, %c2_44, %c0_45, %c0_46] : memref<3x3x8x128xbf16, #tpu.memory_space<vmem>>, vector<1x1x8x128xbf16>
    %33 = vector.shape_cast %32 : vector<1x1x8x128xbf16> to vector<8x128xbf16>
    %cst_47 = arith.constant dense<0.000000e+00> : vector<128x128xf32>
    %34 = tpu.matmul %31, %33, %cst_47 {dimension_numbers = #tpu.dot_dimension_numbers<[1], [0], [0], [1], [0, 0, 1, 1], [], []>} : vector<128x8xbf16>, vector<8x128xbf16>, vector<128x128xf32> -> vector<128x128xf32>
    %35 = arith.addf %29, %34 : vector<128x128xf32>
    %c1_48 = arith.constant 1 : index
    %c0_49 = arith.constant 0 : index
    %c0_50 = arith.constant 0 : index
    %36 = vector.load %arg10[%c1_48, %c0_49, %c0_50] : memref<10x18x8xbf16, #tpu.memory_space<vmem>>, vector<8x16x8xbf16>
    %37 = vector.shape_cast %36 : vector<8x16x8xbf16> to vector<128x8xbf16>
    %c1_51 = arith.constant 1 : index
    %c0_52 = arith.constant 0 : index
    %c0_53 = arith.constant 0 : index
    %c0_54 = arith.constant 0 : index
    %38 = vector.load %arg5[%c1_51, %c0_52, %c0_53, %c0_54] : memref<3x3x8x128xbf16, #tpu.memory_space<vmem>>, vector<1x1x8x128xbf16>
    %39 = vector.shape_cast %38 : vector<1x1x8x128xbf16> to vector<8x128xbf16>
    %cst_55 = arith.constant dense<0.000000e+00> : vector<128x128xf32>
    %40 = tpu.matmul %37, %39, %cst_55 {dimension_numbers = #tpu.dot_dimension_numbers<[1], [0], [0], [1], [0, 0, 1, 1], [], []>} : vector<128x8xbf16>, vector<8x128xbf16>, vector<128x128xf32> -> vector<128x128xf32>
    %41 = arith.addf %35, %40 : vector<128x128xf32>
    %c1_56 = arith.constant 1 : index
    %c1_57 = arith.constant 1 : index
    %c0_58 = arith.constant 0 : index
    %42 = vector.load %arg10[%c1_56, %c1_57, %c0_58] : memref<10x18x8xbf16, #tpu.memory_space<vmem>>, vector<8x16x8xbf16>
    %43 = vector.shape_cast %42 : vector<8x16x8xbf16> to vector<128x8xbf16>
    %c1_59 = arith.constant 1 : index
    %c1_60 = arith.constant 1 : index
    %c0_61 = arith.constant 0 : index
    %c0_62 = arith.constant 0 : index
    %44 = vector.load %arg5[%c1_59, %c1_60, %c0_61, %c0_62] : memref<3x3x8x128xbf16, #tpu.memory_space<vmem>>, vector<1x1x8x128xbf16>
    %45 = vector.shape_cast %44 : vector<1x1x8x128xbf16> to vector<8x128xbf16>
    %cst_63 = arith.constant dense<0.000000e+00> : vector<128x128xf32>
    %46 = tpu.matmul %43, %45, %cst_63 {dimension_numbers = #tpu.dot_dimension_numbers<[1], [0], [0], [1], [0, 0, 1, 1], [], []>} : vector<128x8xbf16>, vector<8x128xbf16>, vector<128x128xf32> -> vector<128x128xf32>
    %47 = arith.addf %41, %46 : vector<128x128xf32>
    %c1_64 = arith.constant 1 : index
    %c2_65 = arith.constant 2 : index
    %c0_66 = arith.constant 0 : index
    %48 = vector.load %arg10[%c1_64, %c2_65, %c0_66] : memref<10x18x8xbf16, #tpu.memory_space<vmem>>, vector<8x16x8xbf16>
    %49 = vector.shape_cast %48 : vector<8x16x8xbf16> to vector<128x8xbf16>
    %c1_67 = arith.constant 1 : index
    %c2_68 = arith.constant 2 : index
    %c0_69 = arith.constant 0 : index
    %c0_70 = arith.constant 0 : index
    %50 = vector.load %arg5[%c1_67, %c2_68, %c0_69, %c0_70] : memref<3x3x8x128xbf16, #tpu.memory_space<vmem>>, vector<1x1x8x128xbf16>
    %51 = vector.shape_cast %50 : vector<1x1x8x128xbf16> to vector<8x128xbf16>
    %cst_71 = arith.constant dense<0.000000e+00> : vector<128x128xf32>
    %52 = tpu.matmul %49, %51, %cst_71 {dimension_numbers = #tpu.dot_dimension_numbers<[1], [0], [0], [1], [0, 0, 1, 1], [], []>} : vector<128x8xbf16>, vector<8x128xbf16>, vector<128x128xf32> -> vector<128x128xf32>
    %53 = arith.addf %47, %52 : vector<128x128xf32>
    %c2_72 = arith.constant 2 : index
    %c0_73 = arith.constant 0 : index
    %c0_74 = arith.constant 0 : index
    %54 = vector.load %arg10[%c2_72, %c0_73, %c0_74] : memref<10x18x8xbf16, #tpu.memory_space<vmem>>, vector<8x16x8xbf16>
    %55 = vector.shape_cast %54 : vector<8x16x8xbf16> to vector<128x8xbf16>
    %c2_75 = arith.constant 2 : index
    %c0_76 = arith.constant 0 : index
    %c0_77 = arith.constant 0 : index
    %c0_78 = arith.constant 0 : index
    %56 = vector.load %arg5[%c2_75, %c0_76, %c0_77, %c0_78] : memref<3x3x8x128xbf16, #tpu.memory_space<vmem>>, vector<1x1x8x128xbf16>
    %57 = vector.shape_cast %56 : vector<1x1x8x128xbf16> to vector<8x128xbf16>
    %cst_79 = arith.constant dense<0.000000e+00> : vector<128x128xf32>
    %58 = tpu.matmul %55, %57, %cst_79 {dimension_numbers = #tpu.dot_dimension_numbers<[1], [0], [0], [1], [0, 0, 1, 1], [], []>} : vector<128x8xbf16>, vector<8x128xbf16>, vector<128x128xf32> -> vector<128x128xf32>
    %59 = arith.addf %53, %58 : vector<128x128xf32>
    %c2_80 = arith.constant 2 : index
    %c1_81 = arith.constant 1 : index
    %c0_82 = arith.constant 0 : index
    %60 = vector.load %arg10[%c2_80, %c1_81, %c0_82] : memref<10x18x8xbf16, #tpu.memory_space<vmem>>, vector<8x16x8xbf16>
    %61 = vector.shape_cast %60 : vector<8x16x8xbf16> to vector<128x8xbf16>
    %c2_83 = arith.constant 2 : index
    %c1_84 = arith.constant 1 : index
    %c0_85 = arith.constant 0 : index
    %c0_86 = arith.constant 0 : index
    %62 = vector.load %arg5[%c2_83, %c1_84, %c0_85, %c0_86] : memref<3x3x8x128xbf16, #tpu.memory_space<vmem>>, vector<1x1x8x128xbf16>
    %63 = vector.shape_cast %62 : vector<1x1x8x128xbf16> to vector<8x128xbf16>
    %cst_87 = arith.constant dense<0.000000e+00> : vector<128x128xf32>
    %64 = tpu.matmul %61, %63, %cst_87 {dimension_numbers = #tpu.dot_dimension_numbers<[1], [0], [0], [1], [0, 0, 1, 1], [], []>} : vector<128x8xbf16>, vector<8x128xbf16>, vector<128x128xf32> -> vector<128x128xf32>
    %65 = arith.addf %59, %64 : vector<128x128xf32>
    %c2_88 = arith.constant 2 : index
    %c2_89 = arith.constant 2 : index
    %c0_90 = arith.constant 0 : index
    %66 = vector.load %arg10[%c2_88, %c2_89, %c0_90] : memref<10x18x8xbf16, #tpu.memory_space<vmem>>, vector<8x16x8xbf16>
    %67 = vector.shape_cast %66 : vector<8x16x8xbf16> to vector<128x8xbf16>
    %c2_91 = arith.constant 2 : index
    %c2_92 = arith.constant 2 : index
    %c0_93 = arith.constant 0 : index
    %c0_94 = arith.constant 0 : index
    %68 = vector.load %arg5[%c2_91, %c2_92, %c0_93, %c0_94] : memref<3x3x8x128xbf16, #tpu.memory_space<vmem>>, vector<1x1x8x128xbf16>
    %69 = vector.shape_cast %68 : vector<1x1x8x128xbf16> to vector<8x128xbf16>
    %cst_95 = arith.constant dense<0.000000e+00> : vector<128x128xf32>
    %70 = tpu.matmul %67, %69, %cst_95 {dimension_numbers = #tpu.dot_dimension_numbers<[1], [0], [0], [1], [0, 0, 1, 1], [], []>} : vector<128x8xbf16>, vector<8x128xbf16>, vector<128x128xf32> -> vector<128x128xf32>
    %71 = arith.addf %65, %70 : vector<128x128xf32>
    %72 = arith.truncf %71 : vector<128x128xf32> to vector<128x128xbf16>
    %c0_96 = arith.constant 0 : index
    %c0_97 = arith.constant 0 : index
    %73 = vector.load %arg8[%c0_96, %c0_97] : memref<128x128xbf16, #tpu.memory_space<vmem>>, vector<128x128xbf16>
    tpu.vector_store %arg8[%c0_96, %c0_97], %72 {strides = array<i32>} : memref<128x128xbf16, #tpu.memory_space<vmem>>, vector<128x128xbf16>,
    %cst_98 = arith.constant dense<0.000000e+00> : vector<128xf32>
    %74 = vector.multi_reduction <add>, %71, %cst_98 [0] : vector<128x128xf32> to vector<128xf32>
    %75 = vector.shape_cast %74 : vector<128xf32> to vector<1x128xf32>
    %cst_99 = arith.constant 7.812500e-03 : f32
    %76 = vector.broadcast %cst_99 : f32 to vector<1x128xf32>
    %77 = arith.mulf %75, %76 : vector<1x128xf32>
    %78 = vector.broadcast %77 : vector<1x128xf32> to vector<128x128xf32>
    %79 = arith.subf %71, %78 : vector<128x128xf32>
    %80 = arith.mulf %79, %79 : vector<128x128xf32>
    %cst_100 = arith.constant dense<0.000000e+00> : vector<128xf32>
    %81 = vector.multi_reduction <add>, %80, %cst_100 [0] : vector<128x128xf32> to vector<128xf32>
    %82 = vector.shape_cast %81 : vector<128xf32> to vector<1x128xf32>
    %83 = tpu.concatenate %75, %82 in 0 : vector<1x128xf32>, vector<1x128xf32> -> vector<2x128xf32>
    %84 = vector.shape_cast %83 : vector<2x128xf32> to vector<1x2x128xf32>
    %c0_101 = arith.constant 0 : index
    %c0_102 = arith.constant 0 : index
    %c0_103 = arith.constant 0 : index
    %85 = vector.load %arg9[%c0_101, %c0_102, %c0_103] : memref<1x2x128xf32, #tpu.memory_space<vmem>>, vector<1x2x128xf32>
    tpu.vector_store %arg9[%c0_101, %c0_102, %c0_103], %84 {strides = array<i32>} : memref<1x2x128xf32, #tpu.memory_space<vmem>>, vector<1x2x128xf32>,
    return
  }
  func.func @transform_0(%arg0: i32, %arg1: i32) -> (i32, i32, i32, i32) {
    %c0_i32 = arith.constant 0 : i32
    %c0_i32_0 = arith.constant 0 : i32
    %c0_i32_1 = arith.constant 0 : i32
    return %arg0, %arg1, %c0_i32, %c0_i32_0 : i32, i32, i32, i32
  }
  func.func @transform_1(%arg0: i32, %arg1: i32) -> (i32, i32, i32, i32) {
    %c8_i32 = arith.constant 8 : i32
    %0 = arith.muli %arg1, %c8_i32 : i32
    %c1_i32 = arith.constant 1 : i32
    %1 = arith.subi %0, %c1_i32 : i32
    %c0_i32 = arith.constant 0 : i32
    %2 = arith.maxsi %1, %c0_i32 : i32
    %c0_i32_0 = arith.constant 0 : i32
    %c0_i32_1 = arith.constant 0 : i32
    %c0_i32_2 = arith.constant 0 : i32
    return %arg0, %2, %c0_i32_0, %c0_i32_1 : i32, i32, i32, i32
  }
  func.func @transform_2(%arg0: i32, %arg1: i32) -> (i32, i32, i32, i32) {
    %c8_i32 = arith.constant 8 : i32
    %0 = arith.muli %arg1, %c8_i32 : i32
    %c8_i32_0 = arith.constant 8 : i32
    %1 = arith.addi %0, %c8_i32_0 : i32
    %c15_i32 = arith.constant 15 : i32
    %2 = arith.minsi %1, %c15_i32 : i32
    %c0_i32 = arith.constant 0 : i32
    %c0_i32_1 = arith.constant 0 : i32
    %c0_i32_2 = arith.constant 0 : i32
    return %arg0, %2, %c0_i32, %c0_i32_1 : i32, i32, i32, i32
  }
  func.func @transform_3(%arg0: i32, %arg1: i32) -> (i32, i32, i32, i32) {
    %c0_i32 = arith.constant 0 : i32
    %c0_i32_0 = arith.constant 0 : i32
    %c0_i32_1 = arith.constant 0 : i32
    %c0_i32_2 = arith.constant 0 : i32
    %c0_i32_3 = arith.constant 0 : i32
    return %c0_i32, %c0_i32_0, %c0_i32_1, %c0_i32_2 : i32, i32, i32, i32
  }
  func.func @transform_4(%arg0: i32, %arg1: i32) -> (i32, i32) {
    %c0_i32 = arith.constant 0 : i32
    %c0_i32_0 = arith.constant 0 : i32
    %c0_i32_1 = arith.constant 0 : i32
    return %c0_i32, %c0_i32_0 : i32, i32
  }
  func.func @transform_5(%arg0: i32, %arg1: i32) -> (i32, i32) {
    %c0_i32 = arith.constant 0 : i32
    %c0_i32_0 = arith.constant 0 : i32
    %c0_i32_1 = arith.constant 0 : i32
    return %c0_i32, %c0_i32_0 : i32, i32
  }
  func.func @transform_6(%arg0: i32, %arg1: i32) -> (i32, i32) {
    %c2_i32 = arith.constant 2 : i32
    %0 = arith.muli %arg0, %c2_i32 : i32
    %1 = arith.addi %0, %arg1 : i32
    %c0_i32 = arith.constant 0 : i32
    %c0_i32_0 = arith.constant 0 : i32
    return %1, %c0_i32 : i32, i32
  }
  func.func @transform_7(%arg0: i32, %arg1: i32) -> (i32, i32, i32) {
    %c2_i32 = arith.constant 2 : i32
    %0 = arith.muli %arg0, %c2_i32 : i32
    %1 = arith.addi %0, %arg1 : i32
    %c0_i32 = arith.constant 0 : i32
    %c0_i32_0 = arith.constant 0 : i32
    %c0_i32_1 = arith.constant 0 : i32
    return %1, %c0_i32, %c0_i32_0 : i32, i32, i32
  }
}

module attributes {stable_mosaic.version = 11 : i64} {
  func.func @_bn_act_kernel(%arg0: i32, %arg1: memref<512x128xbf16, #tpu.memory_space<vmem>>, %arg2: memref<1x128xf32, #tpu.memory_space<vmem>>, %arg3: memref<1x128xf32, #tpu.memory_space<vmem>>, %arg4: memref<512x128xf32, #tpu.memory_space<vmem>>) attributes {dimension_semantics = [#tpu.dimension_semantics<parallel>], iteration_bounds = array<i64: 1>, scalar_prefetch = 0 : i64, scratch_operands = 0 : i64, tpu.core_type = #tpu.core_type<tc>, window_params = [{transform_indices = @transform_0, window_bounds = array<i64: 512, 128>}, {pipeline_mode = #tpu.pipeline_mode<synchronous>, transform_indices = @transform_1, window_bounds = array<i64: 1, 128>}, {pipeline_mode = #tpu.pipeline_mode<synchronous>, transform_indices = @transform_2, window_bounds = array<i64: 1, 128>}, {transform_indices = @transform_3, window_bounds = array<i64: 512, 128>}]} {
    %c0 = arith.constant 0 : index
    %c0_0 = arith.constant 0 : index
    %0 = vector.load %arg1[%c0, %c0_0] : memref<512x128xbf16, #tpu.memory_space<vmem>>, vector<512x128xbf16>
    %1 = arith.extf %0 : vector<512x128xbf16> to vector<512x128xf32>
    %c0_1 = arith.constant 0 : index
    %c0_2 = arith.constant 0 : index
    %2 = vector.load %arg2[%c0_1, %c0_2] : memref<1x128xf32, #tpu.memory_space<vmem>>, vector<1x128xf32>
    %3 = vector.broadcast %2 : vector<1x128xf32> to vector<512x128xf32>
    %4 = arith.mulf %1, %3 : vector<512x128xf32>
    %c0_3 = arith.constant 0 : index
    %c0_4 = arith.constant 0 : index
    %5 = vector.load %arg3[%c0_3, %c0_4] : memref<1x128xf32, #tpu.memory_space<vmem>>, vector<1x128xf32>
    %6 = vector.broadcast %5 : vector<1x128xf32> to vector<512x128xf32>
    %7 = arith.addf %4, %6 : vector<512x128xf32>
    %cst = arith.constant 0.000000e+00 : f32
    %8 = vector.broadcast %cst : f32 to vector<512x128xf32>
    %9 = arith.maximumf %7, %8 : vector<512x128xf32>
    %c0_5 = arith.constant 0 : index
    %c0_6 = arith.constant 0 : index
    %10 = vector.load %arg4[%c0_5, %c0_6] : memref<512x128xf32, #tpu.memory_space<vmem>>, vector<512x128xf32>
    tpu.vector_store %arg4[%c0_5, %c0_6], %9 {strides = array<i32>} : memref<512x128xf32, #tpu.memory_space<vmem>>, vector<512x128xf32>,
    return
  }
  func.func @transform_0(%arg0: i32) -> (i32, i32) {
    %c0_i32 = arith.constant 0 : i32
    %c0_i32_0 = arith.constant 0 : i32
    return %arg0, %c0_i32 : i32, i32
  }
  func.func @transform_1(%arg0: i32) -> (i32, i32) {
    %c0_i32 = arith.constant 0 : i32
    %c0_i32_0 = arith.constant 0 : i32
    %c0_i32_1 = arith.constant 0 : i32
    return %c0_i32, %c0_i32_0 : i32, i32
  }
  func.func @transform_2(%arg0: i32) -> (i32, i32) {
    %c0_i32 = arith.constant 0 : i32
    %c0_i32_0 = arith.constant 0 : i32
    %c0_i32_1 = arith.constant 0 : i32
    return %c0_i32, %c0_i32_0 : i32, i32
  }
  func.func @transform_3(%arg0: i32) -> (i32, i32) {
    %c0_i32 = arith.constant 0 : i32
    %c0_i32_0 = arith.constant 0 : i32
    return %arg0, %c0_i32 : i32, i32
  }
}

module attributes {stable_mosaic.version = 11 : i64} {
  func.func @_conv3x3_stats_kernel(%arg0: i32, %arg1: i32, %arg2: memref<1x8x16x128xbf16, #tpu.memory_space<vmem>>, %arg3: memref<1x1x16x128xbf16, #tpu.memory_space<vmem>>, %arg4: memref<1x1x16x128xbf16, #tpu.memory_space<vmem>>, %arg5: memref<3x3x128x128xbf16, #tpu.memory_space<vmem>>, %arg6: memref<1x128xf32, #tpu.memory_space<vmem>>, %arg7: memref<1x128xf32, #tpu.memory_space<vmem>>, %arg8: memref<128x128xbf16, #tpu.memory_space<vmem>>, %arg9: memref<1x2x128xf32, #tpu.memory_space<vmem>>, %arg10: memref<10x18x128xbf16, #tpu.memory_space<vmem>>) attributes {dimension_semantics = [#tpu.dimension_semantics<parallel>, #tpu.dimension_semantics<parallel>], iteration_bounds = array<i64: 2, 2>, scalar_prefetch = 0 : i64, scratch_operands = 1 : i64, tpu.core_type = #tpu.core_type<tc>, window_params = [{transform_indices = @transform_0, window_bounds = array<i64: 1, 8, 16, 128>}, {transform_indices = @transform_1, window_bounds = array<i64: 1, 1, 16, 128>}, {transform_indices = @transform_2, window_bounds = array<i64: 1, 1, 16, 128>}, {pipeline_mode = #tpu.pipeline_mode<synchronous>, transform_indices = @transform_3, window_bounds = array<i64: 3, 3, 128, 128>}, {pipeline_mode = #tpu.pipeline_mode<synchronous>, transform_indices = @transform_4, window_bounds = array<i64: 1, 128>}, {pipeline_mode = #tpu.pipeline_mode<synchronous>, transform_indices = @transform_5, window_bounds = array<i64: 1, 128>}, {transform_indices = @transform_6, window_bounds = array<i64: 128, 128>}, {transform_indices = @transform_7, window_bounds = array<i64: 1, 2, 128>}]} {
    %c0 = arith.constant 0 : index
    %c0_0 = arith.constant 0 : index
    %c0_1 = arith.constant 0 : index
    %c0_2 = arith.constant 0 : index
    %0 = vector.load %arg2[%c0, %c0_0, %c0_1, %c0_2] : memref<1x8x16x128xbf16, #tpu.memory_space<vmem>>, vector<1x8x16x128xbf16>
    %1 = vector.shape_cast %0 : vector<1x8x16x128xbf16> to vector<8x16x128xbf16>
    %2 = arith.extf %1 : vector<8x16x128xbf16> to vector<8x16x128xf32>
    %c0_3 = arith.constant 0 : index
    %c0_4 = arith.constant 0 : index
    %3 = vector.load %arg6[%c0_3, %c0_4] : memref<1x128xf32, #tpu.memory_space<vmem>>, vector<1x128xf32>
    %4 = vector.shape_cast %3 : vector<1x128xf32> to vector<1x1x128xf32>
    %5 = vector.broadcast %4 : vector<1x1x128xf32> to vector<8x16x128xf32>
    %6 = arith.mulf %2, %5 : vector<8x16x128xf32>
    %c0_5 = arith.constant 0 : index
    %c0_6 = arith.constant 0 : index
    %7 = vector.load %arg7[%c0_5, %c0_6] : memref<1x128xf32, #tpu.memory_space<vmem>>, vector<1x128xf32>
    %8 = vector.shape_cast %7 : vector<1x128xf32> to vector<1x1x128xf32>
    %9 = vector.broadcast %8 : vector<1x1x128xf32> to vector<8x16x128xf32>
    %10 = arith.addf %6, %9 : vector<8x16x128xf32>
    %cst = arith.constant 0.000000e+00 : f32
    %11 = vector.broadcast %cst : f32 to vector<8x16x128xf32>
    %12 = arith.maximumf %10, %11 : vector<8x16x128xf32>
    %13 = arith.truncf %12 : vector<8x16x128xf32> to vector<8x16x128xbf16>
    %c0_7 = arith.constant 0 : index
    %c0_8 = arith.constant 0 : index
    %c0_9 = arith.constant 0 : index
    %c0_10 = arith.constant 0 : index
    %14 = vector.load %arg3[%c0_7, %c0_8, %c0_9, %c0_10] : memref<1x1x16x128xbf16, #tpu.memory_space<vmem>>, vector<1x1x16x128xbf16>
    %15 = vector.shape_cast %14 : vector<1x1x16x128xbf16> to vector<1x16x128xbf16>
    %16 = arith.extf %15 : vector<1x16x128xbf16> to vector<1x16x128xf32>
    %c0_11 = arith.constant 0 : index
    %c0_12 = arith.constant 0 : index
    %17 = vector.load %arg6[%c0_11, %c0_12] : memref<1x128xf32, #tpu.memory_space<vmem>>, vector<1x128xf32>
    %18 = vector.shape_cast %17 : vector<1x128xf32> to vector<1x1x128xf32>
    %19 = vector.broadcast %18 : vector<1x1x128xf32> to vector<1x16x128xf32>
    %20 = arith.mulf %16, %19 : vector<1x16x128xf32>
    %c0_13 = arith.constant 0 : index
    %c0_14 = arith.constant 0 : index
    %21 = vector.load %arg7[%c0_13, %c0_14] : memref<1x128xf32, #tpu.memory_space<vmem>>, vector<1x128xf32>
    %22 = vector.shape_cast %21 : vector<1x128xf32> to vector<1x1x128xf32>
    %23 = vector.broadcast %22 : vector<1x1x128xf32> to vector<1x16x128xf32>
    %24 = arith.addf %20, %23 : vector<1x16x128xf32>
    %cst_15 = arith.constant 0.000000e+00 : f32
    %25 = vector.broadcast %cst_15 : f32 to vector<1x16x128xf32>
    %26 = arith.maximumf %24, %25 : vector<1x16x128xf32>
    %27 = arith.truncf %26 : vector<1x16x128xf32> to vector<1x16x128xbf16>
    %c0_16 = arith.constant 0 : index
    %c0_17 = arith.constant 0 : index
    %c0_18 = arith.constant 0 : index
    %c0_19 = arith.constant 0 : index
    %28 = vector.load %arg4[%c0_16, %c0_17, %c0_18, %c0_19] : memref<1x1x16x128xbf16, #tpu.memory_space<vmem>>, vector<1x1x16x128xbf16>
    %29 = vector.shape_cast %28 : vector<1x1x16x128xbf16> to vector<1x16x128xbf16>
    %30 = arith.extf %29 : vector<1x16x128xbf16> to vector<1x16x128xf32>
    %c0_20 = arith.constant 0 : index
    %c0_21 = arith.constant 0 : index
    %31 = vector.load %arg6[%c0_20, %c0_21] : memref<1x128xf32, #tpu.memory_space<vmem>>, vector<1x128xf32>
    %32 = vector.shape_cast %31 : vector<1x128xf32> to vector<1x1x128xf32>
    %33 = vector.broadcast %32 : vector<1x1x128xf32> to vector<1x16x128xf32>
    %34 = arith.mulf %30, %33 : vector<1x16x128xf32>
    %c0_22 = arith.constant 0 : index
    %c0_23 = arith.constant 0 : index
    %35 = vector.load %arg7[%c0_22, %c0_23] : memref<1x128xf32, #tpu.memory_space<vmem>>, vector<1x128xf32>
    %36 = vector.shape_cast %35 : vector<1x128xf32> to vector<1x1x128xf32>
    %37 = vector.broadcast %36 : vector<1x1x128xf32> to vector<1x16x128xf32>
    %38 = arith.addf %34, %37 : vector<1x16x128xf32>
    %cst_24 = arith.constant 0.000000e+00 : f32
    %39 = vector.broadcast %cst_24 : f32 to vector<1x16x128xf32>
    %40 = arith.maximumf %38, %39 : vector<1x16x128xf32>
    %41 = arith.truncf %40 : vector<1x16x128xf32> to vector<1x16x128xbf16>
    %cst_25 = arith.constant 0.000000e+00 : bf16
    %42 = vector.broadcast %cst_25 : bf16 to vector<1x16x128xbf16>
    %c0_i32 = arith.constant 0 : i32
    %43 = arith.cmpi sgt, %arg1, %c0_i32 : i32
    %44 = arith.select %43, %27, %42 : vector<1x16x128xbf16>
    %c1_i32 = arith.constant 1 : i32
    %45 = arith.cmpi slt, %arg1, %c1_i32 : i32
    %46 = arith.select %45, %41, %42 : vector<1x16x128xbf16>
    %cst_26 = arith.constant 0.000000e+00 : bf16
    %47 = vector.broadcast %cst_26 : bf16 to vector<10x1x128xbf16>
    %c0_27 = arith.constant 0 : index
    %c0_28 = arith.constant 0 : index
    %c0_29 = arith.constant 0 : index
    %48 = vector.load %arg10[%c0_27, %c0_28, %c0_29] : memref<10x18x128xbf16, #tpu.memory_space<vmem>>, vector<10x1x128xbf16>
    tpu.vector_store %arg10[%c0_27, %c0_28, %c0_29], %47 {strides = array<i32>} : memref<10x18x128xbf16, #tpu.memory_space<vmem>>, vector<10x1x128xbf16>,
    %c0_30 = arith.constant 0 : index
    %c17 = arith.constant 17 : index
    %c0_31 = arith.constant 0 : index
    %49 = vector.load %arg10[%c0_30, %c17, %c0_31] : memref<10x18x128xbf16, #tpu.memory_space<vmem>>, vector<10x1x128xbf16>
    tpu.vector_store %arg10[%c0_30, %c17, %c0_31], %47 {strides = array<i32>} : memref<10x18x128xbf16, #tpu.memory_space<vmem>>, vector<10x1x128xbf16>,
    %c0_32 = arith.constant 0 : index
    %c1 = arith.constant 1 : index
    %c0_33 = arith.constant 0 : index
    %50 = vector.load %arg10[%c0_32, %c1, %c0_33] : memref<10x18x128xbf16, #tpu.memory_space<vmem>>, vector<1x16x128xbf16>
    tpu.vector_store %arg10[%c0_32, %c1, %c0_33], %44 {strides = array<i32>} : memref<10x18x128xbf16, #tpu.memory_space<vmem>>, vector<1x16x128xbf16>,
    %c1_34 = arith.constant 1 : index
    %c1_35 = arith.constant 1 : index
    %c0_36 = arith.constant 0 : index
    %51 = vector.load %arg10[%c1_34, %c1_35, %c0_36] : memref<10x18x128xbf16, #tpu.memory_space<vmem>>, vector<8x16x128xbf16>
    tpu.vector_store %arg10[%c1_34, %c1_35, %c0_36], %13 {strides = array<i32>} : memref<10x18x128xbf16, #tpu.memory_space<vmem>>, vector<8x16x128xbf16>,
    %c9 = arith.constant 9 : index
    %c1_37 = arith.constant 1 : index
    %c0_38 = arith.constant 0 : index
    %52 = vector.load %arg10[%c9, %c1_37, %c0_38] : memref<10x18x128xbf16, #tpu.memory_space<vmem>>, vector<1x16x128xbf16>
    tpu.vector_store %arg10[%c9, %c1_37, %c0_38], %46 {strides = array<i32>} : memref<10x18x128xbf16, #tpu.memory_space<vmem>>, vector<1x16x128xbf16>,
    %cst_39 = arith.constant 0.000000e+00 : f32
    %53 = vector.broadcast %cst_39 : f32 to vector<128x128xf32>
    %c0_40 = arith.constant 0 : index
    %c0_41 = arith.constant 0 : index
    %c0_42 = arith.constant 0 : index
    %54 = vector.load %arg10[%c0_40, %c0_41, %c0_42] : memref<10x18x128xbf16, #tpu.memory_space<vmem>>, vector<8x16x128xbf16>
    %55 = vector.shape_cast %54 : vector<8x16x128xbf16> to vector<128x128xbf16>
    %c0_43 = arith.constant 0 : index
    %c0_44 = arith.constant 0 : index
    %c0_45 = arith.constant 0 : index
    %c0_46 = arith.constant 0 : index
    %56 = vector.load %arg5[%c0_43, %c0_44, %c0_45, %c0_46] : memref<3x3x128x128xbf16, #tpu.memory_space<vmem>>, vector<1x1x128x128xbf16>
    %57 = vector.shape_cast %56 : vector<1x1x128x128xbf16> to vector<128x128xbf16>
    %cst_47 = arith.constant dense<0.000000e+00> : vector<128x128xf32>
    %58 = tpu.matmul %55, %57, %cst_47 {dimension_numbers = #tpu.dot_dimension_numbers<[1], [0], [0], [1], [0, 0, 1, 1], [], []>} : vector<128x128xbf16>, vector<128x128xbf16>, vector<128x128xf32> -> vector<128x128xf32>
    %59 = arith.addf %53, %58 : vector<128x128xf32>
    %c0_48 = arith.constant 0 : index
    %c1_49 = arith.constant 1 : index
    %c0_50 = arith.constant 0 : index
    %60 = vector.load %arg10[%c0_48, %c1_49, %c0_50] : memref<10x18x128xbf16, #tpu.memory_space<vmem>>, vector<8x16x128xbf16>
    %61 = vector.shape_cast %60 : vector<8x16x128xbf16> to vector<128x128xbf16>
    %c0_51 = arith.constant 0 : index
    %c1_52 = arith.constant 1 : index
    %c0_53 = arith.constant 0 : index
    %c0_54 = arith.constant 0 : index
    %62 = vector.load %arg5[%c0_51, %c1_52, %c0_53, %c0_54] : memref<3x3x128x128xbf16, #tpu.memory_space<vmem>>, vector<1x1x128x128xbf16>
    %63 = vector.shape_cast %62 : vector<1x1x128x128xbf16> to vector<128x128xbf16>
    %cst_55 = arith.constant dense<0.000000e+00> : vector<128x128xf32>
    %64 = tpu.matmul %61, %63, %cst_55 {dimension_numbers = #tpu.dot_dimension_numbers<[1], [0], [0], [1], [0, 0, 1, 1], [], []>} : vector<128x128xbf16>, vector<128x128xbf16>, vector<128x128xf32> -> vector<128x128xf32>
    %65 = arith.addf %59, %64 : vector<128x128xf32>
    %c0_56 = arith.constant 0 : index
    %c2 = arith.constant 2 : index
    %c0_57 = arith.constant 0 : index
    %66 = vector.load %arg10[%c0_56, %c2, %c0_57] : memref<10x18x128xbf16, #tpu.memory_space<vmem>>, vector<8x16x128xbf16>
    %67 = vector.shape_cast %66 : vector<8x16x128xbf16> to vector<128x128xbf16>
    %c0_58 = arith.constant 0 : index
    %c2_59 = arith.constant 2 : index
    %c0_60 = arith.constant 0 : index
    %c0_61 = arith.constant 0 : index
    %68 = vector.load %arg5[%c0_58, %c2_59, %c0_60, %c0_61] : memref<3x3x128x128xbf16, #tpu.memory_space<vmem>>, vector<1x1x128x128xbf16>
    %69 = vector.shape_cast %68 : vector<1x1x128x128xbf16> to vector<128x128xbf16>
    %cst_62 = arith.constant dense<0.000000e+00> : vector<128x128xf32>
    %70 = tpu.matmul %67, %69, %cst_62 {dimension_numbers = #tpu.dot_dimension_numbers<[1], [0], [0], [1], [0, 0, 1, 1], [], []>} : vector<128x128xbf16>, vector<128x128xbf16>, vector<128x128xf32> -> vector<128x128xf32>
    %71 = arith.addf %65, %70 : vector<128x128xf32>
    %c1_63 = arith.constant 1 : index
    %c0_64 = arith.constant 0 : index
    %c0_65 = arith.constant 0 : index
    %72 = vector.load %arg10[%c1_63, %c0_64, %c0_65] : memref<10x18x128xbf16, #tpu.memory_space<vmem>>, vector<8x16x128xbf16>
    %73 = vector.shape_cast %72 : vector<8x16x128xbf16> to vector<128x128xbf16>
    %c1_66 = arith.constant 1 : index
    %c0_67 = arith.constant 0 : index
    %c0_68 = arith.constant 0 : index
    %c0_69 = arith.constant 0 : index
    %74 = vector.load %arg5[%c1_66, %c0_67, %c0_68, %c0_69] : memref<3x3x128x128xbf16, #tpu.memory_space<vmem>>, vector<1x1x128x128xbf16>
    %75 = vector.shape_cast %74 : vector<1x1x128x128xbf16> to vector<128x128xbf16>
    %cst_70 = arith.constant dense<0.000000e+00> : vector<128x128xf32>
    %76 = tpu.matmul %73, %75, %cst_70 {dimension_numbers = #tpu.dot_dimension_numbers<[1], [0], [0], [1], [0, 0, 1, 1], [], []>} : vector<128x128xbf16>, vector<128x128xbf16>, vector<128x128xf32> -> vector<128x128xf32>
    %77 = arith.addf %71, %76 : vector<128x128xf32>
    %c1_71 = arith.constant 1 : index
    %c1_72 = arith.constant 1 : index
    %c0_73 = arith.constant 0 : index
    %78 = vector.load %arg10[%c1_71, %c1_72, %c0_73] : memref<10x18x128xbf16, #tpu.memory_space<vmem>>, vector<8x16x128xbf16>
    %79 = vector.shape_cast %78 : vector<8x16x128xbf16> to vector<128x128xbf16>
    %c1_74 = arith.constant 1 : index
    %c1_75 = arith.constant 1 : index
    %c0_76 = arith.constant 0 : index
    %c0_77 = arith.constant 0 : index
    %80 = vector.load %arg5[%c1_74, %c1_75, %c0_76, %c0_77] : memref<3x3x128x128xbf16, #tpu.memory_space<vmem>>, vector<1x1x128x128xbf16>
    %81 = vector.shape_cast %80 : vector<1x1x128x128xbf16> to vector<128x128xbf16>
    %cst_78 = arith.constant dense<0.000000e+00> : vector<128x128xf32>
    %82 = tpu.matmul %79, %81, %cst_78 {dimension_numbers = #tpu.dot_dimension_numbers<[1], [0], [0], [1], [0, 0, 1, 1], [], []>} : vector<128x128xbf16>, vector<128x128xbf16>, vector<128x128xf32> -> vector<128x128xf32>
    %83 = arith.addf %77, %82 : vector<128x128xf32>
    %c1_79 = arith.constant 1 : index
    %c2_80 = arith.constant 2 : index
    %c0_81 = arith.constant 0 : index
    %84 = vector.load %arg10[%c1_79, %c2_80, %c0_81] : memref<10x18x128xbf16, #tpu.memory_space<vmem>>, vector<8x16x128xbf16>
    %85 = vector.shape_cast %84 : vector<8x16x128xbf16> to vector<128x128xbf16>
    %c1_82 = arith.constant 1 : index
    %c2_83 = arith.constant 2 : index
    %c0_84 = arith.constant 0 : index
    %c0_85 = arith.constant 0 : index
    %86 = vector.load %arg5[%c1_82, %c2_83, %c0_84, %c0_85] : memref<3x3x128x128xbf16, #tpu.memory_space<vmem>>, vector<1x1x128x128xbf16>
    %87 = vector.shape_cast %86 : vector<1x1x128x128xbf16> to vector<128x128xbf16>
    %cst_86 = arith.constant dense<0.000000e+00> : vector<128x128xf32>
    %88 = tpu.matmul %85, %87, %cst_86 {dimension_numbers = #tpu.dot_dimension_numbers<[1], [0], [0], [1], [0, 0, 1, 1], [], []>} : vector<128x128xbf16>, vector<128x128xbf16>, vector<128x128xf32> -> vector<128x128xf32>
    %89 = arith.addf %83, %88 : vector<128x128xf32>
    %c2_87 = arith.constant 2 : index
    %c0_88 = arith.constant 0 : index
    %c0_89 = arith.constant 0 : index
    %90 = vector.load %arg10[%c2_87, %c0_88, %c0_89] : memref<10x18x128xbf16, #tpu.memory_space<vmem>>, vector<8x16x128xbf16>
    %91 = vector.shape_cast %90 : vector<8x16x128xbf16> to vector<128x128xbf16>
    %c2_90 = arith.constant 2 : index
    %c0_91 = arith.constant 0 : index
    %c0_92 = arith.constant 0 : index
    %c0_93 = arith.constant 0 : index
    %92 = vector.load %arg5[%c2_90, %c0_91, %c0_92, %c0_93] : memref<3x3x128x128xbf16, #tpu.memory_space<vmem>>, vector<1x1x128x128xbf16>
    %93 = vector.shape_cast %92 : vector<1x1x128x128xbf16> to vector<128x128xbf16>
    %cst_94 = arith.constant dense<0.000000e+00> : vector<128x128xf32>
    %94 = tpu.matmul %91, %93, %cst_94 {dimension_numbers = #tpu.dot_dimension_numbers<[1], [0], [0], [1], [0, 0, 1, 1], [], []>} : vector<128x128xbf16>, vector<128x128xbf16>, vector<128x128xf32> -> vector<128x128xf32>
    %95 = arith.addf %89, %94 : vector<128x128xf32>
    %c2_95 = arith.constant 2 : index
    %c1_96 = arith.constant 1 : index
    %c0_97 = arith.constant 0 : index
    %96 = vector.load %arg10[%c2_95, %c1_96, %c0_97] : memref<10x18x128xbf16, #tpu.memory_space<vmem>>, vector<8x16x128xbf16>
    %97 = vector.shape_cast %96 : vector<8x16x128xbf16> to vector<128x128xbf16>
    %c2_98 = arith.constant 2 : index
    %c1_99 = arith.constant 1 : index
    %c0_100 = arith.constant 0 : index
    %c0_101 = arith.constant 0 : index
    %98 = vector.load %arg5[%c2_98, %c1_99, %c0_100, %c0_101] : memref<3x3x128x128xbf16, #tpu.memory_space<vmem>>, vector<1x1x128x128xbf16>
    %99 = vector.shape_cast %98 : vector<1x1x128x128xbf16> to vector<128x128xbf16>
    %cst_102 = arith.constant dense<0.000000e+00> : vector<128x128xf32>
    %100 = tpu.matmul %97, %99, %cst_102 {dimension_numbers = #tpu.dot_dimension_numbers<[1], [0], [0], [1], [0, 0, 1, 1], [], []>} : vector<128x128xbf16>, vector<128x128xbf16>, vector<128x128xf32> -> vector<128x128xf32>
    %101 = arith.addf %95, %100 : vector<128x128xf32>
    %c2_103 = arith.constant 2 : index
    %c2_104 = arith.constant 2 : index
    %c0_105 = arith.constant 0 : index
    %102 = vector.load %arg10[%c2_103, %c2_104, %c0_105] : memref<10x18x128xbf16, #tpu.memory_space<vmem>>, vector<8x16x128xbf16>
    %103 = vector.shape_cast %102 : vector<8x16x128xbf16> to vector<128x128xbf16>
    %c2_106 = arith.constant 2 : index
    %c2_107 = arith.constant 2 : index
    %c0_108 = arith.constant 0 : index
    %c0_109 = arith.constant 0 : index
    %104 = vector.load %arg5[%c2_106, %c2_107, %c0_108, %c0_109] : memref<3x3x128x128xbf16, #tpu.memory_space<vmem>>, vector<1x1x128x128xbf16>
    %105 = vector.shape_cast %104 : vector<1x1x128x128xbf16> to vector<128x128xbf16>
    %cst_110 = arith.constant dense<0.000000e+00> : vector<128x128xf32>
    %106 = tpu.matmul %103, %105, %cst_110 {dimension_numbers = #tpu.dot_dimension_numbers<[1], [0], [0], [1], [0, 0, 1, 1], [], []>} : vector<128x128xbf16>, vector<128x128xbf16>, vector<128x128xf32> -> vector<128x128xf32>
    %107 = arith.addf %101, %106 : vector<128x128xf32>
    %108 = arith.truncf %107 : vector<128x128xf32> to vector<128x128xbf16>
    %c0_111 = arith.constant 0 : index
    %c0_112 = arith.constant 0 : index
    %109 = vector.load %arg8[%c0_111, %c0_112] : memref<128x128xbf16, #tpu.memory_space<vmem>>, vector<128x128xbf16>
    tpu.vector_store %arg8[%c0_111, %c0_112], %108 {strides = array<i32>} : memref<128x128xbf16, #tpu.memory_space<vmem>>, vector<128x128xbf16>,
    %cst_113 = arith.constant dense<0.000000e+00> : vector<128xf32>
    %110 = vector.multi_reduction <add>, %107, %cst_113 [0] : vector<128x128xf32> to vector<128xf32>
    %111 = vector.shape_cast %110 : vector<128xf32> to vector<1x128xf32>
    %cst_114 = arith.constant 7.812500e-03 : f32
    %112 = vector.broadcast %cst_114 : f32 to vector<1x128xf32>
    %113 = arith.mulf %111, %112 : vector<1x128xf32>
    %114 = vector.broadcast %113 : vector<1x128xf32> to vector<128x128xf32>
    %115 = arith.subf %107, %114 : vector<128x128xf32>
    %116 = arith.mulf %115, %115 : vector<128x128xf32>
    %cst_115 = arith.constant dense<0.000000e+00> : vector<128xf32>
    %117 = vector.multi_reduction <add>, %116, %cst_115 [0] : vector<128x128xf32> to vector<128xf32>
    %118 = vector.shape_cast %117 : vector<128xf32> to vector<1x128xf32>
    %119 = tpu.concatenate %111, %118 in 0 : vector<1x128xf32>, vector<1x128xf32> -> vector<2x128xf32>
    %120 = vector.shape_cast %119 : vector<2x128xf32> to vector<1x2x128xf32>
    %c0_116 = arith.constant 0 : index
    %c0_117 = arith.constant 0 : index
    %c0_118 = arith.constant 0 : index
    %121 = vector.load %arg9[%c0_116, %c0_117, %c0_118] : memref<1x2x128xf32, #tpu.memory_space<vmem>>, vector<1x2x128xf32>
    tpu.vector_store %arg9[%c0_116, %c0_117, %c0_118], %120 {strides = array<i32>} : memref<1x2x128xf32, #tpu.memory_space<vmem>>, vector<1x2x128xf32>,
    return
  }
  func.func @transform_0(%arg0: i32, %arg1: i32) -> (i32, i32, i32, i32) {
    %c0_i32 = arith.constant 0 : i32
    %c0_i32_0 = arith.constant 0 : i32
    %c0_i32_1 = arith.constant 0 : i32
    return %arg0, %arg1, %c0_i32, %c0_i32_0 : i32, i32, i32, i32
  }
  func.func @transform_1(%arg0: i32, %arg1: i32) -> (i32, i32, i32, i32) {
    %c8_i32 = arith.constant 8 : i32
    %0 = arith.muli %arg1, %c8_i32 : i32
    %c1_i32 = arith.constant 1 : i32
    %1 = arith.subi %0, %c1_i32 : i32
    %c0_i32 = arith.constant 0 : i32
    %2 = arith.maxsi %1, %c0_i32 : i32
    %c0_i32_0 = arith.constant 0 : i32
    %c0_i32_1 = arith.constant 0 : i32
    %c0_i32_2 = arith.constant 0 : i32
    return %arg0, %2, %c0_i32_0, %c0_i32_1 : i32, i32, i32, i32
  }
  func.func @transform_2(%arg0: i32, %arg1: i32) -> (i32, i32, i32, i32) {
    %c8_i32 = arith.constant 8 : i32
    %0 = arith.muli %arg1, %c8_i32 : i32
    %c8_i32_0 = arith.constant 8 : i32
    %1 = arith.addi %0, %c8_i32_0 : i32
    %c15_i32 = arith.constant 15 : i32
    %2 = arith.minsi %1, %c15_i32 : i32
    %c0_i32 = arith.constant 0 : i32
    %c0_i32_1 = arith.constant 0 : i32
    %c0_i32_2 = arith.constant 0 : i32
    return %arg0, %2, %c0_i32, %c0_i32_1 : i32, i32, i32, i32
  }
  func.func @transform_3(%arg0: i32, %arg1: i32) -> (i32, i32, i32, i32) {
    %c0_i32 = arith.constant 0 : i32
    %c0_i32_0 = arith.constant 0 : i32
    %c0_i32_1 = arith.constant 0 : i32
    %c0_i32_2 = arith.constant 0 : i32
    %c0_i32_3 = arith.constant 0 : i32
    return %c0_i32, %c0_i32_0, %c0_i32_1, %c0_i32_2 : i32, i32, i32, i32
  }
  func.func @transform_4(%arg0: i32, %arg1: i32) -> (i32, i32) {
    %c0_i32 = arith.constant 0 : i32
    %c0_i32_0 = arith.constant 0 : i32
    %c0_i32_1 = arith.constant 0 : i32
    return %c0_i32, %c0_i32_0 : i32, i32
  }
  func.func @transform_5(%arg0: i32, %arg1: i32) -> (i32, i32) {
    %c0_i32 = arith.constant 0 : i32
    %c0_i32_0 = arith.constant 0 : i32
    %c0_i32_1 = arith.constant 0 : i32
    return %c0_i32, %c0_i32_0 : i32, i32
  }
  func.func @transform_6(%arg0: i32, %arg1: i32) -> (i32, i32) {
    %c2_i32 = arith.constant 2 : i32
    %0 = arith.muli %arg0, %c2_i32 : i32
    %1 = arith.addi %0, %arg1 : i32
    %c0_i32 = arith.constant 0 : i32
    %c0_i32_0 = arith.constant 0 : i32
    return %1, %c0_i32 : i32, i32
  }
  func.func @transform_7(%arg0: i32, %arg1: i32) -> (i32, i32, i32) {
    %c2_i32 = arith.constant 2 : i32
    %0 = arith.muli %arg0, %c2_i32 : i32
    %1 = arith.addi %0, %arg1 : i32
    %c0_i32 = arith.constant 0 : i32
    %c0_i32_0 = arith.constant 0 : i32
    %c0_i32_1 = arith.constant 0 : i32
    return %1, %c0_i32, %c0_i32_0 : i32, i32, i32
  }
}

</mosaic_0001>

<llo_original>
// kernel: up_forward.5
$region0: #{up_forward.5}
  #allocation0 [shape = 'u32[]', space=smem, size = 0x4, offset = 0x4, fixed_abs, tag = 'smem constant byte address 0x4 - core index']
  #allocation1 [shape = 'u32[72,128]{1,0:T(1,128)}', space=vmem, size = 0x9000, scoped, tag = 'internal scratch']
  %s0 = inlined_call_operand.vmem [shape: bf16[512,128], index: 0, kind: input, shape index: {}]
  %s1 = inlined_call_operand.vmem [shape: f32[1,128], index: 1, kind: input, shape index: {}]
  %s2 = inlined_call_operand.vmem [shape: f32[1,128], index: 2, kind: input, shape index: {}]
  %s3 = inlined_call_operand.vmem [shape: f32[512,128], index: 3, kind: output, shape index: {}]
  %s4 = sld [smem:[#allocation0]]
  $region22: #{up_forward.5} parent=0
    _
  %s6 = ssub.s32 1, %s4
  %s7 = scalar_select 0, %s6, %s4
  // Predicated region
  $region2: #{up_forward.5} parent=0 // pred_check
    _
  $region3: #{up_forward.5} parent=0 // pred_check_branch
    %9 = sbr.rel (0) target = $region5
  $region4: #{up_forward.5} parent=0 // pred_region
    _
  $region5: #{up_forward.5} parent=0 // pred_fallthru
    _
  // Predicated region
  $region6: #{up_forward.5} parent=0 // pred_check
    _
  $region7: #{up_forward.5} parent=0 // pred_check_branch
    %11 = sbr.rel (0) target = $region9
  $region8: #{up_forward.5} parent=0 // pred_region
    _
  $region9: #{up_forward.5} parent=0 // pred_fallthru
    _
  // Predicated region
  $region10: #{up_forward.5} parent=0 // pred_check
    _
  $region11: #{up_forward.5} parent=0 // pred_check_branch
    %13 = sbr.rel (0) target = $region13
  $region12: #{up_forward.5} parent=0 // pred_region
    _
  $region13: #{up_forward.5} parent=0 // pred_fallthru
    _
  %v14 = vld [vmem:[%s0] sm:$0xf]
  %v15 = vld [vmem:[%s0 + $0x4] sm:$0xf]
  %v16 = vld [vmem:[%s0 + $0x8] sm:$0xf]
  %v17 = vld [vmem:[%s0 + $0xc] sm:$0xf]
  %v18 = vld [vmem:[%s0 + $0x10] sm:$0xf]
  %v19 = vld [vmem:[%s0 + $0x14] sm:$0xf]
  %v20 = vld [vmem:[%s0 + $0x18] sm:$0xf]
  %v21 = vld [vmem:[%s0 + $0x1c] sm:$0xf]
  %v22 = vld [vmem:[%s0 + $0x20] sm:$0xf]
  %v23 = vld [vmem:[%s0 + $0x24] sm:$0xf]
  %v24 = vld [vmem:[%s0 + $0x28] sm:$0xf]
  %v25 = vld [vmem:[%s0 + $0x2c] sm:$0xf]
  %v26 = vld [vmem:[%s0 + $0x30] sm:$0xf]
  %v27 = vld [vmem:[%s0 + $0x34] sm:$0xf]
  %v28 = vld [vmem:[%s0 + $0x38] sm:$0xf]
  %v29 = vld [vmem:[%s0 + $0x3c] sm:$0xf]
  %v30 = vld [vmem:[%s0 + $0x40] sm:$0xf]
  %v31 = vld [vmem:[%s0 + $0x44] sm:$0xf]
  %v32 = vld [vmem:[%s0 + $0x48] sm:$0xf]
  %v33 = vld [vmem:[%s0 + $0x4c] sm:$0xf]
  %v34 = vld [vmem:[%s0 + $0x50] sm:$0xf]
  %v35 = vld [vmem:[%s0 + $0x54] sm:$0xf]
  %v36 = vld [vmem:[%s0 + $0x58] sm:$0xf]
  %v37 = vld [vmem:[%s0 + $0x5c] sm:$0xf]
  %v38 = vld [vmem:[%s0 + $0x60] sm:$0xf]
  %v39 = vld [vmem:[%s0 + $0x64] sm:$0xf]
  %v40 = vld [vmem:[%s0 + $0x68] sm:$0xf]
  %v41 = vld [vmem:[%s0 + $0x6c] sm:$0xf]
  %v42 = vld [vmem:[%s0 + $0x70] sm:$0xf]
  %v43 = vld [vmem:[%s0 + $0x74] sm:$0xf]
  %v44 = vld [vmem:[%s0 + $0x78] sm:$0xf]
  %v45 = vld [vmem:[%s0 + $0x7c] sm:$0xf]
  %v46 = vld [vmem:[%s0 + $0x80] sm:$0xf]
  %v47 = vld [vmem:[%s0 + $0x84] sm:$0xf]
  %v48 = vld [vmem:[%s0 + $0x88] sm:$0xf]
  %v49 = vld [vmem:[%s0 + $0x8c] sm:$0xf]
  %v50 = vld [vmem:[%s0 + $0x90] sm:$0xf]
  %v51 = vld [vmem:[%s0 + $0x94] sm:$0xf]
  %v52 = vld [vmem:[%s0 + $0x98] sm:$0xf]
  %v53 = vld [vmem:[%s0 + $0x9c] sm:$0xf]
  %v54 = vld [vmem:[%s0 + $0xa0] sm:$0xf]
  %v55 = vld [vmem:[%s0 + $0xa4] sm:$0xf]
  %v56 = vld [vmem:[%s0 + $0xa8] sm:$0xf]
  %v57 = vld [vmem:[%s0 + $0xac] sm:$0xf]
  %v58 = vld [vmem:[%s0 + $0xb0] sm:$0xf]
  %v59 = vld [vmem:[%s0 + $0xb4] sm:$0xf]
  %v60 = vld [vmem:[%s0 + $0xb8] sm:$0xf]
  %v61 = vld [vmem:[%s0 + $0xbc] sm:$0xf]
  %v62 = vld [vmem:[%s0 + $0xc0] sm:$0xf]
  %v63 = vld [vmem:[%s0 + $0xc4] sm:$0xf]
  %v64 = vld [vmem:[%s0 + $0xc8] sm:$0xf]
  %v65 = vld [vmem:[%s0 + $0xcc] sm:$0xf]
  %v66 = vld [vmem:[%s0 + $0xd0] sm:$0xf]
  %v67 = vld [vmem:[%s0 + $0xd4] sm:$0xf]
  %v68 = vld [vmem:[%s0 + $0xd8] sm:$0xf]
  %v69 = vld [vmem:[%s0 + $0xdc] sm:$0xf]
  %v70 = vld [vmem:[%s0 + $0xe0] sm:$0xf]
  %v71 = vld [vmem:[%s0 + $0xe4] sm:$0xf]
  %v72 = vld [vmem:[%s0 + $0xe8] sm:$0xf]
  %v73 = vld [vmem:[%s0 + $0xec] sm:$0xf]
  %v74 = vld [vmem:[%s0 + $0xf0] sm:$0xf]
  %v75 = vld [vmem:[%s0 + $0xf4] sm:$0xf]
  %v76 = vld [vmem:[%s0 + $0xf8] sm:$0xf]
  %v77 = vld [vmem:[%s0 + $0xfc] sm:$0xf]
  %v78 = vunpack.c.l.bf16 %v14
  %v79 = vunpack.c.l.bf16 %v15
  %v80 = vunpack.c.l.bf16 %v16
  %v81 = vunpack.c.l.bf16 %v17
  %v82 = vunpack.c.l.bf16 %v18
  %v83 = vunpack.c.l.bf16 %v19
  %v84 = vunpack.c.l.bf16 %v20
  %v85 = vunpack.c.l.bf16 %v21
  %v86 = vunpack.c.l.bf16 %v22
  %v87 = vunpack.c.l.bf16 %v23
  %v88 = vunpack.c.l.bf16 %v24
  %v89 = vunpack.c.l.bf16 %v25
  %v90 = vunpack.c.l.bf16 %v26
  %v91 = vunpack.c.l.bf16 %v27
  %v92 = vunpack.c.l.bf16 %v28
  %v93 = vunpack.c.l.bf16 %v29
  %v94 = vunpack.c.l.bf16 %v30
  %v95 = vunpack.c.l.bf16 %v31
  %v96 = vunpack.c.l.bf16 %v32
  %v97 = vunpack.c.l.bf16 %v33
  %v98 = vunpack.c.l.bf16 %v34
  %v99 = vunpack.c.l.bf16 %v35
  %v100 = vunpack.c.l.bf16 %v36
  %v101 = vunpack.c.l.bf16 %v37
  %v102 = vunpack.c.l.bf16 %v38
  %v103 = vunpack.c.l.bf16 %v39
  %v104 = vunpack.c.l.bf16 %v40
  %v105 = vunpack.c.l.bf16 %v41
  %v106 = vunpack.c.l.bf16 %v42
  %v107 = vunpack.c.l.bf16 %v43
  %v108 = vunpack.c.l.bf16 %v44
  %v109 = vunpack.c.l.bf16 %v45
  %v110 = vunpack.c.l.bf16 %v46
  %v111 = vunpack.c.l.bf16 %v47
  %v112 = vunpack.c.l.bf16 %v48
  %v113 = vunpack.c.l.bf16 %v49
  %v114 = vunpack.c.l.bf16 %v50
  %v115 = vunpack.c.l.bf16 %v51
  %v116 = vunpack.c.l.bf16 %v52
  %v117 = vunpack.c.l.bf16 %v53
  %v118 = vunpack.c.l.bf16 %v54
  %v119 = vunpack.c.l.bf16 %v55
  %v120 = vunpack.c.l.bf16 %v56
  %v121 = vunpack.c.l.bf16 %v57
  %v122 = vunpack.c.l.bf16 %v58
  %v123 = vunpack.c.l.bf16 %v59
  %v124 = vunpack.c.l.bf16 %v60
  %v125 = vunpack.c.l.bf16 %v61
  %v126 = vunpack.c.l.bf16 %v62
  %v127 = vunpack.c.l.bf16 %v63
  %v128 = vunpack.c.l.bf16 %v64
  %v129 = vunpack.c.l.bf16 %v65
  %v130 = vunpack.c.l.bf16 %v66
  %v131 = vunpack.c.l.bf16 %v67
  %v132 = vunpack.c.l.bf16 %v68
  %v133 = vunpack.c.l.bf16 %v69
  %v134 = vunpack.c.l.bf16 %v70
  %v135 = vunpack.c.l.bf16 %v71
  %v136 = vunpack.c.l.bf16 %v72
  %v137 = vunpack.c.l.bf16 %v73
  %v138 = vunpack.c.l.bf16 %v74
  %v139 = vunpack.c.l.bf16 %v75
  %v140 = vunpack.c.l.bf16 %v76
  %v141 = vunpack.c.l.bf16 %v77
  %v142 = vld [vmem:[%s1] sm:$0x1]
  %v144 = vperm.slane %v142, 0
  %v146 = vmul.f32 %v78, %v144
  %v147 = vmul.f32 %v79, %v144
  %v148 = vmul.f32 %v80, %v144
  %v149 = vmul.f32 %v81, %v144
  %v150 = vmul.f32 %v82, %v144
  %v151 = vmul.f32 %v83, %v144
  %v152 = vmul.f32 %v84, %v144
  %v153 = vmul.f32 %v85, %v144
  %v154 = vmul.f32 %v86, %v144
  %v155 = vmul.f32 %v87, %v144
  %v156 = vmul.f32 %v88, %v144
  %v157 = vmul.f32 %v89, %v144
  %v158 = vmul.f32 %v90, %v144
  %v159 = vmul.f32 %v91, %v144
  %v160 = vmul.f32 %v92, %v144
  %v161 = vmul.f32 %v93, %v144
  %v162 = vmul.f32 %v94, %v144
  %v163 = vmul.f32 %v95, %v144
  %v164 = vmul.f32 %v96, %v144
  %v165 = vmul.f32 %v97, %v144
  %v166 = vmul.f32 %v98, %v144
  %v167 = vmul.f32 %v99, %v144
  %v168 = vmul.f32 %v100, %v144
  %v169 = vmul.f32 %v101, %v144
  %v170 = vmul.f32 %v102, %v144
  %v171 = vmul.f32 %v103, %v144
  %v172 = vmul.f32 %v104, %v144
  %v173 = vmul.f32 %v105, %v144
  %v174 = vmul.f32 %v106, %v144
  %v175 = vmul.f32 %v107, %v144
  %v176 = vmul.f32 %v108, %v144
  %v177 = vmul.f32 %v109, %v144
  %v178 = vmul.f32 %v110, %v144
  %v179 = vmul.f32 %v111, %v144
  %v180 = vmul.f32 %v112, %v144
  %v181 = vmul.f32 %v113, %v144
  %v182 = vmul.f32 %v114, %v144
  %v183 = vmul.f32 %v115, %v144
  %v184 = vmul.f32 %v116, %v144
  %v185 = vmul.f32 %v117, %v144
  %v186 = vmul.f32 %v118, %v144
  %v187 = vmul.f32 %v119, %v144
  %v188 = vmul.f32 %v120, %v144
  %v189 = vmul.f32 %v121, %v144
  %v190 = vmul.f32 %v122, %v144
  %v191 = vmul.f32 %v123, %v144
  %v192 = vmul.f32 %v124, %v144
  %v193 = vmul.f32 %v125, %v144
  %v194 = vmul.f32 %v126, %v144
  %v195 = vmul.f32 %v127, %v144
  %v196 = vmul.f32 %v128, %v144
  %v197 = vmul.f32 %v129, %v144
  %v198 = vmul.f32 %v130, %v144
  %v199 = vmul.f32 %v131, %v144
  %v200 = vmul.f32 %v132, %v144
  %v201 = vmul.f32 %v133, %v144
  %v202 = vmul.f32 %v134, %v144
  %v203 = vmul.f32 %v135, %v144
  %v204 = vmul.f32 %v136, %v144
  %v205 = vmul.f32 %v137, %v144
  %v206 = vmul.f32 %v138, %v144
  %v207 = vmul.f32 %v139, %v144
  %v208 = vmul.f32 %v140, %v144
  %v209 = vmul.f32 %v141, %v144
  %v210 = vld [vmem:[%s2] sm:$0x1]
  %v212 = vperm.slane %v210, 0
  %v214 = vadd.f32 %v146, %v212
  %v215 = vadd.f32 %v147, %v212
  %v216 = vadd.f32 %v148, %v212
  %v217 = vadd.f32 %v149, %v212
  %v218 = vadd.f32 %v150, %v212
  %v219 = vadd.f32 %v151, %v212
  %v220 = vadd.f32 %v152, %v212
  %v221 = vadd.f32 %v153, %v212
  %v222 = vadd.f32 %v154, %v212
  %v223 = vadd.f32 %v155, %v212
  %v224 = vadd.f32 %v156, %v212
  %v225 = vadd.f32 %v157, %v212
  %v226 = vadd.f32 %v158, %v212
  %v227 = vadd.f32 %v159, %v212
  %v228 = vadd.f32 %v160, %v212
  %v229 = vadd.f32 %v161, %v212
  %v230 = vadd.f32 %v162, %v212
  %v231 = vadd.f32 %v163, %v212
  %v232 = vadd.f32 %v164, %v212
  %v233 = vadd.f32 %v165, %v212
  %v234 = vadd.f32 %v166, %v212
  %v235 = vadd.f32 %v167, %v212
  %v236 = vadd.f32 %v168, %v212
  %v237 = vadd.f32 %v169, %v212
  %v238 = vadd.f32 %v170, %v212
  %v239 = vadd.f32 %v171, %v212
  %v240 = vadd.f32 %v172, %v212
  %v241 = vadd.f32 %v173, %v212
  %v242 = vadd.f32 %v174, %v212
  %v243 = vadd.f32 %v175, %v212
  %v244 = vadd.f32 %v176, %v212
  %v245 = vadd.f32 %v177, %v212
  %v246 = vadd.f32 %v178, %v212
  %v247 = vadd.f32 %v179, %v212
  %v248 = vadd.f32 %v180, %v212
  %v249 = vadd.f32 %v181, %v212
  %v250 = vadd.f32 %v182, %v212
  %v251 = vadd.f32 %v183, %v212
  %v252 = vadd.f32 %v184, %v212
  %v253 = vadd.f32 %v185, %v212
  %v254 = vadd.f32 %v186, %v212
  %v255 = vadd.f32 %v187, %v212
  %v256 = vadd.f32 %v188, %v212
  %v257 = vadd.f32 %v189, %v212
  %v258 = vadd.f32 %v190, %v212
  %v259 = vadd.f32 %v191, %v212
  %v260 = vadd.f32 %v192, %v212
  %v261 = vadd.f32 %v193, %v212
  %v262 = vadd.f32 %v194, %v212
  %v263 = vadd.f32 %v195, %v212
  %v264 = vadd.f32 %v196, %v212
  %v265 = vadd.f32 %v197, %v212
  %v266 = vadd.f32 %v198, %v212
  %v267 = vadd.f32 %v199, %v212
  %v268 = vadd.f32 %v200, %v212
  %v269 = vadd.f32 %v201, %v212
  %v270 = vadd.f32 %v202, %v212
  %v271 = vadd.f32 %v203, %v212
  %v272 = vadd.f32 %v204, %v212
  %v273 = vadd.f32 %v205, %v212
  %v274 = vadd.f32 %v206, %v212
  %v275 = vadd.f32 %v207, %v212
  %v276 = vadd.f32 %v208, %v212
  %v277 = vadd.f32 %v209, %v212
  %v278 = vmax.f32 %v214, 0.0
  %v279 = vmax.f32 %v215, 0.0
  %v280 = vmax.f32 %v216, 0.0
  %v281 = vmax.f32 %v217, 0.0
  %v282 = vmax.f32 %v218, 0.0
  %v283 = vmax.f32 %v219, 0.0
  %v284 = vmax.f32 %v220, 0.0
  %v285 = vmax.f32 %v221, 0.0
  %v286 = vmax.f32 %v222, 0.0
  %v287 = vmax.f32 %v223, 0.0
  %v288 = vmax.f32 %v224, 0.0
  %v289 = vmax.f32 %v225, 0.0
  %v290 = vmax.f32 %v226, 0.0
  %v291 = vmax.f32 %v227, 0.0
  %v292 = vmax.f32 %v228, 0.0
  %v293 = vmax.f32 %v229, 0.0
  %v294 = vmax.f32 %v230, 0.0
  %v295 = vmax.f32 %v231, 0.0
  %v296 = vmax.f32 %v232, 0.0
  %v297 = vmax.f32 %v233, 0.0
  %v298 = vmax.f32 %v234, 0.0
  %v299 = vmax.f32 %v235, 0.0
  %v300 = vmax.f32 %v236, 0.0
  %v301 = vmax.f32 %v237, 0.0
  %v302 = vmax.f32 %v238, 0.0
  %v303 = vmax.f32 %v239, 0.0
  %v304 = vmax.f32 %v240, 0.0
  %v305 = vmax.f32 %v241, 0.0
  %v306 = vmax.f32 %v242, 0.0
  %v307 = vmax.f32 %v243, 0.0
  %v308 = vmax.f32 %v244, 0.0
  %v309 = vmax.f32 %v245, 0.0
  %v310 = vmax.f32 %v246, 0.0
  %v311 = vmax.f32 %v247, 0.0
  %v312 = vmax.f32 %v248, 0.0
  %v313 = vmax.f32 %v249, 0.0
  %v314 = vmax.f32 %v250, 0.0
  %v315 = vmax.f32 %v251, 0.0
  %v316 = vmax.f32 %v252, 0.0
  %v317 = vmax.f32 %v253, 0.0
  %v318 = vmax.f32 %v254, 0.0
  %v319 = vmax.f32 %v255, 0.0
  %v320 = vmax.f32 %v256, 0.0
  %v321 = vmax.f32 %v257, 0.0
  %v322 = vmax.f32 %v258, 0.0
  %v323 = vmax.f32 %v259, 0.0
  %v324 = vmax.f32 %v260, 0.0
  %v325 = vmax.f32 %v261, 0.0
  %v326 = vmax.f32 %v262, 0.0
  %v327 = vmax.f32 %v263, 0.0
  %v328 = vmax.f32 %v264, 0.0
  %v329 = vmax.f32 %v265, 0.0
  %v330 = vmax.f32 %v266, 0.0
  %v331 = vmax.f32 %v267, 0.0
  %v332 = vmax.f32 %v268, 0.0
  %v333 = vmax.f32 %v269, 0.0
  %v334 = vmax.f32 %v270, 0.0
  %v335 = vmax.f32 %v271, 0.0
  %v336 = vmax.f32 %v272, 0.0
  %v337 = vmax.f32 %v273, 0.0
  %v338 = vmax.f32 %v274, 0.0
  %v339 = vmax.f32 %v275, 0.0
  %v340 = vmax.f32 %v276, 0.0
  %v341 = vmax.f32 %v277, 0.0
  %342 = vst [vmem:[%s3] sm:$0xff] %v278
  %343 = vst [vmem:[%s3 + $0x8] sm:$0xff] %v279
  %344 = vst [vmem:[%s3 + $0x10] sm:$0xff] %v280
  %345 = vst [vmem:[%s3 + $0x18] sm:$0xff] %v281
  %346 = vst [vmem:[%s3 + $0x20] sm:$0xff] %v282
  %347 = vst [vmem:[%s3 + $0x28] sm:$0xff] %v283
  %348 = vst [vmem:[%s3 + $0x30] sm:$0xff] %v284
  %349 = vst [vmem:[%s3 + $0x38] sm:$0xff] %v285
  %350 = vst [vmem:[%s3 + $0x40] sm:$0xff] %v286
  %351 = vst [vmem:[%s3 + $0x48] sm:$0xff] %v287
  %352 = vst [vmem:[%s3 + $0x50] sm:$0xff] %v288
  %353 = vst [vmem:[%s3 + $0x58] sm:$0xff] %v289
  %354 = vst [vmem:[%s3 + $0x60] sm:$0xff] %v290
  %355 = vst [vmem:[%s3 + $0x68] sm:$0xff] %v291
  %356 = vst [vmem:[%s3 + $0x70] sm:$0xff] %v292
  %357 = vst [vmem:[%s3 + $0x78] sm:$0xff] %v293
  %358 = vst [vmem:[%s3 + $0x80] sm:$0xff] %v294
  %359 = vst [vmem:[%s3 + $0x88] sm:$0xff] %v295
  %360 = vst [vmem:[%s3 + $0x90] sm:$0xff] %v296
  %361 = vst [vmem:[%s3 + $0x98] sm:$0xff] %v297
  %362 = vst [vmem:[%s3 + $0xa0] sm:$0xff] %v298
  %363 = vst [vmem:[%s3 + $0xa8] sm:$0xff] %v299
  %364 = vst [vmem:[%s3 + $0xb0] sm:$0xff] %v300
  %365 = vst [vmem:[%s3 + $0xb8] sm:$0xff] %v301
  %366 = vst [vmem:[%s3 + $0xc0] sm:$0xff] %v302
  %367 = vst [vmem:[%s3 + $0xc8] sm:$0xff] %v303
  %368 = vst [vmem:[%s3 + $0xd0] sm:$0xff] %v304
  %369 = vst [vmem:[%s3 + $0xd8] sm:$0xff] %v305
  %370 = vst [vmem:[%s3 + $0xe0] sm:$0xff] %v306
  %371 = vst [vmem:[%s3 + $0xe8] sm:$0xff] %v307
  %372 = vst [vmem:[%s3 + $0xf0] sm:$0xff] %v308
  %373 = vst [vmem:[%s3 + $0xf8] sm:$0xff] %v309
  %374 = vst [vmem:[%s3 + $0x100] sm:$0xff] %v310
  %375 = vst [vmem:[%s3 + $0x108] sm:$0xff] %v311
  %376 = vst [vmem:[%s3 + $0x110] sm:$0xff] %v312
  %377 = vst [vmem:[%s3 + $0x118] sm:$0xff] %v313
  %378 = vst [vmem:[%s3 + $0x120] sm:$0xff] %v314
  %379 = vst [vmem:[%s3 + $0x128] sm:$0xff] %v315
  %380 = vst [vmem:[%s3 + $0x130] sm:$0xff] %v316
  %381 = vst [vmem:[%s3 + $0x138] sm:$0xff] %v317
  %382 = vst [vmem:[%s3 + $0x140] sm:$0xff] %v318
  %383 = vst [vmem:[%s3 + $0x148] sm:$0xff] %v319
  %384 = vst [vmem:[%s3 + $0x150] sm:$0xff] %v320
  %385 = vst [vmem:[%s3 + $0x158] sm:$0xff] %v321
  %386 = vst [vmem:[%s3 + $0x160] sm:$0xff] %v322
  %387 = vst [vmem:[%s3 + $0x168] sm:$0xff] %v323
  %388 = vst [vmem:[%s3 + $0x170] sm:$0xff] %v324
  %389 = vst [vmem:[%s3 + $0x178] sm:$0xff] %v325
  %390 = vst [vmem:[%s3 + $0x180] sm:$0xff] %v326
  %391 = vst [vmem:[%s3 + $0x188] sm:$0xff] %v327
  %392 = vst [vmem:[%s3 + $0x190] sm:$0xff] %v328
  %393 = vst [vmem:[%s3 + $0x198] sm:$0xff] %v329
  %394 = vst [vmem:[%s3 + $0x1a0] sm:$0xff] %v330
  %395 = vst [vmem:[%s3 + $0x1a8] sm:$0xff] %v331
  %396 = vst [vmem:[%s3 + $0x1b0] sm:$0xff] %v332
  %397 = vst [vmem:[%s3 + $0x1b8] sm:$0xff] %v333
  %398 = vst [vmem:[%s3 + $0x1c0] sm:$0xff] %v334
  %399 = vst [vmem:[%s3 + $0x1c8] sm:$0xff] %v335
  %400 = vst [vmem:[%s3 + $0x1d0] sm:$0xff] %v336
  %401 = vst [vmem:[%s3 + $0x1d8] sm:$0xff] %v337
  %402 = vst [vmem:[%s3 + $0x1e0] sm:$0xff] %v338
  %403 = vst [vmem:[%s3 + $0x1e8] sm:$0xff] %v339
  %404 = vst [vmem:[%s3 + $0x1f0] sm:$0xff] %v340
  %405 = vst [vmem:[%s3 + $0x1f8] sm:$0xff] %v341
  // Predicated region
  $region14: #{up_forward.5} parent=0 // pred_check
    _
  $region15: #{up_forward.5} parent=0 // pred_check_branch
    %407 = sbr.rel (0) target = $region17
  $region16: #{up_forward.5} parent=0 // pred_region
    _
  $region17: #{up_forward.5} parent=0 // pred_fallthru
    _
  // Predicated region
  $region18: #{up_forward.5} parent=0 // pred_check
    _
  $region19: #{up_forward.5} parent=0 // pred_check_branch
    %409 = sbr.rel (0) target = $region21
  $region20: #{up_forward.5} parent=0 // pred_region
    _
  $region21: #{up_forward.5} parent=0 // pred_fallthru
    _

// kernel: up_forward.3
$region0: #{up_forward.3}
  #allocation0 [shape = 'u32[]', space=smem, size = 0x4, offset = 0x4, fixed_abs, tag = 'smem constant byte address 0x4 - core index']
  #allocation1 [shape = 'u32[72,128]{1,0:T(1,128)}', space=vmem, size = 0x9000, scoped, tag = 'internal scratch']
  #allocation2 [shape = 'bf16[10,18,8]{2,1,0:T(8,128)(2,1)}', space=vmem, size = 0xf000, scoped, tag = 'scratch operand']
  %s0 = inlined_call_operand.vmem [shape: bf16[2,16,16,8], index: 0, kind: input, shape index: {}, may-alias: {0,1,2}]
  %s1 = inlined_call_operand.vmem [shape: bf16[2,16,16,8], index: 1, kind: input, shape index: {}, may-alias: {0,1,2}]
  %s2 = inlined_call_operand.vmem [shape: bf16[2,16,16,8], index: 2, kind: input, shape index: {}, may-alias: {0,1,2}]
  %s3 = inlined_call_operand.vmem [shape: bf16[3,3,8,128], index: 3, kind: input, shape index: {}]
  %s4 = inlined_call_operand.vmem [shape: f32[1,8], index: 4, kind: input, shape index: {}, may-alias: {4,5}]
  %s5 = inlined_call_operand.vmem [shape: f32[1,8], index: 5, kind: input, shape index: {}, may-alias: {4,5}]
  %s6 = inlined_call_operand.vmem [shape: bf16[512,128], index: 6, kind: output, shape index: {0}]
  %s7 = inlined_call_operand.vmem [shape: f32[4,2,128], index: 7, kind: output, shape index: {1}]
  %8 = xla_tuple %s6, %s7
  %s9 = sld [smem:[#allocation0]]
  $region65: #{up_forward.3} parent=0
    _
  %s11 = ssub.s32 1, %s9
  %s12 = scalar_select 0, %s11, %s9
  loop: start=0, step=1, limit=6
  $region2: #{up_forward.3} parent=0 // loop_pre_header
    _
  $region3: #{up_forward.3} parent=0 // loop_header
    %s14 = sphi 0, %s18
    %p15 = scmp.ge.s32.totalorder %s14, 6
    %s21 = sphi 0, %s33
    %s22 = sphi 0, %s29
    %s23 = sphi 0, %s21
    %s24 = sphi 0, %s22
    %s25 = sphi 0, %s23
    %s26 = sphi 0, %s24
    %s38 = sphi 0, %s40
    %s41 = sphi 0, %s38
    %s42 = sphi 0, %s41
    %s58 = sphi 0, %s42
    %s74 = sphi 0, %s76
    %s77 = sphi 0, %s74
    %s78 = sphi 0, %s77
    %s94 = sphi 0, %s78
    %s110 = sphi 0, %s112
    %s113 = sphi 0, %s110
    %s114 = sphi 0, %s113
    %s130 = sphi 0, %s114
    %s134 = sphi 0, %s134
    %s136 = sphi 0, %s134
    %s137 = sphi 0, %s136
    %s151 = sphi 0, %s137
    %s155 = sphi 0, %s155
    %s157 = sphi 0, %s155
    %s158 = sphi 0, %s157
    %s172 = sphi 0, %s158
    %s176 = sphi 0, %s176
    %s178 = sphi 0, %s176
    %s179 = sphi 0, %s178
    %s193 = sphi 0, %s179
    %s203 = sphi 0, %s205
    %s206 = sphi 0, %s203
    %s207 = sphi 0, %s206
    %s223 = sphi 0, %s207
    %s233 = sphi 0, %s235
    %s236 = sphi 0, %s233
    %s237 = sphi 0, %s236
    %s253 = sphi 0, %s237
  $region4: #{up_forward.3} parent=0 // loop_header_branch
    %17 = sbr.rel (%p15) target = $region8
  $region5: #{up_forward.3} parent=0 // loop_body
    %s19 = ssub.s32 %s14, 1
    %s20 = ssub.s32 %s14, 2
    %s27 = sadd.s32 1, %s22
    %p28 = scmp.ge.s32.totalorder %s27, 2
    %s29 = scalar_select %p28, 0, %s27
    %s30 = sadd.s32 1, %s21
    %s31 = scalar_select %p28, %s30, %s21
    %p32 = scmp.ge.s32.totalorder %s31, 2
    %s33 = scalar_select %p32, 0, %s31
    %s34 = ssub.s32 %s21, %s33
    %s35 = ssub.s32 %s22, %s29
    %s36 = sor.u32 %s34, %s35
    %p37 = scmp.eq.s32.totalorder %s36, 0
    %s39 = sadd.s32 %s38, 1
    %s40 = scalar_select %p37, %s38, %s39
    %p43 = pneg %p37
    %p44 = scmp.eq.s32.totalorder %s14, 3
    %p45 = por %p43, %p44
    %p46 = scmp.ne.s32.totalorder %s38, %s41
    %p47 = scmp.eq.s32.totalorder %s14, 0
    %p48 = por %p46, %p47
    %p49 = scmp.ne.s32.totalorder %s38, %s41
    %p50 = scmp.eq.s32.totalorder %s19, 3
    %p51 = por %p49, %p50
    %p52 = scmp.ne.s32.totalorder %s41, %s42
    %p53 = scmp.eq.s32.totalorder %s19, 0
    %p54 = por %p52, %p53
    %p55 = scmp.ne.s32.totalorder %s41, %s42
    %p56 = scmp.eq.s32.totalorder %s20, 3
    %p57 = por %p55, %p56
    %p59 = scmp.ne.s32.totalorder %s42, %s58
    %p60 = scmp.eq.s32.totalorder %s20, 0
    %p61 = por %p59, %p60
    %s62 = smul.u32 %s22, 8
    %s63 = ssub.s32 %s62, 1
    %p64 = scmp.gt.s32.totalorder %s63, 0
    %s65 = scalar_select %p64, %s63, 0
    %s66 = smul.u32 %s29, 8
    %s67 = ssub.s32 %s66, 1
    %p68 = scmp.gt.s32.totalorder %s67, 0
    %s69 = scalar_select %p68, %s67, 0
    %s70 = ssub.s32 %s21, %s33
    %s71 = ssub.s32 %s65, %s69
    %s72 = sor.u32 %s70, %s71
    %p73 = scmp.eq.s32.totalorder %s72, 0
    %s75 = sadd.s32 %s74, 1
    %s76 = scalar_select %p73, %s74, %s75
    %p79 = pneg %p73
    %p80 = scmp.eq.s32.totalorder %s14, 3
    %p81 = por %p79, %p80
    %p82 = scmp.ne.s32.totalorder %s74, %s77
    %p83 = scmp.eq.s32.totalorder %s14, 0
    %p84 = por %p82, %p83
    %p85 = scmp.ne.s32.totalorder %s74, %s77
    %p86 = scmp.eq.s32.totalorder %s19, 3
    %p87 = por %p85, %p86
    %p88 = scmp.ne.s32.totalorder %s77, %s78
    %p89 = scmp.eq.s32.totalorder %s19, 0
    %p90 = por %p88, %p89
    %p91 = scmp.ne.s32.totalorder %s77, %s78
    %p92 = scmp.eq.s32.totalorder %s20, 3
    %p93 = por %p91, %p92
    %p95 = scmp.ne.s32.totalorder %s78, %s94
    %p96 = scmp.eq.s32.totalorder %s20, 0
    %p97 = por %p95, %p96
    %s98 = smul.u32 %s22, 8
    %s99 = sadd.s32 %s98, 8
    %p100 = scmp.lt.s32.totalorder %s99, 15
    %s101 = scalar_select %p100, %s99, 15
    %s102 = smul.u32 %s29, 8
    %s103 = sadd.s32 %s102, 8
    %p104 = scmp.lt.s32.totalorder %s103, 15
    %s105 = scalar_select %p104, %s103, 15
    %s106 = ssub.s32 %s21, %s33
    %s107 = ssub.s32 %s101, %s105
    %s108 = sor.u32 %s106, %s107
    %p109 = scmp.eq.s32.totalorder %s108, 0
    %s111 = sadd.s32 %s110, 1
    %s112 = scalar_select %p109, %s110, %s111
    %p115 = pneg %p109
    %p116 = scmp.eq.s32.totalorder %s14, 3
    %p117 = por %p115, %p116
    %p118 = scmp.ne.s32.totalorder %s110, %s113
    %p119 = scmp.eq.s32.totalorder %s14, 0
    %p120 = por %p118, %p119
    %p121 = scmp.ne.s32.totalorder %s110, %s113
    %p122 = scmp.eq.s32.totalorder %s19, 3
    %p123 = por %p121, %p122
    %p124 = scmp.ne.s32.totalorder %s113, %s114
    %p125 = scmp.eq.s32.totalorder %s19, 0
    %p126 = por %p124, %p125
    %p127 = scmp.ne.s32.totalorder %s113, %s114
    %p128 = scmp.eq.s32.totalorder %s20, 3
    %p129 = por %p127, %p128
    %p131 = scmp.ne.s32.totalorder %s114, %s130
    %p132 = scmp.eq.s32.totalorder %s20, 0
    %p133 = por %p131, %p132
    %s135 = sadd.s32 %s134, 1
    %p138 = scmp.eq.s32.totalorder %s14, 3
    %p139 = scmp.ne.s32.totalorder %s134, %s136
    %p140 = scmp.eq.s32.totalorder %s14, 0
    %p141 = por %p139, %p140
    %p142 = scmp.ne.s32.totalorder %s134, %s136
    %p143 = scmp.eq.s32.totalorder %s19, 3
    %p144 = por %p142, %p143
    %p145 = scmp.ne.s32.totalorder %s136, %s137
    %p146 = scmp.eq.s32.totalorder %s19, 0
    %p147 = por %p145, %p146
    %p148 = scmp.ne.s32.totalorder %s136, %s137
    %p149 = scmp.eq.s32.totalorder %s20, 3
    %p150 = por %p148, %p149
    %p152 = scmp.ne.s32.totalorder %s137, %s151
    %p153 = scmp.eq.s32.totalorder %s20, 0
    %p154 = por %p152, %p153
    %s156 = sadd.s32 %s155, 1
    %p159 = scmp.eq.s32.totalorder %s14, 3
    %p160 = scmp.ne.s32.totalorder %s155, %s157
    %p161 = scmp.eq.s32.totalorder %s14, 0
    %p162 = por %p160, %p161
    %p163 = scmp.ne.s32.totalorder %s155, %s157
    %p164 = scmp.eq.s32.totalorder %s19, 3
    %p165 = por %p163, %p164
    %p166 = scmp.ne.s32.totalorder %s157, %s158
    %p167 = scmp.eq.s32.totalorder %s19, 0
    %p168 = por %p166, %p167
    %p169 = scmp.ne.s32.totalorder %s157, %s158
    %p170 = scmp.eq.s32.totalorder %s20, 3
    %p171 = por %p169, %p170
    %p173 = scmp.ne.s32.totalorder %s158, %s172
    %p174 = scmp.eq.s32.totalorder %s20, 0
    %p175 = por %p173, %p174
    %s177 = sadd.s32 %s176, 1
    %p180 = scmp.eq.s32.totalorder %s14, 3
    %p181 = scmp.ne.s32.totalorder %s176, %s178
    %p182 = scmp.eq.s32.totalorder %s14, 0
    %p183 = por %p181, %p182
    %p184 = scmp.ne.s32.totalorder %s176, %s178
    %p185 = scmp.eq.s32.totalorder %s19, 3
    %p186 = por %p184, %p185
    %p187 = scmp.ne.s32.totalorder %s178, %s179
    %p188 = scmp.eq.s32.totalorder %s19, 0
    %p189 = por %p187, %p188
    %p190 = scmp.ne.s32.totalorder %s178, %s179
    %p191 = scmp.eq.s32.totalorder %s20, 3
    %p192 = por %p190, %p191
    %p194 = scmp.ne.s32.totalorder %s179, %s193
    %p195 = scmp.eq.s32.totalorder %s20, 0
    %p196 = por %p194, %p195
    %s197 = smul.u32 %s21, 2
    %s198 = sadd.s32 %s197, %s22
    %s199 = smul.u32 %s33, 2
    %s200 = sadd.s32 %s199, %s29
    %s201 = ssub.s32 %s198, %s200
    %p202 = scmp.eq.s32.totalorder %s201, 0
    %s204 = sadd.s32 %s203, 1
    %s205 = scalar_select %p202, %s203, %s204
    %p208 = pneg %p202
    %p209 = scmp.eq.s32.totalorder %s14, 3
    %p210 = por %p208, %p209
    %p211 = scmp.ne.s32.totalorder %s203, %s206
    %p212 = scmp.eq.s32.totalorder %s14, 0
    %p213 = por %p211, %p212
    %p214 = scmp.ne.s32.totalorder %s203, %s206
    %p215 = scmp.eq.s32.totalorder %s19, 3
    %p216 = por %p214, %p215
    %p217 = scmp.ne.s32.totalorder %s206, %s207
    %p218 = scmp.eq.s32.totalorder %s19, 0
    %p219 = por %p217, %p218
    %p220 = scmp.ne.s32.totalorder %s206, %s207
    %p221 = scmp.eq.s32.totalorder %s20, 3
    %p222 = por %p220, %p221
    %p224 = scmp.ne.s32.totalorder %s207, %s223
    %p225 = scmp.eq.s32.totalorder %s20, 0
    %p226 = por %p224, %p225
    %s227 = smul.u32 %s21, 2
    %s228 = sadd.s32 %s227, %s22
    %s229 = smul.u32 %s33, 2
    %s230 = sadd.s32 %s229, %s29
    %s231 = ssub.s32 %s228, %s230
    %p232 = scmp.eq.s32.totalorder %s231, 0
    %s234 = sadd.s32 %s233, 1
    %s235 = scalar_select %p232, %s233, %s234
    %p238 = pneg %p232
    %p239 = scmp.eq.s32.totalorder %s14, 3
    %p240 = por %p238, %p239
    %p241 = scmp.ne.s32.totalorder %s233, %s236
    %p242 = scmp.eq.s32.totalorder %s14, 0
    %p243 = por %p241, %p242
    %p244 = scmp.ne.s32.totalorder %s233, %s236
    %p245 = scmp.eq.s32.totalorder %s19, 3
    %p246 = por %p244, %p245
    %p247 = scmp.ne.s32.totalorder %s236, %s237
    %p248 = scmp.eq.s32.totalorder %s19, 0
    %p249 = por %p247, %p248
    %p250 = scmp.ne.s32.totalorder %s236, %s237
    %p251 = scmp.eq.s32.totalorder %s20, 3
    %p252 = por %p250, %p251
    %p254 = scmp.ne.s32.totalorder %s237, %s253
    %p255 = scmp.eq.s32.totalorder %s20, 0
    %p256 = por %p254, %p255
    %p257 = scmp.le.s32.totalorder 1, %s14
    %p258 = scmp.lt.s32.totalorder %s14, 5
    %p259 = pnand %p257, %p258
    %p260 = pneg %p259
    // Predicated region
    $region9: #{up_forward.3} parent=5 // pred_check
      _
    $region10: #{up_forward.3} parent=5 // pred_check_branch
      %262 = sbr.rel (%p259) target = $region12
    $region11: #{up_forward.3} parent=5 // pred_region
      %s263 = ssub.s32 %s14, 1
      // Predicated region
      $region13: #{up_forward.3} parent=11 // pred_check
        %p264 = pneg %p147
      $region14: #{up_forward.3} parent=11 // pred_check_branch
        %266 = sbr.rel (%p264) target = $region16
      $region15: #{up_forward.3} parent=11 // pred_region
        _
      $region16: #{up_forward.3} parent=11 // pred_fallthru
        _
      // Predicated region
      $region17: #{up_forward.3} parent=11 // pred_check
        %p267 = pneg %p168
      $region18: #{up_forward.3} parent=11 // pred_check_branch
        %269 = sbr.rel (%p267) target = $region20
      $region19: #{up_forward.3} parent=11 // pred_region
        _
      $region20: #{up_forward.3} parent=11 // pred_fallthru
        _
      // Predicated region
      $region21: #{up_forward.3} parent=11 // pred_check
        %p270 = pneg %p189
      $region22: #{up_forward.3} parent=11 // pred_check_branch
        %272 = sbr.rel (%p270) target = $region24
      $region23: #{up_forward.3} parent=11 // pred_region
        _
      $region24: #{up_forward.3} parent=11 // pred_fallthru
        _
    $region12: #{up_forward.3} parent=5 // pred_fallthru
      _
    %p273 = scmp.lt.s32.totalorder %s14, 4
    // Predicated region
    $region25: #{up_forward.3} parent=5 // pred_check
      %p274 = pneg %p273
    $region26: #{up_forward.3} parent=5 // pred_check_branch
      %276 = sbr.rel (%p274) target = $region28
    $region27: #{up_forward.3} parent=5 // pred_region
      // Predicated region
      $region29: #{up_forward.3} parent=27 // pred_check
        %p277 = pneg %p48
      $region30: #{up_forward.3} parent=27 // pred_check_branch
        %279 = sbr.rel (%p277) target = $region32
      $region31: #{up_forward.3} parent=27 // pred_region
        %s280 = smul.u32 8, %s22
        %p281 = scmp.lt.s32.totalorder %s21, 1
        %s282 = scalar_select %p281, %s21, 1
        %p283 = scmp.lt.s32.totalorder %s280, 15
        %s284 = scalar_select %p283, %s280, 15
        %s285 = smul.addr %s284, 2
        %s286 = smul.addr %s282, 32
        %s287 = sadd.s32 %s285, %s286
        %s288 = smul.addr %s287, 4
        %s289 = scalar_lea.vmem %s0, %s288
        %s290 = smul.u32 8, %s22
      $region32: #{up_forward.3} parent=27 // pred_fallthru
        _
      // Predicated region
      $region33: #{up_forward.3} parent=27 // pred_check
        %p291 = pneg %p84
      $region34: #{up_forward.3} parent=27 // pred_check_branch
        %293 = sbr.rel (%p291) target = $region36
      $region35: #{up_forward.3} parent=27 // pred_region
        %s294 = smul.u32 %s22, 8
        %s295 = ssub.s32 %s294, 1
        %p296 = scmp.gt.s32.totalorder %s295, 0
        %s297 = scalar_select %p296, %s295, 0
        %p298 = scmp.lt.s32.totalorder %s21, 1
        %s299 = scalar_select %p298, %s21, 1
        %p300 = scmp.lt.s32.totalorder %s297, 15
        %s301 = scalar_select %p300, %s297, 15
        %s302 = smul.addr %s301, 2
        %s303 = smul.addr %s299, 32
        %s304 = sadd.s32 %s302, %s303
        %s305 = smul.addr %s304, 4
        %s306 = scalar_lea.vmem %s1, %s305
        %s307 = smul.u32 %s22, 8
        %s308 = ssub.s32 %s307, 1
        %p309 = scmp.gt.s32.totalorder %s308, 0
        %s310 = scalar_select %p309, %s308, 0
      $region36: #{up_forward.3} parent=27 // pred_fallthru
        _
      // Predicated region
      $region37: #{up_forward.3} parent=27 // pred_check
        %p311 = pneg %p120
      $region38: #{up_forward.3} parent=27 // pred_check_branch
        %313 = sbr.rel (%p311) target = $region40
      $region39: #{up_forward.3} parent=27 // pred_region
        %s314 = smul.u32 %s22, 8
        %s315 = sadd.s32 %s314, 8
        %p316 = scmp.lt.s32.totalorder %s315, 15
        %s317 = scalar_select %p316, %s315, 15
        %p318 = scmp.lt.s32.totalorder %s21, 1
        %s319 = scalar_select %p318, %s21, 1
        %p320 = scmp.lt.s32.totalorder %s317, 15
        %s321 = scalar_select %p320, %s317, 15
        %s322 = smul.addr %s321, 2
        %s323 = smul.addr %s319, 32
        %s324 = sadd.s32 %s322, %s323
        %s325 = smul.addr %s324, 4
        %s326 = scalar_lea.vmem %s2, %s325
        %s327 = smul.u32 %s22, 8
        %s328 = sadd.s32 %s327, 8
        %p329 = scmp.lt.s32.totalorder %s328, 15
        %s330 = scalar_select %p329, %s328, 15
      $region40: #{up_forward.3} parent=27 // pred_fallthru
        _
    $region28: #{up_forward.3} parent=5 // pred_fallthru
      _
    %p331 = scmp.le.s32.totalorder 1, %s14
    %p332 = scmp.lt.s32.totalorder %s14, 5
    %p333 = pnand %p331, %p332
    %p334 = pneg %p333
    // Predicated region
    $region41: #{up_forward.3} parent=5 // pred_check
      _
    $region42: #{up_forward.3} parent=5 // pred_check_branch
      %336 = sbr.rel (%p333) target = $region44
    $region43: #{up_forward.3} parent=5 // pred_region
      %s337 = ssub.s32 %s14, 1
      %s338 = smul.u32 8, %s24
      %p339 = scmp.lt.s32.totalorder %s23, 1
      %s340 = scalar_select %p339, %s23, 1
      %p341 = scmp.lt.s32.totalorder %s338, 15
      %s342 = scalar_select %p341, %s338, 15
      %s343 = smul.addr %s342, 2
      %s344 = smul.addr %s340, 32
      %s345 = sadd.s32 %s343, %s344
      %s346 = smul.addr %s345, 4
      %s347 = scalar_lea.vmem %s0, %s346
      %p348 = pneg %p54
      %p349 = pneg %p51
      %s350 = smul.u32 %s24, 8
      %s351 = ssub.s32 %s350, 1
      %p352 = scmp.gt.s32.totalorder %s351, 0
      %s353 = scalar_select %p352, %s351, 0
      %p354 = scmp.lt.s32.totalorder %s23, 1
      %s355 = scalar_select %p354, %s23, 1
      %p356 = scmp.lt.s32.totalorder %s353, 15
      %s357 = scalar_select %p356, %s353, 15
      %s358 = smul.addr %s357, 2
      %s359 = smul.addr %s355, 32
      %s360 = sadd.s32 %s358, %s359
      %s361 = smul.addr %s360, 4
      %s362 = scalar_lea.vmem %s1, %s361
      %p363 = pneg %p90
      %p364 = pneg %p87
      %s365 = smul.u32 %s24, 8
      %s366 = sadd.s32 %s365, 8
      %p367 = scmp.lt.s32.totalorder %s366, 15
      %s368 = scalar_select %p367, %s366, 15
      %p369 = scmp.lt.s32.totalorder %s23, 1
      %s370 = scalar_select %p369, %s23, 1
      %p371 = scmp.lt.s32.totalorder %s368, 15
      %s372 = scalar_select %p371, %s368, 15
      %s373 = smul.addr %s372, 2
      %s374 = smul.addr %s370, 32
      %s375 = sadd.s32 %s373, %s374
      %s376 = smul.addr %s375, 4
      %s377 = scalar_lea.vmem %s2, %s376
      %p378 = pneg %p126
      %p379 = pneg %p123
      %p380 = pneg %p147
      %p381 = pneg %p144
      %p382 = pneg %p168
      %p383 = pneg %p165
      %p384 = pneg %p189
      %p385 = pneg %p186
      %p386 = pneg %p219
      %p387 = pneg %p216
      %s388 = smul.u32 %s23, 2
      %s389 = sadd.s32 %s388, %s24
      %s390 = smul.u32 16, %s389
      %p391 = scmp.lt.s32.totalorder %s390, 63
      %s392 = scalar_select %p391, %s390, 63
      %s393 = smul.addr %s392, 4
      %s394 = scalar_lea.vmem %s6, %s393
      %p395 = pneg %p249
      %p396 = pneg %p246
      %s397 = smul.u32 %s23, 2
      %s398 = sadd.s32 %s397, %s24
      %p399 = scmp.lt.s32.totalorder %s398, 3
      %s400 = scalar_select %p399, %s398, 3
      %s401 = smul.addr %s400, 2
      %s402 = scalar_lea.vmem %s7, %s401
      %s403 = smul.u32 8, %s24
      %p404 = scmp.lt.s32.totalorder %s23, 1
      %s405 = scalar_select %p404, %s23, 1
      %p406 = scmp.lt.s32.totalorder %s403, 15
      %s407 = scalar_select %p406, %s403, 15
      %s408 = smul.addr %s407, 2
      %s409 = smul.addr %s405, 32
      %s410 = sadd.s32 %s408, %s409
      %s411 = smul.addr %s410, 4
      %s412 = scalar_lea.vmem %s0, %s411
      %s413 = smul.u32 8, %s24
      %s414 = smul.u32 %s24, 8
      %s415 = ssub.s32 %s414, 1
      %p416 = scmp.gt.s32.totalorder %s415, 0
      %s417 = scalar_select %p416, %s415, 0
      %p418 = scmp.lt.s32.totalorder %s23, 1
      %s419 = scalar_select %p418, %s23, 1
      %p420 = scmp.lt.s32.totalorder %s417, 15
      %s421 = scalar_select %p420, %s417, 15
      %s422 = smul.addr %s421, 2
      %s423 = smul.addr %s419, 32
      %s424 = sadd.s32 %s422, %s423
      %s425 = smul.addr %s424, 4
      %s426 = scalar_lea.vmem %s1, %s425
      %s427 = smul.u32 %s24, 8
      %s428 = ssub.s32 %s427, 1
      %p429 = scmp.gt.s32.totalorder %s428, 0
      %s430 = scalar_select %p429, %s428, 0
      %s431 = smul.u32 %s24, 8
      %s432 = sadd.s32 %s431, 8
      %p433 = scmp.lt.s32.totalorder %s432, 15
      %s434 = scalar_select %p433, %s432, 15
      %p435 = scmp.lt.s32.totalorder %s23, 1
      %s436 = scalar_select %p435, %s23, 1
      %p437 = scmp.lt.s32.totalorder %s434, 15
      %s438 = scalar_select %p437, %s434, 15
      %s439 = smul.addr %s438, 2
      %s440 = smul.addr %s436, 32
      %s441 = sadd.s32 %s439, %s440
      %s442 = smul.addr %s441, 4
      %s443 = scalar_lea.vmem %s2, %s442
      %s444 = smul.u32 %s24, 8
      %s445 = sadd.s32 %s444, 8
      %p446 = scmp.lt.s32.totalorder %s445, 15
      %s447 = scalar_select %p446, %s445, 15
      %s448 = smul.u32 %s23, 2
      %s449 = sadd.s32 %s448, %s24
      %s450 = smul.u32 16, %s449
      %p451 = scmp.lt.s32.totalorder %s450, 63
      %s452 = scalar_select %p451, %s450, 63
      %s453 = smul.addr %s452, 4
      %s454 = scalar_lea.vmem %s6, %s453
      %s455 = smul.u32 %s23, 2
      %s456 = sadd.s32 %s455, %s24
      %s457 = smul.u32 16, %s456
      %s458 = smul.u32 %s23, 2
      %s459 = sadd.s32 %s458, %s24
      %p460 = scmp.lt.s32.totalorder %s459, 3
      %s461 = scalar_select %p460, %s459, 3
      %s462 = smul.addr %s461, 2
      %s463 = scalar_lea.vmem %s7, %s462
      %s464 = smul.u32 %s23, 2
      %s465 = sadd.s32 %s464, %s24
      %v467 = vld [vmem:[%s412] sm:$0xf]
      %v468 = vld [vmem:[%s412 + $0x4] sm:$0xf]
      %v469 = vld [vmem:[%s412 + $0x8] sm:$0xf]
      %v470 = vld [vmem:[%s412 + $0xc] sm:$0xf]
      %v471 = vld [vmem:[%s412 + $0x10] sm:$0xf]
      %v472 = vld [vmem:[%s412 + $0x14] sm:$0xf]
      %v473 = vld [vmem:[%s412 + $0x18] sm:$0xf]
      %v474 = vld [vmem:[%s412 + $0x1c] sm:$0xf]
      %v475 = vld [vmem:[%s412 + $0x20] sm:$0xf]
      %v476 = vld [vmem:[%s412 + $0x24] sm:$0xf]
      %v477 = vld [vmem:[%s412 + $0x28] sm:$0xf]
      %v478 = vld [vmem:[%s412 + $0x2c] sm:$0xf]
      %v479 = vld [vmem:[%s412 + $0x30] sm:$0xf]
      %v480 = vld [vmem:[%s412 + $0x34] sm:$0xf]
      %v481 = vld [vmem:[%s412 + $0x38] sm:$0xf]
      %v482 = vld [vmem:[%s412 + $0x3c] sm:$0xf]
      %v483 = vld [vmem:[%s426] sm:$0xf]
      %v484 = vld [vmem:[%s426 + $0x4] sm:$0xf]
      %v485 = vld [vmem:[%s443] sm:$0xf]
      %v486 = vld [vmem:[%s443 + $0x4] sm:$0xf]
      %p487 = scmp.gt.s32.totalorder %s24, 0
      %s488 = scalar_select %p487, 1, 0
      %v489 = vstv %s488
      %vm490 = vcmp.eq.s32.totalorder %v489, 1
      %v491 = vsel %vm490, %v483, 0
      %v492 = vsel %vm490, %v484, 0
      %p493 = scmp.lt.s32.totalorder %s24, 1
      %s494 = scalar_select %p493, 1, 0
      %v495 = vstv %s494
      %vm496 = vcmp.eq.s32.totalorder %v495, 1
      %v497 = vsel %vm496, %v485, 0
      %v498 = vsel %vm496, %v486, 0
      %vm499 = vcmask 57344
      %vm500 = vsmask.f32 256
      %vm501 = vmand %vm499, %vm500
      %v502 = vld [vmem:[#allocation2] sm:$0x1]
      %v503 = vsel %vm501, 0, %v502
      %504 = vst [vmem:[#allocation2] sm:$0x1] %v503
      %v505 = vld [vmem:[#allocation2 + $0xc] sm:$0x1]
      %v506 = vsel %vm501, 0, %v505
      %507 = vst [vmem:[#allocation2 + $0xc] sm:$0x1] %v506
      %v508 = vld [vmem:[#allocation2 + $0x18] sm:$0x1]
      %v509 = vsel %vm501, 0, %v508
      %510 = vst [vmem:[#allocation2 + $0x18] sm:$0x1] %v509
      %v511 = vld [vmem:[#allocation2 + $0x24] sm:$0x1]
      %v512 = vsel %vm501, 0, %v511
      %513 = vst [vmem:[#allocation2 + $0x24] sm:$0x1] %v512
      %v514 = vld [vmem:[#allocation2 + $0x30] sm:$0x1]
      %v515 = vsel %vm501, 0, %v514
      %516 = vst [vmem:[#allocation2 + $0x30] sm:$0x1] %v515
      %v517 = vld [vmem:[#allocation2 + $0x3c] sm:$0x1]
      %v518 = vsel %vm501, 0, %v517
      %519 = vst [vmem:[#allocation2 + $0x3c] sm:$0x1] %v518
      %v520 = vld [vmem:[#allocation2 + $0x48] sm:$0x1]
      %v521 = vsel %vm501, 0, %v520
      %522 = vst [vmem:[#allocation2 + $0x48] sm:$0x1] %v521
      %v523 = vld [vmem:[#allocation2 + $0x54] sm:$0x1]
      %v524 = vsel %vm501, 0, %v523
      %525 = vst [vmem:[#allocation2 + $0x54] sm:$0x1] %v524
      %v526 = vld [vmem:[#allocation2 + $0x60] sm:$0x1]
      %v527 = vsel %vm501, 0, %v526
      %528 = vst [vmem:[#allocation2 + $0x60] sm:$0x1] %v527
      %v529 = vld [vmem:[#allocation2 + $0x6c] sm:$0x1]
      %v530 = vsel %vm501, 0, %v529
      %531 = vst [vmem:[#allocation2 + $0x6c] sm:$0x1] %v530
      %vm532 = vsmask.f32 7938
      %vm533 = vmand %vm499, %vm532
      %v534 = vld [vmem:[#allocation2 + $0x8] sm:$0x1]
      %v535 = vsel %vm533, 0, %v534
      %536 = vst [vmem:[#allocation2 + $0x8] sm:$0x1] %v535
      %v537 = vld [vmem:[#allocation2 + $0x14] sm:$0x1]
      %v538 = vsel %vm533, 0, %v537
      %539 = vst [vmem:[#allocation2 + $0x14] sm:$0x1] %v538
      %v540 = vld [vmem:[#allocation2 + $0x20] sm:$0x1]
      %v541 = vsel %vm533, 0, %v540
      %542 = vst [vmem:[#allocation2 + $0x20] sm:$0x1] %v541
      %v543 = vld [vmem:[#allocation2 + $0x2c] sm:$0x1]
      %v544 = vsel %vm533, 0, %v543
      %545 = vst [vmem:[#allocation2 + $0x2c] sm:$0x1] %v544
      %v546 = vld [vmem:[#allocation2 + $0x38] sm:$0x1]
      %v547 = vsel %vm533, 0, %v546
      %548 = vst [vmem:[#allocation2 + $0x38] sm:$0x1] %v547
      %v549 = vld [vmem:[#allocation2 + $0x44] sm:$0x1]
      %v550 = vsel %vm533, 0, %v549
      %551 = vst [vmem:[#allocation2 + $0x44] sm:$0x1] %v550
      %v552 = vld [vmem:[#allocation2 + $0x50] sm:$0x1]
      %v553 = vsel %vm533, 0, %v552
      %554 = vst [vmem:[#allocation2 + $0x50] sm:$0x1] %v553
      %v555 = vld [vmem:[#allocation2 + $0x5c] sm:$0x1]
      %v556 = vsel %vm533, 0, %v555
      %557 = vst [vmem:[#allocation2 + $0x5c] sm:$0x1] %v556
      %v558 = vld [vmem:[#allocation2 + $0x68] sm:$0x1]
      %v559 = vsel %vm533, 0, %v558
      %560 = vst [vmem:[#allocation2 + $0x68] sm:$0x1] %v559
      %v561 = vld [vmem:[#allocation2 + $0x74] sm:$0x1]
      %v562 = vsel %vm533, 0, %v561
      %563 = vst [vmem:[#allocation2 + $0x74] sm:$0x1] %v562
      %vm564 = vsmask.f32 4368
      %vm565 = vmor %vm500, %vm564
      %v567 = vshrl.u32 %v491, 16
      %v569 = vrot.slane %v567, 7
      %v570 = vshll.u32 %v491, 16
      %v572 = vor.u32 %v569, %v570
      %v573 = vrot.slane %v569, 4
      %v575 = vshrl.u32 %v492, 16
      %v577 = vrot.slane %v575, 7
      %v578 = vshll.u32 %v492, 16
      %v580 = vor.u32 %v577, %v578
      %v581 = vsel %vm565, %v573, %v580
      %v582 = vrot.slane %v577, 4
      %vm586 = vcmask 60416
      %vm587 = vmand %vm586, %vm532
      %v588 = vld [vmem:[#allocation2] sm:$0xf]
      %v589 = vsel %vm587, %v572, %v588
      %590 = vst [vmem:[#allocation2] sm:$0xf] %v589
      %vm591 = vcmask 60416
      %592 = vst.msk [vmem:[#allocation2 + $0x4] sm:$0xf] %vm591, %v581
      %v593 = vld [vmem:[#allocation2 + $0x8] sm:$0x1]
      %v594 = vsel %vm501, %v582, %v593
      %595 = vst [vmem:[#allocation2 + $0x8] sm:$0x1] %v594
      %v597 = vshrl.u32 %v467, 16
      %v599 = vrot.slane %v597, 7
      %v600 = vshll.u32 %v467, 16
      %v602 = vor.u32 %v599, %v600
      %v603 = vrot.slane %v599, 4
      %v605 = vshrl.u32 %v468, 16
      %v607 = vrot.slane %v605, 7
      %v608 = vshll.u32 %v468, 16
      %v610 = vor.u32 %v607, %v608
      %v611 = vsel %vm565, %v603, %v610
      %v612 = vrot.slane %v607, 4
      %v614 = vshrl.u32 %v469, 16
      %v616 = vrot.slane %v614, 7
      %v617 = vshll.u32 %v469, 16
      %v619 = vor.u32 %v616, %v617
      %v620 = vrot.slane %v616, 4
      %v622 = vshrl.u32 %v470, 16
      %v624 = vrot.slane %v622, 7
      %v625 = vshll.u32 %v470, 16
      %v627 = vor.u32 %v624, %v625
      %v628 = vsel %vm565, %v620, %v627
      %v629 = vrot.slane %v624, 4
      %v631 = vshrl.u32 %v471, 16
      %v633 = vrot.slane %v631, 7
      %v634 = vshll.u32 %v471, 16
      %v636 = vor.u32 %v633, %v634
      %v637 = vrot.slane %v633, 4
      %v639 = vshrl.u32 %v472, 16
      %v641 = vrot.slane %v639, 7
      %v642 = vshll.u32 %v472, 16
      %v644 = vor.u32 %v641, %v642
      %v645 = vsel %vm565, %v637, %v644
      %v646 = vrot.slane %v641, 4
      %v648 = vshrl.u32 %v473, 16
      %v650 = vrot.slane %v648, 7
      %v651 = vshll.u32 %v473, 16
      %v653 = vor.u32 %v650, %v651
      %v654 = vrot.slane %v650, 4
      %v656 = vshrl.u32 %v474, 16
      %v658 = vrot.slane %v656, 7
      %v659 = vshll.u32 %v474, 16
      %v661 = vor.u32 %v658, %v659
      %v662 = vsel %vm565, %v654, %v661
      %v663 = vrot.slane %v658, 4
      %v665 = vshrl.u32 %v475, 16
      %v667 = vrot.slane %v665, 7
      %v668 = vshll.u32 %v475, 16
      %v670 = vor.u32 %v667, %v668
      %v671 = vrot.slane %v667, 4
      %v673 = vshrl.u32 %v476, 16
      %v675 = vrot.slane %v673, 7
      %v676 = vshll.u32 %v476, 16
      %v678 = vor.u32 %v675, %v676
      %v679 = vsel %vm565, %v671, %v678
      %v680 = vrot.slane %v675, 4
      %v682 = vshrl.u32 %v477, 16
      %v684 = vrot.slane %v682, 7
      %v685 = vshll.u32 %v477, 16
      %v687 = vor.u32 %v684, %v685
      %v688 = vrot.slane %v684, 4
      %v690 = vshrl.u32 %v478, 16
      %v692 = vrot.slane %v690, 7
      %v693 = vshll.u32 %v478, 16
      %v695 = vor.u32 %v692, %v693
      %v696 = vsel %vm565, %v688, %v695
      %v697 = vrot.slane %v692, 4
      %v699 = vshrl.u32 %v479, 16
      %v701 = vrot.slane %v699, 7
      %v702 = vshll.u32 %v479, 16
      %v704 = vor.u32 %v701, %v702
      %v705 = vrot.slane %v701, 4
      %v707 = vshrl.u32 %v480, 16
      %v709 = vrot.slane %v707, 7
      %v710 = vshll.u32 %v480, 16
      %v712 = vor.u32 %v709, %v710
      %v713 = vsel %vm565, %v705, %v712
      %v714 = vrot.slane %v709, 4
      %v716 = vshrl.u32 %v481, 16
      %v718 = vrot.slane %v716, 7
      %v719 = vshll.u32 %v481, 16
      %v721 = vor.u32 %v718, %v719
      %v722 = vrot.slane %v718, 4
      %v724 = vshrl.u32 %v482, 16
      %v726 = vrot.slane %v724, 7
      %v727 = vshll.u32 %v482, 16
      %v729 = vor.u32 %v726, %v727
      %v730 = vsel %vm565, %v722, %v729
      %v731 = vrot.slane %v726, 4
      %s756 = scalar_lea.vmem [#allocation2], 12
      %v757 = vld [vmem:[%s756] sm:$0xf]
      %v758 = vsel %vm587, %v602, %v757
      %759 = vst [vmem:[%s756] sm:$0xf] %v758
      %760 = vst.msk [vmem:[%s756 + $0x4] sm:$0xf] %vm591, %v611
      %v761 = vld [vmem:[%s756 + $0x8] sm:$0x1]
      %v762 = vsel %vm501, %v612, %v761
      %763 = vst [vmem:[%s756 + $0x8] sm:$0x1] %v762
      %v764 = vld [vmem:[%s756 + $0xc] sm:$0xf]
      %v765 = vsel %vm587, %v619, %v764
      %766 = vst [vmem:[%s756 + $0xc] sm:$0xf] %v765
      %767 = vst.msk [vmem:[%s756 + $0x10] sm:$0xf] %vm591, %v628
      %v768 = vld [vmem:[%s756 + $0x14] sm:$0x1]
      %v769 = vsel %vm501, %v629, %v768
      %770 = vst [vmem:[%s756 + $0x14] sm:$0x1] %v769
      %v771 = vld [vmem:[%s756 + $0x18] sm:$0xf]
      %v772 = vsel %vm587, %v636, %v771
      %773 = vst [vmem:[%s756 + $0x18] sm:$0xf] %v772
      %774 = vst.msk [vmem:[%s756 + $0x1c] sm:$0xf] %vm591, %v645
      %v775 = vld [vmem:[%s756 + $0x20] sm:$0x1]
      %v776 = vsel %vm501, %v646, %v775
      %777 = vst [vmem:[%s756 + $0x20] sm:$0x1] %v776
      %v778 = vld [vmem:[%s756 + $0x24] sm:$0xf]
      %v779 = vsel %vm587, %v653, %v778
      %780 = vst [vmem:[%s756 + $0x24] sm:$0xf] %v779
      %781 = vst.msk [vmem:[%s756 + $0x28] sm:$0xf] %vm591, %v662
      %v782 = vld [vmem:[%s756 + $0x2c] sm:$0x1]
      %v783 = vsel %vm501, %v663, %v782
      %784 = vst [vmem:[%s756 + $0x2c] sm:$0x1] %v783
      %v785 = vld [vmem:[%s756 + $0x30] sm:$0xf]
      %v786 = vsel %vm587, %v670, %v785
      %787 = vst [vmem:[%s756 + $0x30] sm:$0xf] %v786
      %788 = vst.msk [vmem:[%s756 + $0x34] sm:$0xf] %vm591, %v679
      %v789 = vld [vmem:[%s756 + $0x38] sm:$0x1]
      %v790 = vsel %vm501, %v680, %v789
      %791 = vst [vmem:[%s756 + $0x38] sm:$0x1] %v790
      %v792 = vld [vmem:[%s756 + $0x3c] sm:$0xf]
      %v793 = vsel %vm587, %v687, %v792
      %794 = vst [vmem:[%s756 + $0x3c] sm:$0xf] %v793
      %795 = vst.msk [vmem:[%s756 + $0x40] sm:$0xf] %vm591, %v696
      %v796 = vld [vmem:[%s756 + $0x44] sm:$0x1]
      %v797 = vsel %vm501, %v697, %v796
      %798 = vst [vmem:[%s756 + $0x44] sm:$0x1] %v797
      %v799 = vld [vmem:[%s756 + $0x48] sm:$0xf]
      %v800 = vsel %vm587, %v704, %v799
      %801 = vst [vmem:[%s756 + $0x48] sm:$0xf] %v800
      %802 = vst.msk [vmem:[%s756 + $0x4c] sm:$0xf] %vm591, %v713
      %v803 = vld [vmem:[%s756 + $0x50] sm:$0x1]
      %v804 = vsel %vm501, %v714, %v803
      %805 = vst [vmem:[%s756 + $0x50] sm:$0x1] %v804
      %v806 = vld [vmem:[%s756 + $0x54] sm:$0xf]
      %v807 = vsel %vm587, %v721, %v806
      %808 = vst [vmem:[%s756 + $0x54] sm:$0xf] %v807
      %809 = vst.msk [vmem:[%s756 + $0x58] sm:$0xf] %vm591, %v730
      %v810 = vld [vmem:[%s756 + $0x5c] sm:$0x1]
      %v811 = vsel %vm501, %v731, %v810
      %812 = vst [vmem:[%s756 + $0x5c] sm:$0x1] %v811
      %v814 = vshrl.u32 %v497, 16
      %v816 = vrot.slane %v814, 7
      %v817 = vshll.u32 %v497, 16
      %v819 = vor.u32 %v816, %v817
      %v820 = vrot.slane %v816, 4
      %v822 = vshrl.u32 %v498, 16
      %v824 = vrot.slane %v822, 7
      %v825 = vshll.u32 %v498, 16
      %v827 = vor.u32 %v824, %v825
      %v828 = vsel %vm565, %v820, %v827
      %v829 = vrot.slane %v824, 4
      %s833 = scalar_lea.vmem [#allocation2], 108
      %v834 = vld [vmem:[%s833] sm:$0xf]
      %v835 = vsel %vm587, %v819, %v834
      %836 = vst [vmem:[%s833] sm:$0xf] %v835
      %837 = vst.msk [vmem:[%s833 + $0x4] sm:$0xf] %vm591, %v828
      %v838 = vld [vmem:[%s833 + $0x8] sm:$0x1]
      %v839 = vsel %vm501, %v829, %v838
      %840 = vst [vmem:[%s833 + $0x8] sm:$0x1] %v839
      %v841 = vld [vmem:[#allocation2] sm:$0xf]
      %v842 = vld [vmem:[#allocation2 + $0x4] sm:$0xf]
      %v843 = vld [vmem:[#allocation2 + $0xc] sm:$0xf]
      %v844 = vld [vmem:[#allocation2 + $0x10] sm:$0xf]
      %v845 = vld [vmem:[#allocation2 + $0x18] sm:$0xf]
      %v846 = vld [vmem:[#allocation2 + $0x1c] sm:$0xf]
      %v847 = vld [vmem:[#allocation2 + $0x24] sm:$0xf]
      %v848 = vld [vmem:[#allocation2 + $0x28] sm:$0xf]
      %v849 = vld [vmem:[#allocation2 + $0x30] sm:$0xf]
      %v850 = vld [vmem:[#allocation2 + $0x34] sm:$0xf]
      %v851 = vld [vmem:[#allocation2 + $0x3c] sm:$0xf]
      %v852 = vld [vmem:[#allocation2 + $0x40] sm:$0xf]
      %v853 = vld [vmem:[#allocation2 + $0x48] sm:$0xf]
      %v854 = vld [vmem:[#allocation2 + $0x4c] sm:$0xf]
      %v855 = vld [vmem:[#allocation2 + $0x54] sm:$0xf]
      %v856 = vld [vmem:[#allocation2 + $0x58] sm:$0xf]
      %v857 = vld [vmem:[%s3] sm:$0xf]
      %v858 = vld [vmem:[#allocation2 + $0x8] sm:$0x1]
      %v859 = vld [vmem:[#allocation2 + $0x14] sm:$0x1]
      %v860 = vld [vmem:[#allocation2 + $0x20] sm:$0x1]
      %v861 = vld [vmem:[#allocation2 + $0x2c] sm:$0x1]
      %v862 = vld [vmem:[#allocation2 + $0x38] sm:$0x1]
      %v863 = vld [vmem:[#allocation2 + $0x44] sm:$0x1]
      %v864 = vld [vmem:[#allocation2 + $0x50] sm:$0x1]
      %v865 = vld [vmem:[#allocation2 + $0x5c] sm:$0x1]
      %vm866 = vsmask.f32 3328
      %vm867 = vsmask.f32 7440
      %vm868 = vmor %vm866, %vm867
      %v870 = vshrl.u32 %v841, 16
      %v872 = vrot.slane %v870, 4
      %v873 = vshll.u32 %v841, 16
      %v875 = vrot.slane %v873, 5
      %v876 = vor.u32 %v872, %v875
      %v877 = vrot.slane %v876, 4
      %v879 = vshll.u32 %v842, 16
      %v881 = vrot.slane %v879, 5
      %v882 = vsel %vm868, %v877, %v881
      %v883 = vshrl.u32 %v842, 16
      %v885 = vrot.slane %v883, 4
      %v886 = vor.u32 %v885, %v881
      %v887 = vrot.slane %v886, 4
      %v889 = vshll.u32 %v858, 16
      %v891 = vrot.slane %v889, 5
      %v892 = vsel %vm868, %v887, %v891
      %v894 = vshrl.u32 %v843, 16
      %v896 = vrot.slane %v894, 4
      %v897 = vshll.u32 %v843, 16
      %v899 = vrot.slane %v897, 5
      %v900 = vor.u32 %v896, %v899
      %v901 = vrot.slane %v900, 4
      %v903 = vshll.u32 %v844, 16
      %v905 = vrot.slane %v903, 5
      %v906 = vsel %vm868, %v901, %v905
      %v907 = vshrl.u32 %v844, 16
      %v909 = vrot.slane %v907, 4
      %v910 = vor.u32 %v909, %v905
      %v911 = vrot.slane %v910, 4
      %v913 = vshll.u32 %v859, 16
      %v915 = vrot.slane %v913, 5
      %v916 = vsel %vm868, %v911, %v915
      %v918 = vshrl.u32 %v845, 16
      %v920 = vrot.slane %v918, 4
      %v921 = vshll.u32 %v845, 16
      %v923 = vrot.slane %v921, 5
      %v924 = vor.u32 %v920, %v923
      %v925 = vrot.slane %v924, 4
      %v927 = vshll.u32 %v846, 16
      %v929 = vrot.slane %v927, 5
      %v930 = vsel %vm868, %v925, %v929
      %v931 = vshrl.u32 %v846, 16
      %v933 = vrot.slane %v931, 4
      %v934 = vor.u32 %v933, %v929
      %v935 = vrot.slane %v934, 4
      %v937 = vshll.u32 %v860, 16
      %v939 = vrot.slane %v937, 5
      %v940 = vsel %vm868, %v935, %v939
      %v942 = vshrl.u32 %v847, 16
      %v944 = vrot.slane %v942, 4
      %v945 = vshll.u32 %v847, 16
      %v947 = vrot.slane %v945, 5
      %v948 = vor.u32 %v944, %v947
      %v949 = vrot.slane %v948, 4
      %v951 = vshll.u32 %v848, 16
      %v953 = vrot.slane %v951, 5
      %v954 = vsel %vm868, %v949, %v953
      %v955 = vshrl.u32 %v848, 16
      %v957 = vrot.slane %v955, 4
      %v958 = vor.u32 %v957, %v953
      %v959 = vrot.slane %v958, 4
      %v961 = vshll.u32 %v861, 16
      %v963 = vrot.slane %v961, 5
      %v964 = vsel %vm868, %v959, %v963
      %v966 = vshrl.u32 %v849, 16
      %v968 = vrot.slane %v966, 4
      %v969 = vshll.u32 %v849, 16
      %v971 = vrot.slane %v969, 5
      %v972 = vor.u32 %v968, %v971
      %v973 = vrot.slane %v972, 4
      %v975 = vshll.u32 %v850, 16
      %v977 = vrot.slane %v975, 5
      %v978 = vsel %vm868, %v973, %v977
      %v979 = vshrl.u32 %v850, 16
      %v981 = vrot.slane %v979, 4
      %v982 = vor.u32 %v981, %v977
      %v983 = vrot.slane %v982, 4
      %v985 = vshll.u32 %v862, 16
      %v987 = vrot.slane %v985, 5
      %v988 = vsel %vm868, %v983, %v987
      %v990 = vshrl.u32 %v851, 16
      %v992 = vrot.slane %v990, 4
      %v993 = vshll.u32 %v851, 16
      %v995 = vrot.slane %v993, 5
      %v996 = vor.u32 %v992, %v995
      %v997 = vrot.slane %v996, 4
      %v999 = vshll.u32 %v852, 16
      %v1001 = vrot.slane %v999, 5
      %v1002 = vsel %vm868, %v997, %v1001
      %v1003 = vshrl.u32 %v852, 16
      %v1005 = vrot.slane %v1003, 4
      %v1006 = vor.u32 %v1005, %v1001
      %v1007 = vrot.slane %v1006, 4
      %v1009 = vshll.u32 %v863, 16
      %v1011 = vrot.slane %v1009, 5
      %v1012 = vsel %vm868, %v1007, %v1011
      %v1014 = vshrl.u32 %v853, 16
      %v1016 = vrot.slane %v1014, 4
      %v1017 = vshll.u32 %v853, 16
      %v1019 = vrot.slane %v1017, 5
      %v1020 = vor.u32 %v1016, %v1019
      %v1021 = vrot.slane %v1020, 4
      %v1023 = vshll.u32 %v854, 16
      %v1025 = vrot.slane %v1023, 5
      %v1026 = vsel %vm868, %v1021, %v1025
      %v1027 = vshrl.u32 %v854, 16
      %v1029 = vrot.slane %v1027, 4
      %v1030 = vor.u32 %v1029, %v1025
      %v1031 = vrot.slane %v1030, 4
      %v1033 = vshll.u32 %v864, 16
      %v1035 = vrot.slane %v1033, 5
      %v1036 = vsel %vm868, %v1031, %v1035
      %v1038 = vshrl.u32 %v855, 16
      %v1040 = vrot.slane %v1038, 4
      %v1041 = vshll.u32 %v855, 16
      %v1043 = vrot.slane %v1041, 5
      %v1044 = vor.u32 %v1040, %v1043
      %v1045 = vrot.slane %v1044, 4
      %v1047 = vshll.u32 %v856, 16
      %v1049 = vrot.slane %v1047, 5
      %v1050 = vsel %vm868, %v1045, %v1049
      %v1051 = vshrl.u32 %v856, 16
      %v1053 = vrot.slane %v1051, 4
      %v1054 = vor.u32 %v1053, %v1049
      %v1055 = vrot.slane %v1054, 4
      %v1057 = vshll.u32 %v865, 16
      %v1059 = vrot.slane %v1057, 5
      %v1060 = vsel %vm868, %v1055, %v1059
      %s1061 = scalar_lea.vmem %s3, 4
      %v1062 = vld [vmem:[%s1061] sm:$0xf]
      %v1063 = vunpack.c.l.b16 %v882
      %v1064 = vunpack.c.l.b16 %v892
      %v1065 = vunpack.c.l.b16 %v906
      %v1066 = vunpack.c.l.b16 %v916
      %v1067 = vunpack.c.l.b16 %v930
      %v1068 = vunpack.c.l.b16 %v940
      %v1069 = vunpack.c.l.b16 %v954
      %v1070 = vunpack.c.l.b16 %v964
      %v1071 = vunpack.c.l.b16 %v978
      %v1072 = vunpack.c.l.b16 %v988
      %v1073 = vunpack.c.l.b16 %v1002
      %v1074 = vunpack.c.l.b16 %v1012
      %v1075 = vunpack.c.l.b16 %v1026
      %v1076 = vunpack.c.l.b16 %v1036
      %v1077 = vunpack.c.l.b16 %v1050
      %v1078 = vunpack.c.l.b16 %v1060
      %v1079 = vpack.c.b16 %v1064, %v1063
      %v1080 = vpack.c.b16 %v1066, %v1065
      %v1081 = vpack.c.b16 %v1068, %v1067
      %v1082 = vpack.c.b16 %v1070, %v1069
      %v1083 = vpack.c.b16 %v1072, %v1071
      %v1084 = vpack.c.b16 %v1074, %v1073
      %v1085 = vpack.c.b16 %v1076, %v1075
      %v1086 = vpack.c.b16 %v1078, %v1077
      %vm1087 = vcmask 64512
      %v1089 = vsel %vm1087, %v1079, 0
      %v1092 = vsel %vm1087, %v1080, 0
      %v1095 = vsel %vm1087, %v1081, 0
      %v1098 = vsel %vm1087, %v1082, 0
      %v1101 = vsel %vm1087, %v1083, 0
      %v1104 = vsel %vm1087, %v1084, 0
      %v1107 = vsel %vm1087, %v1085, 0
      %v1110 = vsel %vm1087, %v1086, 0
      %vm1112 = vcmask 1043456
      %v1114 = vsel %vm1112, %v1062, 0
      %1116 = vmatpush.bf16.msra.mxu0 0
      %1117 = vmatpush.bf16.msra.mxu0 0
      %1118 = vmatpush.bf16.msra.mxu0 0
      %1119 = vmatpush.bf16.msra.mxu0 0
      %1120 = vmatpush.bf16.msra.mxu0 0
      %1121 = vmatpush.bf16.msra.mxu0 0
      %1122 = vmatpush.bf16.msra.mxu0 0
      %1123 = vmatpush.bf16.msra.mxu0 %v1114
      %1124 = vmatmul.bf16.gmra.mxu0 %v1089
      %v1125 = vpop.f32.mrf.mxu0
      %v1126 = vadd.f32 0.0, %v1125
      %v1127 = vpop.f32.mrf.mxu0
      %v1128 = vadd.f32 0.0, %v1127
      %1129 = vmatmul.bf16.gmra.mxu0 %v1092
      %v1130 = vpop.f32.mrf.mxu0
      %v1131 = vadd.f32 0.0, %v1130
      %v1132 = vpop.f32.mrf.mxu0
      %v1133 = vadd.f32 0.0, %v1132
      %1134 = vmatmul.bf16.gmra.mxu0 %v1095
      %v1135 = vpop.f32.mrf.mxu0
      %v1136 = vadd.f32 0.0, %v1135
      %v1137 = vpop.f32.mrf.mxu0
      %v1138 = vadd.f32 0.0, %v1137
      %1139 = vmatmul.bf16.gmra.mxu0 %v1098
      %v1140 = vpop.f32.mrf.mxu0
      %v1141 = vadd.f32 0.0, %v1140
      %v1142 = vpop.f32.mrf.mxu0
      %v1143 = vadd.f32 0.0, %v1142
      %1144 = vmatmul.bf16.gmra.mxu0 %v1101
      %v1145 = vpop.f32.mrf.mxu0
      %v1146 = vadd.f32 0.0, %v1145
      %v1147 = vpop.f32.mrf.mxu0
      %v1148 = vadd.f32 0.0, %v1147
      %1149 = vmatmul.bf16.gmra.mxu0 %v1104
      %v1150 = vpop.f32.mrf.mxu0
      %v1151 = vadd.f32 0.0, %v1150
      %v1152 = vpop.f32.mrf.mxu0
      %v1153 = vadd.f32 0.0, %v1152
      %1154 = vmatmul.bf16.gmra.mxu0 %v1107
      %v1155 = vpop.f32.mrf.mxu0
      %v1156 = vadd.f32 0.0, %v1155
      %v1157 = vpop.f32.mrf.mxu0
      %v1158 = vadd.f32 0.0, %v1157
      %1159 = vmatmul.bf16.gmra.mxu0 %v1110
      %v1160 = vpop.f32.mrf.mxu0
      %v1161 = vadd.f32 0.0, %v1160
      %v1162 = vpop.f32.mrf.mxu0
      %v1163 = vadd.f32 0.0, %v1162
      %1164 = vdwg.mxu0
      %v1181 = vunpack.c.l.b16 %v841
      %v1182 = vunpack.c.l.b16 %v842
      %v1183 = vunpack.c.l.b16 %v843
      %v1184 = vunpack.c.l.b16 %v844
      %v1185 = vunpack.c.l.b16 %v845
      %v1186 = vunpack.c.l.b16 %v846
      %v1187 = vunpack.c.l.b16 %v847
      %v1188 = vunpack.c.l.b16 %v848
      %v1189 = vunpack.c.l.b16 %v849
      %v1190 = vunpack.c.l.b16 %v850
      %v1191 = vunpack.c.l.b16 %v851
      %v1192 = vunpack.c.l.b16 %v852
      %v1193 = vunpack.c.l.b16 %v853
      %v1194 = vunpack.c.l.b16 %v854
      %v1195 = vunpack.c.l.b16 %v855
      %v1196 = vunpack.c.l.b16 %v856
      %v1197 = vpack.c.b16 %v1182, %v1181
      %v1198 = vpack.c.b16 %v1184, %v1183
      %v1199 = vpack.c.b16 %v1186, %v1185
      %v1200 = vpack.c.b16 %v1188, %v1187
      %v1201 = vpack.c.b16 %v1190, %v1189
      %v1202 = vpack.c.b16 %v1192, %v1191
      %v1203 = vpack.c.b16 %v1194, %v1193
      %v1204 = vpack.c.b16 %v1196, %v1195
      %v1206 = vsel %vm1087, %v1197, 0
      %v1209 = vsel %vm1087, %v1198, 0
      %v1212 = vsel %vm1087, %v1199, 0
      %v1215 = vsel %vm1087, %v1200, 0
      %v1218 = vsel %vm1087, %v1201, 0
      %v1221 = vsel %vm1087, %v1202, 0
      %v1224 = vsel %vm1087, %v1203, 0
      %v1227 = vsel %vm1087, %v1204, 0
      %v1230 = vsel %vm1112, %v857, 0
      %1232 = vmatpush.bf16.msra.mxu0 0
      %1233 = vmatpush.bf16.msra.mxu0 0
      %1234 = vmatpush.bf16.msra.mxu0 0
      %1235 = vmatpush.bf16.msra.mxu0 0
      %1236 = vmatpush.bf16.msra.mxu0 0
      %1237 = vmatpush.bf16.msra.mxu0 0
      %1238 = vmatpush.bf16.msra.mxu0 0
      %1239 = vmatpush.bf16.msra.mxu0 %v1230
      %1240 = vmatmul.bf16.gmra.mxu0 %v1206
      %v1241 = vpop.f32.mrf.mxu0
      %v1242 = vadd.f32 %v1126, %v1241
      %v1243 = vpop.f32.mrf.mxu0
      %v1244 = vadd.f32 %v1128, %v1243
      %1245 = vmatmul.bf16.gmra.mxu0 %v1209
      %v1246 = vpop.f32.mrf.mxu0
      %v1247 = vadd.f32 %v1131, %v1246
      %v1248 = vpop.f32.mrf.mxu0
      %v1249 = vadd.f32 %v1133, %v1248
      %1250 = vmatmul.bf16.gmra.mxu0 %v1212
      %v1251 = vpop.f32.mrf.mxu0
      %v1252 = vadd.f32 %v1136, %v1251
      %v1253 = vpop.f32.mrf.mxu0
      %v1254 = vadd.f32 %v1138, %v1253
      %1255 = vmatmul.bf16.gmra.mxu0 %v1215
      %v1256 = vpop.f32.mrf.mxu0
      %v1257 = vadd.f32 %v1141, %v1256
      %v1258 = vpop.f32.mrf.mxu0
      %v1259 = vadd.f32 %v1143, %v1258
      %1260 = vmatmul.bf16.gmra.mxu0 %v1218
      %v1261 = vpop.f32.mrf.mxu0
      %v1262 = vadd.f32 %v1146, %v1261
      %v1263 = vpop.f32.mrf.mxu0
      %v1264 = vadd.f32 %v1148, %v1263
      %1265 = vmatmul.bf16.gmra.mxu0 %v1221
      %v1266 = vpop.f32.mrf.mxu0
      %v1267 = vadd.f32 %v1151, %v1266
      %v1268 = vpop.f32.mrf.mxu0
      %v1269 = vadd.f32 %v1153, %v1268
      %1270 = vmatmul.bf16.gmra.mxu0 %v1224
      %v1271 = vpop.f32.mrf.mxu0
      %v1272 = vadd.f32 %v1156, %v1271
      %v1273 = vpop.f32.mrf.mxu0
      %v1274 = vadd.f32 %v1158, %v1273
      %1275 = vmatmul.bf16.gmra.mxu0 %v1227
      %v1276 = vpop.f32.mrf.mxu0
      %v1277 = vadd.f32 %v1161, %v1276
      %v1278 = vpop.f32.mrf.mxu0
      %v1279 = vadd.f32 %v1163, %v1278
      %1280 = vdwg.mxu0
      %v1281 = vld [vmem:[#allocation2] sm:$0xe]
      %v1282 = vld [vmem:[#allocation2 + $0xc] sm:$0xe]
      %v1283 = vld [vmem:[#allocation2 + $0x18] sm:$0xe]
      %v1284 = vld [vmem:[#allocation2 + $0x24] sm:$0xe]
      %v1285 = vld [vmem:[#allocation2 + $0x30] sm:$0xe]
      %v1286 = vld [vmem:[#allocation2 + $0x3c] sm:$0xe]
      %v1287 = vld [vmem:[#allocation2 + $0x48] sm:$0xe]
      %v1288 = vld [vmem:[#allocation2 + $0x54] sm:$0xe]
      %vm1305 = vcmask 1042432
      %vm1306 = vcmask 1046532
      %vm1307 = vmor %vm1305, %vm1306
      %v1308 = vrot.slane %v1281, 5
      %v1309 = vrot.slane %v1308, 4
      %v1310 = vrot.slane %v842, 5
      %v1311 = vsel %vm1307, %v1309, %v1310
      %v1312 = vrot.slane %v1310, 4
      %v1313 = vrot.slane %v858, 5
      %v1314 = vsel %vm1307, %v1312, %v1313
      %v1315 = vrot.slane %v1282, 5
      %v1316 = vrot.slane %v1315, 4
      %v1317 = vrot.slane %v844, 5
      %v1318 = vsel %vm1307, %v1316, %v1317
      %v1319 = vrot.slane %v1317, 4
      %v1320 = vrot.slane %v859, 5
      %v1321 = vsel %vm1307, %v1319, %v1320
      %v1322 = vrot.slane %v1283, 5
      %v1323 = vrot.slane %v1322, 4
      %v1324 = vrot.slane %v846, 5
      %v1325 = vsel %vm1307, %v1323, %v1324
      %v1326 = vrot.slane %v1324, 4
      %v1327 = vrot.slane %v860, 5
      %v1328 = vsel %vm1307, %v1326, %v1327
      %v1329 = vrot.slane %v1284, 5
      %v1330 = vrot.slane %v1329, 4
      %v1331 = vrot.slane %v848, 5
      %v1332 = vsel %vm1307, %v1330, %v1331
      %v1333 = vrot.slane %v1331, 4
      %v1334 = vrot.slane %v861, 5
      %v1335 = vsel %vm1307, %v1333, %v1334
      %v1336 = vrot.slane %v1285, 5
      %v1337 = vrot.slane %v1336, 4
      %v1338 = vrot.slane %v850, 5
      %v1339 = vsel %vm1307, %v1337, %v1338
      %v1340 = vrot.slane %v1338, 4
      %v1341 = vrot.slane %v862, 5
      %v1342 = vsel %vm1307, %v1340, %v1341
      %v1343 = vrot.slane %v1286, 5
      %v1344 = vrot.slane %v1343, 4
      %v1345 = vrot.slane %v852, 5
      %v1346 = vsel %vm1307, %v1344, %v1345
      %v1347 = vrot.slane %v1345, 4
      %v1348 = vrot.slane %v863, 5
      %v1349 = vsel %vm1307, %v1347, %v1348
      %v1350 = vrot.slane %v1287, 5
      %v1351 = vrot.slane %v1350, 4
      %v1352 = vrot.slane %v854, 5
      %v1353 = vsel %vm1307, %v1351, %v1352
      %v1354 = vrot.slane %v1352, 4
      %v1355 = vrot.slane %v864, 5
      %v1356 = vsel %vm1307, %v1354, %v1355
      %v1357 = vrot.slane %v1288, 5
      %v1358 = vrot.slane %v1357, 4
      %v1359 = vrot.slane %v856, 5
      %v1360 = vsel %vm1307, %v1358, %v1359
      %v1361 = vrot.slane %v1359, 4
      %v1362 = vrot.slane %v865, 5
      %v1363 = vsel %vm1307, %v1361, %v1362
      %s1364 = scalar_lea.vmem %s3, 8
      %v1365 = vld [vmem:[%s1364] sm:$0xf]
      %v1366 = vunpack.c.l.b16 %v1311
      %v1367 = vunpack.c.l.b16 %v1314
      %v1368 = vunpack.c.l.b16 %v1318
      %v1369 = vunpack.c.l.b16 %v1321
      %v1370 = vunpack.c.l.b16 %v1325
      %v1371 = vunpack.c.l.b16 %v1328
      %v1372 = vunpack.c.l.b16 %v1332
      %v1373 = vunpack.c.l.b16 %v1335
      %v1374 = vunpack.c.l.b16 %v1339
      %v1375 = vunpack.c.l.b16 %v1342
      %v1376 = vunpack.c.l.b16 %v1346
      %v1377 = vunpack.c.l.b16 %v1349
      %v1378 = vunpack.c.l.b16 %v1353
      %v1379 = vunpack.c.l.b16 %v1356
      %v1380 = vunpack.c.l.b16 %v1360
      %v1381 = vunpack.c.l.b16 %v1363
      %v1382 = vpack.c.b16 %v1367, %v1366
      %v1383 = vpack.c.b16 %v1369, %v1368
      %v1384 = vpack.c.b16 %v1371, %v1370
      %v1385 = vpack.c.b16 %v1373, %v1372
      %v1386 = vpack.c.b16 %v1375, %v1374
      %v1387 = vpack.c.b16 %v1377, %v1376
      %v1388 = vpack.c.b16 %v1379, %v1378
      %v1389 = vpack.c.b16 %v1381, %v1380
      %v1391 = vsel %vm1087, %v1382, 0
      %v1394 = vsel %vm1087, %v1383, 0
      %v1397 = vsel %vm1087, %v1384, 0
      %v1400 = vsel %vm1087, %v1385, 0
      %v1403 = vsel %vm1087, %v1386, 0
      %v1406 = vsel %vm1087, %v1387, 0
      %v1409 = vsel %vm1087, %v1388, 0
      %v1412 = vsel %vm1087, %v1389, 0
      %v1415 = vsel %vm1112, %v1365, 0
      %1417 = vmatpush.bf16.msra.mxu0 0
      %1418 = vmatpush.bf16.msra.mxu0 0
      %1419 = vmatpush.bf16.msra.mxu0 0
      %1420 = vmatpush.bf16.msra.mxu0 0
      %1421 = vmatpush.bf16.msra.mxu0 0
      %1422 = vmatpush.bf16.msra.mxu0 0
      %1423 = vmatpush.bf16.msra.mxu0 0
      %1424 = vmatpush.bf16.msra.mxu0 %v1415
      %1425 = vmatmul.bf16.gmra.mxu0 %v1391
      %v1426 = vpop.f32.mrf.mxu0
      %v1427 = vadd.f32 0.0, %v1426
      %v1428 = vpop.f32.mrf.mxu0
      %v1429 = vadd.f32 0.0, %v1428
      %1430 = vmatmul.bf16.gmra.mxu0 %v1394
      %v1431 = vpop.f32.mrf.mxu0
      %v1432 = vadd.f32 0.0, %v1431
      %v1433 = vpop.f32.mrf.mxu0
      %v1434 = vadd.f32 0.0, %v1433
      %1435 = vmatmul.bf16.gmra.mxu0 %v1397
      %v1436 = vpop.f32.mrf.mxu0
      %v1437 = vadd.f32 0.0, %v1436
      %v1438 = vpop.f32.mrf.mxu0
      %v1439 = vadd.f32 0.0, %v1438
      %1440 = vmatmul.bf16.gmra.mxu0 %v1400
      %v1441 = vpop.f32.mrf.mxu0
      %v1442 = vadd.f32 0.0, %v1441
      %v1443 = vpop.f32.mrf.mxu0
      %v1444 = vadd.f32 0.0, %v1443
      %1445 = vmatmul.bf16.gmra.mxu0 %v1403
      %v1446 = vpop.f32.mrf.mxu0
      %v1447 = vadd.f32 0.0, %v1446
      %v1448 = vpop.f32.mrf.mxu0
      %v1449 = vadd.f32 0.0, %v1448
      %1450 = vmatmul.bf16.gmra.mxu0 %v1406
      %v1451 = vpop.f32.mrf.mxu0
      %v1452 = vadd.f32 0.0, %v1451
      %v1453 = vpop.f32.mrf.mxu0
      %v1454 = vadd.f32 0.0, %v1453
      %1455 = vmatmul.bf16.gmra.mxu0 %v1409
      %v1456 = vpop.f32.mrf.mxu0
      %v1457 = vadd.f32 0.0, %v1456
      %v1458 = vpop.f32.mrf.mxu0
      %v1459 = vadd.f32 0.0, %v1458
      %1460 = vmatmul.bf16.gmra.mxu0 %v1412
      %v1461 = vpop.f32.mrf.mxu0
      %v1462 = vadd.f32 0.0, %v1461
      %v1463 = vpop.f32.mrf.mxu0
      %v1464 = vadd.f32 0.0, %v1463
      %1465 = vdwg.mxu0
      %v1466 = vadd.f32 %v1242, %v1427
      %v1467 = vadd.f32 %v1244, %v1429
      %v1468 = vadd.f32 %v1247, %v1432
      %v1469 = vadd.f32 %v1249, %v1434
      %v1470 = vadd.f32 %v1252, %v1437
      %v1471 = vadd.f32 %v1254, %v1439
      %v1472 = vadd.f32 %v1257, %v1442
      %v1473 = vadd.f32 %v1259, %v1444
      %v1474 = vadd.f32 %v1262, %v1447
      %v1475 = vadd.f32 %v1264, %v1449
      %v1476 = vadd.f32 %v1267, %v1452
      %v1477 = vadd.f32 %v1269, %v1454
      %v1478 = vadd.f32 %v1272, %v1457
      %v1479 = vadd.f32 %v1274, %v1459
      %v1480 = vadd.f32 %v1277, %v1462
      %v1481 = vadd.f32 %v1279, %v1464
      %v1482 = vld [vmem:[%s756] sm:$0xf]
      %v1483 = vld [vmem:[%s756 + $0x4] sm:$0xf]
      %v1484 = vld [vmem:[%s756 + $0xc] sm:$0xf]
      %v1485 = vld [vmem:[%s756 + $0x10] sm:$0xf]
      %v1486 = vld [vmem:[%s756 + $0x18] sm:$0xf]
      %v1487 = vld [vmem:[%s756 + $0x1c] sm:$0xf]
      %v1488 = vld [vmem:[%s756 + $0x24] sm:$0xf]
      %v1489 = vld [vmem:[%s756 + $0x28] sm:$0xf]
      %v1490 = vld [vmem:[%s756 + $0x30] sm:$0xf]
      %v1491 = vld [vmem:[%s756 + $0x34] sm:$0xf]
      %v1492 = vld [vmem:[%s756 + $0x3c] sm:$0xf]
      %v1493 = vld [vmem:[%s756 + $0x40] sm:$0xf]
      %v1494 = vld [vmem:[%s756 + $0x48] sm:$0xf]
      %v1495 = vld [vmem:[%s756 + $0x4c] sm:$0xf]
      %v1496 = vld [vmem:[%s756 + $0x54] sm:$0xf]
      %v1497 = vld [vmem:[%s756 + $0x58] sm:$0xf]
      %s1498 = scalar_lea.vmem %s3, 12
      %v1499 = vld [vmem:[%s1498] sm:$0xf]
      %v1516 = vunpack.c.l.b16 %v1482
      %v1517 = vunpack.c.l.b16 %v1483
      %v1518 = vunpack.c.l.b16 %v1484
      %v1519 = vunpack.c.l.b16 %v1485
      %v1520 = vunpack.c.l.b16 %v1486
      %v1521 = vunpack.c.l.b16 %v1487
      %v1522 = vunpack.c.l.b16 %v1488
      %v1523 = vunpack.c.l.b16 %v1489
      %v1524 = vunpack.c.l.b16 %v1490
      %v1525 = vunpack.c.l.b16 %v1491
      %v1526 = vunpack.c.l.b16 %v1492
      %v1527 = vunpack.c.l.b16 %v1493
      %v1528 = vunpack.c.l.b16 %v1494
      %v1529 = vunpack.c.l.b16 %v1495
      %v1530 = vunpack.c.l.b16 %v1496
      %v1531 = vunpack.c.l.b16 %v1497
      %v1532 = vpack.c.b16 %v1517, %v1516
      %v1533 = vpack.c.b16 %v1519, %v1518
      %v1534 = vpack.c.b16 %v1521, %v1520
      %v1535 = vpack.c.b16 %v1523, %v1522
      %v1536 = vpack.c.b16 %v1525, %v1524
      %v1537 = vpack.c.b16 %v1527, %v1526
      %v1538 = vpack.c.b16 %v1529, %v1528
      %v1539 = vpack.c.b16 %v1531, %v1530
      %v1541 = vsel %vm1087, %v1532, 0
      %v1544 = vsel %vm1087, %v1533, 0
      %v1547 = vsel %vm1087, %v1534, 0
      %v1550 = vsel %vm1087, %v1535, 0
      %v1553 = vsel %vm1087, %v1536, 0
      %v1556 = vsel %vm1087, %v1537, 0
      %v1559 = vsel %vm1087, %v1538, 0
      %v1562 = vsel %vm1087, %v1539, 0
      %v1565 = vsel %vm1112, %v1499, 0
      %1567 = vmatpush.bf16.msra.mxu0 0
      %1568 = vmatpush.bf16.msra.mxu0 0
      %1569 = vmatpush.bf16.msra.mxu0 0
      %1570 = vmatpush.bf16.msra.mxu0 0
      %1571 = vmatpush.bf16.msra.mxu0 0
      %1572 = vmatpush.bf16.msra.mxu0 0
      %1573 = vmatpush.bf16.msra.mxu0 0
      %1574 = vmatpush.bf16.msra.mxu0 %v1565
      %1575 = vmatmul.bf16.gmra.mxu0 %v1541
      %v1576 = vpop.f32.mrf.mxu0
      %v1577 = vadd.f32 0.0, %v1576
      %v1578 = vpop.f32.mrf.mxu0
      %v1579 = vadd.f32 0.0, %v1578
      %1580 = vmatmul.bf16.gmra.mxu0 %v1544
      %v1581 = vpop.f32.mrf.mxu0
      %v1582 = vadd.f32 0.0, %v1581
      %v1583 = vpop.f32.mrf.mxu0
      %v1584 = vadd.f32 0.0, %v1583
      %1585 = vmatmul.bf16.gmra.mxu0 %v1547
      %v1586 = vpop.f32.mrf.mxu0
      %v1587 = vadd.f32 0.0, %v1586
      %v1588 = vpop.f32.mrf.mxu0
      %v1589 = vadd.f32 0.0, %v1588
      %1590 = vmatmul.bf16.gmra.mxu0 %v1550
      %v1591 = vpop.f32.mrf.mxu0
      %v1592 = vadd.f32 0.0, %v1591
      %v1593 = vpop.f32.mrf.mxu0
      %v1594 = vadd.f32 0.0, %v1593
      %1595 = vmatmul.bf16.gmra.mxu0 %v1553
      %v1596 = vpop.f32.mrf.mxu0
      %v1597 = vadd.f32 0.0, %v1596
      %v1598 = vpop.f32.mrf.mxu0
      %v1599 = vadd.f32 0.0, %v1598
      %1600 = vmatmul.bf16.gmra.mxu0 %v1556
      %v1601 = vpop.f32.mrf.mxu0
      %v1602 = vadd.f32 0.0, %v1601
      %v1603 = vpop.f32.mrf.mxu0
      %v1604 = vadd.f32 0.0, %v1603
      %1605 = vmatmul.bf16.gmra.mxu0 %v1559
      %v1606 = vpop.f32.mrf.mxu0
      %v1607 = vadd.f32 0.0, %v1606
      %v1608 = vpop.f32.mrf.mxu0
      %v1609 = vadd.f32 0.0, %v1608
      %1610 = vmatmul.bf16.gmra.mxu0 %v1562
      %v1611 = vpop.f32.mrf.mxu0
      %v1612 = vadd.f32 0.0, %v1611
      %v1613 = vpop.f32.mrf.mxu0
      %v1614 = vadd.f32 0.0, %v1613
      %1615 = vdwg.mxu0
      %v1616 = vadd.f32 %v1466, %v1577
      %v1617 = vadd.f32 %v1467, %v1579
      %v1618 = vadd.f32 %v1468, %v1582
      %v1619 = vadd.f32 %v1469, %v1584
      %v1620 = vadd.f32 %v1470, %v1587
      %v1621 = vadd.f32 %v1471, %v1589
      %v1622 = vadd.f32 %v1472, %v1592
      %v1623 = vadd.f32 %v1473, %v1594
      %v1624 = vadd.f32 %v1474, %v1597
      %v1625 = vadd.f32 %v1475, %v1599
      %v1626 = vadd.f32 %v1476, %v1602
      %v1627 = vadd.f32 %v1477, %v1604
      %v1628 = vadd.f32 %v1478, %v1607
      %v1629 = vadd.f32 %v1479, %v1609
      %v1630 = vadd.f32 %v1480, %v1612
      %v1631 = vadd.f32 %v1481, %v1614
      %v1632 = vld [vmem:[%s756] sm:$0xf]
      %v1633 = vld [vmem:[%s756 + $0x4] sm:$0xf]
      %v1634 = vld [vmem:[%s756 + $0x8] sm:$0x1]
      %v1635 = vld [vmem:[%s756 + $0xc] sm:$0xf]
      %v1636 = vld [vmem:[%s756 + $0x10] sm:$0xf]
      %v1637 = vld [vmem:[%s756 + $0x14] sm:$0x1]
      %v1638 = vld [vmem:[%s756 + $0x18] sm:$0xf]
      %v1639 = vld [vmem:[%s756 + $0x1c] sm:$0xf]
      %v1640 = vld [vmem:[%s756 + $0x20] sm:$0x1]
      %v1641 = vld [vmem:[%s756 + $0x24] sm:$0xf]
      %v1642 = vld [vmem:[%s756 + $0x28] sm:$0xf]
      %v1643 = vld [vmem:[%s756 + $0x2c] sm:$0x1]
      %v1644 = vld [vmem:[%s756 + $0x30] sm:$0xf]
      %v1645 = vld [vmem:[%s756 + $0x34] sm:$0xf]
      %v1646 = vld [vmem:[%s756 + $0x38] sm:$0x1]
      %v1647 = vld [vmem:[%s756 + $0x3c] sm:$0xf]
      %v1648 = vld [vmem:[%s756 + $0x40] sm:$0xf]
      %v1649 = vld [vmem:[%s756 + $0x44] sm:$0x1]
      %v1650 = vld [vmem:[%s756 + $0x48] sm:$0xf]
      %v1651 = vld [vmem:[%s756 + $0x4c] sm:$0xf]
      %v1652 = vld [vmem:[%s756 + $0x50] sm:$0x1]
      %v1653 = vld [vmem:[%s756 + $0x54] sm:$0xf]
      %v1654 = vld [vmem:[%s756 + $0x58] sm:$0xf]
      %v1655 = vld [vmem:[%s756 + $0x5c] sm:$0x1]
      %v1657 = vshrl.u32 %v1632, 16
      %v1659 = vrot.slane %v1657, 4
      %v1660 = vshll.u32 %v1632, 16
      %v1662 = vrot.slane %v1660, 5
      %v1663 = vor.u32 %v1659, %v1662
      %v1664 = vrot.slane %v1663, 4
      %v1666 = vshll.u32 %v1633, 16
      %v1668 = vrot.slane %v1666, 5
      %v1669 = vsel %vm868, %v1664, %v1668
      %v1670 = vshrl.u32 %v1633, 16
      %v1672 = vrot.slane %v1670, 4
      %v1673 = vor.u32 %v1672, %v1668
      %v1674 = vrot.slane %v1673, 4
      %v1676 = vshll.u32 %v1634, 16
      %v1678 = vrot.slane %v1676, 5
      %v1679 = vsel %vm868, %v1674, %v1678
      %v1681 = vshrl.u32 %v1635, 16
      %v1683 = vrot.slane %v1681, 4
      %v1684 = vshll.u32 %v1635, 16
      %v1686 = vrot.slane %v1684, 5
      %v1687 = vor.u32 %v1683, %v1686
      %v1688 = vrot.slane %v1687, 4
      %v1690 = vshll.u32 %v1636, 16
      %v1692 = vrot.slane %v1690, 5
      %v1693 = vsel %vm868, %v1688, %v1692
      %v1694 = vshrl.u32 %v1636, 16
      %v1696 = vrot.slane %v1694, 4
      %v1697 = vor.u32 %v1696, %v1692
      %v1698 = vrot.slane %v1697, 4
      %v1700 = vshll.u32 %v1637, 16
      %v1702 = vrot.slane %v1700, 5
      %v1703 = vsel %vm868, %v1698, %v1702
      %v1705 = vshrl.u32 %v1638, 16
      %v1707 = vrot.slane %v1705, 4
      %v1708 = vshll.u32 %v1638, 16
      %v1710 = vrot.slane %v1708, 5
      %v1711 = vor.u32 %v1707, %v1710
      %v1712 = vrot.slane %v1711, 4
      %v1714 = vshll.u32 %v1639, 16
      %v1716 = vrot.slane %v1714, 5
      %v1717 = vsel %vm868, %v1712, %v1716
      %v1718 = vshrl.u32 %v1639, 16
      %v1720 = vrot.slane %v1718, 4
      %v1721 = vor.u32 %v1720, %v1716
      %v1722 = vrot.slane %v1721, 4
      %v1724 = vshll.u32 %v1640, 16
      %v1726 = vrot.slane %v1724, 5
      %v1727 = vsel %vm868, %v1722, %v1726
      %v1729 = vshrl.u32 %v1641, 16
      %v1731 = vrot.slane %v1729, 4
      %v1732 = vshll.u32 %v1641, 16
      %v1734 = vrot.slane %v1732, 5
      %v1735 = vor.u32 %v1731, %v1734
      %v1736 = vrot.slane %v1735, 4
      %v1738 = vshll.u32 %v1642, 16
      %v1740 = vrot.slane %v1738, 5
      %v1741 = vsel %vm868, %v1736, %v1740
      %v1742 = vshrl.u32 %v1642, 16
      %v1744 = vrot.slane %v1742, 4
      %v1745 = vor.u32 %v1744, %v1740
      %v1746 = vrot.slane %v1745, 4
      %v1748 = vshll.u32 %v1643, 16
      %v1750 = vrot.slane %v1748, 5
      %v1751 = vsel %vm868, %v1746, %v1750
      %v1753 = vshrl.u32 %v1644, 16
      %v1755 = vrot.slane %v1753, 4
      %v1756 = vshll.u32 %v1644, 16
      %v1758 = vrot.slane %v1756, 5
      %v1759 = vor.u32 %v1755, %v1758
      %v1760 = vrot.slane %v1759, 4
      %v1762 = vshll.u32 %v1645, 16
      %v1764 = vrot.slane %v1762, 5
      %v1765 = vsel %vm868, %v1760, %v1764
      %v1766 = vshrl.u32 %v1645, 16
      %v1768 = vrot.slane %v1766, 4
      %v1769 = vor.u32 %v1768, %v1764
      %v1770 = vrot.slane %v1769, 4
      %v1772 = vshll.u32 %v1646, 16
      %v1774 = vrot.slane %v1772, 5
      %v1775 = vsel %vm868, %v1770, %v1774
      %v1777 = vshrl.u32 %v1647, 16
      %v1779 = vrot.slane %v1777, 4
      %v1780 = vshll.u32 %v1647, 16
      %v1782 = vrot.slane %v1780, 5
      %v1783 = vor.u32 %v1779, %v1782
      %v1784 = vrot.slane %v1783, 4
      %v1786 = vshll.u32 %v1648, 16
      %v1788 = vrot.slane %v1786, 5
      %v1789 = vsel %vm868, %v1784, %v1788
      %v1790 = vshrl.u32 %v1648, 16
      %v1792 = vrot.slane %v1790, 4
      %v1793 = vor.u32 %v1792, %v1788
      %v1794 = vrot.slane %v1793, 4
      %v1796 = vshll.u32 %v1649, 16
      %v1798 = vrot.slane %v1796, 5
      %v1799 = vsel %vm868, %v1794, %v1798
      %v1801 = vshrl.u32 %v1650, 16
      %v1803 = vrot.slane %v1801, 4
      %v1804 = vshll.u32 %v1650, 16
      %v1806 = vrot.slane %v1804, 5
      %v1807 = vor.u32 %v1803, %v1806
      %v1808 = vrot.slane %v1807, 4
      %v1810 = vshll.u32 %v1651, 16
      %v1812 = vrot.slane %v1810, 5
      %v1813 = vsel %vm868, %v1808, %v1812
      %v1814 = vshrl.u32 %v1651, 16
      %v1816 = vrot.slane %v1814, 4
      %v1817 = vor.u32 %v1816, %v1812
      %v1818 = vrot.slane %v1817, 4
      %v1820 = vshll.u32 %v1652, 16
      %v1822 = vrot.slane %v1820, 5
      %v1823 = vsel %vm868, %v1818, %v1822
      %v1825 = vshrl.u32 %v1653, 16
      %v1827 = vrot.slane %v1825, 4
      %v1828 = vshll.u32 %v1653, 16
      %v1830 = vrot.slane %v1828, 5
      %v1831 = vor.u32 %v1827, %v1830
      %v1832 = vrot.slane %v1831, 4
      %v1834 = vshll.u32 %v1654, 16
      %v1836 = vrot.slane %v1834, 5
      %v1837 = vsel %vm868, %v1832, %v1836
      %v1838 = vshrl.u32 %v1654, 16
      %v1840 = vrot.slane %v1838, 4
      %v1841 = vor.u32 %v1840, %v1836
      %v1842 = vrot.slane %v1841, 4
      %v1844 = vshll.u32 %v1655, 16
      %v1846 = vrot.slane %v1844, 5
      %v1847 = vsel %vm868, %v1842, %v1846
      %s1848 = scalar_lea.vmem %s3, 16
      %v1849 = vld [vmem:[%s1848] sm:$0xf]
      %v1850 = vunpack.c.l.b16 %v1669
      %v1851 = vunpack.c.l.b16 %v1679
      %v1852 = vunpack.c.l.b16 %v1693
      %v1853 = vunpack.c.l.b16 %v1703
      %v1854 = vunpack.c.l.b16 %v1717
      %v1855 = vunpack.c.l.b16 %v1727
      %v1856 = vunpack.c.l.b16 %v1741
      %v1857 = vunpack.c.l.b16 %v1751
      %v1858 = vunpack.c.l.b16 %v1765
      %v1859 = vunpack.c.l.b16 %v1775
      %v1860 = vunpack.c.l.b16 %v1789
      %v1861 = vunpack.c.l.b16 %v1799
      %v1862 = vunpack.c.l.b16 %v1813
      %v1863 = vunpack.c.l.b16 %v1823
      %v1864 = vunpack.c.l.b16 %v1837
      %v1865 = vunpack.c.l.b16 %v1847
      %v1866 = vpack.c.b16 %v1851, %v1850
      %v1867 = vpack.c.b16 %v1853, %v1852
      %v1868 = vpack.c.b16 %v1855, %v1854
      %v1869 = vpack.c.b16 %v1857, %v1856
      %v1870 = vpack.c.b16 %v1859, %v1858
      %v1871 = vpack.c.b16 %v1861, %v1860
      %v1872 = vpack.c.b16 %v1863, %v1862
      %v1873 = vpack.c.b16 %v1865, %v1864
      %v1875 = vsel %vm1087, %v1866, 0
      %v1878 = vsel %vm1087, %v1867, 0
      %v1881 = vsel %vm1087, %v1868, 0
      %v1884 = vsel %vm1087, %v1869, 0
      %v1887 = vsel %vm1087, %v1870, 0
      %v1890 = vsel %vm1087, %v1871, 0
      %v1893 = vsel %vm1087, %v1872, 0
      %v1896 = vsel %vm1087, %v1873, 0
      %v1899 = vsel %vm1112, %v1849, 0
      %1901 = vmatpush.bf16.msra.mxu0 0
      %1902 = vmatpush.bf16.msra.mxu0 0
      %1903 = vmatpush.bf16.msra.mxu0 0
      %1904 = vmatpush.bf16.msra.mxu0 0
      %1905 = vmatpush.bf16.msra.mxu0 0
      %1906 = vmatpush.bf16.msra.mxu0 0
      %1907 = vmatpush.bf16.msra.mxu0 0
      %1908 = vmatpush.bf16.msra.mxu0 %v1899
      %1909 = vmatmul.bf16.gmra.mxu0 %v1875
      %v1910 = vpop.f32.mrf.mxu0
      %v1911 = vadd.f32 0.0, %v1910
      %v1912 = vpop.f32.mrf.mxu0
      %v1913 = vadd.f32 0.0, %v1912
      %1914 = vmatmul.bf16.gmra.mxu0 %v1878
      %v1915 = vpop.f32.mrf.mxu0
      %v1916 = vadd.f32 0.0, %v1915
      %v1917 = vpop.f32.mrf.mxu0
      %v1918 = vadd.f32 0.0, %v1917
      %1919 = vmatmul.bf16.gmra.mxu0 %v1881
      %v1920 = vpop.f32.mrf.mxu0
      %v1921 = vadd.f32 0.0, %v1920
      %v1922 = vpop.f32.mrf.mxu0
      %v1923 = vadd.f32 0.0, %v1922
      %1924 = vmatmul.bf16.gmra.mxu0 %v1884
      %v1925 = vpop.f32.mrf.mxu0
      %v1926 = vadd.f32 0.0, %v1925
      %v1927 = vpop.f32.mrf.mxu0
      %v1928 = vadd.f32 0.0, %v1927
      %1929 = vmatmul.bf16.gmra.mxu0 %v1887
      %v1930 = vpop.f32.mrf.mxu0
      %v1931 = vadd.f32 0.0, %v1930
      %v1932 = vpop.f32.mrf.mxu0
      %v1933 = vadd.f32 0.0, %v1932
      %1934 = vmatmul.bf16.gmra.mxu0 %v1890
      %v1935 = vpop.f32.mrf.mxu0
      %v1936 = vadd.f32 0.0, %v1935
      %v1937 = vpop.f32.mrf.mxu0
      %v1938 = vadd.f32 0.0, %v1937
      %1939 = vmatmul.bf16.gmra.mxu0 %v1893
      %v1940 = vpop.f32.mrf.mxu0
      %v1941 = vadd.f32 0.0, %v1940
      %v1942 = vpop.f32.mrf.mxu0
      %v1943 = vadd.f32 0.0, %v1942
      %1944 = vmatmul.bf16.gmra.mxu0 %v1896
      %v1945 = vpop.f32.mrf.mxu0
      %v1946 = vadd.f32 0.0, %v1945
      %v1947 = vpop.f32.mrf.mxu0
      %v1948 = vadd.f32 0.0, %v1947
      %1949 = vdwg.mxu0
      %v1950 = vadd.f32 %v1616, %v1911
      %v1951 = vadd.f32 %v1617, %v1913
      %v1952 = vadd.f32 %v1618, %v1916
      %v1953 = vadd.f32 %v1619, %v1918
      %v1954 = vadd.f32 %v1620, %v1921
      %v1955 = vadd.f32 %v1621, %v1923
      %v1956 = vadd.f32 %v1622, %v1926
      %v1957 = vadd.f32 %v1623, %v1928
      %v1958 = vadd.f32 %v1624, %v1931
      %v1959 = vadd.f32 %v1625, %v1933
      %v1960 = vadd.f32 %v1626, %v1936
      %v1961 = vadd.f32 %v1627, %v1938
      %v1962 = vadd.f32 %v1628, %v1941
      %v1963 = vadd.f32 %v1629, %v1943
      %v1964 = vadd.f32 %v1630, %v1946
      %v1965 = vadd.f32 %v1631, %v1948
      %v1966 = vld [vmem:[%s756] sm:$0xe]
      %v1967 = vld [vmem:[%s756 + $0xc] sm:$0xe]
      %v1968 = vld [vmem:[%s756 + $0x18] sm:$0xe]
      %v1969 = vld [vmem:[%s756 + $0x24] sm:$0xe]
      %v1970 = vld [vmem:[%s756 + $0x30] sm:$0xe]
      %v1971 = vld [vmem:[%s756 + $0x3c] sm:$0xe]
      %v1972 = vld [vmem:[%s756 + $0x48] sm:$0xe]
      %v1973 = vld [vmem:[%s756 + $0x54] sm:$0xe]
      %v1998 = vrot.slane %v1966, 5
      %v1999 = vrot.slane %v1998, 4
      %v2000 = vrot.slane %v1633, 5
      %v2001 = vsel %vm1307, %v1999, %v2000
      %v2002 = vrot.slane %v2000, 4
      %v2003 = vrot.slane %v1634, 5
      %v2004 = vsel %vm1307, %v2002, %v2003
      %v2005 = vrot.slane %v1967, 5
      %v2006 = vrot.slane %v2005, 4
      %v2007 = vrot.slane %v1636, 5
      %v2008 = vsel %vm1307, %v2006, %v2007
      %v2009 = vrot.slane %v2007, 4
      %v2010 = vrot.slane %v1637, 5
      %v2011 = vsel %vm1307, %v2009, %v2010
      %v2012 = vrot.slane %v1968, 5
      %v2013 = vrot.slane %v2012, 4
      %v2014 = vrot.slane %v1639, 5
      %v2015 = vsel %vm1307, %v2013, %v2014
      %v2016 = vrot.slane %v2014, 4
      %v2017 = vrot.slane %v1640, 5
      %v2018 = vsel %vm1307, %v2016, %v2017
      %v2019 = vrot.slane %v1969, 5
      %v2020 = vrot.slane %v2019, 4
      %v2021 = vrot.slane %v1642, 5
      %v2022 = vsel %vm1307, %v2020, %v2021
      %v2023 = vrot.slane %v2021, 4
      %v2024 = vrot.slane %v1643, 5
      %v2025 = vsel %vm1307, %v2023, %v2024
      %v2026 = vrot.slane %v1970, 5
      %v2027 = vrot.slane %v2026, 4
      %v2028 = vrot.slane %v1645, 5
      %v2029 = vsel %vm1307, %v2027, %v2028
      %v2030 = vrot.slane %v2028, 4
      %v2031 = vrot.slane %v1646, 5
      %v2032 = vsel %vm1307, %v2030, %v2031
      %v2033 = vrot.slane %v1971, 5
      %v2034 = vrot.slane %v2033, 4
      %v2035 = vrot.slane %v1648, 5
      %v2036 = vsel %vm1307, %v2034, %v2035
      %v2037 = vrot.slane %v2035, 4
      %v2038 = vrot.slane %v1649, 5
      %v2039 = vsel %vm1307, %v2037, %v2038
      %v2040 = vrot.slane %v1972, 5
      %v2041 = vrot.slane %v2040, 4
      %v2042 = vrot.slane %v1651, 5
      %v2043 = vsel %vm1307, %v2041, %v2042
      %v2044 = vrot.slane %v2042, 4
      %v2045 = vrot.slane %v1652, 5
      %v2046 = vsel %vm1307, %v2044, %v2045
      %v2047 = vrot.slane %v1973, 5
      %v2048 = vrot.slane %v2047, 4
      %v2049 = vrot.slane %v1654, 5
      %v2050 = vsel %vm1307, %v2048, %v2049
      %v2051 = vrot.slane %v2049, 4
      %v2052 = vrot.slane %v1655, 5
      %v2053 = vsel %vm1307, %v2051, %v2052
      %s2054 = scalar_lea.vmem %s3, 20
      %v2055 = vld [vmem:[%s2054] sm:$0xf]
      %v2056 = vunpack.c.l.b16 %v2001
      %v2057 = vunpack.c.l.b16 %v2004
      %v2058 = vunpack.c.l.b16 %v2008
      %v2059 = vunpack.c.l.b16 %v2011
      %v2060 = vunpack.c.l.b16 %v2015
      %v2061 = vunpack.c.l.b16 %v2018
      %v2062 = vunpack.c.l.b16 %v2022
      %v2063 = vunpack.c.l.b16 %v2025
      %v2064 = vunpack.c.l.b16 %v2029
      %v2065 = vunpack.c.l.b16 %v2032
      %v2066 = vunpack.c.l.b16 %v2036
      %v2067 = vunpack.c.l.b16 %v2039
      %v2068 = vunpack.c.l.b16 %v2043
      %v2069 = vunpack.c.l.b16 %v2046
      %v2070 = vunpack.c.l.b16 %v2050
      %v2071 = vunpack.c.l.b16 %v2053
      %v2072 = vpack.c.b16 %v2057, %v2056
      %v2073 = vpack.c.b16 %v2059, %v2058
      %v2074 = vpack.c.b16 %v2061, %v2060
      %v2075 = vpack.c.b16 %v2063, %v2062
      %v2076 = vpack.c.b16 %v2065, %v2064
      %v2077 = vpack.c.b16 %v2067, %v2066
      %v2078 = vpack.c.b16 %v2069, %v2068
      %v2079 = vpack.c.b16 %v2071, %v2070
      %v2081 = vsel %vm1087, %v2072, 0
      %v2084 = vsel %vm1087, %v2073, 0
      %v2087 = vsel %vm1087, %v2074, 0
      %v2090 = vsel %vm1087, %v2075, 0
      %v2093 = vsel %vm1087, %v2076, 0
      %v2096 = vsel %vm1087, %v2077, 0
      %v2099 = vsel %vm1087, %v2078, 0
      %v2102 = vsel %vm1087, %v2079, 0
      %v2105 = vsel %vm1112, %v2055, 0
      %2107 = vmatpush.bf16.msra.mxu0 0
      %2108 = vmatpush.bf16.msra.mxu0 0
      %2109 = vmatpush.bf16.msra.mxu0 0
      %2110 = vmatpush.bf16.msra.mxu0 0
      %2111 = vmatpush.bf16.msra.mxu0 0
      %2112 = vmatpush.bf16.msra.mxu0 0
      %2113 = vmatpush.bf16.msra.mxu0 0
      %2114 = vmatpush.bf16.msra.mxu0 %v2105
      %2115 = vmatmul.bf16.gmra.mxu0 %v2081
      %v2116 = vpop.f32.mrf.mxu0
      %v2117 = vadd.f32 0.0, %v2116
      %v2118 = vpop.f32.mrf.mxu0
      %v2119 = vadd.f32 0.0, %v2118
      %2120 = vmatmul.bf16.gmra.mxu0 %v2084
      %v2121 = vpop.f32.mrf.mxu0
      %v2122 = vadd.f32 0.0, %v2121
      %v2123 = vpop.f32.mrf.mxu0
      %v2124 = vadd.f32 0.0, %v2123
      %2125 = vmatmul.bf16.gmra.mxu0 %v2087
      %v2126 = vpop.f32.mrf.mxu0
      %v2127 = vadd.f32 0.0, %v2126
      %v2128 = vpop.f32.mrf.mxu0
      %v2129 = vadd.f32 0.0, %v2128
      %2130 = vmatmul.bf16.gmra.mxu0 %v2090
      %v2131 = vpop.f32.mrf.mxu0
      %v2132 = vadd.f32 0.0, %v2131
      %v2133 = vpop.f32.mrf.mxu0
      %v2134 = vadd.f32 0.0, %v2133
      %2135 = vmatmul.bf16.gmra.mxu0 %v2093
      %v2136 = vpop.f32.mrf.mxu0
      %v2137 = vadd.f32 0.0, %v2136
      %v2138 = vpop.f32.mrf.mxu0
      %v2139 = vadd.f32 0.0, %v2138
      %2140 = vmatmul.bf16.gmra.mxu0 %v2096
      %v2141 = vpop.f32.mrf.mxu0
      %v2142 = vadd.f32 0.0, %v2141
      %v2143 = vpop.f32.mrf.mxu0
      %v2144 = vadd.f32 0.0, %v2143
      %2145 = vmatmul.bf16.gmra.mxu0 %v2099
      %v2146 = vpop.f32.mrf.mxu0
      %v2147 = vadd.f32 0.0, %v2146
      %v2148 = vpop.f32.mrf.mxu0
      %v2149 = vadd.f32 0.0, %v2148
      %2150 = vmatmul.bf16.gmra.mxu0 %v2102
      %v2151 = vpop.f32.mrf.mxu0
      %v2152 = vadd.f32 0.0, %v2151
      %v2153 = vpop.f32.mrf.mxu0
      %v2154 = vadd.f32 0.0, %v2153
      %2155 = vdwg.mxu0
      %v2156 = vadd.f32 %v1950, %v2117
      %v2157 = vadd.f32 %v1951, %v2119
      %v2158 = vadd.f32 %v1952, %v2122
      %v2159 = vadd.f32 %v1953, %v2124
      %v2160 = vadd.f32 %v1954, %v2127
      %v2161 = vadd.f32 %v1955, %v2129
      %v2162 = vadd.f32 %v1956, %v2132
      %v2163 = vadd.f32 %v1957, %v2134
      %v2164 = vadd.f32 %v1958, %v2137
      %v2165 = vadd.f32 %v1959, %v2139
      %v2166 = vadd.f32 %v1960, %v2142
      %v2167 = vadd.f32 %v1961, %v2144
      %v2168 = vadd.f32 %v1962, %v2147
      %v2169 = vadd.f32 %v1963, %v2149
      %v2170 = vadd.f32 %v1964, %v2152
      %v2171 = vadd.f32 %v1965, %v2154
      %s2172 = scalar_lea.vmem [#allocation2], 24
      %v2173 = vld [vmem:[%s2172] sm:$0xf]
      %v2174 = vld [vmem:[%s2172 + $0x4] sm:$0xf]
      %v2175 = vld [vmem:[%s2172 + $0xc] sm:$0xf]
      %v2176 = vld [vmem:[%s2172 + $0x10] sm:$0xf]
      %v2177 = vld [vmem:[%s2172 + $0x18] sm:$0xf]
      %v2178 = vld [vmem:[%s2172 + $0x1c] sm:$0xf]
      %v2179 = vld [vmem:[%s2172 + $0x24] sm:$0xf]
      %v2180 = vld [vmem:[%s2172 + $0x28] sm:$0xf]
      %v2181 = vld [vmem:[%s2172 + $0x30] sm:$0xf]
      %v2182 = vld [vmem:[%s2172 + $0x34] sm:$0xf]
      %v2183 = vld [vmem:[%s2172 + $0x3c] sm:$0xf]
      %v2184 = vld [vmem:[%s2172 + $0x40] sm:$0xf]
      %v2185 = vld [vmem:[%s2172 + $0x48] sm:$0xf]
      %v2186 = vld [vmem:[%s2172 + $0x4c] sm:$0xf]
      %v2187 = vld [vmem:[%s2172 + $0x54] sm:$0xf]
      %v2188 = vld [vmem:[%s2172 + $0x58] sm:$0xf]
      %s2189 = scalar_lea.vmem %s3, 24
      %v2190 = vld [vmem:[%s2189] sm:$0xf]
      %v2207 = vunpack.c.l.b16 %v2173
      %v2208 = vunpack.c.l.b16 %v2174
      %v2209 = vunpack.c.l.b16 %v2175
      %v2210 = vunpack.c.l.b16 %v2176
      %v2211 = vunpack.c.l.b16 %v2177
      %v2212 = vunpack.c.l.b16 %v2178
      %v2213 = vunpack.c.l.b16 %v2179
      %v2214 = vunpack.c.l.b16 %v2180
      %v2215 = vunpack.c.l.b16 %v2181
      %v2216 = vunpack.c.l.b16 %v2182
      %v2217 = vunpack.c.l.b16 %v2183
      %v2218 = vunpack.c.l.b16 %v2184
      %v2219 = vunpack.c.l.b16 %v2185
      %v2220 = vunpack.c.l.b16 %v2186
      %v2221 = vunpack.c.l.b16 %v2187
      %v2222 = vunpack.c.l.b16 %v2188
      %v2223 = vpack.c.b16 %v2208, %v2207
      %v2224 = vpack.c.b16 %v2210, %v2209
      %v2225 = vpack.c.b16 %v2212, %v2211
      %v2226 = vpack.c.b16 %v2214, %v2213
      %v2227 = vpack.c.b16 %v2216, %v2215
      %v2228 = vpack.c.b16 %v2218, %v2217
      %v2229 = vpack.c.b16 %v2220, %v2219
      %v2230 = vpack.c.b16 %v2222, %v2221
      %v2232 = vsel %vm1087, %v2223, 0
      %v2235 = vsel %vm1087, %v2224, 0
      %v2238 = vsel %vm1087, %v2225, 0
      %v2241 = vsel %vm1087, %v2226, 0
      %v2244 = vsel %vm1087, %v2227, 0
      %v2247 = vsel %vm1087, %v2228, 0
      %v2250 = vsel %vm1087, %v2229, 0
      %v2253 = vsel %vm1087, %v2230, 0
      %v2256 = vsel %vm1112, %v2190, 0
      %2258 = vmatpush.bf16.msra.mxu0 0
      %2259 = vmatpush.bf16.msra.mxu0 0
      %2260 = vmatpush.bf16.msra.mxu0 0
      %2261 = vmatpush.bf16.msra.mxu0 0
      %2262 = vmatpush.bf16.msra.mxu0 0
      %2263 = vmatpush.bf16.msra.mxu0 0
      %2264 = vmatpush.bf16.msra.mxu0 0
      %2265 = vmatpush.bf16.msra.mxu0 %v2256
      %2266 = vmatmul.bf16.gmra.mxu0 %v2232
      %v2267 = vpop.f32.mrf.mxu0
      %v2268 = vadd.f32 0.0, %v2267
      %v2269 = vpop.f32.mrf.mxu0
      %v2270 = vadd.f32 0.0, %v2269
      %2271 = vmatmul.bf16.gmra.mxu0 %v2235
      %v2272 = vpop.f32.mrf.mxu0
      %v2273 = vadd.f32 0.0, %v2272
      %v2274 = vpop.f32.mrf.mxu0
      %v2275 = vadd.f32 0.0, %v2274
      %2276 = vmatmul.bf16.gmra.mxu0 %v2238
      %v2277 = vpop.f32.mrf.mxu0
      %v2278 = vadd.f32 0.0, %v2277
      %v2279 = vpop.f32.mrf.mxu0
      %v2280 = vadd.f32 0.0, %v2279
      %2281 = vmatmul.bf16.gmra.mxu0 %v2241
      %v2282 = vpop.f32.mrf.mxu0
      %v2283 = vadd.f32 0.0, %v2282
      %v2284 = vpop.f32.mrf.mxu0
      %v2285 = vadd.f32 0.0, %v2284
      %2286 = vmatmul.bf16.gmra.mxu0 %v2244
      %v2287 = vpop.f32.mrf.mxu0
      %v2288 = vadd.f32 0.0, %v2287
      %v2289 = vpop.f32.mrf.mxu0
      %v2290 = vadd.f32 0.0, %v2289
      %2291 = vmatmul.bf16.gmra.mxu0 %v2247
      %v2292 = vpop.f32.mrf.mxu0
      %v2293 = vadd.f32 0.0, %v2292
      %v2294 = vpop.f32.mrf.mxu0
      %v2295 = vadd.f32 0.0, %v2294
      %2296 = vmatmul.bf16.gmra.mxu0 %v2250
      %v2297 = vpop.f32.mrf.mxu0
      %v2298 = vadd.f32 0.0, %v2297
      %v2299 = vpop.f32.mrf.mxu0
      %v2300 = vadd.f32 0.0, %v2299
      %2301 = vmatmul.bf16.gmra.mxu0 %v2253
      %v2302 = vpop.f32.mrf.mxu0
      %v2303 = vadd.f32 0.0, %v2302
      %v2304 = vpop.f32.mrf.mxu0
      %v2305 = vadd.f32 0.0, %v2304
      %2306 = vdwg.mxu0
      %v2307 = vadd.f32 %v2156, %v2268
      %v2308 = vadd.f32 %v2157, %v2270
      %v2309 = vadd.f32 %v2158, %v2273
      %v2310 = vadd.f32 %v2159, %v2275
      %v2311 = vadd.f32 %v2160, %v2278
      %v2312 = vadd.f32 %v2161, %v2280
      %v2313 = vadd.f32 %v2162, %v2283
      %v2314 = vadd.f32 %v2163, %v2285
      %v2315 = vadd.f32 %v2164, %v2288
      %v2316 = vadd.f32 %v2165, %v2290
      %v2317 = vadd.f32 %v2166, %v2293
      %v2318 = vadd.f32 %v2167, %v2295
      %v2319 = vadd.f32 %v2168, %v2298
      %v2320 = vadd.f32 %v2169, %v2300
      %v2321 = vadd.f32 %v2170, %v2303
      %v2322 = vadd.f32 %v2171, %v2305
      %v2323 = vld [vmem:[%s2172] sm:$0xf]
      %v2324 = vld [vmem:[%s2172 + $0x4] sm:$0xf]
      %v2325 = vld [vmem:[%s2172 + $0x8] sm:$0x1]
      %v2326 = vld [vmem:[%s2172 + $0xc] sm:$0xf]
      %v2327 = vld [vmem:[%s2172 + $0x10] sm:$0xf]
      %v2328 = vld [vmem:[%s2172 + $0x14] sm:$0x1]
      %v2329 = vld [vmem:[%s2172 + $0x18] sm:$0xf]
      %v2330 = vld [vmem:[%s2172 + $0x1c] sm:$0xf]
      %v2331 = vld [vmem:[%s2172 + $0x20] sm:$0x1]
      %v2332 = vld [vmem:[%s2172 + $0x24] sm:$0xf]
      %v2333 = vld [vmem:[%s2172 + $0x28] sm:$0xf]
      %v2334 = vld [vmem:[%s2172 + $0x2c] sm:$0x1]
      %v2335 = vld [vmem:[%s2172 + $0x30] sm:$0xf]
      %v2336 = vld [vmem:[%s2172 + $0x34] sm:$0xf]
      %v2337 = vld [vmem:[%s2172 + $0x38] sm:$0x1]
      %v2338 = vld [vmem:[%s2172 + $0x3c] sm:$0xf]
      %v2339 = vld [vmem:[%s2172 + $0x40] sm:$0xf]
      %v2340 = vld [vmem:[%s2172 + $0x44] sm:$0x1]
      %v2341 = vld [vmem:[%s2172 + $0x48] sm:$0xf]
      %v2342 = vld [vmem:[%s2172 + $0x4c] sm:$0xf]
      %v2343 = vld [vmem:[%s2172 + $0x50] sm:$0x1]
      %v2344 = vld [vmem:[%s2172 + $0x54] sm:$0xf]
      %v2345 = vld [vmem:[%s2172 + $0x58] sm:$0xf]
      %v2346 = vld [vmem:[%s2172 + $0x5c] sm:$0x1]
      %v2348 = vshrl.u32 %v2323, 16
      %v2350 = vrot.slane %v2348, 4
      %v2351 = vshll.u32 %v2323, 16
      %v2353 = vrot.slane %v2351, 5
      %v2354 = vor.u32 %v2350, %v2353
      %v2355 = vrot.slane %v2354, 4
      %v2357 = vshll.u32 %v2324, 16
      %v2359 = vrot.slane %v2357, 5
      %v2360 = vsel %vm868, %v2355, %v2359
      %v2361 = vshrl.u32 %v2324, 16
      %v2363 = vrot.slane %v2361, 4
      %v2364 = vor.u32 %v2363, %v2359
      %v2365 = vrot.slane %v2364, 4
      %v2367 = vshll.u32 %v2325, 16
      %v2369 = vrot.slane %v2367, 5
      %v2370 = vsel %vm868, %v2365, %v2369
      %v2372 = vshrl.u32 %v2326, 16
      %v2374 = vrot.slane %v2372, 4
      %v2375 = vshll.u32 %v2326, 16
      %v2377 = vrot.slane %v2375, 5
      %v2378 = vor.u32 %v2374, %v2377
      %v2379 = vrot.slane %v2378, 4
      %v2381 = vshll.u32 %v2327, 16
      %v2383 = vrot.slane %v2381, 5
      %v2384 = vsel %vm868, %v2379, %v2383
      %v2385 = vshrl.u32 %v2327, 16
      %v2387 = vrot.slane %v2385, 4
      %v2388 = vor.u32 %v2387, %v2383
      %v2389 = vrot.slane %v2388, 4
      %v2391 = vshll.u32 %v2328, 16
      %v2393 = vrot.slane %v2391, 5
      %v2394 = vsel %vm868, %v2389, %v2393
      %v2396 = vshrl.u32 %v2329, 16
      %v2398 = vrot.slane %v2396, 4
      %v2399 = vshll.u32 %v2329, 16
      %v2401 = vrot.slane %v2399, 5
      %v2402 = vor.u32 %v2398, %v2401
      %v2403 = vrot.slane %v2402, 4
      %v2405 = vshll.u32 %v2330, 16
      %v2407 = vrot.slane %v2405, 5
      %v2408 = vsel %vm868, %v2403, %v2407
      %v2409 = vshrl.u32 %v2330, 16
      %v2411 = vrot.slane %v2409, 4
      %v2412 = vor.u32 %v2411, %v2407
      %v2413 = vrot.slane %v2412, 4
      %v2415 = vshll.u32 %v2331, 16
      %v2417 = vrot.slane %v2415, 5
      %v2418 = vsel %vm868, %v2413, %v2417
      %v2420 = vshrl.u32 %v2332, 16
      %v2422 = vrot.slane %v2420, 4
      %v2423 = vshll.u32 %v2332, 16
      %v2425 = vrot.slane %v2423, 5
      %v2426 = vor.u32 %v2422, %v2425
      %v2427 = vrot.slane %v2426, 4
      %v2429 = vshll.u32 %v2333, 16
      %v2431 = vrot.slane %v2429, 5
      %v2432 = vsel %vm868, %v2427, %v2431
      %v2433 = vshrl.u32 %v2333, 16
      %v2435 = vrot.slane %v2433, 4
      %v2436 = vor.u32 %v2435, %v2431
      %v2437 = vrot.slane %v2436, 4
      %v2439 = vshll.u32 %v2334, 16
      %v2441 = vrot.slane %v2439, 5
      %v2442 = vsel %vm868, %v2437, %v2441
      %v2444 = vshrl.u32 %v2335, 16
      %v2446 = vrot.slane %v2444, 4
      %v2447 = vshll.u32 %v2335, 16
      %v2449 = vrot.slane %v2447, 5
      %v2450 = vor.u32 %v2446, %v2449
      %v2451 = vrot.slane %v2450, 4
      %v2453 = vshll.u32 %v2336, 16
      %v2455 = vrot.slane %v2453, 5
      %v2456 = vsel %vm868, %v2451, %v2455
      %v2457 = vshrl.u32 %v2336, 16
      %v2459 = vrot.slane %v2457, 4
      %v2460 = vor.u32 %v2459, %v2455
      %v2461 = vrot.slane %v2460, 4
      %v2463 = vshll.u32 %v2337, 16
      %v2465 = vrot.slane %v2463, 5
      %v2466 = vsel %vm868, %v2461, %v2465
      %v2468 = vshrl.u32 %v2338, 16
      %v2470 = vrot.slane %v2468, 4
      %v2471 = vshll.u32 %v2338, 16
      %v2473 = vrot.slane %v2471, 5
      %v2474 = vor.u32 %v2470, %v2473
      %v2475 = vrot.slane %v2474, 4
      %v2477 = vshll.u32 %v2339, 16
      %v2479 = vrot.slane %v2477, 5
      %v2480 = vsel %vm868, %v2475, %v2479
      %v2481 = vshrl.u32 %v2339, 16
      %v2483 = vrot.slane %v2481, 4
      %v2484 = vor.u32 %v2483, %v2479
      %v2485 = vrot.slane %v2484, 4
      %v2487 = vshll.u32 %v2340, 16
      %v2489 = vrot.slane %v2487, 5
      %v2490 = vsel %vm868, %v2485, %v2489
      %v2492 = vshrl.u32 %v2341, 16
      %v2494 = vrot.slane %v2492, 4
      %v2495 = vshll.u32 %v2341, 16
      %v2497 = vrot.slane %v2495, 5
      %v2498 = vor.u32 %v2494, %v2497
      %v2499 = vrot.slane %v2498, 4
      %v2501 = vshll.u32 %v2342, 16
      %v2503 = vrot.slane %v2501, 5
      %v2504 = vsel %vm868, %v2499, %v2503
      %v2505 = vshrl.u32 %v2342, 16
      %v2507 = vrot.slane %v2505, 4
      %v2508 = vor.u32 %v2507, %v2503
      %v2509 = vrot.slane %v2508, 4
      %v2511 = vshll.u32 %v2343, 16
      %v2513 = vrot.slane %v2511, 5
      %v2514 = vsel %vm868, %v2509, %v2513
      %v2516 = vshrl.u32 %v2344, 16
      %v2518 = vrot.slane %v2516, 4
      %v2519 = vshll.u32 %v2344, 16
      %v2521 = vrot.slane %v2519, 5
      %v2522 = vor.u32 %v2518, %v2521
      %v2523 = vrot.slane %v2522, 4
      %v2525 = vshll.u32 %v2345, 16
      %v2527 = vrot.slane %v2525, 5
      %v2528 = vsel %vm868, %v2523, %v2527
      %v2529 = vshrl.u32 %v2345, 16
      %v2531 = vrot.slane %v2529, 4
      %v2532 = vor.u32 %v2531, %v2527
      %v2533 = vrot.slane %v2532, 4
      %v2535 = vshll.u32 %v2346, 16
      %v2537 = vrot.slane %v2535, 5
      %v2538 = vsel %vm868, %v2533, %v2537
      %s2539 = scalar_lea.vmem %s3, 28
      %v2540 = vld [vmem:[%s2539] sm:$0xf]
      %v2541 = vunpack.c.l.b16 %v2360
      %v2542 = vunpack.c.l.b16 %v2370
      %v2543 = vunpack.c.l.b16 %v2384
      %v2544 = vunpack.c.l.b16 %v2394
      %v2545 = vunpack.c.l.b16 %v2408
      %v2546 = vunpack.c.l.b16 %v2418
      %v2547 = vunpack.c.l.b16 %v2432
      %v2548 = vunpack.c.l.b16 %v2442
      %v2549 = vunpack.c.l.b16 %v2456
      %v2550 = vunpack.c.l.b16 %v2466
      %v2551 = vunpack.c.l.b16 %v2480
      %v2552 = vunpack.c.l.b16 %v2490
      %v2553 = vunpack.c.l.b16 %v2504
      %v2554 = vunpack.c.l.b16 %v2514
      %v2555 = vunpack.c.l.b16 %v2528
      %v2556 = vunpack.c.l.b16 %v2538
      %v2557 = vpack.c.b16 %v2542, %v2541
      %v2558 = vpack.c.b16 %v2544, %v2543
      %v2559 = vpack.c.b16 %v2546, %v2545
      %v2560 = vpack.c.b16 %v2548, %v2547
      %v2561 = vpack.c.b16 %v2550, %v2549
      %v2562 = vpack.c.b16 %v2552, %v2551
      %v2563 = vpack.c.b16 %v2554, %v2553
      %v2564 = vpack.c.b16 %v2556, %v2555
      %v2566 = vsel %vm1087, %v2557, 0
      %v2569 = vsel %vm1087, %v2558, 0
      %v2572 = vsel %vm1087, %v2559, 0
      %v2575 = vsel %vm1087, %v2560, 0
      %v2578 = vsel %vm1087, %v2561, 0
      %v2581 = vsel %vm1087, %v2562, 0
      %v2584 = vsel %vm1087, %v2563, 0
      %v2587 = vsel %vm1087, %v2564, 0
      %v2590 = vsel %vm1112, %v2540, 0
      %2592 = vmatpush.bf16.msra.mxu0 0
      %2593 = vmatpush.bf16.msra.mxu0 0
      %2594 = vmatpush.bf16.msra.mxu0 0
      %2595 = vmatpush.bf16.msra.mxu0 0
      %2596 = vmatpush.bf16.msra.mxu0 0
      %2597 = vmatpush.bf16.msra.mxu0 0
      %2598 = vmatpush.bf16.msra.mxu0 0
      %2599 = vmatpush.bf16.msra.mxu0 %v2590
      %2600 = vmatmul.bf16.gmra.mxu0 %v2566
      %v2601 = vpop.f32.mrf.mxu0
      %v2602 = vadd.f32 0.0, %v2601
      %v2603 = vpop.f32.mrf.mxu0
      %v2604 = vadd.f32 0.0, %v2603
      %2605 = vmatmul.bf16.gmra.mxu0 %v2569
      %v2606 = vpop.f32.mrf.mxu0
      %v2607 = vadd.f32 0.0, %v2606
      %v2608 = vpop.f32.mrf.mxu0
      %v2609 = vadd.f32 0.0, %v2608
      %2610 = vmatmul.bf16.gmra.mxu0 %v2572
      %v2611 = vpop.f32.mrf.mxu0
      %v2612 = vadd.f32 0.0, %v2611
      %v2613 = vpop.f32.mrf.mxu0
      %v2614 = vadd.f32 0.0, %v2613
      %2615 = vmatmul.bf16.gmra.mxu0 %v2575
      %v2616 = vpop.f32.mrf.mxu0
      %v2617 = vadd.f32 0.0, %v2616
      %v2618 = vpop.f32.mrf.mxu0
      %v2619 = vadd.f32 0.0, %v2618
      %2620 = vmatmul.bf16.gmra.mxu0 %v2578
      %v2621 = vpop.f32.mrf.mxu0
      %v2622 = vadd.f32 0.0, %v2621
      %v2623 = vpop.f32.mrf.mxu0
      %v2624 = vadd.f32 0.0, %v2623
      %2625 = vmatmul.bf16.gmra.mxu0 %v2581
      %v2626 = vpop.f32.mrf.mxu0
      %v2627 = vadd.f32 0.0, %v2626
      %v2628 = vpop.f32.mrf.mxu0
      %v2629 = vadd.f32 0.0, %v2628
      %2630 = vmatmul.bf16.gmra.mxu0 %v2584
      %v2631 = vpop.f32.mrf.mxu0
      %v2632 = vadd.f32 0.0, %v2631
      %v2633 = vpop.f32.mrf.mxu0
      %v2634 = vadd.f32 0.0, %v2633
      %2635 = vmatmul.bf16.gmra.mxu0 %v2587
      %v2636 = vpop.f32.mrf.mxu0
      %v2637 = vadd.f32 0.0, %v2636
      %v2638 = vpop.f32.mrf.mxu0
      %v2639 = vadd.f32 0.0, %v2638
      %2640 = vdwg.mxu0
      %v2641 = vadd.f32 %v2307, %v2602
      %v2642 = vadd.f32 %v2308, %v2604
      %v2643 = vadd.f32 %v2309, %v2607
      %v2644 = vadd.f32 %v2310, %v2609
      %v2645 = vadd.f32 %v2311, %v2612
      %v2646 = vadd.f32 %v2312, %v2614
      %v2647 = vadd.f32 %v2313, %v2617
      %v2648 = vadd.f32 %v2314, %v2619
      %v2649 = vadd.f32 %v2315, %v2622
      %v2650 = vadd.f32 %v2316, %v2624
      %v2651 = vadd.f32 %v2317, %v2627
      %v2652 = vadd.f32 %v2318, %v2629
      %v2653 = vadd.f32 %v2319, %v2632
      %v2654 = vadd.f32 %v2320, %v2634
      %v2655 = vadd.f32 %v2321, %v2637
      %v2656 = vadd.f32 %v2322, %v2639
      %v2657 = vld [vmem:[%s2172] sm:$0xe]
      %v2658 = vld [vmem:[%s2172 + $0xc] sm:$0xe]
      %v2659 = vld [vmem:[%s2172 + $0x18] sm:$0xe]
      %v2660 = vld [vmem:[%s2172 + $0x24] sm:$0xe]
      %v2661 = vld [vmem:[%s2172 + $0x30] sm:$0xe]
      %v2662 = vld [vmem:[%s2172 + $0x3c] sm:$0xe]
      %v2663 = vld [vmem:[%s2172 + $0x48] sm:$0xe]
      %v2664 = vld [vmem:[%s2172 + $0x54] sm:$0xe]
      %v2689 = vrot.slane %v2657, 5
      %v2690 = vrot.slane %v2689, 4
      %v2691 = vrot.slane %v2324, 5
      %v2692 = vsel %vm1307, %v2690, %v2691
      %v2693 = vrot.slane %v2691, 4
      %v2694 = vrot.slane %v2325, 5
      %v2695 = vsel %vm1307, %v2693, %v2694
      %v2696 = vrot.slane %v2658, 5
      %v2697 = vrot.slane %v2696, 4
      %v2698 = vrot.slane %v2327, 5
      %v2699 = vsel %vm1307, %v2697, %v2698
      %v2700 = vrot.slane %v2698, 4
      %v2701 = vrot.slane %v2328, 5
      %v2702 = vsel %vm1307, %v2700, %v2701
      %v2703 = vrot.slane %v2659, 5
      %v2704 = vrot.slane %v2703, 4
      %v2705 = vrot.slane %v2330, 5
      %v2706 = vsel %vm1307, %v2704, %v2705
      %v2707 = vrot.slane %v2705, 4
      %v2708 = vrot.slane %v2331, 5
      %v2709 = vsel %vm1307, %v2707, %v2708
      %v2710 = vrot.slane %v2660, 5
      %v2711 = vrot.slane %v2710, 4
      %v2712 = vrot.slane %v2333, 5
      %v2713 = vsel %vm1307, %v2711, %v2712
      %v2714 = vrot.slane %v2712, 4
      %v2715 = vrot.slane %v2334, 5
      %v2716 = vsel %vm1307, %v2714, %v2715
      %v2717 = vrot.slane %v2661, 5
      %v2718 = vrot.slane %v2717, 4
      %v2719 = vrot.slane %v2336, 5
      %v2720 = vsel %vm1307, %v2718, %v2719
      %v2721 = vrot.slane %v2719, 4
      %v2722 = vrot.slane %v2337, 5
      %v2723 = vsel %vm1307, %v2721, %v2722
      %v2724 = vrot.slane %v2662, 5
      %v2725 = vrot.slane %v2724, 4
      %v2726 = vrot.slane %v2339, 5
      %v2727 = vsel %vm1307, %v2725, %v2726
      %v2728 = vrot.slane %v2726, 4
      %v2729 = vrot.slane %v2340, 5
      %v2730 = vsel %vm1307, %v2728, %v2729
      %v2731 = vrot.slane %v2663, 5
      %v2732 = vrot.slane %v2731, 4
      %v2733 = vrot.slane %v2342, 5
      %v2734 = vsel %vm1307, %v2732, %v2733
      %v2735 = vrot.slane %v2733, 4
      %v2736 = vrot.slane %v2343, 5
      %v2737 = vsel %vm1307, %v2735, %v2736
      %v2738 = vrot.slane %v2664, 5
      %v2739 = vrot.slane %v2738, 4
      %v2740 = vrot.slane %v2345, 5
      %v2741 = vsel %vm1307, %v2739, %v2740
      %v2742 = vrot.slane %v2740, 4
      %v2743 = vrot.slane %v2346, 5
      %v2744 = vsel %vm1307, %v2742, %v2743
      %s2745 = scalar_lea.vmem %s3, 32
      %v2746 = vld [vmem:[%s2745] sm:$0xf]
      %v2747 = vunpack.c.l.b16 %v2692
      %v2748 = vunpack.c.l.b16 %v2695
      %v2749 = vunpack.c.l.b16 %v2699
      %v2750 = vunpack.c.l.b16 %v2702
      %v2751 = vunpack.c.l.b16 %v2706
      %v2752 = vunpack.c.l.b16 %v2709
      %v2753 = vunpack.c.l.b16 %v2713
      %v2754 = vunpack.c.l.b16 %v2716
      %v2755 = vunpack.c.l.b16 %v2720
      %v2756 = vunpack.c.l.b16 %v2723
      %v2757 = vunpack.c.l.b16 %v2727
      %v2758 = vunpack.c.l.b16 %v2730
      %v2759 = vunpack.c.l.b16 %v2734
      %v2760 = vunpack.c.l.b16 %v2737
      %v2761 = vunpack.c.l.b16 %v2741
      %v2762 = vunpack.c.l.b16 %v2744
      %v2763 = vpack.c.b16 %v2748, %v2747
      %v2764 = vpack.c.b16 %v2750, %v2749
      %v2765 = vpack.c.b16 %v2752, %v2751
      %v2766 = vpack.c.b16 %v2754, %v2753
      %v2767 = vpack.c.b16 %v2756, %v2755
      %v2768 = vpack.c.b16 %v2758, %v2757
      %v2769 = vpack.c.b16 %v2760, %v2759
      %v2770 = vpack.c.b16 %v2762, %v2761
      %v2772 = vsel %vm1087, %v2763, 0
      %v2775 = vsel %vm1087, %v2764, 0
      %v2778 = vsel %vm1087, %v2765, 0
      %v2781 = vsel %vm1087, %v2766, 0
      %v2784 = vsel %vm1087, %v2767, 0
      %v2787 = vsel %vm1087, %v2768, 0
      %v2790 = vsel %vm1087, %v2769, 0
      %v2793 = vsel %vm1087, %v2770, 0
      %v2796 = vsel %vm1112, %v2746, 0
      %2798 = vmatpush.bf16.msra.mxu0 0
      %2799 = vmatpush.bf16.msra.mxu0 0
      %2800 = vmatpush.bf16.msra.mxu0 0
      %2801 = vmatpush.bf16.msra.mxu0 0
      %2802 = vmatpush.bf16.msra.mxu0 0
      %2803 = vmatpush.bf16.msra.mxu0 0
      %2804 = vmatpush.bf16.msra.mxu0 0
      %2805 = vmatpush.bf16.msra.mxu0 %v2796
      %2806 = vmatmul.bf16.gmra.mxu0 %v2772
      %v2807 = vpop.f32.mrf.mxu0
      %v2808 = vadd.f32 0.0, %v2807
      %v2809 = vpop.f32.mrf.mxu0
      %v2810 = vadd.f32 0.0, %v2809
      %2811 = vmatmul.bf16.gmra.mxu0 %v2775
      %v2812 = vpop.f32.mrf.mxu0
      %v2813 = vadd.f32 0.0, %v2812
      %v2814 = vpop.f32.mrf.mxu0
      %v2815 = vadd.f32 0.0, %v2814
      %2816 = vmatmul.bf16.gmra.mxu0 %v2778
      %v2817 = vpop.f32.mrf.mxu0
      %v2818 = vadd.f32 0.0, %v2817
      %v2819 = vpop.f32.mrf.mxu0
      %v2820 = vadd.f32 0.0, %v2819
      %2821 = vmatmul.bf16.gmra.mxu0 %v2781
      %v2822 = vpop.f32.mrf.mxu0
      %v2823 = vadd.f32 0.0, %v2822
      %v2824 = vpop.f32.mrf.mxu0
      %v2825 = vadd.f32 0.0, %v2824
      %2826 = vmatmul.bf16.gmra.mxu0 %v2784
      %v2827 = vpop.f32.mrf.mxu0
      %v2828 = vadd.f32 0.0, %v2827
      %v2829 = vpop.f32.mrf.mxu0
      %v2830 = vadd.f32 0.0, %v2829
      %2831 = vmatmul.bf16.gmra.mxu0 %v2787
      %v2832 = vpop.f32.mrf.mxu0
      %v2833 = vadd.f32 0.0, %v2832
      %v2834 = vpop.f32.mrf.mxu0
      %v2835 = vadd.f32 0.0, %v2834
      %2836 = vmatmul.bf16.gmra.mxu0 %v2790
      %v2837 = vpop.f32.mrf.mxu0
      %v2838 = vadd.f32 0.0, %v2837
      %v2839 = vpop.f32.mrf.mxu0
      %v2840 = vadd.f32 0.0, %v2839
      %2841 = vmatmul.bf16.gmra.mxu0 %v2793
      %v2842 = vpop.f32.mrf.mxu0
      %v2843 = vadd.f32 0.0, %v2842
      %v2844 = vpop.f32.mrf.mxu0
      %v2845 = vadd.f32 0.0, %v2844
      %2846 = vdwg.mxu0
      %v2847 = vadd.f32 %v2641, %v2808
      %v2848 = vadd.f32 %v2642, %v2810
      %v2849 = vadd.f32 %v2643, %v2813
      %v2850 = vadd.f32 %v2644, %v2815
      %v2851 = vadd.f32 %v2645, %v2818
      %v2852 = vadd.f32 %v2646, %v2820
      %v2853 = vadd.f32 %v2647, %v2823
      %v2854 = vadd.f32 %v2648, %v2825
      %v2855 = vadd.f32 %v2649, %v2828
      %v2856 = vadd.f32 %v2650, %v2830
      %v2857 = vadd.f32 %v2651, %v2833
      %v2858 = vadd.f32 %v2652, %v2835
      %v2859 = vadd.f32 %v2653, %v2838
      %v2860 = vadd.f32 %v2654, %v2840
      %v2861 = vadd.f32 %v2655, %v2843
      %v2862 = vadd.f32 %v2656, %v2845
      %v2863 = vpack.c.bf16 %v2847, %v2847
      %v2864 = vpack.c.bf16 %v2848, %v2848
      %v2865 = vpack.c.bf16 %v2849, %v2849
      %v2866 = vpack.c.bf16 %v2850, %v2850
      %v2867 = vpack.c.bf16 %v2851, %v2851
      %v2868 = vpack.c.bf16 %v2852, %v2852
      %v2869 = vpack.c.bf16 %v2853, %v2853
      %v2870 = vpack.c.bf16 %v2854, %v2854
      %v2871 = vpack.c.bf16 %v2855, %v2855
      %v2872 = vpack.c.bf16 %v2856, %v2856
      %v2873 = vpack.c.bf16 %v2857, %v2857
      %v2874 = vpack.c.bf16 %v2858, %v2858
      %v2875 = vpack.c.bf16 %v2859, %v2859
      %v2876 = vpack.c.bf16 %v2860, %v2860
      %v2877 = vpack.c.bf16 %v2861, %v2861
      %v2878 = vpack.c.bf16 %v2862, %v2862
      %2879 = vst [vmem:[%s454] sm:$0xf] %v2863
      %2880 = vst [vmem:[%s454 + $0x4] sm:$0xf] %v2864
      %2881 = vst [vmem:[%s454 + $0x8] sm:$0xf] %v2865
      %2882 = vst [vmem:[%s454 + $0xc] sm:$0xf] %v2866
      %2883 = vst [vmem:[%s454 + $0x10] sm:$0xf] %v2867
      %2884 = vst [vmem:[%s454 + $0x14] sm:$0xf] %v2868
      %2885 = vst [vmem:[%s454 + $0x18] sm:$0xf] %v2869
      %2886 = vst [vmem:[%s454 + $0x1c] sm:$0xf] %v2870
      %2887 = vst [vmem:[%s454 + $0x20] sm:$0xf] %v2871
      %2888 = vst [vmem:[%s454 + $0x24] sm:$0xf] %v2872
      %2889 = vst [vmem:[%s454 + $0x28] sm:$0xf] %v2873
      %2890 = vst [vmem:[%s454 + $0x2c] sm:$0xf] %v2874
      %2891 = vst [vmem:[%s454 + $0x30] sm:$0xf] %v2875
      %2892 = vst [vmem:[%s454 + $0x34] sm:$0xf] %v2876
      %2893 = vst [vmem:[%s454 + $0x38] sm:$0xf] %v2877
      %2894 = vst [vmem:[%s454 + $0x3c] sm:$0xf] %v2878
      %v2895 = vadd.f32 %v2847, %v2848
      %v2896 = vadd.f32 %v2895, %v2849
      %v2897 = vadd.f32 %v2896, %v2850
      %v2898 = vadd.f32 %v2897, %v2851
      %v2899 = vadd.f32 %v2898, %v2852
      %v2900 = vadd.f32 %v2899, %v2853
      %v2901 = vadd.f32 %v2900, %v2854
      %v2902 = vadd.f32 %v2901, %v2855
      %v2903 = vadd.f32 %v2902, %v2856
      %v2904 = vadd.f32 %v2903, %v2857
      %v2905 = vadd.f32 %v2904, %v2858
      %v2906 = vadd.f32 %v2905, %v2859
      %v2907 = vadd.f32 %v2906, %v2860
      %v2908 = vadd.f32 %v2907, %v2861
      %v2909 = vadd.f32 %v2908, %v2862
      %v2910 = vrot.slane %v2909, 4
      %v2911 = vadd.f32 %v2909, %v2910
      %v2912 = vrot.slane %v2911, 2
      %v2913 = vadd.f32 %v2911, %v2912
      %v2914 = vrot.slane %v2913, 1
      %v2915 = vadd.f32 %v2913, %v2914
      %v2916 = vmul.f32 %v2915, 0.0078125
      %v2917 = vsub.f32 %v2847, %v2916
      %v2918 = vsub.f32 %v2848, %v2916
      %v2919 = vsub.f32 %v2849, %v2916
      %v2920 = vsub.f32 %v2850, %v2916
      %v2921 = vsub.f32 %v2851, %v2916
      %v2922 = vsub.f32 %v2852, %v2916
      %v2923 = vsub.f32 %v2853, %v2916
      %v2924 = vsub.f32 %v2854, %v2916
      %v2925 = vsub.f32 %v2855, %v2916
      %v2926 = vsub.f32 %v2856, %v2916
      %v2927 = vsub.f32 %v2857, %v2916
      %v2928 = vsub.f32 %v2858, %v2916
      %v2929 = vsub.f32 %v2859, %v2916
      %v2930 = vsub.f32 %v2860, %v2916
      %v2931 = vsub.f32 %v2861, %v2916
      %v2932 = vsub.f32 %v2862, %v2916
      %v2933 = vmul.f32 %v2917, %v2917
      %v2934 = vmul.f32 %v2918, %v2918
      %v2935 = vmul.f32 %v2919, %v2919
      %v2936 = vmul.f32 %v2920, %v2920
      %v2937 = vmul.f32 %v2921, %v2921
      %v2938 = vmul.f32 %v2922, %v2922
      %v2939 = vmul.f32 %v2923, %v2923
      %v2940 = vmul.f32 %v2924, %v2924
      %v2941 = vmul.f32 %v2925, %v2925
      %v2942 = vmul.f32 %v2926, %v2926
      %v2943 = vmul.f32 %v2927, %v2927
      %v2944 = vmul.f32 %v2928, %v2928
      %v2945 = vmul.f32 %v2929, %v2929
      %v2946 = vmul.f32 %v2930, %v2930
      %v2947 = vmul.f32 %v2931, %v2931
      %v2948 = vmul.f32 %v2932, %v2932
      %v2949 = vadd.f32 %v2933, %v2934
      %v2950 = vadd.f32 %v2949, %v2935
      %v2951 = vadd.f32 %v2950, %v2936
      %v2952 = vadd.f32 %v2951, %v2937
      %v2953 = vadd.f32 %v2952, %v2938
      %v2954 = vadd.f32 %v2953, %v2939
      %v2955 = vadd.f32 %v2954, %v2940
      %v2956 = vadd.f32 %v2955, %v2941
      %v2957 = vadd.f32 %v2956, %v2942
      %v2958 = vadd.f32 %v2957, %v2943
      %v2959 = vadd.f32 %v2958, %v2944
      %v2960 = vadd.f32 %v2959, %v2945
      %v2961 = vadd.f32 %v2960, %v2946
      %v2962 = vadd.f32 %v2961, %v2947
      %v2963 = vadd.f32 %v2962, %v2948
      %v2964 = vrot.slane %v2963, 4
      %v2965 = vadd.f32 %v2963, %v2964
      %v2966 = vrot.slane %v2965, 2
      %v2967 = vadd.f32 %v2965, %v2966
      %v2968 = vrot.slane %v2967, 1
      %v2969 = vadd.f32 %v2967, %v2968
      %vm2970 = vcmask 1040384
      %v2971 = vsel %vm2970, %v2915, %v2969
      %2972 = vst [vmem:[%s463] sm:$0x3] %v2971
      %s2973 = smul.u32 %s23, 2
      %s2974 = sadd.s32 %s2973, %s24
      %s2975 = smul.u32 16, %s2974
      %p2976 = scmp.lt.s32.totalorder %s2975, 63
      %s2977 = scalar_select %p2976, %s2975, 63
      %s2978 = smul.addr %s2977, 4
      %s2979 = scalar_lea.vmem %s6, %s2978
      %s2980 = smul.u32 %s23, 2
      %s2981 = sadd.s32 %s2980, %s24
      %p2982 = scmp.lt.s32.totalorder %s2981, 3
      %s2983 = scalar_select %p2982, %s2981, 3
      %s2984 = smul.addr %s2983, 2
      %s2985 = scalar_lea.vmem %s7, %s2984
      // Predicated region
      $region45: #{up_forward.3} parent=43 // pred_check
        %p2986 = pneg %p216
      $region46: #{up_forward.3} parent=43 // pred_check_branch
        %2988 = sbr.rel (%p2986) target = $region48
      $region47: #{up_forward.3} parent=43 // pred_region
        %s2989 = smul.u32 %s23, 2
        %s2990 = sadd.s32 %s2989, %s24
        %s2991 = smul.u32 16, %s2990
      $region48: #{up_forward.3} parent=43 // pred_fallthru
        _
      // Predicated region
      $region49: #{up_forward.3} parent=43 // pred_check
        %p2992 = pneg %p246
      $region50: #{up_forward.3} parent=43 // pred_check_branch
        %2994 = sbr.rel (%p2992) target = $region52
      $region51: #{up_forward.3} parent=43 // pred_region
        %s2995 = smul.u32 %s23, 2
        %s2996 = sadd.s32 %s2995, %s24
      $region52: #{up_forward.3} parent=43 // pred_fallthru
        _
    $region44: #{up_forward.3} parent=5 // pred_fallthru
      _
    %p2997 = scmp.le.s32.totalorder 2, %s14
    // Predicated region
    $region53: #{up_forward.3} parent=5 // pred_check
      %p2998 = pneg %p2997
    $region54: #{up_forward.3} parent=5 // pred_check_branch
      %3000 = sbr.rel (%p2998) target = $region56
    $region55: #{up_forward.3} parent=5 // pred_region
      %s3001 = ssub.s32 %s14, 2
      // Predicated region
      $region57: #{up_forward.3} parent=55 // pred_check
        %p3002 = pneg %p222
      $region58: #{up_forward.3} parent=55 // pred_check_branch
        %3004 = sbr.rel (%p3002) target = $region60
      $region59: #{up_forward.3} parent=55 // pred_region
        %s3005 = smul.u32 %s25, 2
        %s3006 = sadd.s32 %s3005, %s26
        %s3007 = smul.u32 16, %s3006
        %p3008 = scmp.lt.s32.totalorder %s3007, 63
        %s3009 = scalar_select %p3008, %s3007, 63
        %s3010 = smul.addr %s3009, 4
        %s3011 = scalar_lea.vmem %s6, %s3010
      $region60: #{up_forward.3} parent=55 // pred_fallthru
        _
      // Predicated region
      $region61: #{up_forward.3} parent=55 // pred_check
        %p3012 = pneg %p252
      $region62: #{up_forward.3} parent=55 // pred_check_branch
        %3014 = sbr.rel (%p3012) target = $region64
      $region63: #{up_forward.3} parent=55 // pred_region
        %s3015 = smul.u32 %s25, 2
        %s3016 = sadd.s32 %s3015, %s26
        %p3017 = scmp.lt.s32.totalorder %s3016, 3
        %s3018 = scalar_select %p3017, %s3016, 3
        %s3019 = smul.addr %s3018, 2
        %s3020 = scalar_lea.vmem %s7, %s3019
      $region64: #{up_forward.3} parent=55 // pred_fallthru
        _
    $region56: #{up_forward.3} parent=5 // pred_fallthru
      _
  $region6: #{up_forward.3} parent=0 // loop_footer
    %s18 = sadd.s32 1, %s14
  $region7: #{up_forward.3} parent=0 // loop_footer_branch
    %13 = sbr.rel target = $region3
  $region8: #{up_forward.3} parent=0 // loop_exit
    _

// kernel: up_forward.4
$region0: #{up_forward.4}
  #allocation0 [shape = 'u32[]', space=smem, size = 0x4, offset = 0x4, fixed_abs, tag = 'smem constant byte address 0x4 - core index']
  #allocation1 [shape = 'u32[72,128]{1,0:T(1,128)}', space=vmem, size = 0x9000, scoped, tag = 'internal scratch']
  #allocation2 [shape = 'bf16[10,18,128]{2,1,0:T(8,128)(2,1)}', space=vmem, size = 0xf000, scoped, tag = 'scratch operand']
  %s0 = inlined_call_operand.vmem [shape: bf16[2,16,16,128], index: 0, kind: input, shape index: {}, may-alias: {0,1,2}]
  %s1 = inlined_call_operand.vmem [shape: bf16[2,16,16,128], index: 1, kind: input, shape index: {}, may-alias: {0,1,2}]
  %s2 = inlined_call_operand.vmem [shape: bf16[2,16,16,128], index: 2, kind: input, shape index: {}, may-alias: {0,1,2}]
  %s3 = inlined_call_operand.vmem [shape: bf16[3,3,128,128], index: 3, kind: input, shape index: {}]
  %s4 = inlined_call_operand.vmem [shape: f32[1,128], index: 4, kind: input, shape index: {}]
  %s5 = inlined_call_operand.vmem [shape: f32[1,128], index: 5, kind: input, shape index: {}]
  %s6 = inlined_call_operand.vmem [shape: bf16[512,128], index: 6, kind: output, shape index: {0}]
  %s7 = inlined_call_operand.vmem [shape: f32[4,2,128], index: 7, kind: output, shape index: {1}]
  %8 = xla_tuple %s6, %s7
  %s9 = sld [smem:[#allocation0]]
  $region65: #{up_forward.4} parent=0
    _
  %s11 = ssub.s32 1, %s9
  %s12 = scalar_select 0, %s11, %s9
  loop: start=0, step=1, limit=6
  $region2: #{up_forward.4} parent=0 // loop_pre_header
    _
  $region3: #{up_forward.4} parent=0 // loop_header
    %s14 = sphi 0, %s18
    %p15 = scmp.ge.s32.totalorder %s14, 6
    %s21 = sphi 0, %s33
    %s22 = sphi 0, %s29
    %s23 = sphi 0, %s21
    %s24 = sphi 0, %s22
    %s25 = sphi 0, %s23
    %s26 = sphi 0, %s24
    %s38 = sphi 0, %s40
    %s41 = sphi 0, %s38
    %s42 = sphi 0, %s41
    %s58 = sphi 0, %s42
    %s74 = sphi 0, %s76
    %s77 = sphi 0, %s74
    %s78 = sphi 0, %s77
    %s94 = sphi 0, %s78
    %s110 = sphi 0, %s112
    %s113 = sphi 0, %s110
    %s114 = sphi 0, %s113
    %s130 = sphi 0, %s114
    %s134 = sphi 0, %s134
    %s136 = sphi 0, %s134
    %s137 = sphi 0, %s136
    %s151 = sphi 0, %s137
    %s155 = sphi 0, %s155
    %s157 = sphi 0, %s155
    %s158 = sphi 0, %s157
    %s172 = sphi 0, %s158
    %s176 = sphi 0, %s176
    %s178 = sphi 0, %s176
    %s179 = sphi 0, %s178
    %s193 = sphi 0, %s179
    %s203 = sphi 0, %s205
    %s206 = sphi 0, %s203
    %s207 = sphi 0, %s206
    %s223 = sphi 0, %s207
    %s233 = sphi 0, %s235
    %s236 = sphi 0, %s233
    %s237 = sphi 0, %s236
    %s253 = sphi 0, %s237
  $region4: #{up_forward.4} parent=0 // loop_header_branch
    %17 = sbr.rel (%p15) target = $region8
  $region5: #{up_forward.4} parent=0 // loop_body
    %s19 = ssub.s32 %s14, 1
    %s20 = ssub.s32 %s14, 2
    %s27 = sadd.s32 1, %s22
    %p28 = scmp.ge.s32.totalorder %s27, 2
    %s29 = scalar_select %p28, 0, %s27
    %s30 = sadd.s32 1, %s21
    %s31 = scalar_select %p28, %s30, %s21
    %p32 = scmp.ge.s32.totalorder %s31, 2
    %s33 = scalar_select %p32, 0, %s31
    %s34 = ssub.s32 %s21, %s33
    %s35 = ssub.s32 %s22, %s29
    %s36 = sor.u32 %s34, %s35
    %p37 = scmp.eq.s32.totalorder %s36, 0
    %s39 = sadd.s32 %s38, 1
    %s40 = scalar_select %p37, %s38, %s39
    %p43 = pneg %p37
    %p44 = scmp.eq.s32.totalorder %s14, 3
    %p45 = por %p43, %p44
    %p46 = scmp.ne.s32.totalorder %s38, %s41
    %p47 = scmp.eq.s32.totalorder %s14, 0
    %p48 = por %p46, %p47
    %p49 = scmp.ne.s32.totalorder %s38, %s41
    %p50 = scmp.eq.s32.totalorder %s19, 3
    %p51 = por %p49, %p50
    %p52 = scmp.ne.s32.totalorder %s41, %s42
    %p53 = scmp.eq.s32.totalorder %s19, 0
    %p54 = por %p52, %p53
    %p55 = scmp.ne.s32.totalorder %s41, %s42
    %p56 = scmp.eq.s32.totalorder %s20, 3
    %p57 = por %p55, %p56
    %p59 = scmp.ne.s32.totalorder %s42, %s58
    %p60 = scmp.eq.s32.totalorder %s20, 0
    %p61 = por %p59, %p60
    %s62 = smul.u32 %s22, 8
    %s63 = ssub.s32 %s62, 1
    %p64 = scmp.gt.s32.totalorder %s63, 0
    %s65 = scalar_select %p64, %s63, 0
    %s66 = smul.u32 %s29, 8
    %s67 = ssub.s32 %s66, 1
    %p68 = scmp.gt.s32.totalorder %s67, 0
    %s69 = scalar_select %p68, %s67, 0
    %s70 = ssub.s32 %s21, %s33
    %s71 = ssub.s32 %s65, %s69
    %s72 = sor.u32 %s70, %s71
    %p73 = scmp.eq.s32.totalorder %s72, 0
    %s75 = sadd.s32 %s74, 1
    %s76 = scalar_select %p73, %s74, %s75
    %p79 = pneg %p73
    %p80 = scmp.eq.s32.totalorder %s14, 3
    %p81 = por %p79, %p80
    %p82 = scmp.ne.s32.totalorder %s74, %s77
    %p83 = scmp.eq.s32.totalorder %s14, 0
    %p84 = por %p82, %p83
    %p85 = scmp.ne.s32.totalorder %s74, %s77
    %p86 = scmp.eq.s32.totalorder %s19, 3
    %p87 = por %p85, %p86
    %p88 = scmp.ne.s32.totalorder %s77, %s78
    %p89 = scmp.eq.s32.totalorder %s19, 0
    %p90 = por %p88, %p89
    %p91 = scmp.ne.s32.totalorder %s77, %s78
    %p92 = scmp.eq.s32.totalorder %s20, 3
    %p93 = por %p91, %p92
    %p95 = scmp.ne.s32.totalorder %s78, %s94
    %p96 = scmp.eq.s32.totalorder %s20, 0
    %p97 = por %p95, %p96
    %s98 = smul.u32 %s22, 8
    %s99 = sadd.s32 %s98, 8
    %p100 = scmp.lt.s32.totalorder %s99, 15
    %s101 = scalar_select %p100, %s99, 15
    %s102 = smul.u32 %s29, 8
    %s103 = sadd.s32 %s102, 8
    %p104 = scmp.lt.s32.totalorder %s103, 15
    %s105 = scalar_select %p104, %s103, 15
    %s106 = ssub.s32 %s21, %s33
    %s107 = ssub.s32 %s101, %s105
    %s108 = sor.u32 %s106, %s107
    %p109 = scmp.eq.s32.totalorder %s108, 0
    %s111 = sadd.s32 %s110, 1
    %s112 = scalar_select %p109, %s110, %s111
    %p115 = pneg %p109
    %p116 = scmp.eq.s32.totalorder %s14, 3
    %p117 = por %p115, %p116
    %p118 = scmp.ne.s32.totalorder %s110, %s113
    %p119 = scmp.eq.s32.totalorder %s14, 0
    %p120 = por %p118, %p119
    %p121 = scmp.ne.s32.totalorder %s110, %s113
    %p122 = scmp.eq.s32.totalorder %s19, 3
    %p123 = por %p121, %p122
    %p124 = scmp.ne.s32.totalorder %s113, %s114
    %p125 = scmp.eq.s32.totalorder %s19, 0
    %p126 = por %p124, %p125
    %p127 = scmp.ne.s32.totalorder %s113, %s114
    %p128 = scmp.eq.s32.totalorder %s20, 3
    %p129 = por %p127, %p128
    %p131 = scmp.ne.s32.totalorder %s114, %s130
    %p132 = scmp.eq.s32.totalorder %s20, 0
    %p133 = por %p131, %p132
    %s135 = sadd.s32 %s134, 1
    %p138 = scmp.eq.s32.totalorder %s14, 3
    %p139 = scmp.ne.s32.totalorder %s134, %s136
    %p140 = scmp.eq.s32.totalorder %s14, 0
    %p141 = por %p139, %p140
    %p142 = scmp.ne.s32.totalorder %s134, %s136
    %p143 = scmp.eq.s32.totalorder %s19, 3
    %p144 = por %p142, %p143
    %p145 = scmp.ne.s32.totalorder %s136, %s137
    %p146 = scmp.eq.s32.totalorder %s19, 0
    %p147 = por %p145, %p146
    %p148 = scmp.ne.s32.totalorder %s136, %s137
    %p149 = scmp.eq.s32.totalorder %s20, 3
    %p150 = por %p148, %p149
    %p152 = scmp.ne.s32.totalorder %s137, %s151
    %p153 = scmp.eq.s32.totalorder %s20, 0
    %p154 = por %p152, %p153
    %s156 = sadd.s32 %s155, 1
    %p159 = scmp.eq.s32.totalorder %s14, 3
    %p160 = scmp.ne.s32.totalorder %s155, %s157
    %p161 = scmp.eq.s32.totalorder %s14, 0
    %p162 = por %p160, %p161
    %p163 = scmp.ne.s32.totalorder %s155, %s157
    %p164 = scmp.eq.s32.totalorder %s19, 3
    %p165 = por %p163, %p164
    %p166 = scmp.ne.s32.totalorder %s157, %s158
    %p167 = scmp.eq.s32.totalorder %s19, 0
    %p168 = por %p166, %p167
    %p169 = scmp.ne.s32.totalorder %s157, %s158
    %p170 = scmp.eq.s32.totalorder %s20, 3
    %p171 = por %p169, %p170
    %p173 = scmp.ne.s32.totalorder %s158, %s172
    %p174 = scmp.eq.s32.totalorder %s20, 0
    %p175 = por %p173, %p174
    %s177 = sadd.s32 %s176, 1
    %p180 = scmp.eq.s32.totalorder %s14, 3
    %p181 = scmp.ne.s32.totalorder %s176, %s178
    %p182 = scmp.eq.s32.totalorder %s14, 0
    %p183 = por %p181, %p182
    %p184 = scmp.ne.s32.totalorder %s176, %s178
    %p185 = scmp.eq.s32.totalorder %s19, 3
    %p186 = por %p184, %p185
    %p187 = scmp.ne.s32.totalorder %s178, %s179
    %p188 = scmp.eq.s32.totalorder %s19, 0
    %p189 = por %p187, %p188
    %p190 = scmp.ne.s32.totalorder %s178, %s179
    %p191 = scmp.eq.s32.totalorder %s20, 3
    %p192 = por %p190, %p191
    %p194 = scmp.ne.s32.totalorder %s179, %s193
    %p195 = scmp.eq.s32.totalorder %s20, 0
    %p196 = por %p194, %p195
    %s197 = smul.u32 %s21, 2
    %s198 = sadd.s32 %s197, %s22
    %s199 = smul.u32 %s33, 2
    %s200 = sadd.s32 %s199, %s29
    %s201 = ssub.s32 %s198, %s200
    %p202 = scmp.eq.s32.totalorder %s201, 0
    %s204 = sadd.s32 %s203, 1
    %s205 = scalar_select %p202, %s203, %s204
    %p208 = pneg %p202
    %p209 = scmp.eq.s32.totalorder %s14, 3
    %p210 = por %p208, %p209
    %p211 = scmp.ne.s32.totalorder %s203, %s206
    %p212 = scmp.eq.s32.totalorder %s14, 0
    %p213 = por %p211, %p212
    %p214 = scmp.ne.s32.totalorder %s203, %s206
    %p215 = scmp.eq.s32.totalorder %s19, 3
    %p216 = por %p214, %p215
    %p217 = scmp.ne.s32.totalorder %s206, %s207
    %p218 = scmp.eq.s32.totalorder %s19, 0
    %p219 = por %p217, %p218
    %p220 = scmp.ne.s32.totalorder %s206, %s207
    %p221 = scmp.eq.s32.totalorder %s20, 3
    %p222 = por %p220, %p221
    %p224 = scmp.ne.s32.totalorder %s207, %s223
    %p225 = scmp.eq.s32.totalorder %s20, 0
    %p226 = por %p224, %p225
    %s227 = smul.u32 %s21, 2
    %s228 = sadd.s32 %s227, %s22
    %s229 = smul.u32 %s33, 2
    %s230 = sadd.s32 %s229, %s29
    %s231 = ssub.s32 %s228, %s230
    %p232 = scmp.eq.s32.totalorder %s231, 0
    %s234 = sadd.s32 %s233, 1
    %s235 = scalar_select %p232, %s233, %s234
    %p238 = pneg %p232
    %p239 = scmp.eq.s32.totalorder %s14, 3
    %p240 = por %p238, %p239
    %p241 = scmp.ne.s32.totalorder %s233, %s236
    %p242 = scmp.eq.s32.totalorder %s14, 0
    %p243 = por %p241, %p242
    %p244 = scmp.ne.s32.totalorder %s233, %s236
    %p245 = scmp.eq.s32.totalorder %s19, 3
    %p246 = por %p244, %p245
    %p247 = scmp.ne.s32.totalorder %s236, %s237
    %p248 = scmp.eq.s32.totalorder %s19, 0
    %p249 = por %p247, %p248
    %p250 = scmp.ne.s32.totalorder %s236, %s237
    %p251 = scmp.eq.s32.totalorder %s20, 3
    %p252 = por %p250, %p251
    %p254 = scmp.ne.s32.totalorder %s237, %s253
    %p255 = scmp.eq.s32.totalorder %s20, 0
    %p256 = por %p254, %p255
    %p257 = scmp.le.s32.totalorder 1, %s14
    %p258 = scmp.lt.s32.totalorder %s14, 5
    %p259 = pnand %p257, %p258
    %p260 = pneg %p259
    // Predicated region
    $region9: #{up_forward.4} parent=5 // pred_check
      _
    $region10: #{up_forward.4} parent=5 // pred_check_branch
      %262 = sbr.rel (%p259) target = $region12
    $region11: #{up_forward.4} parent=5 // pred_region
      %s263 = ssub.s32 %s14, 1
      // Predicated region
      $region13: #{up_forward.4} parent=11 // pred_check
        %p264 = pneg %p147
      $region14: #{up_forward.4} parent=11 // pred_check_branch
        %266 = sbr.rel (%p264) target = $region16
      $region15: #{up_forward.4} parent=11 // pred_region
        _
      $region16: #{up_forward.4} parent=11 // pred_fallthru
        _
      // Predicated region
      $region17: #{up_forward.4} parent=11 // pred_check
        %p267 = pneg %p168
      $region18: #{up_forward.4} parent=11 // pred_check_branch
        %269 = sbr.rel (%p267) target = $region20
      $region19: #{up_forward.4} parent=11 // pred_region
        _
      $region20: #{up_forward.4} parent=11 // pred_fallthru
        _
      // Predicated region
      $region21: #{up_forward.4} parent=11 // pred_check
        %p270 = pneg %p189
      $region22: #{up_forward.4} parent=11 // pred_check_branch
        %272 = sbr.rel (%p270) target = $region24
      $region23: #{up_forward.4} parent=11 // pred_region
        _
      $region24: #{up_forward.4} parent=11 // pred_fallthru
        _
    $region12: #{up_forward.4} parent=5 // pred_fallthru
      _
    %p273 = scmp.lt.s32.totalorder %s14, 4
    // Predicated region
    $region25: #{up_forward.4} parent=5 // pred_check
      %p274 = pneg %p273
    $region26: #{up_forward.4} parent=5 // pred_check_branch
      %276 = sbr.rel (%p274) target = $region28
    $region27: #{up_forward.4} parent=5 // pred_region
      // Predicated region
      $region29: #{up_forward.4} parent=27 // pred_check
        %p277 = pneg %p48
      $region30: #{up_forward.4} parent=27 // pred_check_branch
        %279 = sbr.rel (%p277) target = $region32
      $region31: #{up_forward.4} parent=27 // pred_region
        %s280 = smul.u32 8, %s22
        %p281 = scmp.lt.s32.totalorder %s21, 1
        %s282 = scalar_select %p281, %s21, 1
        %p283 = scmp.lt.s32.totalorder %s280, 15
        %s284 = scalar_select %p283, %s280, 15
        %s285 = smul.addr %s284, 2
        %s286 = smul.addr %s282, 32
        %s287 = sadd.s32 %s285, %s286
        %s288 = smul.addr %s287, 4
        %s289 = scalar_lea.vmem %s0, %s288
        %s290 = smul.u32 8, %s22
      $region32: #{up_forward.4} parent=27 // pred_fallthru
        _
      // Predicated region
      $region33: #{up_forward.4} parent=27 // pred_check
        %p291 = pneg %p84
      $region34: #{up_forward.4} parent=27 // pred_check_branch
        %293 = sbr.rel (%p291) target = $region36
      $region35: #{up_forward.4} parent=27 // pred_region
        %s294 = smul.u32 %s22, 8
        %s295 = ssub.s32 %s294, 1
        %p296 = scmp.gt.s32.totalorder %s295, 0
        %s297 = scalar_select %p296, %s295, 0
        %p298 = scmp.lt.s32.totalorder %s21, 1
        %s299 = scalar_select %p298, %s21, 1
        %p300 = scmp.lt.s32.totalorder %s297, 15
        %s301 = scalar_select %p300, %s297, 15
        %s302 = smul.addr %s301, 2
        %s303 = smul.addr %s299, 32
        %s304 = sadd.s32 %s302, %s303
        %s305 = smul.addr %s304, 4
        %s306 = scalar_lea.vmem %s1, %s305
        %s307 = smul.u32 %s22, 8
        %s308 = ssub.s32 %s307, 1
        %p309 = scmp.gt.s32.totalorder %s308, 0
        %s310 = scalar_select %p309, %s308, 0
      $region36: #{up_forward.4} parent=27 // pred_fallthru
        _
      // Predicated region
      $region37: #{up_forward.4} parent=27 // pred_check
        %p311 = pneg %p120
      $region38: #{up_forward.4} parent=27 // pred_check_branch
        %313 = sbr.rel (%p311) target = $region40
      $region39: #{up_forward.4} parent=27 // pred_region
        %s314 = smul.u32 %s22, 8
        %s315 = sadd.s32 %s314, 8
        %p316 = scmp.lt.s32.totalorder %s315, 15
        %s317 = scalar_select %p316, %s315, 15
        %p318 = scmp.lt.s32.totalorder %s21, 1
        %s319 = scalar_select %p318, %s21, 1
        %p320 = scmp.lt.s32.totalorder %s317, 15
        %s321 = scalar_select %p320, %s317, 15
        %s322 = smul.addr %s321, 2
        %s323 = smul.addr %s319, 32
        %s324 = sadd.s32 %s322, %s323
        %s325 = smul.addr %s324, 4
        %s326 = scalar_lea.vmem %s2, %s325
        %s327 = smul.u32 %s22, 8
        %s328 = sadd.s32 %s327, 8
        %p329 = scmp.lt.s32.totalorder %s328, 15
        %s330 = scalar_select %p329, %s328, 15
      $region40: #{up_forward.4} parent=27 // pred_fallthru
        _
    $region28: #{up_forward.4} parent=5 // pred_fallthru
      _
    %p331 = scmp.le.s32.totalorder 1, %s14
    %p332 = scmp.lt.s32.totalorder %s14, 5
    %p333 = pnand %p331, %p332
    %p334 = pneg %p333
    // Predicated region
    $region41: #{up_forward.4} parent=5 // pred_check
      _
    $region42: #{up_forward.4} parent=5 // pred_check_branch
      %336 = sbr.rel (%p333) target = $region44
    $region43: #{up_forward.4} parent=5 // pred_region
      %s337 = ssub.s32 %s14, 1
      %s338 = smul.u32 8, %s24
      %p339 = scmp.lt.s32.totalorder %s23, 1
      %s340 = scalar_select %p339, %s23, 1
      %p341 = scmp.lt.s32.totalorder %s338, 15
      %s342 = scalar_select %p341, %s338, 15
      %s343 = smul.addr %s342, 2
      %s344 = smul.addr %s340, 32
      %s345 = sadd.s32 %s343, %s344
      %s346 = smul.addr %s345, 4
      %s347 = scalar_lea.vmem %s0, %s346
      %p348 = pneg %p54
      %p349 = pneg %p51
      %s350 = smul.u32 %s24, 8
      %s351 = ssub.s32 %s350, 1
      %p352 = scmp.gt.s32.totalorder %s351, 0
      %s353 = scalar_select %p352, %s351, 0
      %p354 = scmp.lt.s32.totalorder %s23, 1
      %s355 = scalar_select %p354, %s23, 1
      %p356 = scmp.lt.s32.totalorder %s353, 15
      %s357 = scalar_select %p356, %s353, 15
      %s358 = smul.addr %s357, 2
      %s359 = smul.addr %s355, 32
      %s360 = sadd.s32 %s358, %s359
      %s361 = smul.addr %s360, 4
      %s362 = scalar_lea.vmem %s1, %s361
      %p363 = pneg %p90
      %p364 = pneg %p87
      %s365 = smul.u32 %s24, 8
      %s366 = sadd.s32 %s365, 8
      %p367 = scmp.lt.s32.totalorder %s366, 15
      %s368 = scalar_select %p367, %s366, 15
      %p369 = scmp.lt.s32.totalorder %s23, 1
      %s370 = scalar_select %p369, %s23, 1
      %p371 = scmp.lt.s32.totalorder %s368, 15
      %s372 = scalar_select %p371, %s368, 15
      %s373 = smul.addr %s372, 2
      %s374 = smul.addr %s370, 32
      %s375 = sadd.s32 %s373, %s374
      %s376 = smul.addr %s375, 4
      %s377 = scalar_lea.vmem %s2, %s376
      %p378 = pneg %p126
      %p379 = pneg %p123
      %p380 = pneg %p147
      %p381 = pneg %p144
      %p382 = pneg %p168
      %p383 = pneg %p165
      %p384 = pneg %p189
      %p385 = pneg %p186
      %p386 = pneg %p219
      %p387 = pneg %p216
      %s388 = smul.u32 %s23, 2
      %s389 = sadd.s32 %s388, %s24
      %s390 = smul.u32 16, %s389
      %p391 = scmp.lt.s32.totalorder %s390, 63
      %s392 = scalar_select %p391, %s390, 63
      %s393 = smul.addr %s392, 4
      %s394 = scalar_lea.vmem %s6, %s393
      %p395 = pneg %p249
      %p396 = pneg %p246
      %s397 = smul.u32 %s23, 2
      %s398 = sadd.s32 %s397, %s24
      %p399 = scmp.lt.s32.totalorder %s398, 3
      %s400 = scalar_select %p399, %s398, 3
      %s401 = smul.addr %s400, 2
      %s402 = scalar_lea.vmem %s7, %s401
      %s403 = smul.u32 8, %s24
      %p404 = scmp.lt.s32.totalorder %s23, 1
      %s405 = scalar_select %p404, %s23, 1
      %p406 = scmp.lt.s32.totalorder %s403, 15
      %s407 = scalar_select %p406, %s403, 15
      %s408 = smul.addr %s407, 2
      %s409 = smul.addr %s405, 32
      %s410 = sadd.s32 %s408, %s409
      %s411 = smul.addr %s410, 4
      %s412 = scalar_lea.vmem %s0, %s411
      %s413 = smul.u32 8, %s24
      %s414 = smul.u32 %s24, 8
      %s415 = ssub.s32 %s414, 1
      %p416 = scmp.gt.s32.totalorder %s415, 0
      %s417 = scalar_select %p416, %s415, 0
      %p418 = scmp.lt.s32.totalorder %s23, 1
      %s419 = scalar_select %p418, %s23, 1
      %p420 = scmp.lt.s32.totalorder %s417, 15
      %s421 = scalar_select %p420, %s417, 15
      %s422 = smul.addr %s421, 2
      %s423 = smul.addr %s419, 32
      %s424 = sadd.s32 %s422, %s423
      %s425 = smul.addr %s424, 4
      %s426 = scalar_lea.vmem %s1, %s425
      %s427 = smul.u32 %s24, 8
      %s428 = ssub.s32 %s427, 1
      %p429 = scmp.gt.s32.totalorder %s428, 0
      %s430 = scalar_select %p429, %s428, 0
      %s431 = smul.u32 %s24, 8
      %s432 = sadd.s32 %s431, 8
      %p433 = scmp.lt.s32.totalorder %s432, 15
      %s434 = scalar_select %p433, %s432, 15
      %p435 = scmp.lt.s32.totalorder %s23, 1
      %s436 = scalar_select %p435, %s23, 1
      %p437 = scmp.lt.s32.totalorder %s434, 15
      %s438 = scalar_select %p437, %s434, 15
      %s439 = smul.addr %s438, 2
      %s440 = smul.addr %s436, 32
      %s441 = sadd.s32 %s439, %s440
      %s442 = smul.addr %s441, 4
      %s443 = scalar_lea.vmem %s2, %s442
      %s444 = smul.u32 %s24, 8
      %s445 = sadd.s32 %s444, 8
      %p446 = scmp.lt.s32.totalorder %s445, 15
      %s447 = scalar_select %p446, %s445, 15
      %s448 = smul.u32 %s23, 2
      %s449 = sadd.s32 %s448, %s24
      %s450 = smul.u32 16, %s449
      %p451 = scmp.lt.s32.totalorder %s450, 63
      %s452 = scalar_select %p451, %s450, 63
      %s453 = smul.addr %s452, 4
      %s454 = scalar_lea.vmem %s6, %s453
      %s455 = smul.u32 %s23, 2
      %s456 = sadd.s32 %s455, %s24
      %s457 = smul.u32 16, %s456
      %s458 = smul.u32 %s23, 2
      %s459 = sadd.s32 %s458, %s24
      %p460 = scmp.lt.s32.totalorder %s459, 3
      %s461 = scalar_select %p460, %s459, 3
      %s462 = smul.addr %s461, 2
      %s463 = scalar_lea.vmem %s7, %s462
      %s464 = smul.u32 %s23, 2
      %s465 = sadd.s32 %s464, %s24
      %v467 = vld [vmem:[%s412] sm:$0xf]
      %v468 = vld [vmem:[%s412 + $0x4] sm:$0xf]
      %v469 = vld [vmem:[%s412 + $0x8] sm:$0xf]
      %v470 = vld [vmem:[%s412 + $0xc] sm:$0xf]
      %v471 = vld [vmem:[%s412 + $0x10] sm:$0xf]
      %v472 = vld [vmem:[%s412 + $0x14] sm:$0xf]
      %v473 = vld [vmem:[%s412 + $0x18] sm:$0xf]
      %v474 = vld [vmem:[%s412 + $0x1c] sm:$0xf]
      %v475 = vld [vmem:[%s412 + $0x20] sm:$0xf]
      %v476 = vld [vmem:[%s412 + $0x24] sm:$0xf]
      %v477 = vld [vmem:[%s412 + $0x28] sm:$0xf]
      %v478 = vld [vmem:[%s412 + $0x2c] sm:$0xf]
      %v479 = vld [vmem:[%s412 + $0x30] sm:$0xf]
      %v480 = vld [vmem:[%s412 + $0x34] sm:$0xf]
      %v481 = vld [vmem:[%s412 + $0x38] sm:$0xf]
      %v482 = vld [vmem:[%s412 + $0x3c] sm:$0xf]
      %v483 = vunpack.c.l.bf16 %v467
      %v484 = vunpack.c.l.bf16 %v468
      %v485 = vunpack.c.l.bf16 %v469
      %v486 = vunpack.c.l.bf16 %v470
      %v487 = vunpack.c.l.bf16 %v471
      %v488 = vunpack.c.l.bf16 %v472
      %v489 = vunpack.c.l.bf16 %v473
      %v490 = vunpack.c.l.bf16 %v474
      %v491 = vunpack.c.l.bf16 %v475
      %v492 = vunpack.c.l.bf16 %v476
      %v493 = vunpack.c.l.bf16 %v477
      %v494 = vunpack.c.l.bf16 %v478
      %v495 = vunpack.c.l.bf16 %v479
      %v496 = vunpack.c.l.bf16 %v480
      %v497 = vunpack.c.l.bf16 %v481
      %v498 = vunpack.c.l.bf16 %v482
      %v499 = vld [vmem:[%s4] sm:$0x1]
      %v501 = vperm.slane %v499, 0
      %v503 = vmul.f32 %v483, %v501
      %v504 = vmul.f32 %v484, %v501
      %v505 = vmul.f32 %v485, %v501
      %v506 = vmul.f32 %v486, %v501
      %v507 = vmul.f32 %v487, %v501
      %v508 = vmul.f32 %v488, %v501
      %v509 = vmul.f32 %v489, %v501
      %v510 = vmul.f32 %v490, %v501
      %v511 = vmul.f32 %v491, %v501
      %v512 = vmul.f32 %v492, %v501
      %v513 = vmul.f32 %v493, %v501
      %v514 = vmul.f32 %v494, %v501
      %v515 = vmul.f32 %v495, %v501
      %v516 = vmul.f32 %v496, %v501
      %v517 = vmul.f32 %v497, %v501
      %v518 = vmul.f32 %v498, %v501
      %v519 = vld [vmem:[%s5] sm:$0x1]
      %v521 = vperm.slane %v519, 0
      %v523 = vadd.f32 %v503, %v521
      %v524 = vadd.f32 %v504, %v521
      %v525 = vadd.f32 %v505, %v521
      %v526 = vadd.f32 %v506, %v521
      %v527 = vadd.f32 %v507, %v521
      %v528 = vadd.f32 %v508, %v521
      %v529 = vadd.f32 %v509, %v521
      %v530 = vadd.f32 %v510, %v521
      %v531 = vadd.f32 %v511, %v521
      %v532 = vadd.f32 %v512, %v521
      %v533 = vadd.f32 %v513, %v521
      %v534 = vadd.f32 %v514, %v521
      %v535 = vadd.f32 %v515, %v521
      %v536 = vadd.f32 %v516, %v521
      %v537 = vadd.f32 %v517, %v521
      %v538 = vadd.f32 %v518, %v521
      %v539 = vmax.f32 %v523, 0.0
      %v540 = vmax.f32 %v524, 0.0
      %v541 = vmax.f32 %v525, 0.0
      %v542 = vmax.f32 %v526, 0.0
      %v543 = vmax.f32 %v527, 0.0
      %v544 = vmax.f32 %v528, 0.0
      %v545 = vmax.f32 %v529, 0.0
      %v546 = vmax.f32 %v530, 0.0
      %v547 = vmax.f32 %v531, 0.0
      %v548 = vmax.f32 %v532, 0.0
      %v549 = vmax.f32 %v533, 0.0
      %v550 = vmax.f32 %v534, 0.0
      %v551 = vmax.f32 %v535, 0.0
      %v552 = vmax.f32 %v536, 0.0
      %v553 = vmax.f32 %v537, 0.0
      %v554 = vmax.f32 %v538, 0.0
      %v555 = vpack.c.bf16 %v539, %v539
      %v556 = vpack.c.bf16 %v540, %v540
      %v557 = vpack.c.bf16 %v541, %v541
      %v558 = vpack.c.bf16 %v542, %v542
      %v559 = vpack.c.bf16 %v543, %v543
      %v560 = vpack.c.bf16 %v544, %v544
      %v561 = vpack.c.bf16 %v545, %v545
      %v562 = vpack.c.bf16 %v546, %v546
      %v563 = vpack.c.bf16 %v547, %v547
      %v564 = vpack.c.bf16 %v548, %v548
      %v565 = vpack.c.bf16 %v549, %v549
      %v566 = vpack.c.bf16 %v550, %v550
      %v567 = vpack.c.bf16 %v551, %v551
      %v568 = vpack.c.bf16 %v552, %v552
      %v569 = vpack.c.bf16 %v553, %v553
      %v570 = vpack.c.bf16 %v554, %v554
      %v571 = vld [vmem:[%s426] sm:$0xf]
      %v572 = vld [vmem:[%s426 + $0x4] sm:$0xf]
      %v573 = vunpack.c.l.bf16 %v571
      %v574 = vunpack.c.l.bf16 %v572
      %v575 = vmul.f32 %v573, %v501
      %v576 = vmul.f32 %v574, %v501
      %v577 = vadd.f32 %v575, %v521
      %v578 = vadd.f32 %v576, %v521
      %v579 = vmax.f32 %v577, 0.0
      %v580 = vmax.f32 %v578, 0.0
      %v581 = vpack.c.bf16 %v579, %v579
      %v582 = vpack.c.bf16 %v580, %v580
      %v583 = vld [vmem:[%s443] sm:$0xf]
      %v584 = vld [vmem:[%s443 + $0x4] sm:$0xf]
      %v585 = vunpack.c.l.bf16 %v583
      %v586 = vunpack.c.l.bf16 %v584
      %v587 = vmul.f32 %v585, %v501
      %v588 = vmul.f32 %v586, %v501
      %v589 = vadd.f32 %v587, %v521
      %v590 = vadd.f32 %v588, %v521
      %v591 = vmax.f32 %v589, 0.0
      %v592 = vmax.f32 %v590, 0.0
      %v593 = vpack.c.bf16 %v591, %v591
      %v594 = vpack.c.bf16 %v592, %v592
      %p595 = scmp.gt.s32.totalorder %s24, 0
      %s596 = scalar_select %p595, 1, 0
      %v597 = vstv %s596
      %vm598 = vcmp.eq.s32.totalorder %v597, 1
      %v599 = vsel %vm598, %v581, 0
      %v600 = vsel %vm598, %v582, 0
      %p601 = scmp.lt.s32.totalorder %s24, 1
      %s602 = scalar_select %p601, 1, 0
      %v603 = vstv %s602
      %vm604 = vcmp.eq.s32.totalorder %v603, 1
      %v605 = vsel %vm604, %v593, 0
      %v606 = vsel %vm604, %v594, 0
      %vm607 = vcmask 1040384
      %vm608 = vsmask.f32 256
      %vm609 = vmand %vm607, %vm608
      %v610 = vld [vmem:[#allocation2] sm:$0x1]
      %v611 = vsel %vm609, 0, %v610
      %612 = vst [vmem:[#allocation2] sm:$0x1] %v611
      %v613 = vld [vmem:[#allocation2 + $0xc] sm:$0x1]
      %v614 = vsel %vm609, 0, %v613
      %615 = vst [vmem:[#allocation2 + $0xc] sm:$0x1] %v614
      %v616 = vld [vmem:[#allocation2 + $0x18] sm:$0x1]
      %v617 = vsel %vm609, 0, %v616
      %618 = vst [vmem:[#allocation2 + $0x18] sm:$0x1] %v617
      %v619 = vld [vmem:[#allocation2 + $0x24] sm:$0x1]
      %v620 = vsel %vm609, 0, %v619
      %621 = vst [vmem:[#allocation2 + $0x24] sm:$0x1] %v620
      %v622 = vld [vmem:[#allocation2 + $0x30] sm:$0x1]
      %v623 = vsel %vm609, 0, %v622
      %624 = vst [vmem:[#allocation2 + $0x30] sm:$0x1] %v623
      %v625 = vld [vmem:[#allocation2 + $0x3c] sm:$0x1]
      %v626 = vsel %vm609, 0, %v625
      %627 = vst [vmem:[#allocation2 + $0x3c] sm:$0x1] %v626
      %v628 = vld [vmem:[#allocation2 + $0x48] sm:$0x1]
      %v629 = vsel %vm609, 0, %v628
      %630 = vst [vmem:[#allocation2 + $0x48] sm:$0x1] %v629
      %v631 = vld [vmem:[#allocation2 + $0x54] sm:$0x1]
      %v632 = vsel %vm609, 0, %v631
      %633 = vst [vmem:[#allocation2 + $0x54] sm:$0x1] %v632
      %v634 = vld [vmem:[#allocation2 + $0x60] sm:$0x1]
      %v635 = vsel %vm609, 0, %v634
      %636 = vst [vmem:[#allocation2 + $0x60] sm:$0x1] %v635
      %v637 = vld [vmem:[#allocation2 + $0x6c] sm:$0x1]
      %v638 = vsel %vm609, 0, %v637
      %639 = vst [vmem:[#allocation2 + $0x6c] sm:$0x1] %v638
      %vm640 = vsmask.f32 7938
      %vm641 = vmand %vm607, %vm640
      %v642 = vld [vmem:[#allocation2 + $0x8] sm:$0x1]
      %v643 = vsel %vm641, 0, %v642
      %644 = vst [vmem:[#allocation2 + $0x8] sm:$0x1] %v643
      %v645 = vld [vmem:[#allocation2 + $0x14] sm:$0x1]
      %v646 = vsel %vm641, 0, %v645
      %647 = vst [vmem:[#allocation2 + $0x14] sm:$0x1] %v646
      %v648 = vld [vmem:[#allocation2 + $0x20] sm:$0x1]
      %v649 = vsel %vm641, 0, %v648
      %650 = vst [vmem:[#allocation2 + $0x20] sm:$0x1] %v649
      %v651 = vld [vmem:[#allocation2 + $0x2c] sm:$0x1]
      %v652 = vsel %vm641, 0, %v651
      %653 = vst [vmem:[#allocation2 + $0x2c] sm:$0x1] %v652
      %v654 = vld [vmem:[#allocation2 + $0x38] sm:$0x1]
      %v655 = vsel %vm641, 0, %v654
      %656 = vst [vmem:[#allocation2 + $0x38] sm:$0x1] %v655
      %v657 = vld [vmem:[#allocation2 + $0x44] sm:$0x1]
      %v658 = vsel %vm641, 0, %v657
      %659 = vst [vmem:[#allocation2 + $0x44] sm:$0x1] %v658
      %v660 = vld [vmem:[#allocation2 + $0x50] sm:$0x1]
      %v661 = vsel %vm641, 0, %v660
      %662 = vst [vmem:[#allocation2 + $0x50] sm:$0x1] %v661
      %v663 = vld [vmem:[#allocation2 + $0x5c] sm:$0x1]
      %v664 = vsel %vm641, 0, %v663
      %665 = vst [vmem:[#allocation2 + $0x5c] sm:$0x1] %v664
      %v666 = vld [vmem:[#allocation2 + $0x68] sm:$0x1]
      %v667 = vsel %vm641, 0, %v666
      %668 = vst [vmem:[#allocation2 + $0x68] sm:$0x1] %v667
      %v669 = vld [vmem:[#allocation2 + $0x74] sm:$0x1]
      %v670 = vsel %vm641, 0, %v669
      %671 = vst [vmem:[#allocation2 + $0x74] sm:$0x1] %v670
      %vm672 = vsmask.f32 4368
      %vm673 = vmor %vm608, %vm672
      %v675 = vshrl.u32 %v599, 16
      %v677 = vrot.slane %v675, 7
      %v678 = vshll.u32 %v599, 16
      %v680 = vor.u32 %v677, %v678
      %v681 = vrot.slane %v677, 4
      %v683 = vshrl.u32 %v600, 16
      %v685 = vrot.slane %v683, 7
      %v686 = vshll.u32 %v600, 16
      %v688 = vor.u32 %v685, %v686
      %v689 = vsel %vm673, %v681, %v688
      %v690 = vrot.slane %v685, 4
      %vm694 = vcmask 1043456
      %vm695 = vmand %vm694, %vm640
      %v696 = vld [vmem:[#allocation2] sm:$0xf]
      %v697 = vsel %vm695, %v680, %v696
      %698 = vst [vmem:[#allocation2] sm:$0xf] %v697
      %699 = vst [vmem:[#allocation2 + $0x4] sm:$0xf] %v689
      %v700 = vld [vmem:[#allocation2 + $0x8] sm:$0x1]
      %v701 = vsel %vm609, %v690, %v700
      %702 = vst [vmem:[#allocation2 + $0x8] sm:$0x1] %v701
      %v704 = vshrl.u32 %v555, 16
      %v706 = vrot.slane %v704, 7
      %v707 = vshll.u32 %v555, 16
      %v709 = vor.u32 %v706, %v707
      %v710 = vrot.slane %v706, 4
      %v712 = vshrl.u32 %v556, 16
      %v714 = vrot.slane %v712, 7
      %v715 = vshll.u32 %v556, 16
      %v717 = vor.u32 %v714, %v715
      %v718 = vsel %vm673, %v710, %v717
      %v719 = vrot.slane %v714, 4
      %v721 = vshrl.u32 %v557, 16
      %v723 = vrot.slane %v721, 7
      %v724 = vshll.u32 %v557, 16
      %v726 = vor.u32 %v723, %v724
      %v727 = vrot.slane %v723, 4
      %v729 = vshrl.u32 %v558, 16
      %v731 = vrot.slane %v729, 7
      %v732 = vshll.u32 %v558, 16
      %v734 = vor.u32 %v731, %v732
      %v735 = vsel %vm673, %v727, %v734
      %v736 = vrot.slane %v731, 4
      %v738 = vshrl.u32 %v559, 16
      %v740 = vrot.slane %v738, 7
      %v741 = vshll.u32 %v559, 16
      %v743 = vor.u32 %v740, %v741
      %v744 = vrot.slane %v740, 4
      %v746 = vshrl.u32 %v560, 16
      %v748 = vrot.slane %v746, 7
      %v749 = vshll.u32 %v560, 16
      %v751 = vor.u32 %v748, %v749
      %v752 = vsel %vm673, %v744, %v751
      %v753 = vrot.slane %v748, 4
      %v755 = vshrl.u32 %v561, 16
      %v757 = vrot.slane %v755, 7
      %v758 = vshll.u32 %v561, 16
      %v760 = vor.u32 %v757, %v758
      %v761 = vrot.slane %v757, 4
      %v763 = vshrl.u32 %v562, 16
      %v765 = vrot.slane %v763, 7
      %v766 = vshll.u32 %v562, 16
      %v768 = vor.u32 %v765, %v766
      %v769 = vsel %vm673, %v761, %v768
      %v770 = vrot.slane %v765, 4
      %v772 = vshrl.u32 %v563, 16
      %v774 = vrot.slane %v772, 7
      %v775 = vshll.u32 %v563, 16
      %v777 = vor.u32 %v774, %v775
      %v778 = vrot.slane %v774, 4
      %v780 = vshrl.u32 %v564, 16
      %v782 = vrot.slane %v780, 7
      %v783 = vshll.u32 %v564, 16
      %v785 = vor.u32 %v782, %v783
      %v786 = vsel %vm673, %v778, %v785
      %v787 = vrot.slane %v782, 4
      %v789 = vshrl.u32 %v565, 16
      %v791 = vrot.slane %v789, 7
      %v792 = vshll.u32 %v565, 16
      %v794 = vor.u32 %v791, %v792
      %v795 = vrot.slane %v791, 4
      %v797 = vshrl.u32 %v566, 16
      %v799 = vrot.slane %v797, 7
      %v800 = vshll.u32 %v566, 16
      %v802 = vor.u32 %v799, %v800
      %v803 = vsel %vm673, %v795, %v802
      %v804 = vrot.slane %v799, 4
      %v806 = vshrl.u32 %v567, 16
      %v808 = vrot.slane %v806, 7
      %v809 = vshll.u32 %v567, 16
      %v811 = vor.u32 %v808, %v809
      %v812 = vrot.slane %v808, 4
      %v814 = vshrl.u32 %v568, 16
      %v816 = vrot.slane %v814, 7
      %v817 = vshll.u32 %v568, 16
      %v819 = vor.u32 %v816, %v817
      %v820 = vsel %vm673, %v812, %v819
      %v821 = vrot.slane %v816, 4
      %v823 = vshrl.u32 %v569, 16
      %v825 = vrot.slane %v823, 7
      %v826 = vshll.u32 %v569, 16
      %v828 = vor.u32 %v825, %v826
      %v829 = vrot.slane %v825, 4
      %v831 = vshrl.u32 %v570, 16
      %v833 = vrot.slane %v831, 7
      %v834 = vshll.u32 %v570, 16
      %v836 = vor.u32 %v833, %v834
      %v837 = vsel %vm673, %v829, %v836
      %v838 = vrot.slane %v833, 4
      %s863 = scalar_lea.vmem [#allocation2], 12
      %v864 = vld [vmem:[%s863] sm:$0xf]
      %v865 = vsel %vm695, %v709, %v864
      %866 = vst [vmem:[%s863] sm:$0xf] %v865
      %867 = vst [vmem:[%s863 + $0x4] sm:$0xf] %v718
      %v868 = vld [vmem:[%s863 + $0x8] sm:$0x1]
      %v869 = vsel %vm609, %v719, %v868
      %870 = vst [vmem:[%s863 + $0x8] sm:$0x1] %v869
      %v871 = vld [vmem:[%s863 + $0xc] sm:$0xf]
      %v872 = vsel %vm695, %v726, %v871
      %873 = vst [vmem:[%s863 + $0xc] sm:$0xf] %v872
      %874 = vst [vmem:[%s863 + $0x10] sm:$0xf] %v735
      %v875 = vld [vmem:[%s863 + $0x14] sm:$0x1]
      %v876 = vsel %vm609, %v736, %v875
      %877 = vst [vmem:[%s863 + $0x14] sm:$0x1] %v876
      %v878 = vld [vmem:[%s863 + $0x18] sm:$0xf]
      %v879 = vsel %vm695, %v743, %v878
      %880 = vst [vmem:[%s863 + $0x18] sm:$0xf] %v879
      %881 = vst [vmem:[%s863 + $0x1c] sm:$0xf] %v752
      %v882 = vld [vmem:[%s863 + $0x20] sm:$0x1]
      %v883 = vsel %vm609, %v753, %v882
      %884 = vst [vmem:[%s863 + $0x20] sm:$0x1] %v883
      %v885 = vld [vmem:[%s863 + $0x24] sm:$0xf]
      %v886 = vsel %vm695, %v760, %v885
      %887 = vst [vmem:[%s863 + $0x24] sm:$0xf] %v886
      %888 = vst [vmem:[%s863 + $0x28] sm:$0xf] %v769
      %v889 = vld [vmem:[%s863 + $0x2c] sm:$0x1]
      %v890 = vsel %vm609, %v770, %v889
      %891 = vst [vmem:[%s863 + $0x2c] sm:$0x1] %v890
      %v892 = vld [vmem:[%s863 + $0x30] sm:$0xf]
      %v893 = vsel %vm695, %v777, %v892
      %894 = vst [vmem:[%s863 + $0x30] sm:$0xf] %v893
      %895 = vst [vmem:[%s863 + $0x34] sm:$0xf] %v786
      %v896 = vld [vmem:[%s863 + $0x38] sm:$0x1]
      %v897 = vsel %vm609, %v787, %v896
      %898 = vst [vmem:[%s863 + $0x38] sm:$0x1] %v897
      %v899 = vld [vmem:[%s863 + $0x3c] sm:$0xf]
      %v900 = vsel %vm695, %v794, %v899
      %901 = vst [vmem:[%s863 + $0x3c] sm:$0xf] %v900
      %902 = vst [vmem:[%s863 + $0x40] sm:$0xf] %v803
      %v903 = vld [vmem:[%s863 + $0x44] sm:$0x1]
      %v904 = vsel %vm609, %v804, %v903
      %905 = vst [vmem:[%s863 + $0x44] sm:$0x1] %v904
      %v906 = vld [vmem:[%s863 + $0x48] sm:$0xf]
      %v907 = vsel %vm695, %v811, %v906
      %908 = vst [vmem:[%s863 + $0x48] sm:$0xf] %v907
      %909 = vst [vmem:[%s863 + $0x4c] sm:$0xf] %v820
      %v910 = vld [vmem:[%s863 + $0x50] sm:$0x1]
      %v911 = vsel %vm609, %v821, %v910
      %912 = vst [vmem:[%s863 + $0x50] sm:$0x1] %v911
      %v913 = vld [vmem:[%s863 + $0x54] sm:$0xf]
      %v914 = vsel %vm695, %v828, %v913
      %915 = vst [vmem:[%s863 + $0x54] sm:$0xf] %v914
      %916 = vst [vmem:[%s863 + $0x58] sm:$0xf] %v837
      %v917 = vld [vmem:[%s863 + $0x5c] sm:$0x1]
      %v918 = vsel %vm609, %v838, %v917
      %919 = vst [vmem:[%s863 + $0x5c] sm:$0x1] %v918
      %v921 = vshrl.u32 %v605, 16
      %v923 = vrot.slane %v921, 7
      %v924 = vshll.u32 %v605, 16
      %v926 = vor.u32 %v923, %v924
      %v927 = vrot.slane %v923, 4
      %v929 = vshrl.u32 %v606, 16
      %v931 = vrot.slane %v929, 7
      %v932 = vshll.u32 %v606, 16
      %v934 = vor.u32 %v931, %v932
      %v935 = vsel %vm673, %v927, %v934
      %v936 = vrot.slane %v931, 4
      %s940 = scalar_lea.vmem [#allocation2], 108
      %v941 = vld [vmem:[%s940] sm:$0xf]
      %v942 = vsel %vm695, %v926, %v941
      %943 = vst [vmem:[%s940] sm:$0xf] %v942
      %944 = vst [vmem:[%s940 + $0x4] sm:$0xf] %v935
      %v945 = vld [vmem:[%s940 + $0x8] sm:$0x1]
      %v946 = vsel %vm609, %v936, %v945
      %947 = vst [vmem:[%s940 + $0x8] sm:$0x1] %v946
      %v948 = vld [vmem:[#allocation2] sm:$0xf]
      %v949 = vld [vmem:[#allocation2 + $0x4] sm:$0xf]
      %v950 = vld [vmem:[#allocation2 + $0xc] sm:$0xf]
      %v951 = vld [vmem:[#allocation2 + $0x10] sm:$0xf]
      %v952 = vld [vmem:[#allocation2 + $0x18] sm:$0xf]
      %v953 = vld [vmem:[#allocation2 + $0x1c] sm:$0xf]
      %v954 = vld [vmem:[#allocation2 + $0x24] sm:$0xf]
      %v955 = vld [vmem:[#allocation2 + $0x28] sm:$0xf]
      %v956 = vld [vmem:[#allocation2 + $0x30] sm:$0xf]
      %v957 = vld [vmem:[#allocation2 + $0x34] sm:$0xf]
      %v958 = vld [vmem:[#allocation2 + $0x3c] sm:$0xf]
      %v959 = vld [vmem:[#allocation2 + $0x40] sm:$0xf]
      %v960 = vld [vmem:[#allocation2 + $0x48] sm:$0xf]
      %v961 = vld [vmem:[#allocation2 + $0x4c] sm:$0xf]
      %v962 = vld [vmem:[#allocation2 + $0x54] sm:$0xf]
      %v963 = vld [vmem:[#allocation2 + $0x58] sm:$0xf]
      %v964 = vld [vmem:[%s3] sm:$0xf]
      %v965 = vld [vmem:[%s3 + $0x4] sm:$0xf]
      %v966 = vld [vmem:[%s3 + $0x8] sm:$0xf]
      %v967 = vld [vmem:[%s3 + $0xc] sm:$0xf]
      %v968 = vld [vmem:[%s3 + $0x10] sm:$0xf]
      %v969 = vld [vmem:[%s3 + $0x14] sm:$0xf]
      %v970 = vld [vmem:[%s3 + $0x18] sm:$0xf]
      %v971 = vld [vmem:[%s3 + $0x1c] sm:$0xf]
      %v972 = vld [vmem:[%s3 + $0x20] sm:$0xf]
      %v973 = vld [vmem:[%s3 + $0x24] sm:$0xf]
      %v974 = vld [vmem:[%s3 + $0x28] sm:$0xf]
      %v975 = vld [vmem:[%s3 + $0x2c] sm:$0xf]
      %v976 = vld [vmem:[%s3 + $0x30] sm:$0xf]
      %v977 = vld [vmem:[%s3 + $0x34] sm:$0xf]
      %v978 = vld [vmem:[%s3 + $0x38] sm:$0xf]
      %v979 = vld [vmem:[%s3 + $0x3c] sm:$0xf]
      %v980 = vld [vmem:[#allocation2 + $0x8] sm:$0x1]
      %v981 = vld [vmem:[#allocation2 + $0x14] sm:$0x1]
      %v982 = vld [vmem:[#allocation2 + $0x20] sm:$0x1]
      %v983 = vld [vmem:[#allocation2 + $0x2c] sm:$0x1]
      %v984 = vld [vmem:[#allocation2 + $0x38] sm:$0x1]
      %v985 = vld [vmem:[#allocation2 + $0x44] sm:$0x1]
      %v986 = vld [vmem:[#allocation2 + $0x50] sm:$0x1]
      %v987 = vld [vmem:[#allocation2 + $0x5c] sm:$0x1]
      %vm988 = vsmask.f32 3328
      %vm989 = vsmask.f32 7440
      %vm990 = vmor %vm988, %vm989
      %v992 = vshrl.u32 %v948, 16
      %v994 = vrot.slane %v992, 4
      %v995 = vshll.u32 %v948, 16
      %v997 = vrot.slane %v995, 5
      %v998 = vor.u32 %v994, %v997
      %v999 = vrot.slane %v998, 4
      %v1001 = vshll.u32 %v949, 16
      %v1003 = vrot.slane %v1001, 5
      %v1004 = vsel %vm990, %v999, %v1003
      %v1005 = vshrl.u32 %v949, 16
      %v1007 = vrot.slane %v1005, 4
      %v1008 = vor.u32 %v1007, %v1003
      %v1009 = vrot.slane %v1008, 4
      %v1011 = vshll.u32 %v980, 16
      %v1013 = vrot.slane %v1011, 5
      %v1014 = vsel %vm990, %v1009, %v1013
      %v1016 = vshrl.u32 %v950, 16
      %v1018 = vrot.slane %v1016, 4
      %v1019 = vshll.u32 %v950, 16
      %v1021 = vrot.slane %v1019, 5
      %v1022 = vor.u32 %v1018, %v1021
      %v1023 = vrot.slane %v1022, 4
      %v1025 = vshll.u32 %v951, 16
      %v1027 = vrot.slane %v1025, 5
      %v1028 = vsel %vm990, %v1023, %v1027
      %v1029 = vshrl.u32 %v951, 16
      %v1031 = vrot.slane %v1029, 4
      %v1032 = vor.u32 %v1031, %v1027
      %v1033 = vrot.slane %v1032, 4
      %v1035 = vshll.u32 %v981, 16
      %v1037 = vrot.slane %v1035, 5
      %v1038 = vsel %vm990, %v1033, %v1037
      %v1040 = vshrl.u32 %v952, 16
      %v1042 = vrot.slane %v1040, 4
      %v1043 = vshll.u32 %v952, 16
      %v1045 = vrot.slane %v1043, 5
      %v1046 = vor.u32 %v1042, %v1045
      %v1047 = vrot.slane %v1046, 4
      %v1049 = vshll.u32 %v953, 16
      %v1051 = vrot.slane %v1049, 5
      %v1052 = vsel %vm990, %v1047, %v1051
      %v1053 = vshrl.u32 %v953, 16
      %v1055 = vrot.slane %v1053, 4
      %v1056 = vor.u32 %v1055, %v1051
      %v1057 = vrot.slane %v1056, 4
      %v1059 = vshll.u32 %v982, 16
      %v1061 = vrot.slane %v1059, 5
      %v1062 = vsel %vm990, %v1057, %v1061
      %v1064 = vshrl.u32 %v954, 16
      %v1066 = vrot.slane %v1064, 4
      %v1067 = vshll.u32 %v954, 16
      %v1069 = vrot.slane %v1067, 5
      %v1070 = vor.u32 %v1066, %v1069
      %v1071 = vrot.slane %v1070, 4
      %v1073 = vshll.u32 %v955, 16
      %v1075 = vrot.slane %v1073, 5
      %v1076 = vsel %vm990, %v1071, %v1075
      %v1077 = vshrl.u32 %v955, 16
      %v1079 = vrot.slane %v1077, 4
      %v1080 = vor.u32 %v1079, %v1075
      %v1081 = vrot.slane %v1080, 4
      %v1083 = vshll.u32 %v983, 16
      %v1085 = vrot.slane %v1083, 5
      %v1086 = vsel %vm990, %v1081, %v1085
      %v1088 = vshrl.u32 %v956, 16
      %v1090 = vrot.slane %v1088, 4
      %v1091 = vshll.u32 %v956, 16
      %v1093 = vrot.slane %v1091, 5
      %v1094 = vor.u32 %v1090, %v1093
      %v1095 = vrot.slane %v1094, 4
      %v1097 = vshll.u32 %v957, 16
      %v1099 = vrot.slane %v1097, 5
      %v1100 = vsel %vm990, %v1095, %v1099
      %v1101 = vshrl.u32 %v957, 16
      %v1103 = vrot.slane %v1101, 4
      %v1104 = vor.u32 %v1103, %v1099
      %v1105 = vrot.slane %v1104, 4
      %v1107 = vshll.u32 %v984, 16
      %v1109 = vrot.slane %v1107, 5
      %v1110 = vsel %vm990, %v1105, %v1109
      %v1112 = vshrl.u32 %v958, 16
      %v1114 = vrot.slane %v1112, 4
      %v1115 = vshll.u32 %v958, 16
      %v1117 = vrot.slane %v1115, 5
      %v1118 = vor.u32 %v1114, %v1117
      %v1119 = vrot.slane %v1118, 4
      %v1121 = vshll.u32 %v959, 16
      %v1123 = vrot.slane %v1121, 5
      %v1124 = vsel %vm990, %v1119, %v1123
      %v1125 = vshrl.u32 %v959, 16
      %v1127 = vrot.slane %v1125, 4
      %v1128 = vor.u32 %v1127, %v1123
      %v1129 = vrot.slane %v1128, 4
      %v1131 = vshll.u32 %v985, 16
      %v1133 = vrot.slane %v1131, 5
      %v1134 = vsel %vm990, %v1129, %v1133
      %v1136 = vshrl.u32 %v960, 16
      %v1138 = vrot.slane %v1136, 4
      %v1139 = vshll.u32 %v960, 16
      %v1141 = vrot.slane %v1139, 5
      %v1142 = vor.u32 %v1138, %v1141
      %v1143 = vrot.slane %v1142, 4
      %v1145 = vshll.u32 %v961, 16
      %v1147 = vrot.slane %v1145, 5
      %v1148 = vsel %vm990, %v1143, %v1147
      %v1149 = vshrl.u32 %v961, 16
      %v1151 = vrot.slane %v1149, 4
      %v1152 = vor.u32 %v1151, %v1147
      %v1153 = vrot.slane %v1152, 4
      %v1155 = vshll.u32 %v986, 16
      %v1157 = vrot.slane %v1155, 5
      %v1158 = vsel %vm990, %v1153, %v1157
      %v1160 = vshrl.u32 %v962, 16
      %v1162 = vrot.slane %v1160, 4
      %v1163 = vshll.u32 %v962, 16
      %v1165 = vrot.slane %v1163, 5
      %v1166 = vor.u32 %v1162, %v1165
      %v1167 = vrot.slane %v1166, 4
      %v1169 = vshll.u32 %v963, 16
      %v1171 = vrot.slane %v1169, 5
      %v1172 = vsel %vm990, %v1167, %v1171
      %v1173 = vshrl.u32 %v963, 16
      %v1175 = vrot.slane %v1173, 4
      %v1176 = vor.u32 %v1175, %v1171
      %v1177 = vrot.slane %v1176, 4
      %v1179 = vshll.u32 %v987, 16
      %v1181 = vrot.slane %v1179, 5
      %v1182 = vsel %vm990, %v1177, %v1181
      %s1183 = scalar_lea.vmem %s3, 64
      %v1184 = vld [vmem:[%s1183] sm:$0xf]
      %v1185 = vld [vmem:[%s1183 + $0x4] sm:$0xf]
      %v1186 = vld [vmem:[%s1183 + $0x8] sm:$0xf]
      %v1187 = vld [vmem:[%s1183 + $0xc] sm:$0xf]
      %v1188 = vld [vmem:[%s1183 + $0x10] sm:$0xf]
      %v1189 = vld [vmem:[%s1183 + $0x14] sm:$0xf]
      %v1190 = vld [vmem:[%s1183 + $0x18] sm:$0xf]
      %v1191 = vld [vmem:[%s1183 + $0x1c] sm:$0xf]
      %v1192 = vld [vmem:[%s1183 + $0x20] sm:$0xf]
      %v1193 = vld [vmem:[%s1183 + $0x24] sm:$0xf]
      %v1194 = vld [vmem:[%s1183 + $0x28] sm:$0xf]
      %v1195 = vld [vmem:[%s1183 + $0x2c] sm:$0xf]
      %v1196 = vld [vmem:[%s1183 + $0x30] sm:$0xf]
      %v1197 = vld [vmem:[%s1183 + $0x34] sm:$0xf]
      %v1198 = vld [vmem:[%s1183 + $0x38] sm:$0xf]
      %v1199 = vld [vmem:[%s1183 + $0x3c] sm:$0xf]
      %v1200 = vunpack.c.l.b16 %v1004
      %v1201 = vunpack.c.l.b16 %v1014
      %v1202 = vunpack.c.l.b16 %v1028
      %v1203 = vunpack.c.l.b16 %v1038
      %v1204 = vunpack.c.l.b16 %v1052
      %v1205 = vunpack.c.l.b16 %v1062
      %v1206 = vunpack.c.l.b16 %v1076
      %v1207 = vunpack.c.l.b16 %v1086
      %v1208 = vunpack.c.l.b16 %v1100
      %v1209 = vunpack.c.l.b16 %v1110
      %v1210 = vunpack.c.l.b16 %v1124
      %v1211 = vunpack.c.l.b16 %v1134
      %v1212 = vunpack.c.l.b16 %v1148
      %v1213 = vunpack.c.l.b16 %v1158
      %v1214 = vunpack.c.l.b16 %v1172
      %v1215 = vunpack.c.l.b16 %v1182
      %v1216 = vpack.c.b16 %v1201, %v1200
      %v1217 = vpack.c.b16 %v1203, %v1202
      %v1218 = vpack.c.b16 %v1205, %v1204
      %v1219 = vpack.c.b16 %v1207, %v1206
      %v1220 = vpack.c.b16 %v1209, %v1208
      %v1221 = vpack.c.b16 %v1211, %v1210
      %v1222 = vpack.c.b16 %v1213, %v1212
      %v1223 = vpack.c.b16 %v1215, %v1214
      %v1248 = vunpack.c.l.b16 %v1184
      %v1249 = vunpack.c.l.b16 %v1185
      %v1250 = vunpack.c.l.b16 %v1186
      %v1251 = vunpack.c.l.b16 %v1187
      %v1252 = vunpack.c.l.b16 %v1188
      %v1253 = vunpack.c.l.b16 %v1189
      %v1254 = vunpack.c.l.b16 %v1190
      %v1255 = vunpack.c.l.b16 %v1191
      %v1256 = vunpack.c.l.b16 %v1192
      %v1257 = vunpack.c.l.b16 %v1193
      %v1258 = vunpack.c.l.b16 %v1194
      %v1259 = vunpack.c.l.b16 %v1195
      %v1260 = vunpack.c.l.b16 %v1196
      %v1261 = vunpack.c.l.b16 %v1197
      %v1262 = vunpack.c.l.b16 %v1198
      %v1263 = vunpack.c.l.b16 %v1199
      %v1264 = vpack.c.b16 %v1249, %v1248
      %v1265 = vpack.c.b16 %v1251, %v1250
      %v1266 = vpack.c.b16 %v1253, %v1252
      %v1267 = vpack.c.b16 %v1255, %v1254
      %v1268 = vpack.c.b16 %v1257, %v1256
      %v1269 = vpack.c.b16 %v1259, %v1258
      %v1270 = vpack.c.b16 %v1261, %v1260
      %v1271 = vpack.c.b16 %v1263, %v1262
      %1280 = vmatpush.bf16.msra.mxu0 %v1271
      %1281 = vmatpush.bf16.msra.mxu0 %v1270
      %1282 = vmatpush.bf16.msra.mxu0 %v1269
      %1283 = vmatpush.bf16.msra.mxu0 %v1268
      %1284 = vmatpush.bf16.msra.mxu0 %v1267
      %1285 = vmatpush.bf16.msra.mxu0 %v1266
      %1286 = vmatpush.bf16.msra.mxu0 %v1265
      %1287 = vmatpush.bf16.msra.mxu0 %v1264
      %1288 = vmatmul.bf16.gmra.mxu0 %v1216
      %v1289 = vpop.f32.mrf.mxu0
      %v1290 = vadd.f32 0.0, %v1289
      %v1291 = vpop.f32.mrf.mxu0
      %v1292 = vadd.f32 0.0, %v1291
      %1293 = vmatmul.bf16.gmra.mxu0 %v1217
      %v1294 = vpop.f32.mrf.mxu0
      %v1295 = vadd.f32 0.0, %v1294
      %v1296 = vpop.f32.mrf.mxu0
      %v1297 = vadd.f32 0.0, %v1296
      %1298 = vmatmul.bf16.gmra.mxu0 %v1218
      %v1299 = vpop.f32.mrf.mxu0
      %v1300 = vadd.f32 0.0, %v1299
      %v1301 = vpop.f32.mrf.mxu0
      %v1302 = vadd.f32 0.0, %v1301
      %1303 = vmatmul.bf16.gmra.mxu0 %v1219
      %v1304 = vpop.f32.mrf.mxu0
      %v1305 = vadd.f32 0.0, %v1304
      %v1306 = vpop.f32.mrf.mxu0
      %v1307 = vadd.f32 0.0, %v1306
      %1308 = vmatmul.bf16.gmra.mxu0 %v1220
      %v1309 = vpop.f32.mrf.mxu0
      %v1310 = vadd.f32 0.0, %v1309
      %v1311 = vpop.f32.mrf.mxu0
      %v1312 = vadd.f32 0.0, %v1311
      %1313 = vmatmul.bf16.gmra.mxu0 %v1221
      %v1314 = vpop.f32.mrf.mxu0
      %v1315 = vadd.f32 0.0, %v1314
      %v1316 = vpop.f32.mrf.mxu0
      %v1317 = vadd.f32 0.0, %v1316
      %1318 = vmatmul.bf16.gmra.mxu0 %v1222
      %v1319 = vpop.f32.mrf.mxu0
      %v1320 = vadd.f32 0.0, %v1319
      %v1321 = vpop.f32.mrf.mxu0
      %v1322 = vadd.f32 0.0, %v1321
      %1323 = vmatmul.bf16.gmra.mxu0 %v1223
      %v1324 = vpop.f32.mrf.mxu0
      %v1325 = vadd.f32 0.0, %v1324
      %v1326 = vpop.f32.mrf.mxu0
      %v1327 = vadd.f32 0.0, %v1326
      %1328 = vdwg.mxu0
      %v1345 = vunpack.c.l.b16 %v948
      %v1346 = vunpack.c.l.b16 %v949
      %v1347 = vunpack.c.l.b16 %v950
      %v1348 = vunpack.c.l.b16 %v951
      %v1349 = vunpack.c.l.b16 %v952
      %v1350 = vunpack.c.l.b16 %v953
      %v1351 = vunpack.c.l.b16 %v954
      %v1352 = vunpack.c.l.b16 %v955
      %v1353 = vunpack.c.l.b16 %v956
      %v1354 = vunpack.c.l.b16 %v957
      %v1355 = vunpack.c.l.b16 %v958
      %v1356 = vunpack.c.l.b16 %v959
      %v1357 = vunpack.c.l.b16 %v960
      %v1358 = vunpack.c.l.b16 %v961
      %v1359 = vunpack.c.l.b16 %v962
      %v1360 = vunpack.c.l.b16 %v963
      %v1361 = vpack.c.b16 %v1346, %v1345
      %v1362 = vpack.c.b16 %v1348, %v1347
      %v1363 = vpack.c.b16 %v1350, %v1349
      %v1364 = vpack.c.b16 %v1352, %v1351
      %v1365 = vpack.c.b16 %v1354, %v1353
      %v1366 = vpack.c.b16 %v1356, %v1355
      %v1367 = vpack.c.b16 %v1358, %v1357
      %v1368 = vpack.c.b16 %v1360, %v1359
      %v1393 = vunpack.c.l.b16 %v964
      %v1394 = vunpack.c.l.b16 %v965
      %v1395 = vunpack.c.l.b16 %v966
      %v1396 = vunpack.c.l.b16 %v967
      %v1397 = vunpack.c.l.b16 %v968
      %v1398 = vunpack.c.l.b16 %v969
      %v1399 = vunpack.c.l.b16 %v970
      %v1400 = vunpack.c.l.b16 %v971
      %v1401 = vunpack.c.l.b16 %v972
      %v1402 = vunpack.c.l.b16 %v973
      %v1403 = vunpack.c.l.b16 %v974
      %v1404 = vunpack.c.l.b16 %v975
      %v1405 = vunpack.c.l.b16 %v976
      %v1406 = vunpack.c.l.b16 %v977
      %v1407 = vunpack.c.l.b16 %v978
      %v1408 = vunpack.c.l.b16 %v979
      %v1409 = vpack.c.b16 %v1394, %v1393
      %v1410 = vpack.c.b16 %v1396, %v1395
      %v1411 = vpack.c.b16 %v1398, %v1397
      %v1412 = vpack.c.b16 %v1400, %v1399
      %v1413 = vpack.c.b16 %v1402, %v1401
      %v1414 = vpack.c.b16 %v1404, %v1403
      %v1415 = vpack.c.b16 %v1406, %v1405
      %v1416 = vpack.c.b16 %v1408, %v1407
      %1425 = vmatpush.bf16.msra.mxu0 %v1416
      %1426 = vmatpush.bf16.msra.mxu0 %v1415
      %1427 = vmatpush.bf16.msra.mxu0 %v1414
      %1428 = vmatpush.bf16.msra.mxu0 %v1413
      %1429 = vmatpush.bf16.msra.mxu0 %v1412
      %1430 = vmatpush.bf16.msra.mxu0 %v1411
      %1431 = vmatpush.bf16.msra.mxu0 %v1410
      %1432 = vmatpush.bf16.msra.mxu0 %v1409
      %1433 = vmatmul.bf16.gmra.mxu0 %v1361
      %v1434 = vpop.f32.mrf.mxu0
      %v1435 = vadd.f32 %v1290, %v1434
      %v1436 = vpop.f32.mrf.mxu0
      %v1437 = vadd.f32 %v1292, %v1436
      %1438 = vmatmul.bf16.gmra.mxu0 %v1362
      %v1439 = vpop.f32.mrf.mxu0
      %v1440 = vadd.f32 %v1295, %v1439
      %v1441 = vpop.f32.mrf.mxu0
      %v1442 = vadd.f32 %v1297, %v1441
      %1443 = vmatmul.bf16.gmra.mxu0 %v1363
      %v1444 = vpop.f32.mrf.mxu0
      %v1445 = vadd.f32 %v1300, %v1444
      %v1446 = vpop.f32.mrf.mxu0
      %v1447 = vadd.f32 %v1302, %v1446
      %1448 = vmatmul.bf16.gmra.mxu0 %v1364
      %v1449 = vpop.f32.mrf.mxu0
      %v1450 = vadd.f32 %v1305, %v1449
      %v1451 = vpop.f32.mrf.mxu0
      %v1452 = vadd.f32 %v1307, %v1451
      %1453 = vmatmul.bf16.gmra.mxu0 %v1365
      %v1454 = vpop.f32.mrf.mxu0
      %v1455 = vadd.f32 %v1310, %v1454
      %v1456 = vpop.f32.mrf.mxu0
      %v1457 = vadd.f32 %v1312, %v1456
      %1458 = vmatmul.bf16.gmra.mxu0 %v1366
      %v1459 = vpop.f32.mrf.mxu0
      %v1460 = vadd.f32 %v1315, %v1459
      %v1461 = vpop.f32.mrf.mxu0
      %v1462 = vadd.f32 %v1317, %v1461
      %1463 = vmatmul.bf16.gmra.mxu0 %v1367
      %v1464 = vpop.f32.mrf.mxu0
      %v1465 = vadd.f32 %v1320, %v1464
      %v1466 = vpop.f32.mrf.mxu0
      %v1467 = vadd.f32 %v1322, %v1466
      %1468 = vmatmul.bf16.gmra.mxu0 %v1368
      %v1469 = vpop.f32.mrf.mxu0
      %v1470 = vadd.f32 %v1325, %v1469
      %v1471 = vpop.f32.mrf.mxu0
      %v1472 = vadd.f32 %v1327, %v1471
      %1473 = vdwg.mxu0
      %v1474 = vld [vmem:[#allocation2] sm:$0xe]
      %v1475 = vld [vmem:[#allocation2 + $0xc] sm:$0xe]
      %v1476 = vld [vmem:[#allocation2 + $0x18] sm:$0xe]
      %v1477 = vld [vmem:[#allocation2 + $0x24] sm:$0xe]
      %v1478 = vld [vmem:[#allocation2 + $0x30] sm:$0xe]
      %v1479 = vld [vmem:[#allocation2 + $0x3c] sm:$0xe]
      %v1480 = vld [vmem:[#allocation2 + $0x48] sm:$0xe]
      %v1481 = vld [vmem:[#allocation2 + $0x54] sm:$0xe]
      %vm1498 = vcmask 1042432
      %vm1499 = vcmask 1046532
      %vm1500 = vmor %vm1498, %vm1499
      %v1501 = vrot.slane %v1474, 5
      %v1502 = vrot.slane %v1501, 4
      %v1503 = vrot.slane %v949, 5
      %v1504 = vsel %vm1500, %v1502, %v1503
      %v1505 = vrot.slane %v1503, 4
      %v1506 = vrot.slane %v980, 5
      %v1507 = vsel %vm1500, %v1505, %v1506
      %v1508 = vrot.slane %v1475, 5
      %v1509 = vrot.slane %v1508, 4
      %v1510 = vrot.slane %v951, 5
      %v1511 = vsel %vm1500, %v1509, %v1510
      %v1512 = vrot.slane %v1510, 4
      %v1513 = vrot.slane %v981, 5
      %v1514 = vsel %vm1500, %v1512, %v1513
      %v1515 = vrot.slane %v1476, 5
      %v1516 = vrot.slane %v1515, 4
      %v1517 = vrot.slane %v953, 5
      %v1518 = vsel %vm1500, %v1516, %v1517
      %v1519 = vrot.slane %v1517, 4
      %v1520 = vrot.slane %v982, 5
      %v1521 = vsel %vm1500, %v1519, %v1520
      %v1522 = vrot.slane %v1477, 5
      %v1523 = vrot.slane %v1522, 4
      %v1524 = vrot.slane %v955, 5
      %v1525 = vsel %vm1500, %v1523, %v1524
      %v1526 = vrot.slane %v1524, 4
      %v1527 = vrot.slane %v983, 5
      %v1528 = vsel %vm1500, %v1526, %v1527
      %v1529 = vrot.slane %v1478, 5
      %v1530 = vrot.slane %v1529, 4
      %v1531 = vrot.slane %v957, 5
      %v1532 = vsel %vm1500, %v1530, %v1531
      %v1533 = vrot.slane %v1531, 4
      %v1534 = vrot.slane %v984, 5
      %v1535 = vsel %vm1500, %v1533, %v1534
      %v1536 = vrot.slane %v1479, 5
      %v1537 = vrot.slane %v1536, 4
      %v1538 = vrot.slane %v959, 5
      %v1539 = vsel %vm1500, %v1537, %v1538
      %v1540 = vrot.slane %v1538, 4
      %v1541 = vrot.slane %v985, 5
      %v1542 = vsel %vm1500, %v1540, %v1541
      %v1543 = vrot.slane %v1480, 5
      %v1544 = vrot.slane %v1543, 4
      %v1545 = vrot.slane %v961, 5
      %v1546 = vsel %vm1500, %v1544, %v1545
      %v1547 = vrot.slane %v1545, 4
      %v1548 = vrot.slane %v986, 5
      %v1549 = vsel %vm1500, %v1547, %v1548
      %v1550 = vrot.slane %v1481, 5
      %v1551 = vrot.slane %v1550, 4
      %v1552 = vrot.slane %v963, 5
      %v1553 = vsel %vm1500, %v1551, %v1552
      %v1554 = vrot.slane %v1552, 4
      %v1555 = vrot.slane %v987, 5
      %v1556 = vsel %vm1500, %v1554, %v1555
      %s1557 = scalar_lea.vmem %s3, 128
      %v1558 = vld [vmem:[%s1557] sm:$0xf]
      %v1559 = vld [vmem:[%s1557 + $0x4] sm:$0xf]
      %v1560 = vld [vmem:[%s1557 + $0x8] sm:$0xf]
      %v1561 = vld [vmem:[%s1557 + $0xc] sm:$0xf]
      %v1562 = vld [vmem:[%s1557 + $0x10] sm:$0xf]
      %v1563 = vld [vmem:[%s1557 + $0x14] sm:$0xf]
      %v1564 = vld [vmem:[%s1557 + $0x18] sm:$0xf]
      %v1565 = vld [vmem:[%s1557 + $0x1c] sm:$0xf]
      %v1566 = vld [vmem:[%s1557 + $0x20] sm:$0xf]
      %v1567 = vld [vmem:[%s1557 + $0x24] sm:$0xf]
      %v1568 = vld [vmem:[%s1557 + $0x28] sm:$0xf]
      %v1569 = vld [vmem:[%s1557 + $0x2c] sm:$0xf]
      %v1570 = vld [vmem:[%s1557 + $0x30] sm:$0xf]
      %v1571 = vld [vmem:[%s1557 + $0x34] sm:$0xf]
      %v1572 = vld [vmem:[%s1557 + $0x38] sm:$0xf]
      %v1573 = vld [vmem:[%s1557 + $0x3c] sm:$0xf]
      %v1574 = vunpack.c.l.b16 %v1504
      %v1575 = vunpack.c.l.b16 %v1507
      %v1576 = vunpack.c.l.b16 %v1511
      %v1577 = vunpack.c.l.b16 %v1514
      %v1578 = vunpack.c.l.b16 %v1518
      %v1579 = vunpack.c.l.b16 %v1521
      %v1580 = vunpack.c.l.b16 %v1525
      %v1581 = vunpack.c.l.b16 %v1528
      %v1582 = vunpack.c.l.b16 %v1532
      %v1583 = vunpack.c.l.b16 %v1535
      %v1584 = vunpack.c.l.b16 %v1539
      %v1585 = vunpack.c.l.b16 %v1542
      %v1586 = vunpack.c.l.b16 %v1546
      %v1587 = vunpack.c.l.b16 %v1549
      %v1588 = vunpack.c.l.b16 %v1553
      %v1589 = vunpack.c.l.b16 %v1556
      %v1590 = vpack.c.b16 %v1575, %v1574
      %v1591 = vpack.c.b16 %v1577, %v1576
      %v1592 = vpack.c.b16 %v1579, %v1578
      %v1593 = vpack.c.b16 %v1581, %v1580
      %v1594 = vpack.c.b16 %v1583, %v1582
      %v1595 = vpack.c.b16 %v1585, %v1584
      %v1596 = vpack.c.b16 %v1587, %v1586
      %v1597 = vpack.c.b16 %v1589, %v1588
      %v1622 = vunpack.c.l.b16 %v1558
      %v1623 = vunpack.c.l.b16 %v1559
      %v1624 = vunpack.c.l.b16 %v1560
      %v1625 = vunpack.c.l.b16 %v1561
      %v1626 = vunpack.c.l.b16 %v1562
      %v1627 = vunpack.c.l.b16 %v1563
      %v1628 = vunpack.c.l.b16 %v1564
      %v1629 = vunpack.c.l.b16 %v1565
      %v1630 = vunpack.c.l.b16 %v1566
      %v1631 = vunpack.c.l.b16 %v1567
      %v1632 = vunpack.c.l.b16 %v1568
      %v1633 = vunpack.c.l.b16 %v1569
      %v1634 = vunpack.c.l.b16 %v1570
      %v1635 = vunpack.c.l.b16 %v1571
      %v1636 = vunpack.c.l.b16 %v1572
      %v1637 = vunpack.c.l.b16 %v1573
      %v1638 = vpack.c.b16 %v1623, %v1622
      %v1639 = vpack.c.b16 %v1625, %v1624
      %v1640 = vpack.c.b16 %v1627, %v1626
      %v1641 = vpack.c.b16 %v1629, %v1628
      %v1642 = vpack.c.b16 %v1631, %v1630
      %v1643 = vpack.c.b16 %v1633, %v1632
      %v1644 = vpack.c.b16 %v1635, %v1634
      %v1645 = vpack.c.b16 %v1637, %v1636
      %1654 = vmatpush.bf16.msra.mxu0 %v1645
      %1655 = vmatpush.bf16.msra.mxu0 %v1644
      %1656 = vmatpush.bf16.msra.mxu0 %v1643
      %1657 = vmatpush.bf16.msra.mxu0 %v1642
      %1658 = vmatpush.bf16.msra.mxu0 %v1641
      %1659 = vmatpush.bf16.msra.mxu0 %v1640
      %1660 = vmatpush.bf16.msra.mxu0 %v1639
      %1661 = vmatpush.bf16.msra.mxu0 %v1638
      %1662 = vmatmul.bf16.gmra.mxu0 %v1590
      %v1663 = vpop.f32.mrf.mxu0
      %v1664 = vadd.f32 0.0, %v1663
      %v1665 = vpop.f32.mrf.mxu0
      %v1666 = vadd.f32 0.0, %v1665
      %1667 = vmatmul.bf16.gmra.mxu0 %v1591
      %v1668 = vpop.f32.mrf.mxu0
      %v1669 = vadd.f32 0.0, %v1668
      %v1670 = vpop.f32.mrf.mxu0
      %v1671 = vadd.f32 0.0, %v1670
      %1672 = vmatmul.bf16.gmra.mxu0 %v1592
      %v1673 = vpop.f32.mrf.mxu0
      %v1674 = vadd.f32 0.0, %v1673
      %v1675 = vpop.f32.mrf.mxu0
      %v1676 = vadd.f32 0.0, %v1675
      %1677 = vmatmul.bf16.gmra.mxu0 %v1593
      %v1678 = vpop.f32.mrf.mxu0
      %v1679 = vadd.f32 0.0, %v1678
      %v1680 = vpop.f32.mrf.mxu0
      %v1681 = vadd.f32 0.0, %v1680
      %1682 = vmatmul.bf16.gmra.mxu0 %v1594
      %v1683 = vpop.f32.mrf.mxu0
      %v1684 = vadd.f32 0.0, %v1683
      %v1685 = vpop.f32.mrf.mxu0
      %v1686 = vadd.f32 0.0, %v1685
      %1687 = vmatmul.bf16.gmra.mxu0 %v1595
      %v1688 = vpop.f32.mrf.mxu0
      %v1689 = vadd.f32 0.0, %v1688
      %v1690 = vpop.f32.mrf.mxu0
      %v1691 = vadd.f32 0.0, %v1690
      %1692 = vmatmul.bf16.gmra.mxu0 %v1596
      %v1693 = vpop.f32.mrf.mxu0
      %v1694 = vadd.f32 0.0, %v1693
      %v1695 = vpop.f32.mrf.mxu0
      %v1696 = vadd.f32 0.0, %v1695
      %1697 = vmatmul.bf16.gmra.mxu0 %v1597
      %v1698 = vpop.f32.mrf.mxu0
      %v1699 = vadd.f32 0.0, %v1698
      %v1700 = vpop.f32.mrf.mxu0
      %v1701 = vadd.f32 0.0, %v1700
      %1702 = vdwg.mxu0
      %v1703 = vadd.f32 %v1435, %v1664
      %v1704 = vadd.f32 %v1437, %v1666
      %v1705 = vadd.f32 %v1440, %v1669
      %v1706 = vadd.f32 %v1442, %v1671
      %v1707 = vadd.f32 %v1445, %v1674
      %v1708 = vadd.f32 %v1447, %v1676
      %v1709 = vadd.f32 %v1450, %v1679
      %v1710 = vadd.f32 %v1452, %v1681
      %v1711 = vadd.f32 %v1455, %v1684
      %v1712 = vadd.f32 %v1457, %v1686
      %v1713 = vadd.f32 %v1460, %v1689
      %v1714 = vadd.f32 %v1462, %v1691
      %v1715 = vadd.f32 %v1465, %v1694
      %v1716 = vadd.f32 %v1467, %v1696
      %v1717 = vadd.f32 %v1470, %v1699
      %v1718 = vadd.f32 %v1472, %v1701
      %v1719 = vld [vmem:[%s863] sm:$0xf]
      %v1720 = vld [vmem:[%s863 + $0x4] sm:$0xf]
      %v1721 = vld [vmem:[%s863 + $0xc] sm:$0xf]
      %v1722 = vld [vmem:[%s863 + $0x10] sm:$0xf]
      %v1723 = vld [vmem:[%s863 + $0x18] sm:$0xf]
      %v1724 = vld [vmem:[%s863 + $0x1c] sm:$0xf]
      %v1725 = vld [vmem:[%s863 + $0x24] sm:$0xf]
      %v1726 = vld [vmem:[%s863 + $0x28] sm:$0xf]
      %v1727 = vld [vmem:[%s863 + $0x30] sm:$0xf]
      %v1728 = vld [vmem:[%s863 + $0x34] sm:$0xf]
      %v1729 = vld [vmem:[%s863 + $0x3c] sm:$0xf]
      %v1730 = vld [vmem:[%s863 + $0x40] sm:$0xf]
      %v1731 = vld [vmem:[%s863 + $0x48] sm:$0xf]
      %v1732 = vld [vmem:[%s863 + $0x4c] sm:$0xf]
      %v1733 = vld [vmem:[%s863 + $0x54] sm:$0xf]
      %v1734 = vld [vmem:[%s863 + $0x58] sm:$0xf]
      %s1735 = scalar_lea.vmem %s3, 192
      %v1736 = vld [vmem:[%s1735] sm:$0xf]
      %v1737 = vld [vmem:[%s1735 + $0x4] sm:$0xf]
      %v1738 = vld [vmem:[%s1735 + $0x8] sm:$0xf]
      %v1739 = vld [vmem:[%s1735 + $0xc] sm:$0xf]
      %v1740 = vld [vmem:[%s1735 + $0x10] sm:$0xf]
      %v1741 = vld [vmem:[%s1735 + $0x14] sm:$0xf]
      %v1742 = vld [vmem:[%s1735 + $0x18] sm:$0xf]
      %v1743 = vld [vmem:[%s1735 + $0x1c] sm:$0xf]
      %v1744 = vld [vmem:[%s1735 + $0x20] sm:$0xf]
      %v1745 = vld [vmem:[%s1735 + $0x24] sm:$0xf]
      %v1746 = vld [vmem:[%s1735 + $0x28] sm:$0xf]
      %v1747 = vld [vmem:[%s1735 + $0x2c] sm:$0xf]
      %v1748 = vld [vmem:[%s1735 + $0x30] sm:$0xf]
      %v1749 = vld [vmem:[%s1735 + $0x34] sm:$0xf]
      %v1750 = vld [vmem:[%s1735 + $0x38] sm:$0xf]
      %v1751 = vld [vmem:[%s1735 + $0x3c] sm:$0xf]
      %v1768 = vunpack.c.l.b16 %v1719
      %v1769 = vunpack.c.l.b16 %v1720
      %v1770 = vunpack.c.l.b16 %v1721
      %v1771 = vunpack.c.l.b16 %v1722
      %v1772 = vunpack.c.l.b16 %v1723
      %v1773 = vunpack.c.l.b16 %v1724
      %v1774 = vunpack.c.l.b16 %v1725
      %v1775 = vunpack.c.l.b16 %v1726
      %v1776 = vunpack.c.l.b16 %v1727
      %v1777 = vunpack.c.l.b16 %v1728
      %v1778 = vunpack.c.l.b16 %v1729
      %v1779 = vunpack.c.l.b16 %v1730
      %v1780 = vunpack.c.l.b16 %v1731
      %v1781 = vunpack.c.l.b16 %v1732
      %v1782 = vunpack.c.l.b16 %v1733
      %v1783 = vunpack.c.l.b16 %v1734
      %v1784 = vpack.c.b16 %v1769, %v1768
      %v1785 = vpack.c.b16 %v1771, %v1770
      %v1786 = vpack.c.b16 %v1773, %v1772
      %v1787 = vpack.c.b16 %v1775, %v1774
      %v1788 = vpack.c.b16 %v1777, %v1776
      %v1789 = vpack.c.b16 %v1779, %v1778
      %v1790 = vpack.c.b16 %v1781, %v1780
      %v1791 = vpack.c.b16 %v1783, %v1782
      %v1816 = vunpack.c.l.b16 %v1736
      %v1817 = vunpack.c.l.b16 %v1737
      %v1818 = vunpack.c.l.b16 %v1738
      %v1819 = vunpack.c.l.b16 %v1739
      %v1820 = vunpack.c.l.b16 %v1740
      %v1821 = vunpack.c.l.b16 %v1741
      %v1822 = vunpack.c.l.b16 %v1742
      %v1823 = vunpack.c.l.b16 %v1743
      %v1824 = vunpack.c.l.b16 %v1744
      %v1825 = vunpack.c.l.b16 %v1745
      %v1826 = vunpack.c.l.b16 %v1746
      %v1827 = vunpack.c.l.b16 %v1747
      %v1828 = vunpack.c.l.b16 %v1748
      %v1829 = vunpack.c.l.b16 %v1749
      %v1830 = vunpack.c.l.b16 %v1750
      %v1831 = vunpack.c.l.b16 %v1751
      %v1832 = vpack.c.b16 %v1817, %v1816
      %v1833 = vpack.c.b16 %v1819, %v1818
      %v1834 = vpack.c.b16 %v1821, %v1820
      %v1835 = vpack.c.b16 %v1823, %v1822
      %v1836 = vpack.c.b16 %v1825, %v1824
      %v1837 = vpack.c.b16 %v1827, %v1826
      %v1838 = vpack.c.b16 %v1829, %v1828
      %v1839 = vpack.c.b16 %v1831, %v1830
      %1848 = vmatpush.bf16.msra.mxu0 %v1839
      %1849 = vmatpush.bf16.msra.mxu0 %v1838
      %1850 = vmatpush.bf16.msra.mxu0 %v1837
      %1851 = vmatpush.bf16.msra.mxu0 %v1836
      %1852 = vmatpush.bf16.msra.mxu0 %v1835
      %1853 = vmatpush.bf16.msra.mxu0 %v1834
      %1854 = vmatpush.bf16.msra.mxu0 %v1833
      %1855 = vmatpush.bf16.msra.mxu0 %v1832
      %1856 = vmatmul.bf16.gmra.mxu0 %v1784
      %v1857 = vpop.f32.mrf.mxu0
      %v1858 = vadd.f32 0.0, %v1857
      %v1859 = vpop.f32.mrf.mxu0
      %v1860 = vadd.f32 0.0, %v1859
      %1861 = vmatmul.bf16.gmra.mxu0 %v1785
      %v1862 = vpop.f32.mrf.mxu0
      %v1863 = vadd.f32 0.0, %v1862
      %v1864 = vpop.f32.mrf.mxu0
      %v1865 = vadd.f32 0.0, %v1864
      %1866 = vmatmul.bf16.gmra.mxu0 %v1786
      %v1867 = vpop.f32.mrf.mxu0
      %v1868 = vadd.f32 0.0, %v1867
      %v1869 = vpop.f32.mrf.mxu0
      %v1870 = vadd.f32 0.0, %v1869
      %1871 = vmatmul.bf16.gmra.mxu0 %v1787
      %v1872 = vpop.f32.mrf.mxu0
      %v1873 = vadd.f32 0.0, %v1872
      %v1874 = vpop.f32.mrf.mxu0
      %v1875 = vadd.f32 0.0, %v1874
      %1876 = vmatmul.bf16.gmra.mxu0 %v1788
      %v1877 = vpop.f32.mrf.mxu0
      %v1878 = vadd.f32 0.0, %v1877
      %v1879 = vpop.f32.mrf.mxu0
      %v1880 = vadd.f32 0.0, %v1879
      %1881 = vmatmul.bf16.gmra.mxu0 %v1789
      %v1882 = vpop.f32.mrf.mxu0
      %v1883 = vadd.f32 0.0, %v1882
      %v1884 = vpop.f32.mrf.mxu0
      %v1885 = vadd.f32 0.0, %v1884
      %1886 = vmatmul.bf16.gmra.mxu0 %v1790
      %v1887 = vpop.f32.mrf.mxu0
      %v1888 = vadd.f32 0.0, %v1887
      %v1889 = vpop.f32.mrf.mxu0
      %v1890 = vadd.f32 0.0, %v1889
      %1891 = vmatmul.bf16.gmra.mxu0 %v1791
      %v1892 = vpop.f32.mrf.mxu0
      %v1893 = vadd.f32 0.0, %v1892
      %v1894 = vpop.f32.mrf.mxu0
      %v1895 = vadd.f32 0.0, %v1894
      %1896 = vdwg.mxu0
      %v1897 = vadd.f32 %v1703, %v1858
      %v1898 = vadd.f32 %v1704, %v1860
      %v1899 = vadd.f32 %v1705, %v1863
      %v1900 = vadd.f32 %v1706, %v1865
      %v1901 = vadd.f32 %v1707, %v1868
      %v1902 = vadd.f32 %v1708, %v1870
      %v1903 = vadd.f32 %v1709, %v1873
      %v1904 = vadd.f32 %v1710, %v1875
      %v1905 = vadd.f32 %v1711, %v1878
      %v1906 = vadd.f32 %v1712, %v1880
      %v1907 = vadd.f32 %v1713, %v1883
      %v1908 = vadd.f32 %v1714, %v1885
      %v1909 = vadd.f32 %v1715, %v1888
      %v1910 = vadd.f32 %v1716, %v1890
      %v1911 = vadd.f32 %v1717, %v1893
      %v1912 = vadd.f32 %v1718, %v1895
      %v1913 = vld [vmem:[%s863] sm:$0xf]
      %v1914 = vld [vmem:[%s863 + $0x4] sm:$0xf]
      %v1915 = vld [vmem:[%s863 + $0x8] sm:$0x1]
      %v1916 = vld [vmem:[%s863 + $0xc] sm:$0xf]
      %v1917 = vld [vmem:[%s863 + $0x10] sm:$0xf]
      %v1918 = vld [vmem:[%s863 + $0x14] sm:$0x1]
      %v1919 = vld [vmem:[%s863 + $0x18] sm:$0xf]
      %v1920 = vld [vmem:[%s863 + $0x1c] sm:$0xf]
      %v1921 = vld [vmem:[%s863 + $0x20] sm:$0x1]
      %v1922 = vld [vmem:[%s863 + $0x24] sm:$0xf]
      %v1923 = vld [vmem:[%s863 + $0x28] sm:$0xf]
      %v1924 = vld [vmem:[%s863 + $0x2c] sm:$0x1]
      %v1925 = vld [vmem:[%s863 + $0x30] sm:$0xf]
      %v1926 = vld [vmem:[%s863 + $0x34] sm:$0xf]
      %v1927 = vld [vmem:[%s863 + $0x38] sm:$0x1]
      %v1928 = vld [vmem:[%s863 + $0x3c] sm:$0xf]
      %v1929 = vld [vmem:[%s863 + $0x40] sm:$0xf]
      %v1930 = vld [vmem:[%s863 + $0x44] sm:$0x1]
      %v1931 = vld [vmem:[%s863 + $0x48] sm:$0xf]
      %v1932 = vld [vmem:[%s863 + $0x4c] sm:$0xf]
      %v1933 = vld [vmem:[%s863 + $0x50] sm:$0x1]
      %v1934 = vld [vmem:[%s863 + $0x54] sm:$0xf]
      %v1935 = vld [vmem:[%s863 + $0x58] sm:$0xf]
      %v1936 = vld [vmem:[%s863 + $0x5c] sm:$0x1]
      %v1938 = vshrl.u32 %v1913, 16
      %v1940 = vrot.slane %v1938, 4
      %v1941 = vshll.u32 %v1913, 16
      %v1943 = vrot.slane %v1941, 5
      %v1944 = vor.u32 %v1940, %v1943
      %v1945 = vrot.slane %v1944, 4
      %v1947 = vshll.u32 %v1914, 16
      %v1949 = vrot.slane %v1947, 5
      %v1950 = vsel %vm990, %v1945, %v1949
      %v1951 = vshrl.u32 %v1914, 16
      %v1953 = vrot.slane %v1951, 4
      %v1954 = vor.u32 %v1953, %v1949
      %v1955 = vrot.slane %v1954, 4
      %v1957 = vshll.u32 %v1915, 16
      %v1959 = vrot.slane %v1957, 5
      %v1960 = vsel %vm990, %v1955, %v1959
      %v1962 = vshrl.u32 %v1916, 16
      %v1964 = vrot.slane %v1962, 4
      %v1965 = vshll.u32 %v1916, 16
      %v1967 = vrot.slane %v1965, 5
      %v1968 = vor.u32 %v1964, %v1967
      %v1969 = vrot.slane %v1968, 4
      %v1971 = vshll.u32 %v1917, 16
      %v1973 = vrot.slane %v1971, 5
      %v1974 = vsel %vm990, %v1969, %v1973
      %v1975 = vshrl.u32 %v1917, 16
      %v1977 = vrot.slane %v1975, 4
      %v1978 = vor.u32 %v1977, %v1973
      %v1979 = vrot.slane %v1978, 4
      %v1981 = vshll.u32 %v1918, 16
      %v1983 = vrot.slane %v1981, 5
      %v1984 = vsel %vm990, %v1979, %v1983
      %v1986 = vshrl.u32 %v1919, 16
      %v1988 = vrot.slane %v1986, 4
      %v1989 = vshll.u32 %v1919, 16
      %v1991 = vrot.slane %v1989, 5
      %v1992 = vor.u32 %v1988, %v1991
      %v1993 = vrot.slane %v1992, 4
      %v1995 = vshll.u32 %v1920, 16
      %v1997 = vrot.slane %v1995, 5
      %v1998 = vsel %vm990, %v1993, %v1997
      %v1999 = vshrl.u32 %v1920, 16
      %v2001 = vrot.slane %v1999, 4
      %v2002 = vor.u32 %v2001, %v1997
      %v2003 = vrot.slane %v2002, 4
      %v2005 = vshll.u32 %v1921, 16
      %v2007 = vrot.slane %v2005, 5
      %v2008 = vsel %vm990, %v2003, %v2007
      %v2010 = vshrl.u32 %v1922, 16
      %v2012 = vrot.slane %v2010, 4
      %v2013 = vshll.u32 %v1922, 16
      %v2015 = vrot.slane %v2013, 5
      %v2016 = vor.u32 %v2012, %v2015
      %v2017 = vrot.slane %v2016, 4
      %v2019 = vshll.u32 %v1923, 16
      %v2021 = vrot.slane %v2019, 5
      %v2022 = vsel %vm990, %v2017, %v2021
      %v2023 = vshrl.u32 %v1923, 16
      %v2025 = vrot.slane %v2023, 4
      %v2026 = vor.u32 %v2025, %v2021
      %v2027 = vrot.slane %v2026, 4
      %v2029 = vshll.u32 %v1924, 16
      %v2031 = vrot.slane %v2029, 5
      %v2032 = vsel %vm990, %v2027, %v2031
      %v2034 = vshrl.u32 %v1925, 16
      %v2036 = vrot.slane %v2034, 4
      %v2037 = vshll.u32 %v1925, 16
      %v2039 = vrot.slane %v2037, 5
      %v2040 = vor.u32 %v2036, %v2039
      %v2041 = vrot.slane %v2040, 4
      %v2043 = vshll.u32 %v1926, 16
      %v2045 = vrot.slane %v2043, 5
      %v2046 = vsel %vm990, %v2041, %v2045
      %v2047 = vshrl.u32 %v1926, 16
      %v2049 = vrot.slane %v2047, 4
      %v2050 = vor.u32 %v2049, %v2045
      %v2051 = vrot.slane %v2050, 4
      %v2053 = vshll.u32 %v1927, 16
      %v2055 = vrot.slane %v2053, 5
      %v2056 = vsel %vm990, %v2051, %v2055
      %v2058 = vshrl.u32 %v1928, 16
      %v2060 = vrot.slane %v2058, 4
      %v2061 = vshll.u32 %v1928, 16
      %v2063 = vrot.slane %v2061, 5
      %v2064 = vor.u32 %v2060, %v2063
      %v2065 = vrot.slane %v2064, 4
      %v2067 = vshll.u32 %v1929, 16
      %v2069 = vrot.slane %v2067, 5
      %v2070 = vsel %vm990, %v2065, %v2069
      %v2071 = vshrl.u32 %v1929, 16
      %v2073 = vrot.slane %v2071, 4
      %v2074 = vor.u32 %v2073, %v2069
      %v2075 = vrot.slane %v2074, 4
      %v2077 = vshll.u32 %v1930, 16
      %v2079 = vrot.slane %v2077, 5
      %v2080 = vsel %vm990, %v2075, %v2079
      %v2082 = vshrl.u32 %v1931, 16
      %v2084 = vrot.slane %v2082, 4
      %v2085 = vshll.u32 %v1931, 16
      %v2087 = vrot.slane %v2085, 5
      %v2088 = vor.u32 %v2084, %v2087
      %v2089 = vrot.slane %v2088, 4
      %v2091 = vshll.u32 %v1932, 16
      %v2093 = vrot.slane %v2091, 5
      %v2094 = vsel %vm990, %v2089, %v2093
      %v2095 = vshrl.u32 %v1932, 16
      %v2097 = vrot.slane %v2095, 4
      %v2098 = vor.u32 %v2097, %v2093
      %v2099 = vrot.slane %v2098, 4
      %v2101 = vshll.u32 %v1933, 16
      %v2103 = vrot.slane %v2101, 5
      %v2104 = vsel %vm990, %v2099, %v2103
      %v2106 = vshrl.u32 %v1934, 16
      %v2108 = vrot.slane %v2106, 4
      %v2109 = vshll.u32 %v1934, 16
      %v2111 = vrot.slane %v2109, 5
      %v2112 = vor.u32 %v2108, %v2111
      %v2113 = vrot.slane %v2112, 4
      %v2115 = vshll.u32 %v1935, 16
      %v2117 = vrot.slane %v2115, 5
      %v2118 = vsel %vm990, %v2113, %v2117
      %v2119 = vshrl.u32 %v1935, 16
      %v2121 = vrot.slane %v2119, 4
      %v2122 = vor.u32 %v2121, %v2117
      %v2123 = vrot.slane %v2122, 4
      %v2125 = vshll.u32 %v1936, 16
      %v2127 = vrot.slane %v2125, 5
      %v2128 = vsel %vm990, %v2123, %v2127
      %s2129 = scalar_lea.vmem %s3, 256
      %v2130 = vld [vmem:[%s2129] sm:$0xf]
      %v2131 = vld [vmem:[%s2129 + $0x4] sm:$0xf]
      %v2132 = vld [vmem:[%s2129 + $0x8] sm:$0xf]
      %v2133 = vld [vmem:[%s2129 + $0xc] sm:$0xf]
      %v2134 = vld [vmem:[%s2129 + $0x10] sm:$0xf]
      %v2135 = vld [vmem:[%s2129 + $0x14] sm:$0xf]
      %v2136 = vld [vmem:[%s2129 + $0x18] sm:$0xf]
      %v2137 = vld [vmem:[%s2129 + $0x1c] sm:$0xf]
      %v2138 = vld [vmem:[%s2129 + $0x20] sm:$0xf]
      %v2139 = vld [vmem:[%s2129 + $0x24] sm:$0xf]
      %v2140 = vld [vmem:[%s2129 + $0x28] sm:$0xf]
      %v2141 = vld [vmem:[%s2129 + $0x2c] sm:$0xf]
      %v2142 = vld [vmem:[%s2129 + $0x30] sm:$0xf]
      %v2143 = vld [vmem:[%s2129 + $0x34] sm:$0xf]
      %v2144 = vld [vmem:[%s2129 + $0x38] sm:$0xf]
      %v2145 = vld [vmem:[%s2129 + $0x3c] sm:$0xf]
      %v2146 = vunpack.c.l.b16 %v1950
      %v2147 = vunpack.c.l.b16 %v1960
      %v2148 = vunpack.c.l.b16 %v1974
      %v2149 = vunpack.c.l.b16 %v1984
      %v2150 = vunpack.c.l.b16 %v1998
      %v2151 = vunpack.c.l.b16 %v2008
      %v2152 = vunpack.c.l.b16 %v2022
      %v2153 = vunpack.c.l.b16 %v2032
      %v2154 = vunpack.c.l.b16 %v2046
      %v2155 = vunpack.c.l.b16 %v2056
      %v2156 = vunpack.c.l.b16 %v2070
      %v2157 = vunpack.c.l.b16 %v2080
      %v2158 = vunpack.c.l.b16 %v2094
      %v2159 = vunpack.c.l.b16 %v2104
      %v2160 = vunpack.c.l.b16 %v2118
      %v2161 = vunpack.c.l.b16 %v2128
      %v2162 = vpack.c.b16 %v2147, %v2146
      %v2163 = vpack.c.b16 %v2149, %v2148
      %v2164 = vpack.c.b16 %v2151, %v2150
      %v2165 = vpack.c.b16 %v2153, %v2152
      %v2166 = vpack.c.b16 %v2155, %v2154
      %v2167 = vpack.c.b16 %v2157, %v2156
      %v2168 = vpack.c.b16 %v2159, %v2158
      %v2169 = vpack.c.b16 %v2161, %v2160
      %v2194 = vunpack.c.l.b16 %v2130
      %v2195 = vunpack.c.l.b16 %v2131
      %v2196 = vunpack.c.l.b16 %v2132
      %v2197 = vunpack.c.l.b16 %v2133
      %v2198 = vunpack.c.l.b16 %v2134
      %v2199 = vunpack.c.l.b16 %v2135
      %v2200 = vunpack.c.l.b16 %v2136
      %v2201 = vunpack.c.l.b16 %v2137
      %v2202 = vunpack.c.l.b16 %v2138
      %v2203 = vunpack.c.l.b16 %v2139
      %v2204 = vunpack.c.l.b16 %v2140
      %v2205 = vunpack.c.l.b16 %v2141
      %v2206 = vunpack.c.l.b16 %v2142
      %v2207 = vunpack.c.l.b16 %v2143
      %v2208 = vunpack.c.l.b16 %v2144
      %v2209 = vunpack.c.l.b16 %v2145
      %v2210 = vpack.c.b16 %v2195, %v2194
      %v2211 = vpack.c.b16 %v2197, %v2196
      %v2212 = vpack.c.b16 %v2199, %v2198
      %v2213 = vpack.c.b16 %v2201, %v2200
      %v2214 = vpack.c.b16 %v2203, %v2202
      %v2215 = vpack.c.b16 %v2205, %v2204
      %v2216 = vpack.c.b16 %v2207, %v2206
      %v2217 = vpack.c.b16 %v2209, %v2208
      %2226 = vmatpush.bf16.msra.mxu0 %v2217
      %2227 = vmatpush.bf16.msra.mxu0 %v2216
      %2228 = vmatpush.bf16.msra.mxu0 %v2215
      %2229 = vmatpush.bf16.msra.mxu0 %v2214
      %2230 = vmatpush.bf16.msra.mxu0 %v2213
      %2231 = vmatpush.bf16.msra.mxu0 %v2212
      %2232 = vmatpush.bf16.msra.mxu0 %v2211
      %2233 = vmatpush.bf16.msra.mxu0 %v2210
      %2234 = vmatmul.bf16.gmra.mxu0 %v2162
      %v2235 = vpop.f32.mrf.mxu0
      %v2236 = vadd.f32 0.0, %v2235
      %v2237 = vpop.f32.mrf.mxu0
      %v2238 = vadd.f32 0.0, %v2237
      %2239 = vmatmul.bf16.gmra.mxu0 %v2163
      %v2240 = vpop.f32.mrf.mxu0
      %v2241 = vadd.f32 0.0, %v2240
      %v2242 = vpop.f32.mrf.mxu0
      %v2243 = vadd.f32 0.0, %v2242
      %2244 = vmatmul.bf16.gmra.mxu0 %v2164
      %v2245 = vpop.f32.mrf.mxu0
      %v2246 = vadd.f32 0.0, %v2245
      %v2247 = vpop.f32.mrf.mxu0
      %v2248 = vadd.f32 0.0, %v2247
      %2249 = vmatmul.bf16.gmra.mxu0 %v2165
      %v2250 = vpop.f32.mrf.mxu0
      %v2251 = vadd.f32 0.0, %v2250
      %v2252 = vpop.f32.mrf.mxu0
      %v2253 = vadd.f32 0.0, %v2252
      %2254 = vmatmul.bf16.gmra.mxu0 %v2166
      %v2255 = vpop.f32.mrf.mxu0
      %v2256 = vadd.f32 0.0, %v2255
      %v2257 = vpop.f32.mrf.mxu0
      %v2258 = vadd.f32 0.0, %v2257
      %2259 = vmatmul.bf16.gmra.mxu0 %v2167
      %v2260 = vpop.f32.mrf.mxu0
      %v2261 = vadd.f32 0.0, %v2260
      %v2262 = vpop.f32.mrf.mxu0
      %v2263 = vadd.f32 0.0, %v2262
      %2264 = vmatmul.bf16.gmra.mxu0 %v2168
      %v2265 = vpop.f32.mrf.mxu0
      %v2266 = vadd.f32 0.0, %v2265
      %v2267 = vpop.f32.mrf.mxu0
      %v2268 = vadd.f32 0.0, %v2267
      %2269 = vmatmul.bf16.gmra.mxu0 %v2169
      %v2270 = vpop.f32.mrf.mxu0
      %v2271 = vadd.f32 0.0, %v2270
      %v2272 = vpop.f32.mrf.mxu0
      %v2273 = vadd.f32 0.0, %v2272
      %2274 = vdwg.mxu0
      %v2275 = vadd.f32 %v1897, %v2236
      %v2276 = vadd.f32 %v1898, %v2238
      %v2277 = vadd.f32 %v1899, %v2241
      %v2278 = vadd.f32 %v1900, %v2243
      %v2279 = vadd.f32 %v1901, %v2246
      %v2280 = vadd.f32 %v1902, %v2248
      %v2281 = vadd.f32 %v1903, %v2251
      %v2282 = vadd.f32 %v1904, %v2253
      %v2283 = vadd.f32 %v1905, %v2256
      %v2284 = vadd.f32 %v1906, %v2258
      %v2285 = vadd.f32 %v1907, %v2261
      %v2286 = vadd.f32 %v1908, %v2263
      %v2287 = vadd.f32 %v1909, %v2266
      %v2288 = vadd.f32 %v1910, %v2268
      %v2289 = vadd.f32 %v1911, %v2271
      %v2290 = vadd.f32 %v1912, %v2273
      %v2291 = vld [vmem:[%s863] sm:$0xe]
      %v2292 = vld [vmem:[%s863 + $0xc] sm:$0xe]
      %v2293 = vld [vmem:[%s863 + $0x18] sm:$0xe]
      %v2294 = vld [vmem:[%s863 + $0x24] sm:$0xe]
      %v2295 = vld [vmem:[%s863 + $0x30] sm:$0xe]
      %v2296 = vld [vmem:[%s863 + $0x3c] sm:$0xe]
      %v2297 = vld [vmem:[%s863 + $0x48] sm:$0xe]
      %v2298 = vld [vmem:[%s863 + $0x54] sm:$0xe]
      %v2323 = vrot.slane %v2291, 5
      %v2324 = vrot.slane %v2323, 4
      %v2325 = vrot.slane %v1914, 5
      %v2326 = vsel %vm1500, %v2324, %v2325
      %v2327 = vrot.slane %v2325, 4
      %v2328 = vrot.slane %v1915, 5
      %v2329 = vsel %vm1500, %v2327, %v2328
      %v2330 = vrot.slane %v2292, 5
      %v2331 = vrot.slane %v2330, 4
      %v2332 = vrot.slane %v1917, 5
      %v2333 = vsel %vm1500, %v2331, %v2332
      %v2334 = vrot.slane %v2332, 4
      %v2335 = vrot.slane %v1918, 5
      %v2336 = vsel %vm1500, %v2334, %v2335
      %v2337 = vrot.slane %v2293, 5
      %v2338 = vrot.slane %v2337, 4
      %v2339 = vrot.slane %v1920, 5
      %v2340 = vsel %vm1500, %v2338, %v2339
      %v2341 = vrot.slane %v2339, 4
      %v2342 = vrot.slane %v1921, 5
      %v2343 = vsel %vm1500, %v2341, %v2342
      %v2344 = vrot.slane %v2294, 5
      %v2345 = vrot.slane %v2344, 4
      %v2346 = vrot.slane %v1923, 5
      %v2347 = vsel %vm1500, %v2345, %v2346
      %v2348 = vrot.slane %v2346, 4
      %v2349 = vrot.slane %v1924, 5
      %v2350 = vsel %vm1500, %v2348, %v2349
      %v2351 = vrot.slane %v2295, 5
      %v2352 = vrot.slane %v2351, 4
      %v2353 = vrot.slane %v1926, 5
      %v2354 = vsel %vm1500, %v2352, %v2353
      %v2355 = vrot.slane %v2353, 4
      %v2356 = vrot.slane %v1927, 5
      %v2357 = vsel %vm1500, %v2355, %v2356
      %v2358 = vrot.slane %v2296, 5
      %v2359 = vrot.slane %v2358, 4
      %v2360 = vrot.slane %v1929, 5
      %v2361 = vsel %vm1500, %v2359, %v2360
      %v2362 = vrot.slane %v2360, 4
      %v2363 = vrot.slane %v1930, 5
      %v2364 = vsel %vm1500, %v2362, %v2363
      %v2365 = vrot.slane %v2297, 5
      %v2366 = vrot.slane %v2365, 4
      %v2367 = vrot.slane %v1932, 5
      %v2368 = vsel %vm1500, %v2366, %v2367
      %v2369 = vrot.slane %v2367, 4
      %v2370 = vrot.slane %v1933, 5
      %v2371 = vsel %vm1500, %v2369, %v2370
      %v2372 = vrot.slane %v2298, 5
      %v2373 = vrot.slane %v2372, 4
      %v2374 = vrot.slane %v1935, 5
      %v2375 = vsel %vm1500, %v2373, %v2374
      %v2376 = vrot.slane %v2374, 4
      %v2377 = vrot.slane %v1936, 5
      %v2378 = vsel %vm1500, %v2376, %v2377
      %s2379 = scalar_lea.vmem %s3, 320
      %v2380 = vld [vmem:[%s2379] sm:$0xf]
      %v2381 = vld [vmem:[%s2379 + $0x4] sm:$0xf]
      %v2382 = vld [vmem:[%s2379 + $0x8] sm:$0xf]
      %v2383 = vld [vmem:[%s2379 + $0xc] sm:$0xf]
      %v2384 = vld [vmem:[%s2379 + $0x10] sm:$0xf]
      %v2385 = vld [vmem:[%s2379 + $0x14] sm:$0xf]
      %v2386 = vld [vmem:[%s2379 + $0x18] sm:$0xf]
      %v2387 = vld [vmem:[%s2379 + $0x1c] sm:$0xf]
      %v2388 = vld [vmem:[%s2379 + $0x20] sm:$0xf]
      %v2389 = vld [vmem:[%s2379 + $0x24] sm:$0xf]
      %v2390 = vld [vmem:[%s2379 + $0x28] sm:$0xf]
      %v2391 = vld [vmem:[%s2379 + $0x2c] sm:$0xf]
      %v2392 = vld [vmem:[%s2379 + $0x30] sm:$0xf]
      %v2393 = vld [vmem:[%s2379 + $0x34] sm:$0xf]
      %v2394 = vld [vmem:[%s2379 + $0x38] sm:$0xf]
      %v2395 = vld [vmem:[%s2379 + $0x3c] sm:$0xf]
      %v2396 = vunpack.c.l.b16 %v2326
      %v2397 = vunpack.c.l.b16 %v2329
      %v2398 = vunpack.c.l.b16 %v2333
      %v2399 = vunpack.c.l.b16 %v2336
      %v2400 = vunpack.c.l.b16 %v2340
      %v2401 = vunpack.c.l.b16 %v2343
      %v2402 = vunpack.c.l.b16 %v2347
      %v2403 = vunpack.c.l.b16 %v2350
      %v2404 = vunpack.c.l.b16 %v2354
      %v2405 = vunpack.c.l.b16 %v2357
      %v2406 = vunpack.c.l.b16 %v2361
      %v2407 = vunpack.c.l.b16 %v2364
      %v2408 = vunpack.c.l.b16 %v2368
      %v2409 = vunpack.c.l.b16 %v2371
      %v2410 = vunpack.c.l.b16 %v2375
      %v2411 = vunpack.c.l.b16 %v2378
      %v2412 = vpack.c.b16 %v2397, %v2396
      %v2413 = vpack.c.b16 %v2399, %v2398
      %v2414 = vpack.c.b16 %v2401, %v2400
      %v2415 = vpack.c.b16 %v2403, %v2402
      %v2416 = vpack.c.b16 %v2405, %v2404
      %v2417 = vpack.c.b16 %v2407, %v2406
      %v2418 = vpack.c.b16 %v2409, %v2408
      %v2419 = vpack.c.b16 %v2411, %v2410
      %v2444 = vunpack.c.l.b16 %v2380
      %v2445 = vunpack.c.l.b16 %v2381
      %v2446 = vunpack.c.l.b16 %v2382
      %v2447 = vunpack.c.l.b16 %v2383
      %v2448 = vunpack.c.l.b16 %v2384
      %v2449 = vunpack.c.l.b16 %v2385
      %v2450 = vunpack.c.l.b16 %v2386
      %v2451 = vunpack.c.l.b16 %v2387
      %v2452 = vunpack.c.l.b16 %v2388
      %v2453 = vunpack.c.l.b16 %v2389
      %v2454 = vunpack.c.l.b16 %v2390
      %v2455 = vunpack.c.l.b16 %v2391
      %v2456 = vunpack.c.l.b16 %v2392
      %v2457 = vunpack.c.l.b16 %v2393
      %v2458 = vunpack.c.l.b16 %v2394
      %v2459 = vunpack.c.l.b16 %v2395
      %v2460 = vpack.c.b16 %v2445, %v2444
      %v2461 = vpack.c.b16 %v2447, %v2446
      %v2462 = vpack.c.b16 %v2449, %v2448
      %v2463 = vpack.c.b16 %v2451, %v2450
      %v2464 = vpack.c.b16 %v2453, %v2452
      %v2465 = vpack.c.b16 %v2455, %v2454
      %v2466 = vpack.c.b16 %v2457, %v2456
      %v2467 = vpack.c.b16 %v2459, %v2458
      %2476 = vmatpush.bf16.msra.mxu0 %v2467
      %2477 = vmatpush.bf16.msra.mxu0 %v2466
      %2478 = vmatpush.bf16.msra.mxu0 %v2465
      %2479 = vmatpush.bf16.msra.mxu0 %v2464
      %2480 = vmatpush.bf16.msra.mxu0 %v2463
      %2481 = vmatpush.bf16.msra.mxu0 %v2462
      %2482 = vmatpush.bf16.msra.mxu0 %v2461
      %2483 = vmatpush.bf16.msra.mxu0 %v2460
      %2484 = vmatmul.bf16.gmra.mxu0 %v2412
      %v2485 = vpop.f32.mrf.mxu0
      %v2486 = vadd.f32 0.0, %v2485
      %v2487 = vpop.f32.mrf.mxu0
      %v2488 = vadd.f32 0.0, %v2487
      %2489 = vmatmul.bf16.gmra.mxu0 %v2413
      %v2490 = vpop.f32.mrf.mxu0
      %v2491 = vadd.f32 0.0, %v2490
      %v2492 = vpop.f32.mrf.mxu0
      %v2493 = vadd.f32 0.0, %v2492
      %2494 = vmatmul.bf16.gmra.mxu0 %v2414
      %v2495 = vpop.f32.mrf.mxu0
      %v2496 = vadd.f32 0.0, %v2495
      %v2497 = vpop.f32.mrf.mxu0
      %v2498 = vadd.f32 0.0, %v2497
      %2499 = vmatmul.bf16.gmra.mxu0 %v2415
      %v2500 = vpop.f32.mrf.mxu0
      %v2501 = vadd.f32 0.0, %v2500
      %v2502 = vpop.f32.mrf.mxu0
      %v2503 = vadd.f32 0.0, %v2502
      %2504 = vmatmul.bf16.gmra.mxu0 %v2416
      %v2505 = vpop.f32.mrf.mxu0
      %v2506 = vadd.f32 0.0, %v2505
      %v2507 = vpop.f32.mrf.mxu0
      %v2508 = vadd.f32 0.0, %v2507
      %2509 = vmatmul.bf16.gmra.mxu0 %v2417
      %v2510 = vpop.f32.mrf.mxu0
      %v2511 = vadd.f32 0.0, %v2510
      %v2512 = vpop.f32.mrf.mxu0
      %v2513 = vadd.f32 0.0, %v2512
      %2514 = vmatmul.bf16.gmra.mxu0 %v2418
      %v2515 = vpop.f32.mrf.mxu0
      %v2516 = vadd.f32 0.0, %v2515
      %v2517 = vpop.f32.mrf.mxu0
      %v2518 = vadd.f32 0.0, %v2517
      %2519 = vmatmul.bf16.gmra.mxu0 %v2419
      %v2520 = vpop.f32.mrf.mxu0
      %v2521 = vadd.f32 0.0, %v2520
      %v2522 = vpop.f32.mrf.mxu0
      %v2523 = vadd.f32 0.0, %v2522
      %2524 = vdwg.mxu0
      %v2525 = vadd.f32 %v2275, %v2486
      %v2526 = vadd.f32 %v2276, %v2488
      %v2527 = vadd.f32 %v2277, %v2491
      %v2528 = vadd.f32 %v2278, %v2493
      %v2529 = vadd.f32 %v2279, %v2496
      %v2530 = vadd.f32 %v2280, %v2498
      %v2531 = vadd.f32 %v2281, %v2501
      %v2532 = vadd.f32 %v2282, %v2503
      %v2533 = vadd.f32 %v2283, %v2506
      %v2534 = vadd.f32 %v2284, %v2508
      %v2535 = vadd.f32 %v2285, %v2511
      %v2536 = vadd.f32 %v2286, %v2513
      %v2537 = vadd.f32 %v2287, %v2516
      %v2538 = vadd.f32 %v2288, %v2518
      %v2539 = vadd.f32 %v2289, %v2521
      %v2540 = vadd.f32 %v2290, %v2523
      %s2541 = scalar_lea.vmem [#allocation2], 24
      %v2542 = vld [vmem:[%s2541] sm:$0xf]
      %v2543 = vld [vmem:[%s2541 + $0x4] sm:$0xf]
      %v2544 = vld [vmem:[%s2541 + $0xc] sm:$0xf]
      %v2545 = vld [vmem:[%s2541 + $0x10] sm:$0xf]
      %v2546 = vld [vmem:[%s2541 + $0x18] sm:$0xf]
      %v2547 = vld [vmem:[%s2541 + $0x1c] sm:$0xf]
      %v2548 = vld [vmem:[%s2541 + $0x24] sm:$0xf]
      %v2549 = vld [vmem:[%s2541 + $0x28] sm:$0xf]
      %v2550 = vld [vmem:[%s2541 + $0x30] sm:$0xf]
      %v2551 = vld [vmem:[%s2541 + $0x34] sm:$0xf]
      %v2552 = vld [vmem:[%s2541 + $0x3c] sm:$0xf]
      %v2553 = vld [vmem:[%s2541 + $0x40] sm:$0xf]
      %v2554 = vld [vmem:[%s2541 + $0x48] sm:$0xf]
      %v2555 = vld [vmem:[%s2541 + $0x4c] sm:$0xf]
      %v2556 = vld [vmem:[%s2541 + $0x54] sm:$0xf]
      %v2557 = vld [vmem:[%s2541 + $0x58] sm:$0xf]
      %s2558 = scalar_lea.vmem %s3, 384
      %v2559 = vld [vmem:[%s2558] sm:$0xf]
      %v2560 = vld [vmem:[%s2558 + $0x4] sm:$0xf]
      %v2561 = vld [vmem:[%s2558 + $0x8] sm:$0xf]
      %v2562 = vld [vmem:[%s2558 + $0xc] sm:$0xf]
      %v2563 = vld [vmem:[%s2558 + $0x10] sm:$0xf]
      %v2564 = vld [vmem:[%s2558 + $0x14] sm:$0xf]
      %v2565 = vld [vmem:[%s2558 + $0x18] sm:$0xf]
      %v2566 = vld [vmem:[%s2558 + $0x1c] sm:$0xf]
      %v2567 = vld [vmem:[%s2558 + $0x20] sm:$0xf]
      %v2568 = vld [vmem:[%s2558 + $0x24] sm:$0xf]
      %v2569 = vld [vmem:[%s2558 + $0x28] sm:$0xf]
      %v2570 = vld [vmem:[%s2558 + $0x2c] sm:$0xf]
      %v2571 = vld [vmem:[%s2558 + $0x30] sm:$0xf]
      %v2572 = vld [vmem:[%s2558 + $0x34] sm:$0xf]
      %v2573 = vld [vmem:[%s2558 + $0x38] sm:$0xf]
      %v2574 = vld [vmem:[%s2558 + $0x3c] sm:$0xf]
      %v2591 = vunpack.c.l.b16 %v2542
      %v2592 = vunpack.c.l.b16 %v2543
      %v2593 = vunpack.c.l.b16 %v2544
      %v2594 = vunpack.c.l.b16 %v2545
      %v2595 = vunpack.c.l.b16 %v2546
      %v2596 = vunpack.c.l.b16 %v2547
      %v2597 = vunpack.c.l.b16 %v2548
      %v2598 = vunpack.c.l.b16 %v2549
      %v2599 = vunpack.c.l.b16 %v2550
      %v2600 = vunpack.c.l.b16 %v2551
      %v2601 = vunpack.c.l.b16 %v2552
      %v2602 = vunpack.c.l.b16 %v2553
      %v2603 = vunpack.c.l.b16 %v2554
      %v2604 = vunpack.c.l.b16 %v2555
      %v2605 = vunpack.c.l.b16 %v2556
      %v2606 = vunpack.c.l.b16 %v2557
      %v2607 = vpack.c.b16 %v2592, %v2591
      %v2608 = vpack.c.b16 %v2594, %v2593
      %v2609 = vpack.c.b16 %v2596, %v2595
      %v2610 = vpack.c.b16 %v2598, %v2597
      %v2611 = vpack.c.b16 %v2600, %v2599
      %v2612 = vpack.c.b16 %v2602, %v2601
      %v2613 = vpack.c.b16 %v2604, %v2603
      %v2614 = vpack.c.b16 %v2606, %v2605
      %v2639 = vunpack.c.l.b16 %v2559
      %v2640 = vunpack.c.l.b16 %v2560
      %v2641 = vunpack.c.l.b16 %v2561
      %v2642 = vunpack.c.l.b16 %v2562
      %v2643 = vunpack.c.l.b16 %v2563
      %v2644 = vunpack.c.l.b16 %v2564
      %v2645 = vunpack.c.l.b16 %v2565
      %v2646 = vunpack.c.l.b16 %v2566
      %v2647 = vunpack.c.l.b16 %v2567
      %v2648 = vunpack.c.l.b16 %v2568
      %v2649 = vunpack.c.l.b16 %v2569
      %v2650 = vunpack.c.l.b16 %v2570
      %v2651 = vunpack.c.l.b16 %v2571
      %v2652 = vunpack.c.l.b16 %v2572
      %v2653 = vunpack.c.l.b16 %v2573
      %v2654 = vunpack.c.l.b16 %v2574
      %v2655 = vpack.c.b16 %v2640, %v2639
      %v2656 = vpack.c.b16 %v2642, %v2641
      %v2657 = vpack.c.b16 %v2644, %v2643
      %v2658 = vpack.c.b16 %v2646, %v2645
      %v2659 = vpack.c.b16 %v2648, %v2647
      %v2660 = vpack.c.b16 %v2650, %v2649
      %v2661 = vpack.c.b16 %v2652, %v2651
      %v2662 = vpack.c.b16 %v2654, %v2653
      %2671 = vmatpush.bf16.msra.mxu0 %v2662
      %2672 = vmatpush.bf16.msra.mxu0 %v2661
      %2673 = vmatpush.bf16.msra.mxu0 %v2660
      %2674 = vmatpush.bf16.msra.mxu0 %v2659
      %2675 = vmatpush.bf16.msra.mxu0 %v2658
      %2676 = vmatpush.bf16.msra.mxu0 %v2657
      %2677 = vmatpush.bf16.msra.mxu0 %v2656
      %2678 = vmatpush.bf16.msra.mxu0 %v2655
      %2679 = vmatmul.bf16.gmra.mxu0 %v2607
      %v2680 = vpop.f32.mrf.mxu0
      %v2681 = vadd.f32 0.0, %v2680
      %v2682 = vpop.f32.mrf.mxu0
      %v2683 = vadd.f32 0.0, %v2682
      %2684 = vmatmul.bf16.gmra.mxu0 %v2608
      %v2685 = vpop.f32.mrf.mxu0
      %v2686 = vadd.f32 0.0, %v2685
      %v2687 = vpop.f32.mrf.mxu0
      %v2688 = vadd.f32 0.0, %v2687
      %2689 = vmatmul.bf16.gmra.mxu0 %v2609
      %v2690 = vpop.f32.mrf.mxu0
      %v2691 = vadd.f32 0.0, %v2690
      %v2692 = vpop.f32.mrf.mxu0
      %v2693 = vadd.f32 0.0, %v2692
      %2694 = vmatmul.bf16.gmra.mxu0 %v2610
      %v2695 = vpop.f32.mrf.mxu0
      %v2696 = vadd.f32 0.0, %v2695
      %v2697 = vpop.f32.mrf.mxu0
      %v2698 = vadd.f32 0.0, %v2697
      %2699 = vmatmul.bf16.gmra.mxu0 %v2611
      %v2700 = vpop.f32.mrf.mxu0
      %v2701 = vadd.f32 0.0, %v2700
      %v2702 = vpop.f32.mrf.mxu0
      %v2703 = vadd.f32 0.0, %v2702
      %2704 = vmatmul.bf16.gmra.mxu0 %v2612
      %v2705 = vpop.f32.mrf.mxu0
      %v2706 = vadd.f32 0.0, %v2705
      %v2707 = vpop.f32.mrf.mxu0
      %v2708 = vadd.f32 0.0, %v2707
      %2709 = vmatmul.bf16.gmra.mxu0 %v2613
      %v2710 = vpop.f32.mrf.mxu0
      %v2711 = vadd.f32 0.0, %v2710
      %v2712 = vpop.f32.mrf.mxu0
      %v2713 = vadd.f32 0.0, %v2712
      %2714 = vmatmul.bf16.gmra.mxu0 %v2614
      %v2715 = vpop.f32.mrf.mxu0
      %v2716 = vadd.f32 0.0, %v2715
      %v2717 = vpop.f32.mrf.mxu0
      %v2718 = vadd.f32 0.0, %v2717
      %2719 = vdwg.mxu0
      %v2720 = vadd.f32 %v2525, %v2681
      %v2721 = vadd.f32 %v2526, %v2683
      %v2722 = vadd.f32 %v2527, %v2686
      %v2723 = vadd.f32 %v2528, %v2688
      %v2724 = vadd.f32 %v2529, %v2691
      %v2725 = vadd.f32 %v2530, %v2693
      %v2726 = vadd.f32 %v2531, %v2696
      %v2727 = vadd.f32 %v2532, %v2698
      %v2728 = vadd.f32 %v2533, %v2701
      %v2729 = vadd.f32 %v2534, %v2703
      %v2730 = vadd.f32 %v2535, %v2706
      %v2731 = vadd.f32 %v2536, %v2708
      %v2732 = vadd.f32 %v2537, %v2711
      %v2733 = vadd.f32 %v2538, %v2713
      %v2734 = vadd.f32 %v2539, %v2716
      %v2735 = vadd.f32 %v2540, %v2718
      %v2736 = vld [vmem:[%s2541] sm:$0xf]
      %v2737 = vld [vmem:[%s2541 + $0x4] sm:$0xf]
      %v2738 = vld [vmem:[%s2541 + $0x8] sm:$0x1]
      %v2739 = vld [vmem:[%s2541 + $0xc] sm:$0xf]
      %v2740 = vld [vmem:[%s2541 + $0x10] sm:$0xf]
      %v2741 = vld [vmem:[%s2541 + $0x14] sm:$0x1]
      %v2742 = vld [vmem:[%s2541 + $0x18] sm:$0xf]
      %v2743 = vld [vmem:[%s2541 + $0x1c] sm:$0xf]
      %v2744 = vld [vmem:[%s2541 + $0x20] sm:$0x1]
      %v2745 = vld [vmem:[%s2541 + $0x24] sm:$0xf]
      %v2746 = vld [vmem:[%s2541 + $0x28] sm:$0xf]
      %v2747 = vld [vmem:[%s2541 + $0x2c] sm:$0x1]
      %v2748 = vld [vmem:[%s2541 + $0x30] sm:$0xf]
      %v2749 = vld [vmem:[%s2541 + $0x34] sm:$0xf]
      %v2750 = vld [vmem:[%s2541 + $0x38] sm:$0x1]
      %v2751 = vld [vmem:[%s2541 + $0x3c] sm:$0xf]
      %v2752 = vld [vmem:[%s2541 + $0x40] sm:$0xf]
      %v2753 = vld [vmem:[%s2541 + $0x44] sm:$0x1]
      %v2754 = vld [vmem:[%s2541 + $0x48] sm:$0xf]
      %v2755 = vld [vmem:[%s2541 + $0x4c] sm:$0xf]
      %v2756 = vld [vmem:[%s2541 + $0x50] sm:$0x1]
      %v2757 = vld [vmem:[%s2541 + $0x54] sm:$0xf]
      %v2758 = vld [vmem:[%s2541 + $0x58] sm:$0xf]
      %v2759 = vld [vmem:[%s2541 + $0x5c] sm:$0x1]
      %v2761 = vshrl.u32 %v2736, 16
      %v2763 = vrot.slane %v2761, 4
      %v2764 = vshll.u32 %v2736, 16
      %v2766 = vrot.slane %v2764, 5
      %v2767 = vor.u32 %v2763, %v2766
      %v2768 = vrot.slane %v2767, 4
      %v2770 = vshll.u32 %v2737, 16
      %v2772 = vrot.slane %v2770, 5
      %v2773 = vsel %vm990, %v2768, %v2772
      %v2774 = vshrl.u32 %v2737, 16
      %v2776 = vrot.slane %v2774, 4
      %v2777 = vor.u32 %v2776, %v2772
      %v2778 = vrot.slane %v2777, 4
      %v2780 = vshll.u32 %v2738, 16
      %v2782 = vrot.slane %v2780, 5
      %v2783 = vsel %vm990, %v2778, %v2782
      %v2785 = vshrl.u32 %v2739, 16
      %v2787 = vrot.slane %v2785, 4
      %v2788 = vshll.u32 %v2739, 16
      %v2790 = vrot.slane %v2788, 5
      %v2791 = vor.u32 %v2787, %v2790
      %v2792 = vrot.slane %v2791, 4
      %v2794 = vshll.u32 %v2740, 16
      %v2796 = vrot.slane %v2794, 5
      %v2797 = vsel %vm990, %v2792, %v2796
      %v2798 = vshrl.u32 %v2740, 16
      %v2800 = vrot.slane %v2798, 4
      %v2801 = vor.u32 %v2800, %v2796
      %v2802 = vrot.slane %v2801, 4
      %v2804 = vshll.u32 %v2741, 16
      %v2806 = vrot.slane %v2804, 5
      %v2807 = vsel %vm990, %v2802, %v2806
      %v2809 = vshrl.u32 %v2742, 16
      %v2811 = vrot.slane %v2809, 4
      %v2812 = vshll.u32 %v2742, 16
      %v2814 = vrot.slane %v2812, 5
      %v2815 = vor.u32 %v2811, %v2814
      %v2816 = vrot.slane %v2815, 4
      %v2818 = vshll.u32 %v2743, 16
      %v2820 = vrot.slane %v2818, 5
      %v2821 = vsel %vm990, %v2816, %v2820
      %v2822 = vshrl.u32 %v2743, 16
      %v2824 = vrot.slane %v2822, 4
      %v2825 = vor.u32 %v2824, %v2820
      %v2826 = vrot.slane %v2825, 4
      %v2828 = vshll.u32 %v2744, 16
      %v2830 = vrot.slane %v2828, 5
      %v2831 = vsel %vm990, %v2826, %v2830
      %v2833 = vshrl.u32 %v2745, 16
      %v2835 = vrot.slane %v2833, 4
      %v2836 = vshll.u32 %v2745, 16
      %v2838 = vrot.slane %v2836, 5
      %v2839 = vor.u32 %v2835, %v2838
      %v2840 = vrot.slane %v2839, 4
      %v2842 = vshll.u32 %v2746, 16
      %v2844 = vrot.slane %v2842, 5
      %v2845 = vsel %vm990, %v2840, %v2844
      %v2846 = vshrl.u32 %v2746, 16
      %v2848 = vrot.slane %v2846, 4
      %v2849 = vor.u32 %v2848, %v2844
      %v2850 = vrot.slane %v2849, 4
      %v2852 = vshll.u32 %v2747, 16
      %v2854 = vrot.slane %v2852, 5
      %v2855 = vsel %vm990, %v2850, %v2854
      %v2857 = vshrl.u32 %v2748, 16
      %v2859 = vrot.slane %v2857, 4
      %v2860 = vshll.u32 %v2748, 16
      %v2862 = vrot.slane %v2860, 5
      %v2863 = vor.u32 %v2859, %v2862
      %v2864 = vrot.slane %v2863, 4
      %v2866 = vshll.u32 %v2749, 16
      %v2868 = vrot.slane %v2866, 5
      %v2869 = vsel %vm990, %v2864, %v2868
      %v2870 = vshrl.u32 %v2749, 16
      %v2872 = vrot.slane %v2870, 4
      %v2873 = vor.u32 %v2872, %v2868
      %v2874 = vrot.slane %v2873, 4
      %v2876 = vshll.u32 %v2750, 16
      %v2878 = vrot.slane %v2876, 5
      %v2879 = vsel %vm990, %v2874, %v2878
      %v2881 = vshrl.u32 %v2751, 16
      %v2883 = vrot.slane %v2881, 4
      %v2884 = vshll.u32 %v2751, 16
      %v2886 = vrot.slane %v2884, 5
      %v2887 = vor.u32 %v2883, %v2886
      %v2888 = vrot.slane %v2887, 4
      %v2890 = vshll.u32 %v2752, 16
      %v2892 = vrot.slane %v2890, 5
      %v2893 = vsel %vm990, %v2888, %v2892
      %v2894 = vshrl.u32 %v2752, 16
      %v2896 = vrot.slane %v2894, 4
      %v2897 = vor.u32 %v2896, %v2892
      %v2898 = vrot.slane %v2897, 4
      %v2900 = vshll.u32 %v2753, 16
      %v2902 = vrot.slane %v2900, 5
      %v2903 = vsel %vm990, %v2898, %v2902
      %v2905 = vshrl.u32 %v2754, 16
      %v2907 = vrot.slane %v2905, 4
      %v2908 = vshll.u32 %v2754, 16
      %v2910 = vrot.slane %v2908, 5
      %v2911 = vor.u32 %v2907, %v2910
      %v2912 = vrot.slane %v2911, 4
      %v2914 = vshll.u32 %v2755, 16
      %v2916 = vrot.slane %v2914, 5
      %v2917 = vsel %vm990, %v2912, %v2916
      %v2918 = vshrl.u32 %v2755, 16
      %v2920 = vrot.slane %v2918, 4
      %v2921 = vor.u32 %v2920, %v2916
      %v2922 = vrot.slane %v2921, 4
      %v2924 = vshll.u32 %v2756, 16
      %v2926 = vrot.slane %v2924, 5
      %v2927 = vsel %vm990, %v2922, %v2926
      %v2929 = vshrl.u32 %v2757, 16
      %v2931 = vrot.slane %v2929, 4
      %v2932 = vshll.u32 %v2757, 16
      %v2934 = vrot.slane %v2932, 5
      %v2935 = vor.u32 %v2931, %v2934
      %v2936 = vrot.slane %v2935, 4
      %v2938 = vshll.u32 %v2758, 16
      %v2940 = vrot.slane %v2938, 5
      %v2941 = vsel %vm990, %v2936, %v2940
      %v2942 = vshrl.u32 %v2758, 16
      %v2944 = vrot.slane %v2942, 4
      %v2945 = vor.u32 %v2944, %v2940
      %v2946 = vrot.slane %v2945, 4
      %v2948 = vshll.u32 %v2759, 16
      %v2950 = vrot.slane %v2948, 5
      %v2951 = vsel %vm990, %v2946, %v2950
      %s2952 = scalar_lea.vmem %s3, 448
      %v2953 = vld [vmem:[%s2952] sm:$0xf]
      %v2954 = vld [vmem:[%s2952 + $0x4] sm:$0xf]
      %v2955 = vld [vmem:[%s2952 + $0x8] sm:$0xf]
      %v2956 = vld [vmem:[%s2952 + $0xc] sm:$0xf]
      %v2957 = vld [vmem:[%s2952 + $0x10] sm:$0xf]
      %v2958 = vld [vmem:[%s2952 + $0x14] sm:$0xf]
      %v2959 = vld [vmem:[%s2952 + $0x18] sm:$0xf]
      %v2960 = vld [vmem:[%s2952 + $0x1c] sm:$0xf]
      %v2961 = vld [vmem:[%s2952 + $0x20] sm:$0xf]
      %v2962 = vld [vmem:[%s2952 + $0x24] sm:$0xf]
      %v2963 = vld [vmem:[%s2952 + $0x28] sm:$0xf]
      %v2964 = vld [vmem:[%s2952 + $0x2c] sm:$0xf]
      %v2965 = vld [vmem:[%s2952 + $0x30] sm:$0xf]
      %v2966 = vld [vmem:[%s2952 + $0x34] sm:$0xf]
      %v2967 = vld [vmem:[%s2952 + $0x38] sm:$0xf]
      %v2968 = vld [vmem:[%s2952 + $0x3c] sm:$0xf]
      %v2969 = vunpack.c.l.b16 %v2773
      %v2970 = vunpack.c.l.b16 %v2783
      %v2971 = vunpack.c.l.b16 %v2797
      %v2972 = vunpack.c.l.b16 %v2807
      %v2973 = vunpack.c.l.b16 %v2821
      %v2974 = vunpack.c.l.b16 %v2831
      %v2975 = vunpack.c.l.b16 %v2845
      %v2976 = vunpack.c.l.b16 %v2855
      %v2977 = vunpack.c.l.b16 %v2869
      %v2978 = vunpack.c.l.b16 %v2879
      %v2979 = vunpack.c.l.b16 %v2893
      %v2980 = vunpack.c.l.b16 %v2903
      %v2981 = vunpack.c.l.b16 %v2917
      %v2982 = vunpack.c.l.b16 %v2927
      %v2983 = vunpack.c.l.b16 %v2941
      %v2984 = vunpack.c.l.b16 %v2951
      %v2985 = vpack.c.b16 %v2970, %v2969
      %v2986 = vpack.c.b16 %v2972, %v2971
      %v2987 = vpack.c.b16 %v2974, %v2973
      %v2988 = vpack.c.b16 %v2976, %v2975
      %v2989 = vpack.c.b16 %v2978, %v2977
      %v2990 = vpack.c.b16 %v2980, %v2979
      %v2991 = vpack.c.b16 %v2982, %v2981
      %v2992 = vpack.c.b16 %v2984, %v2983
      %v3017 = vunpack.c.l.b16 %v2953
      %v3018 = vunpack.c.l.b16 %v2954
      %v3019 = vunpack.c.l.b16 %v2955
      %v3020 = vunpack.c.l.b16 %v2956
      %v3021 = vunpack.c.l.b16 %v2957
      %v3022 = vunpack.c.l.b16 %v2958
      %v3023 = vunpack.c.l.b16 %v2959
      %v3024 = vunpack.c.l.b16 %v2960
      %v3025 = vunpack.c.l.b16 %v2961
      %v3026 = vunpack.c.l.b16 %v2962
      %v3027 = vunpack.c.l.b16 %v2963
      %v3028 = vunpack.c.l.b16 %v2964
      %v3029 = vunpack.c.l.b16 %v2965
      %v3030 = vunpack.c.l.b16 %v2966
      %v3031 = vunpack.c.l.b16 %v2967
      %v3032 = vunpack.c.l.b16 %v2968
      %v3033 = vpack.c.b16 %v3018, %v3017
      %v3034 = vpack.c.b16 %v3020, %v3019
      %v3035 = vpack.c.b16 %v3022, %v3021
      %v3036 = vpack.c.b16 %v3024, %v3023
      %v3037 = vpack.c.b16 %v3026, %v3025
      %v3038 = vpack.c.b16 %v3028, %v3027
      %v3039 = vpack.c.b16 %v3030, %v3029
      %v3040 = vpack.c.b16 %v3032, %v3031
      %3049 = vmatpush.bf16.msra.mxu0 %v3040
      %3050 = vmatpush.bf16.msra.mxu0 %v3039
      %3051 = vmatpush.bf16.msra.mxu0 %v3038
      %3052 = vmatpush.bf16.msra.mxu0 %v3037
      %3053 = vmatpush.bf16.msra.mxu0 %v3036
      %3054 = vmatpush.bf16.msra.mxu0 %v3035
      %3055 = vmatpush.bf16.msra.mxu0 %v3034
      %3056 = vmatpush.bf16.msra.mxu0 %v3033
      %3057 = vmatmul.bf16.gmra.mxu0 %v2985
      %v3058 = vpop.f32.mrf.mxu0
      %v3059 = vadd.f32 0.0, %v3058
      %v3060 = vpop.f32.mrf.mxu0
      %v3061 = vadd.f32 0.0, %v3060
      %3062 = vmatmul.bf16.gmra.mxu0 %v2986
      %v3063 = vpop.f32.mrf.mxu0
      %v3064 = vadd.f32 0.0, %v3063
      %v3065 = vpop.f32.mrf.mxu0
      %v3066 = vadd.f32 0.0, %v3065
      %3067 = vmatmul.bf16.gmra.mxu0 %v2987
      %v3068 = vpop.f32.mrf.mxu0
      %v3069 = vadd.f32 0.0, %v3068
      %v3070 = vpop.f32.mrf.mxu0
      %v3071 = vadd.f32 0.0, %v3070
      %3072 = vmatmul.bf16.gmra.mxu0 %v2988
      %v3073 = vpop.f32.mrf.mxu0
      %v3074 = vadd.f32 0.0, %v3073
      %v3075 = vpop.f32.mrf.mxu0
      %v3076 = vadd.f32 0.0, %v3075
      %3077 = vmatmul.bf16.gmra.mxu0 %v2989
      %v3078 = vpop.f32.mrf.mxu0
      %v3079 = vadd.f32 0.0, %v3078
      %v3080 = vpop.f32.mrf.mxu0
      %v3081 = vadd.f32 0.0, %v3080
      %3082 = vmatmul.bf16.gmra.mxu0 %v2990
      %v3083 = vpop.f32.mrf.mxu0
      %v3084 = vadd.f32 0.0, %v3083
      %v3085 = vpop.f32.mrf.mxu0
      %v3086 = vadd.f32 0.0, %v3085
      %3087 = vmatmul.bf16.gmra.mxu0 %v2991
      %v3088 = vpop.f32.mrf.mxu0
      %v3089 = vadd.f32 0.0, %v3088
      %v3090 = vpop.f32.mrf.mxu0
      %v3091 = vadd.f32 0.0, %v3090
      %3092 = vmatmul.bf16.gmra.mxu0 %v2992
      %v3093 = vpop.f32.mrf.mxu0
      %v3094 = vadd.f32 0.0, %v3093
      %v3095 = vpop.f32.mrf.mxu0
      %v3096 = vadd.f32 0.0, %v3095
      %3097 = vdwg.mxu0
      %v3098 = vadd.f32 %v2720, %v3059
      %v3099 = vadd.f32 %v2721, %v3061
      %v3100 = vadd.f32 %v2722, %v3064
      %v3101 = vadd.f32 %v2723, %v3066
      %v3102 = vadd.f32 %v2724, %v3069
      %v3103 = vadd.f32 %v2725, %v3071
      %v3104 = vadd.f32 %v2726, %v3074
      %v3105 = vadd.f32 %v2727, %v3076
      %v3106 = vadd.f32 %v2728, %v3079
      %v3107 = vadd.f32 %v2729, %v3081
      %v3108 = vadd.f32 %v2730, %v3084
      %v3109 = vadd.f32 %v2731, %v3086
      %v3110 = vadd.f32 %v2732, %v3089
      %v3111 = vadd.f32 %v2733, %v3091
      %v3112 = vadd.f32 %v2734, %v3094
      %v3113 = vadd.f32 %v2735, %v3096
      %v3114 = vld [vmem:[%s2541] sm:$0xe]
      %v3115 = vld [vmem:[%s2541 + $0xc] sm:$0xe]
      %v3116 = vld [vmem:[%s2541 + $0x18] sm:$0xe]
      %v3117 = vld [vmem:[%s2541 + $0x24] sm:$0xe]
      %v3118 = vld [vmem:[%s2541 + $0x30] sm:$0xe]
      %v3119 = vld [vmem:[%s2541 + $0x3c] sm:$0xe]
      %v3120 = vld [vmem:[%s2541 + $0x48] sm:$0xe]
      %v3121 = vld [vmem:[%s2541 + $0x54] sm:$0xe]
      %v3146 = vrot.slane %v3114, 5
      %v3147 = vrot.slane %v3146, 4
      %v3148 = vrot.slane %v2737, 5
      %v3149 = vsel %vm1500, %v3147, %v3148
      %v3150 = vrot.slane %v3148, 4
      %v3151 = vrot.slane %v2738, 5
      %v3152 = vsel %vm1500, %v3150, %v3151
      %v3153 = vrot.slane %v3115, 5
      %v3154 = vrot.slane %v3153, 4
      %v3155 = vrot.slane %v2740, 5
      %v3156 = vsel %vm1500, %v3154, %v3155
      %v3157 = vrot.slane %v3155, 4
      %v3158 = vrot.slane %v2741, 5
      %v3159 = vsel %vm1500, %v3157, %v3158
      %v3160 = vrot.slane %v3116, 5
      %v3161 = vrot.slane %v3160, 4
      %v3162 = vrot.slane %v2743, 5
      %v3163 = vsel %vm1500, %v3161, %v3162
      %v3164 = vrot.slane %v3162, 4
      %v3165 = vrot.slane %v2744, 5
      %v3166 = vsel %vm1500, %v3164, %v3165
      %v3167 = vrot.slane %v3117, 5
      %v3168 = vrot.slane %v3167, 4
      %v3169 = vrot.slane %v2746, 5
      %v3170 = vsel %vm1500, %v3168, %v3169
      %v3171 = vrot.slane %v3169, 4
      %v3172 = vrot.slane %v2747, 5
      %v3173 = vsel %vm1500, %v3171, %v3172
      %v3174 = vrot.slane %v3118, 5
      %v3175 = vrot.slane %v3174, 4
      %v3176 = vrot.slane %v2749, 5
      %v3177 = vsel %vm1500, %v3175, %v3176
      %v3178 = vrot.slane %v3176, 4
      %v3179 = vrot.slane %v2750, 5
      %v3180 = vsel %vm1500, %v3178, %v3179
      %v3181 = vrot.slane %v3119, 5
      %v3182 = vrot.slane %v3181, 4
      %v3183 = vrot.slane %v2752, 5
      %v3184 = vsel %vm1500, %v3182, %v3183
      %v3185 = vrot.slane %v3183, 4
      %v3186 = vrot.slane %v2753, 5
      %v3187 = vsel %vm1500, %v3185, %v3186
      %v3188 = vrot.slane %v3120, 5
      %v3189 = vrot.slane %v3188, 4
      %v3190 = vrot.slane %v2755, 5
      %v3191 = vsel %vm1500, %v3189, %v3190
      %v3192 = vrot.slane %v3190, 4
      %v3193 = vrot.slane %v2756, 5
      %v3194 = vsel %vm1500, %v3192, %v3193
      %v3195 = vrot.slane %v3121, 5
      %v3196 = vrot.slane %v3195, 4
      %v3197 = vrot.slane %v2758, 5
      %v3198 = vsel %vm1500, %v3196, %v3197
      %v3199 = vrot.slane %v3197, 4
      %v3200 = vrot.slane %v2759, 5
      %v3201 = vsel %vm1500, %v3199, %v3200
      %s3202 = scalar_lea.vmem %s3, 512
      %v3203 = vld [vmem:[%s3202] sm:$0xf]
      %v3204 = vld [vmem:[%s3202 + $0x4] sm:$0xf]
      %v3205 = vld [vmem:[%s3202 + $0x8] sm:$0xf]
      %v3206 = vld [vmem:[%s3202 + $0xc] sm:$0xf]
      %v3207 = vld [vmem:[%s3202 + $0x10] sm:$0xf]
      %v3208 = vld [vmem:[%s3202 + $0x14] sm:$0xf]
      %v3209 = vld [vmem:[%s3202 + $0x18] sm:$0xf]
      %v3210 = vld [vmem:[%s3202 + $0x1c] sm:$0xf]
      %v3211 = vld [vmem:[%s3202 + $0x20] sm:$0xf]
      %v3212 = vld [vmem:[%s3202 + $0x24] sm:$0xf]
      %v3213 = vld [vmem:[%s3202 + $0x28] sm:$0xf]
      %v3214 = vld [vmem:[%s3202 + $0x2c] sm:$0xf]
      %v3215 = vld [vmem:[%s3202 + $0x30] sm:$0xf]
      %v3216 = vld [vmem:[%s3202 + $0x34] sm:$0xf]
      %v3217 = vld [vmem:[%s3202 + $0x38] sm:$0xf]
      %v3218 = vld [vmem:[%s3202 + $0x3c] sm:$0xf]
      %v3219 = vunpack.c.l.b16 %v3149
      %v3220 = vunpack.c.l.b16 %v3152
      %v3221 = vunpack.c.l.b16 %v3156
      %v3222 = vunpack.c.l.b16 %v3159
      %v3223 = vunpack.c.l.b16 %v3163
      %v3224 = vunpack.c.l.b16 %v3166
      %v3225 = vunpack.c.l.b16 %v3170
      %v3226 = vunpack.c.l.b16 %v3173
      %v3227 = vunpack.c.l.b16 %v3177
      %v3228 = vunpack.c.l.b16 %v3180
      %v3229 = vunpack.c.l.b16 %v3184
      %v3230 = vunpack.c.l.b16 %v3187
      %v3231 = vunpack.c.l.b16 %v3191
      %v3232 = vunpack.c.l.b16 %v3194
      %v3233 = vunpack.c.l.b16 %v3198
      %v3234 = vunpack.c.l.b16 %v3201
      %v3235 = vpack.c.b16 %v3220, %v3219
      %v3236 = vpack.c.b16 %v3222, %v3221
      %v3237 = vpack.c.b16 %v3224, %v3223
      %v3238 = vpack.c.b16 %v3226, %v3225
      %v3239 = vpack.c.b16 %v3228, %v3227
      %v3240 = vpack.c.b16 %v3230, %v3229
      %v3241 = vpack.c.b16 %v3232, %v3231
      %v3242 = vpack.c.b16 %v3234, %v3233
      %v3267 = vunpack.c.l.b16 %v3203
      %v3268 = vunpack.c.l.b16 %v3204
      %v3269 = vunpack.c.l.b16 %v3205
      %v3270 = vunpack.c.l.b16 %v3206
      %v3271 = vunpack.c.l.b16 %v3207
      %v3272 = vunpack.c.l.b16 %v3208
      %v3273 = vunpack.c.l.b16 %v3209
      %v3274 = vunpack.c.l.b16 %v3210
      %v3275 = vunpack.c.l.b16 %v3211
      %v3276 = vunpack.c.l.b16 %v3212
      %v3277 = vunpack.c.l.b16 %v3213
      %v3278 = vunpack.c.l.b16 %v3214
      %v3279 = vunpack.c.l.b16 %v3215
      %v3280 = vunpack.c.l.b16 %v3216
      %v3281 = vunpack.c.l.b16 %v3217
      %v3282 = vunpack.c.l.b16 %v3218
      %v3283 = vpack.c.b16 %v3268, %v3267
      %v3284 = vpack.c.b16 %v3270, %v3269
      %v3285 = vpack.c.b16 %v3272, %v3271
      %v3286 = vpack.c.b16 %v3274, %v3273
      %v3287 = vpack.c.b16 %v3276, %v3275
      %v3288 = vpack.c.b16 %v3278, %v3277
      %v3289 = vpack.c.b16 %v3280, %v3279
      %v3290 = vpack.c.b16 %v3282, %v3281
      %3299 = vmatpush.bf16.msra.mxu0 %v3290
      %3300 = vmatpush.bf16.msra.mxu0 %v3289
      %3301 = vmatpush.bf16.msra.mxu0 %v3288
      %3302 = vmatpush.bf16.msra.mxu0 %v3287
      %3303 = vmatpush.bf16.msra.mxu0 %v3286
      %3304 = vmatpush.bf16.msra.mxu0 %v3285
      %3305 = vmatpush.bf16.msra.mxu0 %v3284
      %3306 = vmatpush.bf16.msra.mxu0 %v3283
      %3307 = vmatmul.bf16.gmra.mxu0 %v3235
      %v3308 = vpop.f32.mrf.mxu0
      %v3309 = vadd.f32 0.0, %v3308
      %v3310 = vpop.f32.mrf.mxu0
      %v3311 = vadd.f32 0.0, %v3310
      %3312 = vmatmul.bf16.gmra.mxu0 %v3236
      %v3313 = vpop.f32.mrf.mxu0
      %v3314 = vadd.f32 0.0, %v3313
      %v3315 = vpop.f32.mrf.mxu0
      %v3316 = vadd.f32 0.0, %v3315
      %3317 = vmatmul.bf16.gmra.mxu0 %v3237
      %v3318 = vpop.f32.mrf.mxu0
      %v3319 = vadd.f32 0.0, %v3318
      %v3320 = vpop.f32.mrf.mxu0
      %v3321 = vadd.f32 0.0, %v3320
      %3322 = vmatmul.bf16.gmra.mxu0 %v3238
      %v3323 = vpop.f32.mrf.mxu0
      %v3324 = vadd.f32 0.0, %v3323
      %v3325 = vpop.f32.mrf.mxu0
      %v3326 = vadd.f32 0.0, %v3325
      %3327 = vmatmul.bf16.gmra.mxu0 %v3239
      %v3328 = vpop.f32.mrf.mxu0
      %v3329 = vadd.f32 0.0, %v3328
      %v3330 = vpop.f32.mrf.mxu0
      %v3331 = vadd.f32 0.0, %v3330
      %3332 = vmatmul.bf16.gmra.mxu0 %v3240
      %v3333 = vpop.f32.mrf.mxu0
      %v3334 = vadd.f32 0.0, %v3333
      %v3335 = vpop.f32.mrf.mxu0
      %v3336 = vadd.f32 0.0, %v3335
      %3337 = vmatmul.bf16.gmra.mxu0 %v3241
      %v3338 = vpop.f32.mrf.mxu0
      %v3339 = vadd.f32 0.0, %v3338
      %v3340 = vpop.f32.mrf.mxu0
      %v3341 = vadd.f32 0.0, %v3340
      %3342 = vmatmul.bf16.gmra.mxu0 %v3242
      %v3343 = vpop.f32.mrf.mxu0
      %v3344 = vadd.f32 0.0, %v3343
      %v3345 = vpop.f32.mrf.mxu0
      %v3346 = vadd.f32 0.0, %v3345
      %3347 = vdwg.mxu0
      %v3348 = vadd.f32 %v3098, %v3309
      %v3349 = vadd.f32 %v3099, %v3311
      %v3350 = vadd.f32 %v3100, %v3314
      %v3351 = vadd.f32 %v3101, %v3316
      %v3352 = vadd.f32 %v3102, %v3319
      %v3353 = vadd.f32 %v3103, %v3321
      %v3354 = vadd.f32 %v3104, %v3324
      %v3355 = vadd.f32 %v3105, %v3326
      %v3356 = vadd.f32 %v3106, %v3329
      %v3357 = vadd.f32 %v3107, %v3331
      %v3358 = vadd.f32 %v3108, %v3334
      %v3359 = vadd.f32 %v3109, %v3336
      %v3360 = vadd.f32 %v3110, %v3339
      %v3361 = vadd.f32 %v3111, %v3341
      %v3362 = vadd.f32 %v3112, %v3344
      %v3363 = vadd.f32 %v3113, %v3346
      %v3364 = vpack.c.bf16 %v3348, %v3348
      %v3365 = vpack.c.bf16 %v3349, %v3349
      %v3366 = vpack.c.bf16 %v3350, %v3350
      %v3367 = vpack.c.bf16 %v3351, %v3351
      %v3368 = vpack.c.bf16 %v3352, %v3352
      %v3369 = vpack.c.bf16 %v3353, %v3353
      %v3370 = vpack.c.bf16 %v3354, %v3354
      %v3371 = vpack.c.bf16 %v3355, %v3355
      %v3372 = vpack.c.bf16 %v3356, %v3356
      %v3373 = vpack.c.bf16 %v3357, %v3357
      %v3374 = vpack.c.bf16 %v3358, %v3358
      %v3375 = vpack.c.bf16 %v3359, %v3359
      %v3376 = vpack.c.bf16 %v3360, %v3360
      %v3377 = vpack.c.bf16 %v3361, %v3361
      %v3378 = vpack.c.bf16 %v3362, %v3362
      %v3379 = vpack.c.bf16 %v3363, %v3363
      %3380 = vst [vmem:[%s454] sm:$0xf] %v3364
      %3381 = vst [vmem:[%s454 + $0x4] sm:$0xf] %v3365
      %3382 = vst [vmem:[%s454 + $0x8] sm:$0xf] %v3366
      %3383 = vst [vmem:[%s454 + $0xc] sm:$0xf] %v3367
      %3384 = vst [vmem:[%s454 + $0x10] sm:$0xf] %v3368
      %3385 = vst [vmem:[%s454 + $0x14] sm:$0xf] %v3369
      %3386 = vst [vmem:[%s454 + $0x18] sm:$0xf] %v3370
      %3387 = vst [vmem:[%s454 + $0x1c] sm:$0xf] %v3371
      %3388 = vst [vmem:[%s454 + $0x20] sm:$0xf] %v3372
      %3389 = vst [vmem:[%s454 + $0x24] sm:$0xf] %v3373
      %3390 = vst [vmem:[%s454 + $0x28] sm:$0xf] %v3374
      %3391 = vst [vmem:[%s454 + $0x2c] sm:$0xf] %v3375
      %3392 = vst [vmem:[%s454 + $0x30] sm:$0xf] %v3376
      %3393 = vst [vmem:[%s454 + $0x34] sm:$0xf] %v3377
      %3394 = vst [vmem:[%s454 + $0x38] sm:$0xf] %v3378
      %3395 = vst [vmem:[%s454 + $0x3c] sm:$0xf] %v3379
      %v3396 = vadd.f32 %v3348, %v3349
      %v3397 = vadd.f32 %v3396, %v3350
      %v3398 = vadd.f32 %v3397, %v3351
      %v3399 = vadd.f32 %v3398, %v3352
      %v3400 = vadd.f32 %v3399, %v3353
      %v3401 = vadd.f32 %v3400, %v3354
      %v3402 = vadd.f32 %v3401, %v3355
      %v3403 = vadd.f32 %v3402, %v3356
      %v3404 = vadd.f32 %v3403, %v3357
      %v3405 = vadd.f32 %v3404, %v3358
      %v3406 = vadd.f32 %v3405, %v3359
      %v3407 = vadd.f32 %v3406, %v3360
      %v3408 = vadd.f32 %v3407, %v3361
      %v3409 = vadd.f32 %v3408, %v3362
      %v3410 = vadd.f32 %v3409, %v3363
      %v3411 = vrot.slane %v3410, 4
      %v3412 = vadd.f32 %v3410, %v3411
      %v3413 = vrot.slane %v3412, 2
      %v3414 = vadd.f32 %v3412, %v3413
      %v3415 = vrot.slane %v3414, 1
      %v3416 = vadd.f32 %v3414, %v3415
      %v3417 = vmul.f32 %v3416, 0.0078125
      %v3418 = vsub.f32 %v3348, %v3417
      %v3419 = vsub.f32 %v3349, %v3417
      %v3420 = vsub.f32 %v3350, %v3417
      %v3421 = vsub.f32 %v3351, %v3417
      %v3422 = vsub.f32 %v3352, %v3417
      %v3423 = vsub.f32 %v3353, %v3417
      %v3424 = vsub.f32 %v3354, %v3417
      %v3425 = vsub.f32 %v3355, %v3417
      %v3426 = vsub.f32 %v3356, %v3417
      %v3427 = vsub.f32 %v3357, %v3417
      %v3428 = vsub.f32 %v3358, %v3417
      %v3429 = vsub.f32 %v3359, %v3417
      %v3430 = vsub.f32 %v3360, %v3417
      %v3431 = vsub.f32 %v3361, %v3417
      %v3432 = vsub.f32 %v3362, %v3417
      %v3433 = vsub.f32 %v3363, %v3417
      %v3434 = vmul.f32 %v3418, %v3418
      %v3435 = vmul.f32 %v3419, %v3419
      %v3436 = vmul.f32 %v3420, %v3420
      %v3437 = vmul.f32 %v3421, %v3421
      %v3438 = vmul.f32 %v3422, %v3422
      %v3439 = vmul.f32 %v3423, %v3423
      %v3440 = vmul.f32 %v3424, %v3424
      %v3441 = vmul.f32 %v3425, %v3425
      %v3442 = vmul.f32 %v3426, %v3426
      %v3443 = vmul.f32 %v3427, %v3427
      %v3444 = vmul.f32 %v3428, %v3428
      %v3445 = vmul.f32 %v3429, %v3429
      %v3446 = vmul.f32 %v3430, %v3430
      %v3447 = vmul.f32 %v3431, %v3431
      %v3448 = vmul.f32 %v3432, %v3432
      %v3449 = vmul.f32 %v3433, %v3433
      %v3450 = vadd.f32 %v3434, %v3435
      %v3451 = vadd.f32 %v3450, %v3436
      %v3452 = vadd.f32 %v3451, %v3437
      %v3453 = vadd.f32 %v3452, %v3438
      %v3454 = vadd.f32 %v3453, %v3439
      %v3455 = vadd.f32 %v3454, %v3440
      %v3456 = vadd.f32 %v3455, %v3441
      %v3457 = vadd.f32 %v3456, %v3442
      %v3458 = vadd.f32 %v3457, %v3443
      %v3459 = vadd.f32 %v3458, %v3444
      %v3460 = vadd.f32 %v3459, %v3445
      %v3461 = vadd.f32 %v3460, %v3446
      %v3462 = vadd.f32 %v3461, %v3447
      %v3463 = vadd.f32 %v3462, %v3448
      %v3464 = vadd.f32 %v3463, %v3449
      %v3465 = vrot.slane %v3464, 4
      %v3466 = vadd.f32 %v3464, %v3465
      %v3467 = vrot.slane %v3466, 2
      %v3468 = vadd.f32 %v3466, %v3467
      %v3469 = vrot.slane %v3468, 1
      %v3470 = vadd.f32 %v3468, %v3469
      %vm3471 = vcmask 1040384
      %v3472 = vsel %vm3471, %v3416, %v3470
      %3473 = vst [vmem:[%s463] sm:$0x3] %v3472
      %s3474 = smul.u32 %s23, 2
      %s3475 = sadd.s32 %s3474, %s24
      %s3476 = smul.u32 16, %s3475
      %p3477 = scmp.lt.s32.totalorder %s3476, 63
      %s3478 = scalar_select %p3477, %s3476, 63
      %s3479 = smul.addr %s3478, 4
      %s3480 = scalar_lea.vmem %s6, %s3479
      %s3481 = smul.u32 %s23, 2
      %s3482 = sadd.s32 %s3481, %s24
      %p3483 = scmp.lt.s32.totalorder %s3482, 3
      %s3484 = scalar_select %p3483, %s3482, 3
      %s3485 = smul.addr %s3484, 2
      %s3486 = scalar_lea.vmem %s7, %s3485
      // Predicated region
      $region45: #{up_forward.4} parent=43 // pred_check
        %p3487 = pneg %p216
      $region46: #{up_forward.4} parent=43 // pred_check_branch
        %3489 = sbr.rel (%p3487) target = $region48
      $region47: #{up_forward.4} parent=43 // pred_region
        %s3490 = smul.u32 %s23, 2
        %s3491 = sadd.s32 %s3490, %s24
        %s3492 = smul.u32 16, %s3491
      $region48: #{up_forward.4} parent=43 // pred_fallthru
        _
      // Predicated region
      $region49: #{up_forward.4} parent=43 // pred_check
        %p3493 = pneg %p246
      $region50: #{up_forward.4} parent=43 // pred_check_branch
        %3495 = sbr.rel (%p3493) target = $region52
      $region51: #{up_forward.4} parent=43 // pred_region
        %s3496 = smul.u32 %s23, 2
        %s3497 = sadd.s32 %s3496, %s24
      $region52: #{up_forward.4} parent=43 // pred_fallthru
        _
    $region44: #{up_forward.4} parent=5 // pred_fallthru
      _
    %p3498 = scmp.le.s32.totalorder 2, %s14
    // Predicated region
    $region53: #{up_forward.4} parent=5 // pred_check
      %p3499 = pneg %p3498
    $region54: #{up_forward.4} parent=5 // pred_check_branch
      %3501 = sbr.rel (%p3499) target = $region56
    $region55: #{up_forward.4} parent=5 // pred_region
      %s3502 = ssub.s32 %s14, 2
      // Predicated region
      $region57: #{up_forward.4} parent=55 // pred_check
        %p3503 = pneg %p222
      $region58: #{up_forward.4} parent=55 // pred_check_branch
        %3505 = sbr.rel (%p3503) target = $region60
      $region59: #{up_forward.4} parent=55 // pred_region
        %s3506 = smul.u32 %s25, 2
        %s3507 = sadd.s32 %s3506, %s26
        %s3508 = smul.u32 16, %s3507
        %p3509 = scmp.lt.s32.totalorder %s3508, 63
        %s3510 = scalar_select %p3509, %s3508, 63
        %s3511 = smul.addr %s3510, 4
        %s3512 = scalar_lea.vmem %s6, %s3511
      $region60: #{up_forward.4} parent=55 // pred_fallthru
        _
      // Predicated region
      $region61: #{up_forward.4} parent=55 // pred_check
        %p3513 = pneg %p252
      $region62: #{up_forward.4} parent=55 // pred_check_branch
        %3515 = sbr.rel (%p3513) target = $region64
      $region63: #{up_forward.4} parent=55 // pred_region
        %s3516 = smul.u32 %s25, 2
        %s3517 = sadd.s32 %s3516, %s26
        %p3518 = scmp.lt.s32.totalorder %s3517, 3
        %s3519 = scalar_select %p3518, %s3517, 3
        %s3520 = smul.addr %s3519, 2
        %s3521 = scalar_lea.vmem %s7, %s3520
      $region64: #{up_forward.4} parent=55 // pred_fallthru
        _
    $region56: #{up_forward.4} parent=5 // pred_fallthru
      _
  $region6: #{up_forward.4} parent=0 // loop_footer
    %s18 = sadd.s32 1, %s14
  $region7: #{up_forward.4} parent=0 // loop_footer_branch
    %13 = sbr.rel target = $region3
  $region8: #{up_forward.4} parent=0 // loop_exit
    _

</llo_original>
